<compile_context>
chip_gen: v5e
topology: v5e:2x2
jax: 0.10.0
libtpu: 0.0.40
codegen_flags: <defaults>
</compile_context>

<pallas_src>
import functools
import math

import jax
import jax.numpy as jnp
from jax.experimental import pallas as pl
from jax.experimental.pallas import tpu as pltpu

# ----------------------------- mini wav2vec2 config -----------------------------
CONV_LAYERS = [  # (out_channels, kernel, stride) — mirrors the 7-layer wav2vec2 stack
    (32, 10, 5), (32, 3, 2), (32, 3, 2), (32, 3, 2), (32, 3, 2), (32, 2, 2), (32, 2, 2)
]
CONV_DIM = 32
HIDDEN = 32          # model.config.hidden_size (out_dim of SSLModel)
NUM_HEADS = 4
HEAD_DIM = HIDDEN // NUM_HEADS
FFN_DIM = 64
NUM_LAYERS = 2
POS_KERNEL = 16      # num_conv_pos_embeddings (even -> SamePad removes one frame)
POS_GROUPS = 4
LN_EPS = 1e-5


# ----------------------------- in-kernel math helpers -----------------------------
def _gelu(x):
    # tanh-form GELU (EUP): ~3e-4 max abs error vs torch's exact erf GELU.
    c = 0.7978845608028654  # sqrt(2/pi)
    return 0.5 * x * (1.0 + jnp.tanh(c * (x + 0.044715 * x * x * x)))


def _ln(x, g, b):
    mean = jnp.mean(x, axis=-1, keepdims=True)
    var = jnp.mean(jnp.square(x - mean), axis=-1, keepdims=True)
    return (x - mean) * jax.lax.rsqrt(var + LN_EPS) * g + b


# ----------------------------- the fused kernel -----------------------------
def _ssl_fused_kernel(x_ref, convw_ref, convv_ref, fpw_ref, posw_ref, wqkv_ref,
                      bq_ref, wo_ref, wff1_ref, bff1_ref, wff2_ref, vec_ref,
                      o_ref, buf_a, buf_b, *, conv_lens, n_pos_taps, pos_left_pad):
    f32 = jnp.float32
    n_conv = len(CONV_LAYERS)

    # ---------- conv layer 1 (C_in=1, kernel 10, stride 5) ----------
    # host pre-reshaped the waveform to (rows, 5): output frame t = rows t, t+1 concatenated.
    t1 = conv_lens[0]
    k1 = CONV_LAYERS[0][1]
    xr = x_ref[0]                                                     # (rows, 5)
    x01 = jnp.concatenate([xr[0:t1, :], xr[1:t1 + 1, :]], axis=-1)    # (t1, 10)
    h = jnp.dot(x01, convw_ref[0, 0:k1, :], preferred_element_type=f32)
    h = h + convv_ref[0, 0:1, :]
    h = _gelu(_ln(h, convv_ref[0, 1:2, :], convv_ref[0, 2:3, :]))
    buf_a[0:t1, :] = h

    # ---------- conv layers 2..7 (stride 2): strided-tap reads + one merged matmul ----------
    src, dst = buf_a, buf_b
    conv_out = None
    for li in range(1, n_conv):
        k = CONV_LAYERS[li][1]
        t_out = conv_lens[li]
        taps = [src[pl.ds(j, t_out, stride=2), :] for j in range(k)]  # tap j = rows 2t+j
        xcat = jnp.concatenate(taps, axis=-1)                         # (t_out, k*C)
        w = convw_ref[li, 0:k * CONV_DIM, :]
        y = jnp.dot(xcat, w, preferred_element_type=f32) + convv_ref[li, 0:1, :]
        y = _gelu(_ln(y, convv_ref[li, 1:2, :], convv_ref[li, 2:3, :]))
        if li < n_conv - 1:
            dst[0:t_out, :] = y
            src, dst = dst, src
        else:
            conv_out = y                                              # (S, CONV_DIM)

    seq = conv_lens[-1]

    # ---------- feature projection (LN + Linear) ----------
    cn = _ln(conv_out, vec_ref[0:1, :], vec_ref[1:2, :])
    hcur = jnp.dot(cn, fpw_ref[...], preferred_element_type=f32) + vec_ref[2:3, :]

    # ---------- positional conv embedding (zero taps dropped, merged matmul) ----------
    left = pos_left_pad
    right = n_pos_taps - 1 - left
    parts = []
    if left > 0:
        parts.append(jnp.zeros((left, HIDDEN), f32))
    parts.append(hcur)
    if right > 0:
        parts.append(jnp.zeros((right, HIDDEN), f32))
    xpad = jnp.concatenate(parts, axis=0)                             # (seq + n_taps - 1, H)
    xim = jnp.concatenate([xpad[m:m + seq, :] for m in range(n_pos_taps)], axis=-1)
    pos = jnp.dot(xim, posw_ref[...], preferred_element_type=f32) + vec_ref[3:4, :]
    hcur = hcur + _gelu(pos)

    # ---------- pre-LN encoder layers + fused final encoder LayerNorm ----------
    for l in range(NUM_LAYERS):
        base = 4 + 6 * l
        hn = _ln(hcur, vec_ref[base:base + 1, :], vec_ref[base + 1:base + 2, :])
        attn = jnp.zeros((seq, HIDDEN), f32)
        for hd in range(NUM_HEADS):
            q = jnp.dot(hn, wqkv_ref[(3 * l + 0) * NUM_HEADS + hd],
                        preferred_element_type=f32) + bq_ref[l * NUM_HEADS + hd]
            kk = jnp.dot(hn, wqkv_ref[(3 * l + 1) * NUM_HEADS + hd],
                         preferred_element_type=f32)
            v = jnp.dot(hn, wqkv_ref[(3 * l + 2) * NUM_HEADS + hd],
                        preferred_element_type=f32)
            s = jax.lax.dot_general(q, kk, (((1,), (1,)), ((), ())),
                                    preferred_element_type=f32)       # (S, S)
            m = jnp.max(s, axis=-1, keepdims=True)
            p = jnp.exp(s - m)
            pw = p * pl.reciprocal(jnp.sum(p, axis=-1, keepdims=True), approx=True)
            ctx = jnp.dot(pw, v, preferred_element_type=f32)          # (S, dh)
            attn = attn + jnp.dot(ctx, wo_ref[l * NUM_HEADS + hd],
                                  preferred_element_type=f32)
        h1 = hcur + attn + vec_ref[base + 2:base + 3, :]              # bo' (V-bias folded in)
        hn2 = _ln(h1, vec_ref[base + 3:base + 4, :], vec_ref[base + 4:base + 5, :])
        ff = _gelu(jnp.dot(hn2, wff1_ref[l], preferred_element_type=f32) + bff1_ref[l])
        ff = jnp.dot(ff, wff2_ref[l], preferred_element_type=f32) + vec_ref[base + 5:base + 6, :]
        hcur = h1 + ff

    fin = 4 + 6 * NUM_LAYERS
    out = _ln(hcur, vec_ref[fin:fin + 1, :], vec_ref[fin + 1:fin + 2, :])
    o_ref[0] = out


# ----------------------------- forward pass (one pallas_call) -----------------------------
def ssl_forward(input_data, params):
    # SSLModel.forward: squeeze trailing dim if ndim == 3, then wav2vec2 last_hidden_state.
    if input_data.ndim == 3:
        x = jnp.squeeze(input_data, axis=-1)
    else:
        x = input_data
    x = x.astype(jnp.float32)
    b, t = x.shape

    # static geometry of the conv stack
    conv_lens = []
    cur = t
    for _, k, s in CONV_LAYERS:
        cur = (cur - k) // s + 1
        conv_lens.append(cur)
    t1, seq = conv_lens[0], conv_lens[-1]

    # layer-1 input: pad + reshape waveform into (rows, 5); one output frame = two rows.
    s1 = CONV_LAYERS[0][2]
    rows = max(-(-t // s1), t1 + 1)
    x_r = jnp.pad(x, ((0, 0), (0, rows * s1 - t))).reshape(b, rows, s1)

    # positional conv: statically drop taps that only ever multiply the zero padding.
    pad = POS_KERNEL // 2
    j_min = max(0, pad - (seq - 1))
    j_max = min(POS_KERNEL - 1, pad + (seq - 1))
    n_taps = j_max - j_min + 1
    left = pad - j_min
    pos_w = params["pos_w_stack"][j_min * HIDDEN:(j_max + 1) * HIDDEN, :]

    kernel = functools.partial(_ssl_fused_kernel, conv_lens=tuple(conv_lens),
                               n_pos_taps=n_taps, pos_left_pad=left)

    args = (x_r, params["conv_w"], params["conv_vec"], params["fp_w"], pos_w,
            params["wqkv"], params["bq"], params["wo"],
            params["w_ff1"], params["b_ff1"], params["w_ff2"], params["vec32"])

    def _whole(a):
        return pl.BlockSpec(a.shape, lambda i, _nd=a.ndim: (0,) * _nd)

    in_specs = [pl.BlockSpec((1, rows, s1), lambda i: (i, 0, 0))]
    in_specs += [_whole(a) for a in args[1:]]

    return pl.pallas_call(
        kernel,
        out_shape=jax.ShapeDtypeStruct((b, seq, HIDDEN), jnp.float32),
        grid=(b,),
        in_specs=in_specs,
        out_specs=pl.BlockSpec((1, seq, HIDDEN), lambda i: (i, 0, 0)),
        scratch_shapes=[pltpu.VMEM((conv_lens[0], CONV_DIM), jnp.float32),
                        pltpu.VMEM((conv_lens[1], CONV_DIM), jnp.float32)],
        compiler_params=pltpu.CompilerParams(
            dimension_semantics=("parallel",),
            vmem_limit_bytes=32 * 1024 * 1024),
    )(*args)


# ----------------------------- parameter init (packed for the kernel) -----------------------------
def _nrm(key, shape, scale=0.02):
    return scale * jax.random.normal(key, shape, dtype=jnp.float32)


def init_params(key):
    keys = iter(jax.random.split(key, 128))
    p = {}

    # ---- conv feature encoder: tap-stacked weights + (bias, ln_g, ln_b) vectors ----
    n_conv = len(CONV_LAYERS)
    wrows = max(CONV_LAYERS[0][1], max(k * CONV_DIM for _, k, _ in CONV_LAYERS[1:]))
    conv_w = jnp.zeros((n_conv, wrows, CONV_DIM), jnp.float32)
    conv_vec = jnp.zeros((n_conv, 3, CONV_DIM), jnp.float32)
    cin = 1
    for i, (cout, k, _) in enumerate(CONV_LAYERS):
        w = _nrm(next(keys), (k, cin, cout))                  # per-tap (C_in, C_out) weights
        conv_w = conv_w.at[i, :k * cin, :].set(w.reshape(k * cin, cout))
        conv_vec = conv_vec.at[i, 0].set(_nrm(next(keys), (cout,)))      # conv bias
        conv_vec = conv_vec.at[i, 1].set(jnp.ones((cout,), jnp.float32))  # LN gamma
        # row 2 (LN beta) stays zero
        cin = cout
    p["conv_w"] = conv_w
    p["conv_vec"] = conv_vec

    # ---- feature projection ----
    fp_ln_g = jnp.ones((cin,), jnp.float32)
    fp_ln_b = jnp.zeros((cin,), jnp.float32)
    p["fp_w"] = _nrm(next(keys), (cin, HIDDEN))
    fp_b = _nrm(next(keys), (HIDDEN,))

    # ---- grouped positional conv (weight_norm folded): tap-stacked (16*H, H) ----
    cg = HIDDEN // POS_GROUPS
    wpos = jnp.zeros((POS_KERNEL, HIDDEN, HIDDEN), jnp.float32)
    for g in range(POS_GROUPS):
        wpos = wpos.at[:, g * cg:(g + 1) * cg, g * cg:(g + 1) * cg].set(
            _nrm(next(keys), (POS_KERNEL, cg, cg)))
    p["pos_w_stack"] = wpos.reshape(POS_KERNEL * HIDDEN, HIDDEN)
    pos_b = _nrm(next(keys), (HIDDEN,))

    # ---- encoder layers (stable-layer-norm / pre-LN) ----
    dh = HEAD_DIM
    scale = 1.0 / math.sqrt(dh)

    def _heads_cols(w):   # (C, C) -> (H, C, dh): per-head column blocks, sliced on the host
        return jnp.stack([w[:, hd * dh:(hd + 1) * dh] for hd in range(NUM_HEADS)])

    wqkv, bq_all, wo_all, wff1, bff1, wff2 = [], [], [], [], [], []
    vec_rows = [fp_ln_g, fp_ln_b, fp_b, pos_b]
    for _ in range(NUM_LAYERS):
        wq = _nrm(next(keys), (HIDDEN, HIDDEN)); bq = _nrm(next(keys), (HIDDEN,))
        wk = _nrm(next(keys), (HIDDEN, HIDDEN))
        _bk = _nrm(next(keys), (HIDDEN,))  # K bias: dropped exactly (softmax row-invariant)
        wv = _nrm(next(keys), (HIDDEN, HIDDEN)); bv = _nrm(next(keys), (HIDDEN,))
        wo = _nrm(next(keys), (HIDDEN, HIDDEN)); bo = _nrm(next(keys), (HIDDEN,))
        w1 = _nrm(next(keys), (HIDDEN, FFN_DIM)); b1 = _nrm(next(keys), (FFN_DIM,))
        w2 = _nrm(next(keys), (FFN_DIM, HIDDEN)); b2 = _nrm(next(keys), (HIDDEN,))

        # fold HF's pre-score q scaling into Wq/bq; fold V bias through Wo into output bias
        wqkv.append(jnp.stack([_heads_cols(wq * scale), _heads_cols(wk), _heads_cols(wv)]))
        bq_all.append(jnp.stack([(bq * scale)[hd * dh:(hd + 1) * dh][None, :]
                                 for hd in range(NUM_HEADS)]))
        wo_all.append(jnp.stack([wo[hd * dh:(hd + 1) * dh, :] for hd in range(NUM_HEADS)]))
        bo_eff = bo + bv @ wo
        wff1.append(w1); bff1.append(b1[None, :]); wff2.append(w2)
        vec_rows += [jnp.ones((HIDDEN,), jnp.float32), jnp.zeros((HIDDEN,), jnp.float32),
                     bo_eff,
                     jnp.ones((HIDDEN,), jnp.float32), jnp.zeros((HIDDEN,), jnp.float32),
                     b2]

    p["wqkv"] = jnp.stack(wqkv).reshape(NUM_LAYERS * 3 * NUM_HEADS, HIDDEN, dh)
    p["bq"] = jnp.stack(bq_all).reshape(NUM_LAYERS * NUM_HEADS, 1, dh)
    p["wo"] = jnp.stack(wo_all).reshape(NUM_LAYERS * NUM_HEADS, dh, HIDDEN)
    p["w_ff1"] = jnp.stack(wff1)          # (L, C, F)
    p["b_ff1"] = jnp.stack(bff1)          # (L, 1, F)
    p["w_ff2"] = jnp.stack(wff2)          # (L, F, C)
    vec_rows += [jnp.ones((HIDDEN,), jnp.float32), jnp.zeros((HIDDEN,), jnp.float32)]
    p["vec32"] = jnp.stack(vec_rows)      # (4 + 6*L + 2, C)
    return p


if __name__ == "__main__":
    key = jax.random.PRNGKey(0)
    pkey, xkey = jax.random.split(key)
    params = init_params(pkey)

    # (B, T, 1) raw waveform with a trailing channel dim -> exercises the ndim==3 squeeze.
    # TODO(synk): pretrained facebook/wav2vec2-xls-r-300m weights cannot be loaded here;
    # deterministic synthetic parameters with a scaled-down config are used instead.
    input_data = jax.random.normal(xkey, (2, 2048, 1), dtype=jnp.float32)

    fwd = jax.jit(ssl_forward)
    out = fwd(input_data, params)
    out = jax.block_until_ready(out)

    # T=2048 -> 7-layer conv stack reduces to 6 frames; hidden size 32.
    assert out.shape == (2, 6, HIDDEN), out.shape
    assert out.dtype == jnp.float32
    assert bool(jnp.all(jnp.isfinite(out)))
    print("KERNEL_OK")
</pallas_src>

<mosaic_0001>
module attributes {stable_mosaic.version = 11 : i64} {
  func.func @_ssl_fused_kernel(%arg0: i32, %arg1: memref<1x410x5xf32, #tpu.memory_space<vmem>>, %arg2: memref<7x96x32xf32, #tpu.memory_space<vmem>>, %arg3: memref<7x3x32xf32, #tpu.memory_space<vmem>>, %arg4: memref<32x32xf32, #tpu.memory_space<vmem>>, %arg5: memref<352x32xf32, #tpu.memory_space<vmem>>, %arg6: memref<24x32x8xf32, #tpu.memory_space<vmem>>, %arg7: memref<8x1x8xf32, #tpu.memory_space<vmem>>, %arg8: memref<8x8x32xf32, #tpu.memory_space<vmem>>, %arg9: memref<2x32x64xf32, #tpu.memory_space<vmem>>, %arg10: memref<2x1x64xf32, #tpu.memory_space<vmem>>, %arg11: memref<2x64x32xf32, #tpu.memory_space<vmem>>, %arg12: memref<18x32xf32, #tpu.memory_space<vmem>>, %arg13: memref<1x6x32xf32, #tpu.memory_space<vmem>>, %arg14: memref<408x32xf32, #tpu.memory_space<vmem>>, %arg15: memref<203x32xf32, #tpu.memory_space<vmem>>) attributes {dimension_semantics = [#tpu.dimension_semantics<parallel>], iteration_bounds = array<i64: 2>, scalar_prefetch = 0 : i64, scratch_operands = 2 : i64, tpu.core_type = #tpu.core_type<tc>, window_params = [{transform_indices = @transform_0, window_bounds = array<i64: 1, 410, 5>}, {pipeline_mode = #tpu.pipeline_mode<synchronous>, transform_indices = @transform_1, window_bounds = array<i64: 7, 96, 32>}, {pipeline_mode = #tpu.pipeline_mode<synchronous>, transform_indices = @transform_2, window_bounds = array<i64: 7, 3, 32>}, {pipeline_mode = #tpu.pipeline_mode<synchronous>, transform_indices = @transform_3, window_bounds = array<i64: 32, 32>}, {pipeline_mode = #tpu.pipeline_mode<synchronous>, transform_indices = @transform_4, window_bounds = array<i64: 352, 32>}, {pipeline_mode = #tpu.pipeline_mode<synchronous>, transform_indices = @transform_5, window_bounds = array<i64: 24, 32, 8>}, {pipeline_mode = #tpu.pipeline_mode<synchronous>, transform_indices = @transform_6, window_bounds = array<i64: 8, 1, 8>}, {pipeline_mode = #tpu.pipeline_mode<synchronous>, transform_indices = @transform_7, window_bounds = array<i64: 8, 8, 32>}, {pipeline_mode = #tpu.pipeline_mode<synchronous>, transform_indices = @transform_8, window_bounds = array<i64: 2, 32, 64>}, {pipeline_mode = #tpu.pipeline_mode<synchronous>, transform_indices = @transform_9, window_bounds = array<i64: 2, 1, 64>}, {pipeline_mode = #tpu.pipeline_mode<synchronous>, transform_indices = @transform_10, window_bounds = array<i64: 2, 64, 32>}, {pipeline_mode = #tpu.pipeline_mode<synchronous>, transform_indices = @transform_11, window_bounds = array<i64: 18, 32>}, {transform_indices = @transform_12, window_bounds = array<i64: 1, 6, 32>}]} {
    %c0 = arith.constant 0 : index
    %c0_0 = arith.constant 0 : index
    %c0_1 = arith.constant 0 : index
    %0 = vector.load %arg1[%c0, %c0_0, %c0_1] : memref<1x410x5xf32, #tpu.memory_space<vmem>>, vector<1x410x5xf32>
    %1 = vector.shape_cast %0 : vector<1x410x5xf32> to vector<410x5xf32>
    %2 = vector.extract_strided_slice %1 {offsets = [0, 0], sizes = [408, 5], strides = [1, 1]} : vector<410x5xf32> to vector<408x5xf32>
    %3 = vector.extract_strided_slice %1 {offsets = [1, 0], sizes = [408, 5], strides = [1, 1]} : vector<410x5xf32> to vector<408x5xf32>
    %4 = tpu.concatenate %2, %3 in 1 : vector<408x5xf32>, vector<408x5xf32> -> vector<408x10xf32>
    %c0_2 = arith.constant 0 : index
    %c0_3 = arith.constant 0 : index
    %c0_4 = arith.constant 0 : index
    %5 = vector.load %arg2[%c0_2, %c0_3, %c0_4] : memref<7x96x32xf32, #tpu.memory_space<vmem>>, vector<1x10x32xf32>
    %6 = vector.shape_cast %5 : vector<1x10x32xf32> to vector<10x32xf32>
    %cst = arith.constant dense<0.000000e+00> : vector<408x32xf32>
    %7 = tpu.matmul %4, %6, %cst {dimension_numbers = #tpu.dot_dimension_numbers<[1], [0], [0], [1], [0, 0, 1, 1], [], []>} : vector<408x10xf32>, vector<10x32xf32>, vector<408x32xf32> -> vector<408x32xf32>
    %c0_5 = arith.constant 0 : index
    %c0_6 = arith.constant 0 : index
    %c0_7 = arith.constant 0 : index
    %8 = vector.load %arg3[%c0_5, %c0_6, %c0_7] : memref<7x3x32xf32, #tpu.memory_space<vmem>>, vector<1x1x32xf32>
    %9 = vector.shape_cast %8 : vector<1x1x32xf32> to vector<1x32xf32>
    %10 = vector.broadcast %9 : vector<1x32xf32> to vector<408x32xf32>
    %11 = arith.addf %7, %10 : vector<408x32xf32>
    %c0_8 = arith.constant 0 : index
    %c1 = arith.constant 1 : index
    %c0_9 = arith.constant 0 : index
    %12 = vector.load %arg3[%c0_8, %c1, %c0_9] : memref<7x3x32xf32, #tpu.memory_space<vmem>>, vector<1x1x32xf32>
    %13 = vector.shape_cast %12 : vector<1x1x32xf32> to vector<1x32xf32>
    %c0_10 = arith.constant 0 : index
    %c2 = arith.constant 2 : index
    %c0_11 = arith.constant 0 : index
    %14 = vector.load %arg3[%c0_10, %c2, %c0_11] : memref<7x3x32xf32, #tpu.memory_space<vmem>>, vector<1x1x32xf32>
    %15 = vector.shape_cast %14 : vector<1x1x32xf32> to vector<1x32xf32>
    %cst_12 = arith.constant dense<0.000000e+00> : vector<408xf32>
    %16 = vector.multi_reduction <add>, %11, %cst_12 [1] : vector<408x32xf32> to vector<408xf32>
    %17 = vector.shape_cast %16 : vector<408xf32> to vector<408x1xf32>
    %cst_13 = arith.constant 3.200000e+01 : f32
    %18 = vector.broadcast %cst_13 : f32 to vector<408x1xf32>
    %19 = arith.divf %17, %18 : vector<408x1xf32>
    %20 = vector.broadcast %19 : vector<408x1xf32> to vector<408x32xf32>
    %21 = arith.subf %11, %20 : vector<408x32xf32>
    %22 = arith.mulf %21, %21 : vector<408x32xf32>
    %cst_14 = arith.constant dense<0.000000e+00> : vector<408xf32>
    %23 = vector.multi_reduction <add>, %22, %cst_14 [1] : vector<408x32xf32> to vector<408xf32>
    %24 = vector.shape_cast %23 : vector<408xf32> to vector<408x1xf32>
    %cst_15 = arith.constant 3.200000e+01 : f32
    %25 = vector.broadcast %cst_15 : f32 to vector<408x1xf32>
    %26 = arith.divf %24, %25 : vector<408x1xf32>
    %27 = vector.broadcast %19 : vector<408x1xf32> to vector<408x32xf32>
    %28 = arith.subf %11, %27 : vector<408x32xf32>
    %cst_16 = arith.constant 9.99999974E-6 : f32
    %29 = vector.broadcast %cst_16 : f32 to vector<408x1xf32>
    %30 = arith.addf %26, %29 : vector<408x1xf32>
    %31 = math.rsqrt %30 : vector<408x1xf32>
    %32 = vector.broadcast %31 : vector<408x1xf32> to vector<408x32xf32>
    %33 = arith.mulf %28, %32 : vector<408x32xf32>
    %34 = vector.broadcast %13 : vector<1x32xf32> to vector<408x32xf32>
    %35 = arith.mulf %33, %34 : vector<408x32xf32>
    %36 = vector.broadcast %15 : vector<1x32xf32> to vector<408x32xf32>
    %37 = arith.addf %35, %36 : vector<408x32xf32>
    %cst_17 = arith.constant 5.000000e-01 : f32
    %38 = vector.broadcast %cst_17 : f32 to vector<408x32xf32>
    %39 = arith.mulf %38, %37 : vector<408x32xf32>
    %cst_18 = arith.constant 4.471500e-02 : f32
    %40 = vector.broadcast %cst_18 : f32 to vector<408x32xf32>
    %41 = arith.mulf %40, %37 : vector<408x32xf32>
    %42 = arith.mulf %41, %37 : vector<408x32xf32>
    %43 = arith.mulf %42, %37 : vector<408x32xf32>
    %44 = arith.addf %37, %43 : vector<408x32xf32>
    %cst_19 = arith.constant 0.797884583 : f32
    %45 = vector.broadcast %cst_19 : f32 to vector<408x32xf32>
    %46 = arith.mulf %45, %44 : vector<408x32xf32>
    %47 = math.tanh %46 : vector<408x32xf32>
    %cst_20 = arith.constant 1.000000e+00 : f32
    %48 = vector.broadcast %cst_20 : f32 to vector<408x32xf32>
    %49 = arith.addf %48, %47 : vector<408x32xf32>
    %50 = arith.mulf %39, %49 : vector<408x32xf32>
    %c0_21 = arith.constant 0 : index
    %c0_22 = arith.constant 0 : index
    %51 = vector.load %arg14[%c0_21, %c0_22] : memref<408x32xf32, #tpu.memory_space<vmem>>, vector<408x32xf32>
    tpu.vector_store %arg14[%c0_21, %c0_22], %50 {strides = array<i32>} : memref<408x32xf32, #tpu.memory_space<vmem>>, vector<408x32xf32>,
    %c0_23 = arith.constant 0 : index
    %c0_24 = arith.constant 0 : index
    %52 = tpu.strided_load %arg14[%c0_23, %c0_24] {strides = array<i32: 2, 1>} : memref<408x32xf32, #tpu.memory_space<vmem>>, vector<203x32xf32>
    %c1_25 = arith.constant 1 : index
    %c0_26 = arith.constant 0 : index
    %53 = tpu.strided_load %arg14[%c1_25, %c0_26] {strides = array<i32: 2, 1>} : memref<408x32xf32, #tpu.memory_space<vmem>>, vector<203x32xf32>
    %c2_27 = arith.constant 2 : index
    %c0_28 = arith.constant 0 : index
    %54 = tpu.strided_load %arg14[%c2_27, %c0_28] {strides = array<i32: 2, 1>} : memref<408x32xf32, #tpu.memory_space<vmem>>, vector<203x32xf32>
    %55 = tpu.concatenate %52, %53, %54 in 1 : vector<203x32xf32>, vector<203x32xf32>, vector<203x32xf32> -> vector<203x96xf32>
    %c1_29 = arith.constant 1 : index
    %c0_30 = arith.constant 0 : index
    %c0_31 = arith.constant 0 : index
    %56 = vector.load %arg2[%c1_29, %c0_30, %c0_31] : memref<7x96x32xf32, #tpu.memory_space<vmem>>, vector<1x96x32xf32>
    %57 = vector.shape_cast %56 : vector<1x96x32xf32> to vector<96x32xf32>
    %cst_32 = arith.constant dense<0.000000e+00> : vector<203x32xf32>
    %58 = tpu.matmul %55, %57, %cst_32 {dimension_numbers = #tpu.dot_dimension_numbers<[1], [0], [0], [1], [0, 0, 1, 1], [], []>} : vector<203x96xf32>, vector<96x32xf32>, vector<203x32xf32> -> vector<203x32xf32>
    %c1_33 = arith.constant 1 : index
    %c0_34 = arith.constant 0 : index
    %c0_35 = arith.constant 0 : index
    %59 = vector.load %arg3[%c1_33, %c0_34, %c0_35] : memref<7x3x32xf32, #tpu.memory_space<vmem>>, vector<1x1x32xf32>
    %60 = vector.shape_cast %59 : vector<1x1x32xf32> to vector<1x32xf32>
    %61 = vector.broadcast %60 : vector<1x32xf32> to vector<203x32xf32>
    %62 = arith.addf %58, %61 : vector<203x32xf32>
    %c1_36 = arith.constant 1 : index
    %c1_37 = arith.constant 1 : index
    %c0_38 = arith.constant 0 : index
    %63 = vector.load %arg3[%c1_36, %c1_37, %c0_38] : memref<7x3x32xf32, #tpu.memory_space<vmem>>, vector<1x1x32xf32>
    %64 = vector.shape_cast %63 : vector<1x1x32xf32> to vector<1x32xf32>
    %c1_39 = arith.constant 1 : index
    %c2_40 = arith.constant 2 : index
    %c0_41 = arith.constant 0 : index
    %65 = vector.load %arg3[%c1_39, %c2_40, %c0_41] : memref<7x3x32xf32, #tpu.memory_space<vmem>>, vector<1x1x32xf32>
    %66 = vector.shape_cast %65 : vector<1x1x32xf32> to vector<1x32xf32>
    %cst_42 = arith.constant dense<0.000000e+00> : vector<203xf32>
    %67 = vector.multi_reduction <add>, %62, %cst_42 [1] : vector<203x32xf32> to vector<203xf32>
    %68 = vector.shape_cast %67 : vector<203xf32> to vector<203x1xf32>
    %cst_43 = arith.constant 3.200000e+01 : f32
    %69 = vector.broadcast %cst_43 : f32 to vector<203x1xf32>
    %70 = arith.divf %68, %69 : vector<203x1xf32>
    %71 = vector.broadcast %70 : vector<203x1xf32> to vector<203x32xf32>
    %72 = arith.subf %62, %71 : vector<203x32xf32>
    %73 = arith.mulf %72, %72 : vector<203x32xf32>
    %cst_44 = arith.constant dense<0.000000e+00> : vector<203xf32>
    %74 = vector.multi_reduction <add>, %73, %cst_44 [1] : vector<203x32xf32> to vector<203xf32>
    %75 = vector.shape_cast %74 : vector<203xf32> to vector<203x1xf32>
    %cst_45 = arith.constant 3.200000e+01 : f32
    %76 = vector.broadcast %cst_45 : f32 to vector<203x1xf32>
    %77 = arith.divf %75, %76 : vector<203x1xf32>
    %78 = vector.broadcast %70 : vector<203x1xf32> to vector<203x32xf32>
    %79 = arith.subf %62, %78 : vector<203x32xf32>
    %cst_46 = arith.constant 9.99999974E-6 : f32
    %80 = vector.broadcast %cst_46 : f32 to vector<203x1xf32>
    %81 = arith.addf %77, %80 : vector<203x1xf32>
    %82 = math.rsqrt %81 : vector<203x1xf32>
    %83 = vector.broadcast %82 : vector<203x1xf32> to vector<203x32xf32>
    %84 = arith.mulf %79, %83 : vector<203x32xf32>
    %85 = vector.broadcast %64 : vector<1x32xf32> to vector<203x32xf32>
    %86 = arith.mulf %84, %85 : vector<203x32xf32>
    %87 = vector.broadcast %66 : vector<1x32xf32> to vector<203x32xf32>
    %88 = arith.addf %86, %87 : vector<203x32xf32>
    %cst_47 = arith.constant 5.000000e-01 : f32
    %89 = vector.broadcast %cst_47 : f32 to vector<203x32xf32>
    %90 = arith.mulf %89, %88 : vector<203x32xf32>
    %cst_48 = arith.constant 4.471500e-02 : f32
    %91 = vector.broadcast %cst_48 : f32 to vector<203x32xf32>
    %92 = arith.mulf %91, %88 : vector<203x32xf32>
    %93 = arith.mulf %92, %88 : vector<203x32xf32>
    %94 = arith.mulf %93, %88 : vector<203x32xf32>
    %95 = arith.addf %88, %94 : vector<203x32xf32>
    %cst_49 = arith.constant 0.797884583 : f32
    %96 = vector.broadcast %cst_49 : f32 to vector<203x32xf32>
    %97 = arith.mulf %96, %95 : vector<203x32xf32>
    %98 = math.tanh %97 : vector<203x32xf32>
    %cst_50 = arith.constant 1.000000e+00 : f32
    %99 = vector.broadcast %cst_50 : f32 to vector<203x32xf32>
    %100 = arith.addf %99, %98 : vector<203x32xf32>
    %101 = arith.mulf %90, %100 : vector<203x32xf32>
    %c0_51 = arith.constant 0 : index
    %c0_52 = arith.constant 0 : index
    %102 = vector.load %arg15[%c0_51, %c0_52] : memref<203x32xf32, #tpu.memory_space<vmem>>, vector<203x32xf32>
    tpu.vector_store %arg15[%c0_51, %c0_52], %101 {strides = array<i32>} : memref<203x32xf32, #tpu.memory_space<vmem>>, vector<203x32xf32>,
    %c0_53 = arith.constant 0 : index
    %c0_54 = arith.constant 0 : index
    %103 = tpu.strided_load %arg15[%c0_53, %c0_54] {strides = array<i32: 2, 1>} : memref<203x32xf32, #tpu.memory_space<vmem>>, vector<101x32xf32>
    %c1_55 = arith.constant 1 : index
    %c0_56 = arith.constant 0 : index
    %104 = tpu.strided_load %arg15[%c1_55, %c0_56] {strides = array<i32: 2, 1>} : memref<203x32xf32, #tpu.memory_space<vmem>>, vector<101x32xf32>
    %c2_57 = arith.constant 2 : index
    %c0_58 = arith.constant 0 : index
    %105 = tpu.strided_load %arg15[%c2_57, %c0_58] {strides = array<i32: 2, 1>} : memref<203x32xf32, #tpu.memory_space<vmem>>, vector<101x32xf32>
    %106 = tpu.concatenate %103, %104, %105 in 1 : vector<101x32xf32>, vector<101x32xf32>, vector<101x32xf32> -> vector<101x96xf32>
    %c2_59 = arith.constant 2 : index
    %c0_60 = arith.constant 0 : index
    %c0_61 = arith.constant 0 : index
    %107 = vector.load %arg2[%c2_59, %c0_60, %c0_61] : memref<7x96x32xf32, #tpu.memory_space<vmem>>, vector<1x96x32xf32>
    %108 = vector.shape_cast %107 : vector<1x96x32xf32> to vector<96x32xf32>
    %cst_62 = arith.constant dense<0.000000e+00> : vector<101x32xf32>
    %109 = tpu.matmul %106, %108, %cst_62 {dimension_numbers = #tpu.dot_dimension_numbers<[1], [0], [0], [1], [0, 0, 1, 1], [], []>} : vector<101x96xf32>, vector<96x32xf32>, vector<101x32xf32> -> vector<101x32xf32>
    %c2_63 = arith.constant 2 : index
    %c0_64 = arith.constant 0 : index
    %c0_65 = arith.constant 0 : index
    %110 = vector.load %arg3[%c2_63, %c0_64, %c0_65] : memref<7x3x32xf32, #tpu.memory_space<vmem>>, vector<1x1x32xf32>
    %111 = vector.shape_cast %110 : vector<1x1x32xf32> to vector<1x32xf32>
    %112 = vector.broadcast %111 : vector<1x32xf32> to vector<101x32xf32>
    %113 = arith.addf %109, %112 : vector<101x32xf32>
    %c2_66 = arith.constant 2 : index
    %c1_67 = arith.constant 1 : index
    %c0_68 = arith.constant 0 : index
    %114 = vector.load %arg3[%c2_66, %c1_67, %c0_68] : memref<7x3x32xf32, #tpu.memory_space<vmem>>, vector<1x1x32xf32>
    %115 = vector.shape_cast %114 : vector<1x1x32xf32> to vector<1x32xf32>
    %c2_69 = arith.constant 2 : index
    %c2_70 = arith.constant 2 : index
    %c0_71 = arith.constant 0 : index
    %116 = vector.load %arg3[%c2_69, %c2_70, %c0_71] : memref<7x3x32xf32, #tpu.memory_space<vmem>>, vector<1x1x32xf32>
    %117 = vector.shape_cast %116 : vector<1x1x32xf32> to vector<1x32xf32>
    %cst_72 = arith.constant dense<0.000000e+00> : vector<101xf32>
    %118 = vector.multi_reduction <add>, %113, %cst_72 [1] : vector<101x32xf32> to vector<101xf32>
    %119 = vector.shape_cast %118 : vector<101xf32> to vector<101x1xf32>
    %cst_73 = arith.constant 3.200000e+01 : f32
    %120 = vector.broadcast %cst_73 : f32 to vector<101x1xf32>
    %121 = arith.divf %119, %120 : vector<101x1xf32>
    %122 = vector.broadcast %121 : vector<101x1xf32> to vector<101x32xf32>
    %123 = arith.subf %113, %122 : vector<101x32xf32>
    %124 = arith.mulf %123, %123 : vector<101x32xf32>
    %cst_74 = arith.constant dense<0.000000e+00> : vector<101xf32>
    %125 = vector.multi_reduction <add>, %124, %cst_74 [1] : vector<101x32xf32> to vector<101xf32>
    %126 = vector.shape_cast %125 : vector<101xf32> to vector<101x1xf32>
    %cst_75 = arith.constant 3.200000e+01 : f32
    %127 = vector.broadcast %cst_75 : f32 to vector<101x1xf32>
    %128 = arith.divf %126, %127 : vector<101x1xf32>
    %129 = vector.broadcast %121 : vector<101x1xf32> to vector<101x32xf32>
    %130 = arith.subf %113, %129 : vector<101x32xf32>
    %cst_76 = arith.constant 9.99999974E-6 : f32
    %131 = vector.broadcast %cst_76 : f32 to vector<101x1xf32>
    %132 = arith.addf %128, %131 : vector<101x1xf32>
    %133 = math.rsqrt %132 : vector<101x1xf32>
    %134 = vector.broadcast %133 : vector<101x1xf32> to vector<101x32xf32>
    %135 = arith.mulf %130, %134 : vector<101x32xf32>
    %136 = vector.broadcast %115 : vector<1x32xf32> to vector<101x32xf32>
    %137 = arith.mulf %135, %136 : vector<101x32xf32>
    %138 = vector.broadcast %117 : vector<1x32xf32> to vector<101x32xf32>
    %139 = arith.addf %137, %138 : vector<101x32xf32>
    %cst_77 = arith.constant 5.000000e-01 : f32
    %140 = vector.broadcast %cst_77 : f32 to vector<101x32xf32>
    %141 = arith.mulf %140, %139 : vector<101x32xf32>
    %cst_78 = arith.constant 4.471500e-02 : f32
    %142 = vector.broadcast %cst_78 : f32 to vector<101x32xf32>
    %143 = arith.mulf %142, %139 : vector<101x32xf32>
    %144 = arith.mulf %143, %139 : vector<101x32xf32>
    %145 = arith.mulf %144, %139 : vector<101x32xf32>
    %146 = arith.addf %139, %145 : vector<101x32xf32>
    %cst_79 = arith.constant 0.797884583 : f32
    %147 = vector.broadcast %cst_79 : f32 to vector<101x32xf32>
    %148 = arith.mulf %147, %146 : vector<101x32xf32>
    %149 = math.tanh %148 : vector<101x32xf32>
    %cst_80 = arith.constant 1.000000e+00 : f32
    %150 = vector.broadcast %cst_80 : f32 to vector<101x32xf32>
    %151 = arith.addf %150, %149 : vector<101x32xf32>
    %152 = arith.mulf %141, %151 : vector<101x32xf32>
    %c0_81 = arith.constant 0 : index
    %c0_82 = arith.constant 0 : index
    %153 = vector.load %arg14[%c0_81, %c0_82] : memref<408x32xf32, #tpu.memory_space<vmem>>, vector<101x32xf32>
    tpu.vector_store %arg14[%c0_81, %c0_82], %152 {strides = array<i32>} : memref<408x32xf32, #tpu.memory_space<vmem>>, vector<101x32xf32>,
    %c0_83 = arith.constant 0 : index
    %c0_84 = arith.constant 0 : index
    %154 = tpu.strided_load %arg14[%c0_83, %c0_84] {strides = array<i32: 2, 1>} : memref<408x32xf32, #tpu.memory_space<vmem>>, vector<50x32xf32>
    %c1_85 = arith.constant 1 : index
    %c0_86 = arith.constant 0 : index
    %155 = tpu.strided_load %arg14[%c1_85, %c0_86] {strides = array<i32: 2, 1>} : memref<408x32xf32, #tpu.memory_space<vmem>>, vector<50x32xf32>
    %c2_87 = arith.constant 2 : index
    %c0_88 = arith.constant 0 : index
    %156 = tpu.strided_load %arg14[%c2_87, %c0_88] {strides = array<i32: 2, 1>} : memref<408x32xf32, #tpu.memory_space<vmem>>, vector<50x32xf32>
    %157 = tpu.concatenate %154, %155, %156 in 1 : vector<50x32xf32>, vector<50x32xf32>, vector<50x32xf32> -> vector<50x96xf32>
    %c3 = arith.constant 3 : index
    %c0_89 = arith.constant 0 : index
    %c0_90 = arith.constant 0 : index
    %158 = vector.load %arg2[%c3, %c0_89, %c0_90] : memref<7x96x32xf32, #tpu.memory_space<vmem>>, vector<1x96x32xf32>
    %159 = vector.shape_cast %158 : vector<1x96x32xf32> to vector<96x32xf32>
    %cst_91 = arith.constant dense<0.000000e+00> : vector<50x32xf32>
    %160 = tpu.matmul %157, %159, %cst_91 {dimension_numbers = #tpu.dot_dimension_numbers<[1], [0], [0], [1], [0, 0, 1, 1], [], []>} : vector<50x96xf32>, vector<96x32xf32>, vector<50x32xf32> -> vector<50x32xf32>
    %c3_92 = arith.constant 3 : index
    %c0_93 = arith.constant 0 : index
    %c0_94 = arith.constant 0 : index
    %161 = vector.load %arg3[%c3_92, %c0_93, %c0_94] : memref<7x3x32xf32, #tpu.memory_space<vmem>>, vector<1x1x32xf32>
    %162 = vector.shape_cast %161 : vector<1x1x32xf32> to vector<1x32xf32>
    %163 = vector.broadcast %162 : vector<1x32xf32> to vector<50x32xf32>
    %164 = arith.addf %160, %163 : vector<50x32xf32>
    %c3_95 = arith.constant 3 : index
    %c1_96 = arith.constant 1 : index
    %c0_97 = arith.constant 0 : index
    %165 = vector.load %arg3[%c3_95, %c1_96, %c0_97] : memref<7x3x32xf32, #tpu.memory_space<vmem>>, vector<1x1x32xf32>
    %166 = vector.shape_cast %165 : vector<1x1x32xf32> to vector<1x32xf32>
    %c3_98 = arith.constant 3 : index
    %c2_99 = arith.constant 2 : index
    %c0_100 = arith.constant 0 : index
    %167 = vector.load %arg3[%c3_98, %c2_99, %c0_100] : memref<7x3x32xf32, #tpu.memory_space<vmem>>, vector<1x1x32xf32>
    %168 = vector.shape_cast %167 : vector<1x1x32xf32> to vector<1x32xf32>
    %cst_101 = arith.constant dense<0.000000e+00> : vector<50xf32>
    %169 = vector.multi_reduction <add>, %164, %cst_101 [1] : vector<50x32xf32> to vector<50xf32>
    %170 = vector.shape_cast %169 : vector<50xf32> to vector<50x1xf32>
    %cst_102 = arith.constant 3.200000e+01 : f32
    %171 = vector.broadcast %cst_102 : f32 to vector<50x1xf32>
    %172 = arith.divf %170, %171 : vector<50x1xf32>
    %173 = vector.broadcast %172 : vector<50x1xf32> to vector<50x32xf32>
    %174 = arith.subf %164, %173 : vector<50x32xf32>
    %175 = arith.mulf %174, %174 : vector<50x32xf32>
    %cst_103 = arith.constant dense<0.000000e+00> : vector<50xf32>
    %176 = vector.multi_reduction <add>, %175, %cst_103 [1] : vector<50x32xf32> to vector<50xf32>
    %177 = vector.shape_cast %176 : vector<50xf32> to vector<50x1xf32>
    %cst_104 = arith.constant 3.200000e+01 : f32
    %178 = vector.broadcast %cst_104 : f32 to vector<50x1xf32>
    %179 = arith.divf %177, %178 : vector<50x1xf32>
    %180 = vector.broadcast %172 : vector<50x1xf32> to vector<50x32xf32>
    %181 = arith.subf %164, %180 : vector<50x32xf32>
    %cst_105 = arith.constant 9.99999974E-6 : f32
    %182 = vector.broadcast %cst_105 : f32 to vector<50x1xf32>
    %183 = arith.addf %179, %182 : vector<50x1xf32>
    %184 = math.rsqrt %183 : vector<50x1xf32>
    %185 = vector.broadcast %184 : vector<50x1xf32> to vector<50x32xf32>
    %186 = arith.mulf %181, %185 : vector<50x32xf32>
    %187 = vector.broadcast %166 : vector<1x32xf32> to vector<50x32xf32>
    %188 = arith.mulf %186, %187 : vector<50x32xf32>
    %189 = vector.broadcast %168 : vector<1x32xf32> to vector<50x32xf32>
    %190 = arith.addf %188, %189 : vector<50x32xf32>
    %cst_106 = arith.constant 5.000000e-01 : f32
    %191 = vector.broadcast %cst_106 : f32 to vector<50x32xf32>
    %192 = arith.mulf %191, %190 : vector<50x32xf32>
    %cst_107 = arith.constant 4.471500e-02 : f32
    %193 = vector.broadcast %cst_107 : f32 to vector<50x32xf32>
    %194 = arith.mulf %193, %190 : vector<50x32xf32>
    %195 = arith.mulf %194, %190 : vector<50x32xf32>
    %196 = arith.mulf %195, %190 : vector<50x32xf32>
    %197 = arith.addf %190, %196 : vector<50x32xf32>
    %cst_108 = arith.constant 0.797884583 : f32
    %198 = vector.broadcast %cst_108 : f32 to vector<50x32xf32>
    %199 = arith.mulf %198, %197 : vector<50x32xf32>
    %200 = math.tanh %199 : vector<50x32xf32>
    %cst_109 = arith.constant 1.000000e+00 : f32
    %201 = vector.broadcast %cst_109 : f32 to vector<50x32xf32>
    %202 = arith.addf %201, %200 : vector<50x32xf32>
    %203 = arith.mulf %192, %202 : vector<50x32xf32>
    %c0_110 = arith.constant 0 : index
    %c0_111 = arith.constant 0 : index
    %204 = vector.load %arg15[%c0_110, %c0_111] : memref<203x32xf32, #tpu.memory_space<vmem>>, vector<50x32xf32>
    tpu.vector_store %arg15[%c0_110, %c0_111], %203 {strides = array<i32>} : memref<203x32xf32, #tpu.memory_space<vmem>>, vector<50x32xf32>,
    %c0_112 = arith.constant 0 : index
    %c0_113 = arith.constant 0 : index
    %205 = tpu.strided_load %arg15[%c0_112, %c0_113] {strides = array<i32: 2, 1>} : memref<203x32xf32, #tpu.memory_space<vmem>>, vector<24x32xf32>
    %c1_114 = arith.constant 1 : index
    %c0_115 = arith.constant 0 : index
    %206 = tpu.strided_load %arg15[%c1_114, %c0_115] {strides = array<i32: 2, 1>} : memref<203x32xf32, #tpu.memory_space<vmem>>, vector<24x32xf32>
    %c2_116 = arith.constant 2 : index
    %c0_117 = arith.constant 0 : index
    %207 = tpu.strided_load %arg15[%c2_116, %c0_117] {strides = array<i32: 2, 1>} : memref<203x32xf32, #tpu.memory_space<vmem>>, vector<24x32xf32>
    %208 = tpu.concatenate %205, %206, %207 in 1 : vector<24x32xf32>, vector<24x32xf32>, vector<24x32xf32> -> vector<24x96xf32>
    %c4 = arith.constant 4 : index
    %c0_118 = arith.constant 0 : index
    %c0_119 = arith.constant 0 : index
    %209 = vector.load %arg2[%c4, %c0_118, %c0_119] : memref<7x96x32xf32, #tpu.memory_space<vmem>>, vector<1x96x32xf32>
    %210 = vector.shape_cast %209 : vector<1x96x32xf32> to vector<96x32xf32>
    %cst_120 = arith.constant dense<0.000000e+00> : vector<24x32xf32>
    %211 = tpu.matmul %208, %210, %cst_120 {dimension_numbers = #tpu.dot_dimension_numbers<[1], [0], [0], [1], [0, 0, 1, 1], [], []>} : vector<24x96xf32>, vector<96x32xf32>, vector<24x32xf32> -> vector<24x32xf32>
    %c4_121 = arith.constant 4 : index
    %c0_122 = arith.constant 0 : index
    %c0_123 = arith.constant 0 : index
    %212 = vector.load %arg3[%c4_121, %c0_122, %c0_123] : memref<7x3x32xf32, #tpu.memory_space<vmem>>, vector<1x1x32xf32>
    %213 = vector.shape_cast %212 : vector<1x1x32xf32> to vector<1x32xf32>
    %214 = vector.broadcast %213 : vector<1x32xf32> to vector<24x32xf32>
    %215 = arith.addf %211, %214 : vector<24x32xf32>
    %c4_124 = arith.constant 4 : index
    %c1_125 = arith.constant 1 : index
    %c0_126 = arith.constant 0 : index
    %216 = vector.load %arg3[%c4_124, %c1_125, %c0_126] : memref<7x3x32xf32, #tpu.memory_space<vmem>>, vector<1x1x32xf32>
    %217 = vector.shape_cast %216 : vector<1x1x32xf32> to vector<1x32xf32>
    %c4_127 = arith.constant 4 : index
    %c2_128 = arith.constant 2 : index
    %c0_129 = arith.constant 0 : index
    %218 = vector.load %arg3[%c4_127, %c2_128, %c0_129] : memref<7x3x32xf32, #tpu.memory_space<vmem>>, vector<1x1x32xf32>
    %219 = vector.shape_cast %218 : vector<1x1x32xf32> to vector<1x32xf32>
    %cst_130 = arith.constant dense<0.000000e+00> : vector<24xf32>
    %220 = vector.multi_reduction <add>, %215, %cst_130 [1] : vector<24x32xf32> to vector<24xf32>
    %221 = vector.shape_cast %220 : vector<24xf32> to vector<24x1xf32>
    %cst_131 = arith.constant 3.200000e+01 : f32
    %222 = vector.broadcast %cst_131 : f32 to vector<24x1xf32>
    %223 = arith.divf %221, %222 : vector<24x1xf32>
    %224 = vector.broadcast %223 : vector<24x1xf32> to vector<24x32xf32>
    %225 = arith.subf %215, %224 : vector<24x32xf32>
    %226 = arith.mulf %225, %225 : vector<24x32xf32>
    %cst_132 = arith.constant dense<0.000000e+00> : vector<24xf32>
    %227 = vector.multi_reduction <add>, %226, %cst_132 [1] : vector<24x32xf32> to vector<24xf32>
    %228 = vector.shape_cast %227 : vector<24xf32> to vector<24x1xf32>
    %cst_133 = arith.constant 3.200000e+01 : f32
    %229 = vector.broadcast %cst_133 : f32 to vector<24x1xf32>
    %230 = arith.divf %228, %229 : vector<24x1xf32>
    %231 = vector.broadcast %223 : vector<24x1xf32> to vector<24x32xf32>
    %232 = arith.subf %215, %231 : vector<24x32xf32>
    %cst_134 = arith.constant 9.99999974E-6 : f32
    %233 = vector.broadcast %cst_134 : f32 to vector<24x1xf32>
    %234 = arith.addf %230, %233 : vector<24x1xf32>
    %235 = math.rsqrt %234 : vector<24x1xf32>
    %236 = vector.broadcast %235 : vector<24x1xf32> to vector<24x32xf32>
    %237 = arith.mulf %232, %236 : vector<24x32xf32>
    %238 = vector.broadcast %217 : vector<1x32xf32> to vector<24x32xf32>
    %239 = arith.mulf %237, %238 : vector<24x32xf32>
    %240 = vector.broadcast %219 : vector<1x32xf32> to vector<24x32xf32>
    %241 = arith.addf %239, %240 : vector<24x32xf32>
    %cst_135 = arith.constant 5.000000e-01 : f32
    %242 = vector.broadcast %cst_135 : f32 to vector<24x32xf32>
    %243 = arith.mulf %242, %241 : vector<24x32xf32>
    %cst_136 = arith.constant 4.471500e-02 : f32
    %244 = vector.broadcast %cst_136 : f32 to vector<24x32xf32>
    %245 = arith.mulf %244, %241 : vector<24x32xf32>
    %246 = arith.mulf %245, %241 : vector<24x32xf32>
    %247 = arith.mulf %246, %241 : vector<24x32xf32>
    %248 = arith.addf %241, %247 : vector<24x32xf32>
    %cst_137 = arith.constant 0.797884583 : f32
    %249 = vector.broadcast %cst_137 : f32 to vector<24x32xf32>
    %250 = arith.mulf %249, %248 : vector<24x32xf32>
    %251 = math.tanh %250 : vector<24x32xf32>
    %cst_138 = arith.constant 1.000000e+00 : f32
    %252 = vector.broadcast %cst_138 : f32 to vector<24x32xf32>
    %253 = arith.addf %252, %251 : vector<24x32xf32>
    %254 = arith.mulf %243, %253 : vector<24x32xf32>
    %c0_139 = arith.constant 0 : index
    %c0_140 = arith.constant 0 : index
    %255 = vector.load %arg14[%c0_139, %c0_140] : memref<408x32xf32, #tpu.memory_space<vmem>>, vector<24x32xf32>
    tpu.vector_store %arg14[%c0_139, %c0_140], %254 {strides = array<i32>} : memref<408x32xf32, #tpu.memory_space<vmem>>, vector<24x32xf32>,
    %c0_141 = arith.constant 0 : index
    %c0_142 = arith.constant 0 : index
    %256 = tpu.strided_load %arg14[%c0_141, %c0_142] {strides = array<i32: 2, 1>} : memref<408x32xf32, #tpu.memory_space<vmem>>, vector<12x32xf32>
    %c1_143 = arith.constant 1 : index
    %c0_144 = arith.constant 0 : index
    %257 = tpu.strided_load %arg14[%c1_143, %c0_144] {strides = array<i32: 2, 1>} : memref<408x32xf32, #tpu.memory_space<vmem>>, vector<12x32xf32>
    %258 = tpu.concatenate %256, %257 in 1 : vector<12x32xf32>, vector<12x32xf32> -> vector<12x64xf32>
    %c5 = arith.constant 5 : index
    %c0_145 = arith.constant 0 : index
    %c0_146 = arith.constant 0 : index
    %259 = vector.load %arg2[%c5, %c0_145, %c0_146] : memref<7x96x32xf32, #tpu.memory_space<vmem>>, vector<1x64x32xf32>
    %260 = vector.shape_cast %259 : vector<1x64x32xf32> to vector<64x32xf32>
    %cst_147 = arith.constant dense<0.000000e+00> : vector<12x32xf32>
    %261 = tpu.matmul %258, %260, %cst_147 {dimension_numbers = #tpu.dot_dimension_numbers<[1], [0], [0], [1], [0, 0, 1, 1], [], []>} : vector<12x64xf32>, vector<64x32xf32>, vector<12x32xf32> -> vector<12x32xf32>
    %c5_148 = arith.constant 5 : index
    %c0_149 = arith.constant 0 : index
    %c0_150 = arith.constant 0 : index
    %262 = vector.load %arg3[%c5_148, %c0_149, %c0_150] : memref<7x3x32xf32, #tpu.memory_space<vmem>>, vector<1x1x32xf32>
    %263 = vector.shape_cast %262 : vector<1x1x32xf32> to vector<1x32xf32>
    %264 = vector.broadcast %263 : vector<1x32xf32> to vector<12x32xf32>
    %265 = arith.addf %261, %264 : vector<12x32xf32>
    %c5_151 = arith.constant 5 : index
    %c1_152 = arith.constant 1 : index
    %c0_153 = arith.constant 0 : index
    %266 = vector.load %arg3[%c5_151, %c1_152, %c0_153] : memref<7x3x32xf32, #tpu.memory_space<vmem>>, vector<1x1x32xf32>
    %267 = vector.shape_cast %266 : vector<1x1x32xf32> to vector<1x32xf32>
    %c5_154 = arith.constant 5 : index
    %c2_155 = arith.constant 2 : index
    %c0_156 = arith.constant 0 : index
    %268 = vector.load %arg3[%c5_154, %c2_155, %c0_156] : memref<7x3x32xf32, #tpu.memory_space<vmem>>, vector<1x1x32xf32>
    %269 = vector.shape_cast %268 : vector<1x1x32xf32> to vector<1x32xf32>
    %cst_157 = arith.constant dense<0.000000e+00> : vector<12xf32>
    %270 = vector.multi_reduction <add>, %265, %cst_157 [1] : vector<12x32xf32> to vector<12xf32>
    %271 = vector.shape_cast %270 : vector<12xf32> to vector<12x1xf32>
    %cst_158 = arith.constant 3.200000e+01 : f32
    %272 = vector.broadcast %cst_158 : f32 to vector<12x1xf32>
    %273 = arith.divf %271, %272 : vector<12x1xf32>
    %274 = vector.broadcast %273 : vector<12x1xf32> to vector<12x32xf32>
    %275 = arith.subf %265, %274 : vector<12x32xf32>
    %276 = arith.mulf %275, %275 : vector<12x32xf32>
    %cst_159 = arith.constant dense<0.000000e+00> : vector<12xf32>
    %277 = vector.multi_reduction <add>, %276, %cst_159 [1] : vector<12x32xf32> to vector<12xf32>
    %278 = vector.shape_cast %277 : vector<12xf32> to vector<12x1xf32>
    %cst_160 = arith.constant 3.200000e+01 : f32
    %279 = vector.broadcast %cst_160 : f32 to vector<12x1xf32>
    %280 = arith.divf %278, %279 : vector<12x1xf32>
    %281 = vector.broadcast %273 : vector<12x1xf32> to vector<12x32xf32>
    %282 = arith.subf %265, %281 : vector<12x32xf32>
    %cst_161 = arith.constant 9.99999974E-6 : f32
    %283 = vector.broadcast %cst_161 : f32 to vector<12x1xf32>
    %284 = arith.addf %280, %283 : vector<12x1xf32>
    %285 = math.rsqrt %284 : vector<12x1xf32>
    %286 = vector.broadcast %285 : vector<12x1xf32> to vector<12x32xf32>
    %287 = arith.mulf %282, %286 : vector<12x32xf32>
    %288 = vector.broadcast %267 : vector<1x32xf32> to vector<12x32xf32>
    %289 = arith.mulf %287, %288 : vector<12x32xf32>
    %290 = vector.broadcast %269 : vector<1x32xf32> to vector<12x32xf32>
    %291 = arith.addf %289, %290 : vector<12x32xf32>
    %cst_162 = arith.constant 5.000000e-01 : f32
    %292 = vector.broadcast %cst_162 : f32 to vector<12x32xf32>
    %293 = arith.mulf %292, %291 : vector<12x32xf32>
    %cst_163 = arith.constant 4.471500e-02 : f32
    %294 = vector.broadcast %cst_163 : f32 to vector<12x32xf32>
    %295 = arith.mulf %294, %291 : vector<12x32xf32>
    %296 = arith.mulf %295, %291 : vector<12x32xf32>
    %297 = arith.mulf %296, %291 : vector<12x32xf32>
    %298 = arith.addf %291, %297 : vector<12x32xf32>
    %cst_164 = arith.constant 0.797884583 : f32
    %299 = vector.broadcast %cst_164 : f32 to vector<12x32xf32>
    %300 = arith.mulf %299, %298 : vector<12x32xf32>
    %301 = math.tanh %300 : vector<12x32xf32>
    %cst_165 = arith.constant 1.000000e+00 : f32
    %302 = vector.broadcast %cst_165 : f32 to vector<12x32xf32>
    %303 = arith.addf %302, %301 : vector<12x32xf32>
    %304 = arith.mulf %293, %303 : vector<12x32xf32>
    %c0_166 = arith.constant 0 : index
    %c0_167 = arith.constant 0 : index
    %305 = vector.load %arg15[%c0_166, %c0_167] : memref<203x32xf32, #tpu.memory_space<vmem>>, vector<12x32xf32>
    tpu.vector_store %arg15[%c0_166, %c0_167], %304 {strides = array<i32>} : memref<203x32xf32, #tpu.memory_space<vmem>>, vector<12x32xf32>,
    %c0_168 = arith.constant 0 : index
    %c0_169 = arith.constant 0 : index
    %306 = tpu.strided_load %arg15[%c0_168, %c0_169] {strides = array<i32: 2, 1>} : memref<203x32xf32, #tpu.memory_space<vmem>>, vector<6x32xf32>
    %c1_170 = arith.constant 1 : index
    %c0_171 = arith.constant 0 : index
    %307 = tpu.strided_load %arg15[%c1_170, %c0_171] {strides = array<i32: 2, 1>} : memref<203x32xf32, #tpu.memory_space<vmem>>, vector<6x32xf32>
    %308 = tpu.concatenate %306, %307 in 1 : vector<6x32xf32>, vector<6x32xf32> -> vector<6x64xf32>
    %c6 = arith.constant 6 : index
    %c0_172 = arith.constant 0 : index
    %c0_173 = arith.constant 0 : index
    %309 = vector.load %arg2[%c6, %c0_172, %c0_173] : memref<7x96x32xf32, #tpu.memory_space<vmem>>, vector<1x64x32xf32>
    %310 = vector.shape_cast %309 : vector<1x64x32xf32> to vector<64x32xf32>
    %cst_174 = arith.constant dense<0.000000e+00> : vector<6x32xf32>
    %311 = tpu.matmul %308, %310, %cst_174 {dimension_numbers = #tpu.dot_dimension_numbers<[1], [0], [0], [1], [0, 0, 1, 1], [], []>} : vector<6x64xf32>, vector<64x32xf32>, vector<6x32xf32> -> vector<6x32xf32>
    %c6_175 = arith.constant 6 : index
    %c0_176 = arith.constant 0 : index
    %c0_177 = arith.constant 0 : index
    %312 = vector.load %arg3[%c6_175, %c0_176, %c0_177] : memref<7x3x32xf32, #tpu.memory_space<vmem>>, vector<1x1x32xf32>
    %313 = vector.shape_cast %312 : vector<1x1x32xf32> to vector<1x32xf32>
    %314 = vector.broadcast %313 : vector<1x32xf32> to vector<6x32xf32>
    %315 = arith.addf %311, %314 : vector<6x32xf32>
    %c6_178 = arith.constant 6 : index
    %c1_179 = arith.constant 1 : index
    %c0_180 = arith.constant 0 : index
    %316 = vector.load %arg3[%c6_178, %c1_179, %c0_180] : memref<7x3x32xf32, #tpu.memory_space<vmem>>, vector<1x1x32xf32>
    %317 = vector.shape_cast %316 : vector<1x1x32xf32> to vector<1x32xf32>
    %c6_181 = arith.constant 6 : index
    %c2_182 = arith.constant 2 : index
    %c0_183 = arith.constant 0 : index
    %318 = vector.load %arg3[%c6_181, %c2_182, %c0_183] : memref<7x3x32xf32, #tpu.memory_space<vmem>>, vector<1x1x32xf32>
    %319 = vector.shape_cast %318 : vector<1x1x32xf32> to vector<1x32xf32>
    %cst_184 = arith.constant dense<0.000000e+00> : vector<6xf32>
    %320 = vector.multi_reduction <add>, %315, %cst_184 [1] : vector<6x32xf32> to vector<6xf32>
    %321 = vector.shape_cast %320 : vector<6xf32> to vector<6x1xf32>
    %cst_185 = arith.constant 3.200000e+01 : f32
    %322 = vector.broadcast %cst_185 : f32 to vector<6x1xf32>
    %323 = arith.divf %321, %322 : vector<6x1xf32>
    %324 = vector.broadcast %323 : vector<6x1xf32> to vector<6x32xf32>
    %325 = arith.subf %315, %324 : vector<6x32xf32>
    %326 = arith.mulf %325, %325 : vector<6x32xf32>
    %cst_186 = arith.constant dense<0.000000e+00> : vector<6xf32>
    %327 = vector.multi_reduction <add>, %326, %cst_186 [1] : vector<6x32xf32> to vector<6xf32>
    %328 = vector.shape_cast %327 : vector<6xf32> to vector<6x1xf32>
    %cst_187 = arith.constant 3.200000e+01 : f32
    %329 = vector.broadcast %cst_187 : f32 to vector<6x1xf32>
    %330 = arith.divf %328, %329 : vector<6x1xf32>
    %331 = vector.broadcast %323 : vector<6x1xf32> to vector<6x32xf32>
    %332 = arith.subf %315, %331 : vector<6x32xf32>
    %cst_188 = arith.constant 9.99999974E-6 : f32
    %333 = vector.broadcast %cst_188 : f32 to vector<6x1xf32>
    %334 = arith.addf %330, %333 : vector<6x1xf32>
    %335 = math.rsqrt %334 : vector<6x1xf32>
    %336 = vector.broadcast %335 : vector<6x1xf32> to vector<6x32xf32>
    %337 = arith.mulf %332, %336 : vector<6x32xf32>
    %338 = vector.broadcast %317 : vector<1x32xf32> to vector<6x32xf32>
    %339 = arith.mulf %337, %338 : vector<6x32xf32>
    %340 = vector.broadcast %319 : vector<1x32xf32> to vector<6x32xf32>
    %341 = arith.addf %339, %340 : vector<6x32xf32>
    %cst_189 = arith.constant 5.000000e-01 : f32
    %342 = vector.broadcast %cst_189 : f32 to vector<6x32xf32>
    %343 = arith.mulf %342, %341 : vector<6x32xf32>
    %cst_190 = arith.constant 4.471500e-02 : f32
    %344 = vector.broadcast %cst_190 : f32 to vector<6x32xf32>
    %345 = arith.mulf %344, %341 : vector<6x32xf32>
    %346 = arith.mulf %345, %341 : vector<6x32xf32>
    %347 = arith.mulf %346, %341 : vector<6x32xf32>
    %348 = arith.addf %341, %347 : vector<6x32xf32>
    %cst_191 = arith.constant 0.797884583 : f32
    %349 = vector.broadcast %cst_191 : f32 to vector<6x32xf32>
    %350 = arith.mulf %349, %348 : vector<6x32xf32>
    %351 = math.tanh %350 : vector<6x32xf32>
    %cst_192 = arith.constant 1.000000e+00 : f32
    %352 = vector.broadcast %cst_192 : f32 to vector<6x32xf32>
    %353 = arith.addf %352, %351 : vector<6x32xf32>
    %354 = arith.mulf %343, %353 : vector<6x32xf32>
    %c0_193 = arith.constant 0 : index
    %c0_194 = arith.constant 0 : index
    %355 = vector.load %arg12[%c0_193, %c0_194] : memref<18x32xf32, #tpu.memory_space<vmem>>, vector<1x32xf32>
    %c1_195 = arith.constant 1 : index
    %c0_196 = arith.constant 0 : index
    %356 = vector.load %arg12[%c1_195, %c0_196] : memref<18x32xf32, #tpu.memory_space<vmem>>, vector<1x32xf32>
    %cst_197 = arith.constant dense<0.000000e+00> : vector<6xf32>
    %357 = vector.multi_reduction <add>, %354, %cst_197 [1] : vector<6x32xf32> to vector<6xf32>
    %358 = vector.shape_cast %357 : vector<6xf32> to vector<6x1xf32>
    %cst_198 = arith.constant 3.200000e+01 : f32
    %359 = vector.broadcast %cst_198 : f32 to vector<6x1xf32>
    %360 = arith.divf %358, %359 : vector<6x1xf32>
    %361 = vector.broadcast %360 : vector<6x1xf32> to vector<6x32xf32>
    %362 = arith.subf %354, %361 : vector<6x32xf32>
    %363 = arith.mulf %362, %362 : vector<6x32xf32>
    %cst_199 = arith.constant dense<0.000000e+00> : vector<6xf32>
    %364 = vector.multi_reduction <add>, %363, %cst_199 [1] : vector<6x32xf32> to vector<6xf32>
    %365 = vector.shape_cast %364 : vector<6xf32> to vector<6x1xf32>
    %cst_200 = arith.constant 3.200000e+01 : f32
    %366 = vector.broadcast %cst_200 : f32 to vector<6x1xf32>
    %367 = arith.divf %365, %366 : vector<6x1xf32>
    %368 = vector.broadcast %360 : vector<6x1xf32> to vector<6x32xf32>
    %369 = arith.subf %354, %368 : vector<6x32xf32>
    %cst_201 = arith.constant 9.99999974E-6 : f32
    %370 = vector.broadcast %cst_201 : f32 to vector<6x1xf32>
    %371 = arith.addf %367, %370 : vector<6x1xf32>
    %372 = math.rsqrt %371 : vector<6x1xf32>
    %373 = vector.broadcast %372 : vector<6x1xf32> to vector<6x32xf32>
    %374 = arith.mulf %369, %373 : vector<6x32xf32>
    %375 = vector.broadcast %355 : vector<1x32xf32> to vector<6x32xf32>
    %376 = arith.mulf %374, %375 : vector<6x32xf32>
    %377 = vector.broadcast %356 : vector<1x32xf32> to vector<6x32xf32>
    %378 = arith.addf %376, %377 : vector<6x32xf32>
    %c0_202 = arith.constant 0 : index
    %c0_203 = arith.constant 0 : index
    %379 = vector.load %arg4[%c0_202, %c0_203] : memref<32x32xf32, #tpu.memory_space<vmem>>, vector<32x32xf32>
    %cst_204 = arith.constant dense<0.000000e+00> : vector<6x32xf32>
    %380 = tpu.matmul %378, %379, %cst_204 {dimension_numbers = #tpu.dot_dimension_numbers<[1], [0], [0], [1], [0, 0, 1, 1], [], []>} : vector<6x32xf32>, vector<32x32xf32>, vector<6x32xf32> -> vector<6x32xf32>
    %c2_205 = arith.constant 2 : index
    %c0_206 = arith.constant 0 : index
    %381 = vector.load %arg12[%c2_205, %c0_206] : memref<18x32xf32, #tpu.memory_space<vmem>>, vector<1x32xf32>
    %382 = vector.broadcast %381 : vector<1x32xf32> to vector<6x32xf32>
    %383 = arith.addf %380, %382 : vector<6x32xf32>
    %cst_207 = arith.constant 0.000000e+00 : f32
    %384 = vector.broadcast %cst_207 : f32 to vector<5x32xf32>
    %cst_208 = arith.constant 0.000000e+00 : f32
    %385 = vector.broadcast %cst_208 : f32 to vector<5x32xf32>
    %386 = tpu.concatenate %384, %383, %385 in 0 : vector<5x32xf32>, vector<6x32xf32>, vector<5x32xf32> -> vector<16x32xf32>
    %387 = vector.extract_strided_slice %386 {offsets = [0, 0], sizes = [6, 32], strides = [1, 1]} : vector<16x32xf32> to vector<6x32xf32>
    %388 = vector.extract_strided_slice %386 {offsets = [1, 0], sizes = [6, 32], strides = [1, 1]} : vector<16x32xf32> to vector<6x32xf32>
    %389 = vector.extract_strided_slice %386 {offsets = [2, 0], sizes = [6, 32], strides = [1, 1]} : vector<16x32xf32> to vector<6x32xf32>
    %390 = vector.extract_strided_slice %386 {offsets = [3, 0], sizes = [6, 32], strides = [1, 1]} : vector<16x32xf32> to vector<6x32xf32>
    %391 = vector.extract_strided_slice %386 {offsets = [4, 0], sizes = [6, 32], strides = [1, 1]} : vector<16x32xf32> to vector<6x32xf32>
    %392 = vector.extract_strided_slice %386 {offsets = [5, 0], sizes = [6, 32], strides = [1, 1]} : vector<16x32xf32> to vector<6x32xf32>
    %393 = vector.extract_strided_slice %386 {offsets = [6, 0], sizes = [6, 32], strides = [1, 1]} : vector<16x32xf32> to vector<6x32xf32>
    %394 = vector.extract_strided_slice %386 {offsets = [7, 0], sizes = [6, 32], strides = [1, 1]} : vector<16x32xf32> to vector<6x32xf32>
    %395 = vector.extract_strided_slice %386 {offsets = [8, 0], sizes = [6, 32], strides = [1, 1]} : vector<16x32xf32> to vector<6x32xf32>
    %396 = vector.extract_strided_slice %386 {offsets = [9, 0], sizes = [6, 32], strides = [1, 1]} : vector<16x32xf32> to vector<6x32xf32>
    %397 = vector.extract_strided_slice %386 {offsets = [10, 0], sizes = [6, 32], strides = [1, 1]} : vector<16x32xf32> to vector<6x32xf32>
    %398 = tpu.concatenate %387, %388, %389, %390, %391, %392, %393, %394, %395, %396, %397 in 1 : vector<6x32xf32>, vector<6x32xf32>, vector<6x32xf32>, vector<6x32xf32>, vector<6x32xf32>, vector<6x32xf32>, vector<6x32xf32>, vector<6x32xf32>, vector<6x32xf32>, vector<6x32xf32>, vector<6x32xf32> -> vector<6x352xf32>
    %c0_209 = arith.constant 0 : index
    %c0_210 = arith.constant 0 : index
    %399 = vector.load %arg5[%c0_209, %c0_210] : memref<352x32xf32, #tpu.memory_space<vmem>>, vector<352x32xf32>
    %cst_211 = arith.constant dense<0.000000e+00> : vector<6x32xf32>
    %400 = tpu.matmul %398, %399, %cst_211 {dimension_numbers = #tpu.dot_dimension_numbers<[1], [0], [0], [1], [0, 0, 1, 1], [], []>} : vector<6x352xf32>, vector<352x32xf32>, vector<6x32xf32> -> vector<6x32xf32>
    %c3_212 = arith.constant 3 : index
    %c0_213 = arith.constant 0 : index
    %401 = vector.load %arg12[%c3_212, %c0_213] : memref<18x32xf32, #tpu.memory_space<vmem>>, vector<1x32xf32>
    %402 = vector.broadcast %401 : vector<1x32xf32> to vector<6x32xf32>
    %403 = arith.addf %400, %402 : vector<6x32xf32>
    %cst_214 = arith.constant 5.000000e-01 : f32
    %404 = vector.broadcast %cst_214 : f32 to vector<6x32xf32>
    %405 = arith.mulf %404, %403 : vector<6x32xf32>
    %cst_215 = arith.constant 4.471500e-02 : f32
    %406 = vector.broadcast %cst_215 : f32 to vector<6x32xf32>
    %407 = arith.mulf %406, %403 : vector<6x32xf32>
    %408 = arith.mulf %407, %403 : vector<6x32xf32>
    %409 = arith.mulf %408, %403 : vector<6x32xf32>
    %410 = arith.addf %403, %409 : vector<6x32xf32>
    %cst_216 = arith.constant 0.797884583 : f32
    %411 = vector.broadcast %cst_216 : f32 to vector<6x32xf32>
    %412 = arith.mulf %411, %410 : vector<6x32xf32>
    %413 = math.tanh %412 : vector<6x32xf32>
    %cst_217 = arith.constant 1.000000e+00 : f32
    %414 = vector.broadcast %cst_217 : f32 to vector<6x32xf32>
    %415 = arith.addf %414, %413 : vector<6x32xf32>
    %416 = arith.mulf %405, %415 : vector<6x32xf32>
    %417 = arith.addf %383, %416 : vector<6x32xf32>
    %c4_218 = arith.constant 4 : index
    %c0_219 = arith.constant 0 : index
    %418 = vector.load %arg12[%c4_218, %c0_219] : memref<18x32xf32, #tpu.memory_space<vmem>>, vector<1x32xf32>
    %c5_220 = arith.constant 5 : index
    %c0_221 = arith.constant 0 : index
    %419 = vector.load %arg12[%c5_220, %c0_221] : memref<18x32xf32, #tpu.memory_space<vmem>>, vector<1x32xf32>
    %cst_222 = arith.constant dense<0.000000e+00> : vector<6xf32>
    %420 = vector.multi_reduction <add>, %417, %cst_222 [1] : vector<6x32xf32> to vector<6xf32>
    %421 = vector.shape_cast %420 : vector<6xf32> to vector<6x1xf32>
    %cst_223 = arith.constant 3.200000e+01 : f32
    %422 = vector.broadcast %cst_223 : f32 to vector<6x1xf32>
    %423 = arith.divf %421, %422 : vector<6x1xf32>
    %424 = vector.broadcast %423 : vector<6x1xf32> to vector<6x32xf32>
    %425 = arith.subf %417, %424 : vector<6x32xf32>
    %426 = arith.mulf %425, %425 : vector<6x32xf32>
    %cst_224 = arith.constant dense<0.000000e+00> : vector<6xf32>
    %427 = vector.multi_reduction <add>, %426, %cst_224 [1] : vector<6x32xf32> to vector<6xf32>
    %428 = vector.shape_cast %427 : vector<6xf32> to vector<6x1xf32>
    %cst_225 = arith.constant 3.200000e+01 : f32
    %429 = vector.broadcast %cst_225 : f32 to vector<6x1xf32>
    %430 = arith.divf %428, %429 : vector<6x1xf32>
    %431 = vector.broadcast %423 : vector<6x1xf32> to vector<6x32xf32>
    %432 = arith.subf %417, %431 : vector<6x32xf32>
    %cst_226 = arith.constant 9.99999974E-6 : f32
    %433 = vector.broadcast %cst_226 : f32 to vector<6x1xf32>
    %434 = arith.addf %430, %433 : vector<6x1xf32>
    %435 = math.rsqrt %434 : vector<6x1xf32>
    %436 = vector.broadcast %435 : vector<6x1xf32> to vector<6x32xf32>
    %437 = arith.mulf %432, %436 : vector<6x32xf32>
    %438 = vector.broadcast %418 : vector<1x32xf32> to vector<6x32xf32>
    %439 = arith.mulf %437, %438 : vector<6x32xf32>
    %440 = vector.broadcast %419 : vector<1x32xf32> to vector<6x32xf32>
    %441 = arith.addf %439, %440 : vector<6x32xf32>
    %cst_227 = arith.constant 0.000000e+00 : f32
    %442 = vector.broadcast %cst_227 : f32 to vector<6x32xf32>
    %c0_228 = arith.constant 0 : index
    %c0_229 = arith.constant 0 : index
    %c0_230 = arith.constant 0 : index
    %443 = vector.load %arg6[%c0_228, %c0_229, %c0_230] : memref<24x32x8xf32, #tpu.memory_space<vmem>>, vector<1x32x8xf32>
    %444 = vector.shape_cast %443 : vector<1x32x8xf32> to vector<32x8xf32>
    %cst_231 = arith.constant dense<0.000000e+00> : vector<6x8xf32>
    %445 = tpu.matmul %441, %444, %cst_231 {dimension_numbers = #tpu.dot_dimension_numbers<[1], [0], [0], [1], [0, 0, 1, 1], [], []>} : vector<6x32xf32>, vector<32x8xf32>, vector<6x8xf32> -> vector<6x8xf32>
    %c0_232 = arith.constant 0 : index
    %c0_233 = arith.constant 0 : index
    %c0_234 = arith.constant 0 : index
    %446 = vector.load %arg7[%c0_232, %c0_233, %c0_234] : memref<8x1x8xf32, #tpu.memory_space<vmem>>, vector<1x1x8xf32>
    %447 = vector.shape_cast %446 : vector<1x1x8xf32> to vector<1x8xf32>
    %448 = vector.broadcast %447 : vector<1x8xf32> to vector<6x8xf32>
    %449 = arith.addf %445, %448 : vector<6x8xf32>
    %c4_235 = arith.constant 4 : index
    %c0_236 = arith.constant 0 : index
    %c0_237 = arith.constant 0 : index
    %450 = vector.load %arg6[%c4_235, %c0_236, %c0_237] : memref<24x32x8xf32, #tpu.memory_space<vmem>>, vector<1x32x8xf32>
    %451 = vector.shape_cast %450 : vector<1x32x8xf32> to vector<32x8xf32>
    %cst_238 = arith.constant dense<0.000000e+00> : vector<6x8xf32>
    %452 = tpu.matmul %441, %451, %cst_238 {dimension_numbers = #tpu.dot_dimension_numbers<[1], [0], [0], [1], [0, 0, 1, 1], [], []>} : vector<6x32xf32>, vector<32x8xf32>, vector<6x8xf32> -> vector<6x8xf32>
    %c8 = arith.constant 8 : index
    %c0_239 = arith.constant 0 : index
    %c0_240 = arith.constant 0 : index
    %453 = vector.load %arg6[%c8, %c0_239, %c0_240] : memref<24x32x8xf32, #tpu.memory_space<vmem>>, vector<1x32x8xf32>
    %454 = vector.shape_cast %453 : vector<1x32x8xf32> to vector<32x8xf32>
    %cst_241 = arith.constant dense<0.000000e+00> : vector<6x8xf32>
    %455 = tpu.matmul %441, %454, %cst_241 {dimension_numbers = #tpu.dot_dimension_numbers<[1], [0], [0], [1], [0, 0, 1, 1], [], []>} : vector<6x32xf32>, vector<32x8xf32>, vector<6x8xf32> -> vector<6x8xf32>
    %cst_242 = arith.constant dense<0.000000e+00> : vector<6x6xf32>
    %456 = tpu.matmul %449, %452, %cst_242 {dimension_numbers = #tpu.dot_dimension_numbers<[1], [1], [0], [0], [0, 0, 1, 0], [], []>} : vector<6x8xf32>, vector<6x8xf32>, vector<6x6xf32> -> vector<6x6xf32>
    %cst_243 = arith.constant dense<0xFF800000> : vector<6xf32>
    %457 = vector.multi_reduction <maximumf>, %456, %cst_243 [1] : vector<6x6xf32> to vector<6xf32>
    %458 = vector.shape_cast %457 : vector<6xf32> to vector<6x1xf32>
    %459 = vector.broadcast %458 : vector<6x1xf32> to vector<6x6xf32>
    %460 = arith.subf %456, %459 : vector<6x6xf32>
    %461 = math.exp %460 : vector<6x6xf32>
    %cst_244 = arith.constant dense<0.000000e+00> : vector<6xf32>
    %462 = vector.multi_reduction <add>, %461, %cst_244 [1] : vector<6x6xf32> to vector<6xf32>
    %463 = vector.shape_cast %462 : vector<6xf32> to vector<6x1xf32>
    %464 = tpu.reciprocal %463 {approx = true} : vector<6x1xf32> -> vector<6x1xf32>
    %465 = vector.broadcast %464 : vector<6x1xf32> to vector<6x6xf32>
    %466 = arith.mulf %461, %465 : vector<6x6xf32>
    %cst_245 = arith.constant dense<0.000000e+00> : vector<6x8xf32>
    %467 = tpu.matmul %466, %455, %cst_245 {dimension_numbers = #tpu.dot_dimension_numbers<[1], [0], [0], [1], [0, 0, 1, 1], [], []>} : vector<6x6xf32>, vector<6x8xf32>, vector<6x8xf32> -> vector<6x8xf32>
    %c0_246 = arith.constant 0 : index
    %c0_247 = arith.constant 0 : index
    %c0_248 = arith.constant 0 : index
    %468 = vector.load %arg8[%c0_246, %c0_247, %c0_248] : memref<8x8x32xf32, #tpu.memory_space<vmem>>, vector<1x8x32xf32>
    %469 = vector.shape_cast %468 : vector<1x8x32xf32> to vector<8x32xf32>
    %cst_249 = arith.constant dense<0.000000e+00> : vector<6x32xf32>
    %470 = tpu.matmul %467, %469, %cst_249 {dimension_numbers = #tpu.dot_dimension_numbers<[1], [0], [0], [1], [0, 0, 1, 1], [], []>} : vector<6x8xf32>, vector<8x32xf32>, vector<6x32xf32> -> vector<6x32xf32>
    %471 = arith.addf %442, %470 : vector<6x32xf32>
    %c1_250 = arith.constant 1 : index
    %c0_251 = arith.constant 0 : index
    %c0_252 = arith.constant 0 : index
    %472 = vector.load %arg6[%c1_250, %c0_251, %c0_252] : memref<24x32x8xf32, #tpu.memory_space<vmem>>, vector<1x32x8xf32>
    %473 = vector.shape_cast %472 : vector<1x32x8xf32> to vector<32x8xf32>
    %cst_253 = arith.constant dense<0.000000e+00> : vector<6x8xf32>
    %474 = tpu.matmul %441, %473, %cst_253 {dimension_numbers = #tpu.dot_dimension_numbers<[1], [0], [0], [1], [0, 0, 1, 1], [], []>} : vector<6x32xf32>, vector<32x8xf32>, vector<6x8xf32> -> vector<6x8xf32>
    %c1_254 = arith.constant 1 : index
    %c0_255 = arith.constant 0 : index
    %c0_256 = arith.constant 0 : index
    %475 = vector.load %arg7[%c1_254, %c0_255, %c0_256] : memref<8x1x8xf32, #tpu.memory_space<vmem>>, vector<1x1x8xf32>
    %476 = vector.shape_cast %475 : vector<1x1x8xf32> to vector<1x8xf32>
    %477 = vector.broadcast %476 : vector<1x8xf32> to vector<6x8xf32>
    %478 = arith.addf %474, %477 : vector<6x8xf32>
    %c5_257 = arith.constant 5 : index
    %c0_258 = arith.constant 0 : index
    %c0_259 = arith.constant 0 : index
    %479 = vector.load %arg6[%c5_257, %c0_258, %c0_259] : memref<24x32x8xf32, #tpu.memory_space<vmem>>, vector<1x32x8xf32>
    %480 = vector.shape_cast %479 : vector<1x32x8xf32> to vector<32x8xf32>
    %cst_260 = arith.constant dense<0.000000e+00> : vector<6x8xf32>
    %481 = tpu.matmul %441, %480, %cst_260 {dimension_numbers = #tpu.dot_dimension_numbers<[1], [0], [0], [1], [0, 0, 1, 1], [], []>} : vector<6x32xf32>, vector<32x8xf32>, vector<6x8xf32> -> vector<6x8xf32>
    %c9 = arith.constant 9 : index
    %c0_261 = arith.constant 0 : index
    %c0_262 = arith.constant 0 : index
    %482 = vector.load %arg6[%c9, %c0_261, %c0_262] : memref<24x32x8xf32, #tpu.memory_space<vmem>>, vector<1x32x8xf32>
    %483 = vector.shape_cast %482 : vector<1x32x8xf32> to vector<32x8xf32>
    %cst_263 = arith.constant dense<0.000000e+00> : vector<6x8xf32>
    %484 = tpu.matmul %441, %483, %cst_263 {dimension_numbers = #tpu.dot_dimension_numbers<[1], [0], [0], [1], [0, 0, 1, 1], [], []>} : vector<6x32xf32>, vector<32x8xf32>, vector<6x8xf32> -> vector<6x8xf32>
    %cst_264 = arith.constant dense<0.000000e+00> : vector<6x6xf32>
    %485 = tpu.matmul %478, %481, %cst_264 {dimension_numbers = #tpu.dot_dimension_numbers<[1], [1], [0], [0], [0, 0, 1, 0], [], []>} : vector<6x8xf32>, vector<6x8xf32>, vector<6x6xf32> -> vector<6x6xf32>
    %cst_265 = arith.constant dense<0xFF800000> : vector<6xf32>
    %486 = vector.multi_reduction <maximumf>, %485, %cst_265 [1] : vector<6x6xf32> to vector<6xf32>
    %487 = vector.shape_cast %486 : vector<6xf32> to vector<6x1xf32>
    %488 = vector.broadcast %487 : vector<6x1xf32> to vector<6x6xf32>
    %489 = arith.subf %485, %488 : vector<6x6xf32>
    %490 = math.exp %489 : vector<6x6xf32>
    %cst_266 = arith.constant dense<0.000000e+00> : vector<6xf32>
    %491 = vector.multi_reduction <add>, %490, %cst_266 [1] : vector<6x6xf32> to vector<6xf32>
    %492 = vector.shape_cast %491 : vector<6xf32> to vector<6x1xf32>
    %493 = tpu.reciprocal %492 {approx = true} : vector<6x1xf32> -> vector<6x1xf32>
    %494 = vector.broadcast %493 : vector<6x1xf32> to vector<6x6xf32>
    %495 = arith.mulf %490, %494 : vector<6x6xf32>
    %cst_267 = arith.constant dense<0.000000e+00> : vector<6x8xf32>
    %496 = tpu.matmul %495, %484, %cst_267 {dimension_numbers = #tpu.dot_dimension_numbers<[1], [0], [0], [1], [0, 0, 1, 1], [], []>} : vector<6x6xf32>, vector<6x8xf32>, vector<6x8xf32> -> vector<6x8xf32>
    %c1_268 = arith.constant 1 : index
    %c0_269 = arith.constant 0 : index
    %c0_270 = arith.constant 0 : index
    %497 = vector.load %arg8[%c1_268, %c0_269, %c0_270] : memref<8x8x32xf32, #tpu.memory_space<vmem>>, vector<1x8x32xf32>
    %498 = vector.shape_cast %497 : vector<1x8x32xf32> to vector<8x32xf32>
    %cst_271 = arith.constant dense<0.000000e+00> : vector<6x32xf32>
    %499 = tpu.matmul %496, %498, %cst_271 {dimension_numbers = #tpu.dot_dimension_numbers<[1], [0], [0], [1], [0, 0, 1, 1], [], []>} : vector<6x8xf32>, vector<8x32xf32>, vector<6x32xf32> -> vector<6x32xf32>
    %500 = arith.addf %471, %499 : vector<6x32xf32>
    %c2_272 = arith.constant 2 : index
    %c0_273 = arith.constant 0 : index
    %c0_274 = arith.constant 0 : index
    %501 = vector.load %arg6[%c2_272, %c0_273, %c0_274] : memref<24x32x8xf32, #tpu.memory_space<vmem>>, vector<1x32x8xf32>
    %502 = vector.shape_cast %501 : vector<1x32x8xf32> to vector<32x8xf32>
    %cst_275 = arith.constant dense<0.000000e+00> : vector<6x8xf32>
    %503 = tpu.matmul %441, %502, %cst_275 {dimension_numbers = #tpu.dot_dimension_numbers<[1], [0], [0], [1], [0, 0, 1, 1], [], []>} : vector<6x32xf32>, vector<32x8xf32>, vector<6x8xf32> -> vector<6x8xf32>
    %c2_276 = arith.constant 2 : index
    %c0_277 = arith.constant 0 : index
    %c0_278 = arith.constant 0 : index
    %504 = vector.load %arg7[%c2_276, %c0_277, %c0_278] : memref<8x1x8xf32, #tpu.memory_space<vmem>>, vector<1x1x8xf32>
    %505 = vector.shape_cast %504 : vector<1x1x8xf32> to vector<1x8xf32>
    %506 = vector.broadcast %505 : vector<1x8xf32> to vector<6x8xf32>
    %507 = arith.addf %503, %506 : vector<6x8xf32>
    %c6_279 = arith.constant 6 : index
    %c0_280 = arith.constant 0 : index
    %c0_281 = arith.constant 0 : index
    %508 = vector.load %arg6[%c6_279, %c0_280, %c0_281] : memref<24x32x8xf32, #tpu.memory_space<vmem>>, vector<1x32x8xf32>
    %509 = vector.shape_cast %508 : vector<1x32x8xf32> to vector<32x8xf32>
    %cst_282 = arith.constant dense<0.000000e+00> : vector<6x8xf32>
    %510 = tpu.matmul %441, %509, %cst_282 {dimension_numbers = #tpu.dot_dimension_numbers<[1], [0], [0], [1], [0, 0, 1, 1], [], []>} : vector<6x32xf32>, vector<32x8xf32>, vector<6x8xf32> -> vector<6x8xf32>
    %c10 = arith.constant 10 : index
    %c0_283 = arith.constant 0 : index
    %c0_284 = arith.constant 0 : index
    %511 = vector.load %arg6[%c10, %c0_283, %c0_284] : memref<24x32x8xf32, #tpu.memory_space<vmem>>, vector<1x32x8xf32>
    %512 = vector.shape_cast %511 : vector<1x32x8xf32> to vector<32x8xf32>
    %cst_285 = arith.constant dense<0.000000e+00> : vector<6x8xf32>
    %513 = tpu.matmul %441, %512, %cst_285 {dimension_numbers = #tpu.dot_dimension_numbers<[1], [0], [0], [1], [0, 0, 1, 1], [], []>} : vector<6x32xf32>, vector<32x8xf32>, vector<6x8xf32> -> vector<6x8xf32>
    %cst_286 = arith.constant dense<0.000000e+00> : vector<6x6xf32>
    %514 = tpu.matmul %507, %510, %cst_286 {dimension_numbers = #tpu.dot_dimension_numbers<[1], [1], [0], [0], [0, 0, 1, 0], [], []>} : vector<6x8xf32>, vector<6x8xf32>, vector<6x6xf32> -> vector<6x6xf32>
    %cst_287 = arith.constant dense<0xFF800000> : vector<6xf32>
    %515 = vector.multi_reduction <maximumf>, %514, %cst_287 [1] : vector<6x6xf32> to vector<6xf32>
    %516 = vector.shape_cast %515 : vector<6xf32> to vector<6x1xf32>
    %517 = vector.broadcast %516 : vector<6x1xf32> to vector<6x6xf32>
    %518 = arith.subf %514, %517 : vector<6x6xf32>
    %519 = math.exp %518 : vector<6x6xf32>
    %cst_288 = arith.constant dense<0.000000e+00> : vector<6xf32>
    %520 = vector.multi_reduction <add>, %519, %cst_288 [1] : vector<6x6xf32> to vector<6xf32>
    %521 = vector.shape_cast %520 : vector<6xf32> to vector<6x1xf32>
    %522 = tpu.reciprocal %521 {approx = true} : vector<6x1xf32> -> vector<6x1xf32>
    %523 = vector.broadcast %522 : vector<6x1xf32> to vector<6x6xf32>
    %524 = arith.mulf %519, %523 : vector<6x6xf32>
    %cst_289 = arith.constant dense<0.000000e+00> : vector<6x8xf32>
    %525 = tpu.matmul %524, %513, %cst_289 {dimension_numbers = #tpu.dot_dimension_numbers<[1], [0], [0], [1], [0, 0, 1, 1], [], []>} : vector<6x6xf32>, vector<6x8xf32>, vector<6x8xf32> -> vector<6x8xf32>
    %c2_290 = arith.constant 2 : index
    %c0_291 = arith.constant 0 : index
    %c0_292 = arith.constant 0 : index
    %526 = vector.load %arg8[%c2_290, %c0_291, %c0_292] : memref<8x8x32xf32, #tpu.memory_space<vmem>>, vector<1x8x32xf32>
    %527 = vector.shape_cast %526 : vector<1x8x32xf32> to vector<8x32xf32>
    %cst_293 = arith.constant dense<0.000000e+00> : vector<6x32xf32>
    %528 = tpu.matmul %525, %527, %cst_293 {dimension_numbers = #tpu.dot_dimension_numbers<[1], [0], [0], [1], [0, 0, 1, 1], [], []>} : vector<6x8xf32>, vector<8x32xf32>, vector<6x32xf32> -> vector<6x32xf32>
    %529 = arith.addf %500, %528 : vector<6x32xf32>
    %c3_294 = arith.constant 3 : index
    %c0_295 = arith.constant 0 : index
    %c0_296 = arith.constant 0 : index
    %530 = vector.load %arg6[%c3_294, %c0_295, %c0_296] : memref<24x32x8xf32, #tpu.memory_space<vmem>>, vector<1x32x8xf32>
    %531 = vector.shape_cast %530 : vector<1x32x8xf32> to vector<32x8xf32>
    %cst_297 = arith.constant dense<0.000000e+00> : vector<6x8xf32>
    %532 = tpu.matmul %441, %531, %cst_297 {dimension_numbers = #tpu.dot_dimension_numbers<[1], [0], [0], [1], [0, 0, 1, 1], [], []>} : vector<6x32xf32>, vector<32x8xf32>, vector<6x8xf32> -> vector<6x8xf32>
    %c3_298 = arith.constant 3 : index
    %c0_299 = arith.constant 0 : index
    %c0_300 = arith.constant 0 : index
    %533 = vector.load %arg7[%c3_298, %c0_299, %c0_300] : memref<8x1x8xf32, #tpu.memory_space<vmem>>, vector<1x1x8xf32>
    %534 = vector.shape_cast %533 : vector<1x1x8xf32> to vector<1x8xf32>
    %535 = vector.broadcast %534 : vector<1x8xf32> to vector<6x8xf32>
    %536 = arith.addf %532, %535 : vector<6x8xf32>
    %c7 = arith.constant 7 : index
    %c0_301 = arith.constant 0 : index
    %c0_302 = arith.constant 0 : index
    %537 = vector.load %arg6[%c7, %c0_301, %c0_302] : memref<24x32x8xf32, #tpu.memory_space<vmem>>, vector<1x32x8xf32>
    %538 = vector.shape_cast %537 : vector<1x32x8xf32> to vector<32x8xf32>
    %cst_303 = arith.constant dense<0.000000e+00> : vector<6x8xf32>
    %539 = tpu.matmul %441, %538, %cst_303 {dimension_numbers = #tpu.dot_dimension_numbers<[1], [0], [0], [1], [0, 0, 1, 1], [], []>} : vector<6x32xf32>, vector<32x8xf32>, vector<6x8xf32> -> vector<6x8xf32>
    %c11 = arith.constant 11 : index
    %c0_304 = arith.constant 0 : index
    %c0_305 = arith.constant 0 : index
    %540 = vector.load %arg6[%c11, %c0_304, %c0_305] : memref<24x32x8xf32, #tpu.memory_space<vmem>>, vector<1x32x8xf32>
    %541 = vector.shape_cast %540 : vector<1x32x8xf32> to vector<32x8xf32>
    %cst_306 = arith.constant dense<0.000000e+00> : vector<6x8xf32>
    %542 = tpu.matmul %441, %541, %cst_306 {dimension_numbers = #tpu.dot_dimension_numbers<[1], [0], [0], [1], [0, 0, 1, 1], [], []>} : vector<6x32xf32>, vector<32x8xf32>, vector<6x8xf32> -> vector<6x8xf32>
    %cst_307 = arith.constant dense<0.000000e+00> : vector<6x6xf32>
    %543 = tpu.matmul %536, %539, %cst_307 {dimension_numbers = #tpu.dot_dimension_numbers<[1], [1], [0], [0], [0, 0, 1, 0], [], []>} : vector<6x8xf32>, vector<6x8xf32>, vector<6x6xf32> -> vector<6x6xf32>
    %cst_308 = arith.constant dense<0xFF800000> : vector<6xf32>
    %544 = vector.multi_reduction <maximumf>, %543, %cst_308 [1] : vector<6x6xf32> to vector<6xf32>
    %545 = vector.shape_cast %544 : vector<6xf32> to vector<6x1xf32>
    %546 = vector.broadcast %545 : vector<6x1xf32> to vector<6x6xf32>
    %547 = arith.subf %543, %546 : vector<6x6xf32>
    %548 = math.exp %547 : vector<6x6xf32>
    %cst_309 = arith.constant dense<0.000000e+00> : vector<6xf32>
    %549 = vector.multi_reduction <add>, %548, %cst_309 [1] : vector<6x6xf32> to vector<6xf32>
    %550 = vector.shape_cast %549 : vector<6xf32> to vector<6x1xf32>
    %551 = tpu.reciprocal %550 {approx = true} : vector<6x1xf32> -> vector<6x1xf32>
    %552 = vector.broadcast %551 : vector<6x1xf32> to vector<6x6xf32>
    %553 = arith.mulf %548, %552 : vector<6x6xf32>
    %cst_310 = arith.constant dense<0.000000e+00> : vector<6x8xf32>
    %554 = tpu.matmul %553, %542, %cst_310 {dimension_numbers = #tpu.dot_dimension_numbers<[1], [0], [0], [1], [0, 0, 1, 1], [], []>} : vector<6x6xf32>, vector<6x8xf32>, vector<6x8xf32> -> vector<6x8xf32>
    %c3_311 = arith.constant 3 : index
    %c0_312 = arith.constant 0 : index
    %c0_313 = arith.constant 0 : index
    %555 = vector.load %arg8[%c3_311, %c0_312, %c0_313] : memref<8x8x32xf32, #tpu.memory_space<vmem>>, vector<1x8x32xf32>
    %556 = vector.shape_cast %555 : vector<1x8x32xf32> to vector<8x32xf32>
    %cst_314 = arith.constant dense<0.000000e+00> : vector<6x32xf32>
    %557 = tpu.matmul %554, %556, %cst_314 {dimension_numbers = #tpu.dot_dimension_numbers<[1], [0], [0], [1], [0, 0, 1, 1], [], []>} : vector<6x8xf32>, vector<8x32xf32>, vector<6x32xf32> -> vector<6x32xf32>
    %558 = arith.addf %529, %557 : vector<6x32xf32>
    %559 = arith.addf %417, %558 : vector<6x32xf32>
    %c6_315 = arith.constant 6 : index
    %c0_316 = arith.constant 0 : index
    %560 = vector.load %arg12[%c6_315, %c0_316] : memref<18x32xf32, #tpu.memory_space<vmem>>, vector<1x32xf32>
    %561 = vector.broadcast %560 : vector<1x32xf32> to vector<6x32xf32>
    %562 = arith.addf %559, %561 : vector<6x32xf32>
    %c7_317 = arith.constant 7 : index
    %c0_318 = arith.constant 0 : index
    %563 = vector.load %arg12[%c7_317, %c0_318] : memref<18x32xf32, #tpu.memory_space<vmem>>, vector<1x32xf32>
    %c8_319 = arith.constant 8 : index
    %c0_320 = arith.constant 0 : index
    %564 = vector.load %arg12[%c8_319, %c0_320] : memref<18x32xf32, #tpu.memory_space<vmem>>, vector<1x32xf32>
    %cst_321 = arith.constant dense<0.000000e+00> : vector<6xf32>
    %565 = vector.multi_reduction <add>, %562, %cst_321 [1] : vector<6x32xf32> to vector<6xf32>
    %566 = vector.shape_cast %565 : vector<6xf32> to vector<6x1xf32>
    %cst_322 = arith.constant 3.200000e+01 : f32
    %567 = vector.broadcast %cst_322 : f32 to vector<6x1xf32>
    %568 = arith.divf %566, %567 : vector<6x1xf32>
    %569 = vector.broadcast %568 : vector<6x1xf32> to vector<6x32xf32>
    %570 = arith.subf %562, %569 : vector<6x32xf32>
    %571 = arith.mulf %570, %570 : vector<6x32xf32>
    %cst_323 = arith.constant dense<0.000000e+00> : vector<6xf32>
    %572 = vector.multi_reduction <add>, %571, %cst_323 [1] : vector<6x32xf32> to vector<6xf32>
    %573 = vector.shape_cast %572 : vector<6xf32> to vector<6x1xf32>
    %cst_324 = arith.constant 3.200000e+01 : f32
    %574 = vector.broadcast %cst_324 : f32 to vector<6x1xf32>
    %575 = arith.divf %573, %574 : vector<6x1xf32>
    %576 = vector.broadcast %568 : vector<6x1xf32> to vector<6x32xf32>
    %577 = arith.subf %562, %576 : vector<6x32xf32>
    %cst_325 = arith.constant 9.99999974E-6 : f32
    %578 = vector.broadcast %cst_325 : f32 to vector<6x1xf32>
    %579 = arith.addf %575, %578 : vector<6x1xf32>
    %580 = math.rsqrt %579 : vector<6x1xf32>
    %581 = vector.broadcast %580 : vector<6x1xf32> to vector<6x32xf32>
    %582 = arith.mulf %577, %581 : vector<6x32xf32>
    %583 = vector.broadcast %563 : vector<1x32xf32> to vector<6x32xf32>
    %584 = arith.mulf %582, %583 : vector<6x32xf32>
    %585 = vector.broadcast %564 : vector<1x32xf32> to vector<6x32xf32>
    %586 = arith.addf %584, %585 : vector<6x32xf32>
    %c0_326 = arith.constant 0 : index
    %c0_327 = arith.constant 0 : index
    %c0_328 = arith.constant 0 : index
    %587 = vector.load %arg9[%c0_326, %c0_327, %c0_328] : memref<2x32x64xf32, #tpu.memory_space<vmem>>, vector<1x32x64xf32>
    %588 = vector.shape_cast %587 : vector<1x32x64xf32> to vector<32x64xf32>
    %cst_329 = arith.constant dense<0.000000e+00> : vector<6x64xf32>
    %589 = tpu.matmul %586, %588, %cst_329 {dimension_numbers = #tpu.dot_dimension_numbers<[1], [0], [0], [1], [0, 0, 1, 1], [], []>} : vector<6x32xf32>, vector<32x64xf32>, vector<6x64xf32> -> vector<6x64xf32>
    %c0_330 = arith.constant 0 : index
    %c0_331 = arith.constant 0 : index
    %c0_332 = arith.constant 0 : index
    %590 = vector.load %arg10[%c0_330, %c0_331, %c0_332] : memref<2x1x64xf32, #tpu.memory_space<vmem>>, vector<1x1x64xf32>
    %591 = vector.shape_cast %590 : vector<1x1x64xf32> to vector<1x64xf32>
    %592 = vector.broadcast %591 : vector<1x64xf32> to vector<6x64xf32>
    %593 = arith.addf %589, %592 : vector<6x64xf32>
    %cst_333 = arith.constant 5.000000e-01 : f32
    %594 = vector.broadcast %cst_333 : f32 to vector<6x64xf32>
    %595 = arith.mulf %594, %593 : vector<6x64xf32>
    %cst_334 = arith.constant 4.471500e-02 : f32
    %596 = vector.broadcast %cst_334 : f32 to vector<6x64xf32>
    %597 = arith.mulf %596, %593 : vector<6x64xf32>
    %598 = arith.mulf %597, %593 : vector<6x64xf32>
    %599 = arith.mulf %598, %593 : vector<6x64xf32>
    %600 = arith.addf %593, %599 : vector<6x64xf32>
    %cst_335 = arith.constant 0.797884583 : f32
    %601 = vector.broadcast %cst_335 : f32 to vector<6x64xf32>
    %602 = arith.mulf %601, %600 : vector<6x64xf32>
    %603 = math.tanh %602 : vector<6x64xf32>
    %cst_336 = arith.constant 1.000000e+00 : f32
    %604 = vector.broadcast %cst_336 : f32 to vector<6x64xf32>
    %605 = arith.addf %604, %603 : vector<6x64xf32>
    %606 = arith.mulf %595, %605 : vector<6x64xf32>
    %c0_337 = arith.constant 0 : index
    %c0_338 = arith.constant 0 : index
    %c0_339 = arith.constant 0 : index
    %607 = vector.load %arg11[%c0_337, %c0_338, %c0_339] : memref<2x64x32xf32, #tpu.memory_space<vmem>>, vector<1x64x32xf32>
    %608 = vector.shape_cast %607 : vector<1x64x32xf32> to vector<64x32xf32>
    %cst_340 = arith.constant dense<0.000000e+00> : vector<6x32xf32>
    %609 = tpu.matmul %606, %608, %cst_340 {dimension_numbers = #tpu.dot_dimension_numbers<[1], [0], [0], [1], [0, 0, 1, 1], [], []>} : vector<6x64xf32>, vector<64x32xf32>, vector<6x32xf32> -> vector<6x32xf32>
    %c9_341 = arith.constant 9 : index
    %c0_342 = arith.constant 0 : index
    %610 = vector.load %arg12[%c9_341, %c0_342] : memref<18x32xf32, #tpu.memory_space<vmem>>, vector<1x32xf32>
    %611 = vector.broadcast %610 : vector<1x32xf32> to vector<6x32xf32>
    %612 = arith.addf %609, %611 : vector<6x32xf32>
    %613 = arith.addf %562, %612 : vector<6x32xf32>
    %c10_343 = arith.constant 10 : index
    %c0_344 = arith.constant 0 : index
    %614 = vector.load %arg12[%c10_343, %c0_344] : memref<18x32xf32, #tpu.memory_space<vmem>>, vector<1x32xf32>
    %c11_345 = arith.constant 11 : index
    %c0_346 = arith.constant 0 : index
    %615 = vector.load %arg12[%c11_345, %c0_346] : memref<18x32xf32, #tpu.memory_space<vmem>>, vector<1x32xf32>
    %cst_347 = arith.constant dense<0.000000e+00> : vector<6xf32>
    %616 = vector.multi_reduction <add>, %613, %cst_347 [1] : vector<6x32xf32> to vector<6xf32>
    %617 = vector.shape_cast %616 : vector<6xf32> to vector<6x1xf32>
    %cst_348 = arith.constant 3.200000e+01 : f32
    %618 = vector.broadcast %cst_348 : f32 to vector<6x1xf32>
    %619 = arith.divf %617, %618 : vector<6x1xf32>
    %620 = vector.broadcast %619 : vector<6x1xf32> to vector<6x32xf32>
    %621 = arith.subf %613, %620 : vector<6x32xf32>
    %622 = arith.mulf %621, %621 : vector<6x32xf32>
    %cst_349 = arith.constant dense<0.000000e+00> : vector<6xf32>
    %623 = vector.multi_reduction <add>, %622, %cst_349 [1] : vector<6x32xf32> to vector<6xf32>
    %624 = vector.shape_cast %623 : vector<6xf32> to vector<6x1xf32>
    %cst_350 = arith.constant 3.200000e+01 : f32
    %625 = vector.broadcast %cst_350 : f32 to vector<6x1xf32>
    %626 = arith.divf %624, %625 : vector<6x1xf32>
    %627 = vector.broadcast %619 : vector<6x1xf32> to vector<6x32xf32>
    %628 = arith.subf %613, %627 : vector<6x32xf32>
    %cst_351 = arith.constant 9.99999974E-6 : f32
    %629 = vector.broadcast %cst_351 : f32 to vector<6x1xf32>
    %630 = arith.addf %626, %629 : vector<6x1xf32>
    %631 = math.rsqrt %630 : vector<6x1xf32>
    %632 = vector.broadcast %631 : vector<6x1xf32> to vector<6x32xf32>
    %633 = arith.mulf %628, %632 : vector<6x32xf32>
    %634 = vector.broadcast %614 : vector<1x32xf32> to vector<6x32xf32>
    %635 = arith.mulf %633, %634 : vector<6x32xf32>
    %636 = vector.broadcast %615 : vector<1x32xf32> to vector<6x32xf32>
    %637 = arith.addf %635, %636 : vector<6x32xf32>
    %cst_352 = arith.constant 0.000000e+00 : f32
    %638 = vector.broadcast %cst_352 : f32 to vector<6x32xf32>
    %c12 = arith.constant 12 : index
    %c0_353 = arith.constant 0 : index
    %c0_354 = arith.constant 0 : index
    %639 = vector.load %arg6[%c12, %c0_353, %c0_354] : memref<24x32x8xf32, #tpu.memory_space<vmem>>, vector<1x32x8xf32>
    %640 = vector.shape_cast %639 : vector<1x32x8xf32> to vector<32x8xf32>
    %cst_355 = arith.constant dense<0.000000e+00> : vector<6x8xf32>
    %641 = tpu.matmul %637, %640, %cst_355 {dimension_numbers = #tpu.dot_dimension_numbers<[1], [0], [0], [1], [0, 0, 1, 1], [], []>} : vector<6x32xf32>, vector<32x8xf32>, vector<6x8xf32> -> vector<6x8xf32>
    %c4_356 = arith.constant 4 : index
    %c0_357 = arith.constant 0 : index
    %c0_358 = arith.constant 0 : index
    %642 = vector.load %arg7[%c4_356, %c0_357, %c0_358] : memref<8x1x8xf32, #tpu.memory_space<vmem>>, vector<1x1x8xf32>
    %643 = vector.shape_cast %642 : vector<1x1x8xf32> to vector<1x8xf32>
    %644 = vector.broadcast %643 : vector<1x8xf32> to vector<6x8xf32>
    %645 = arith.addf %641, %644 : vector<6x8xf32>
    %c16 = arith.constant 16 : index
    %c0_359 = arith.constant 0 : index
    %c0_360 = arith.constant 0 : index
    %646 = vector.load %arg6[%c16, %c0_359, %c0_360] : memref<24x32x8xf32, #tpu.memory_space<vmem>>, vector<1x32x8xf32>
    %647 = vector.shape_cast %646 : vector<1x32x8xf32> to vector<32x8xf32>
    %cst_361 = arith.constant dense<0.000000e+00> : vector<6x8xf32>
    %648 = tpu.matmul %637, %647, %cst_361 {dimension_numbers = #tpu.dot_dimension_numbers<[1], [0], [0], [1], [0, 0, 1, 1], [], []>} : vector<6x32xf32>, vector<32x8xf32>, vector<6x8xf32> -> vector<6x8xf32>
    %c20 = arith.constant 20 : index
    %c0_362 = arith.constant 0 : index
    %c0_363 = arith.constant 0 : index
    %649 = vector.load %arg6[%c20, %c0_362, %c0_363] : memref<24x32x8xf32, #tpu.memory_space<vmem>>, vector<1x32x8xf32>
    %650 = vector.shape_cast %649 : vector<1x32x8xf32> to vector<32x8xf32>
    %cst_364 = arith.constant dense<0.000000e+00> : vector<6x8xf32>
    %651 = tpu.matmul %637, %650, %cst_364 {dimension_numbers = #tpu.dot_dimension_numbers<[1], [0], [0], [1], [0, 0, 1, 1], [], []>} : vector<6x32xf32>, vector<32x8xf32>, vector<6x8xf32> -> vector<6x8xf32>
    %cst_365 = arith.constant dense<0.000000e+00> : vector<6x6xf32>
    %652 = tpu.matmul %645, %648, %cst_365 {dimension_numbers = #tpu.dot_dimension_numbers<[1], [1], [0], [0], [0, 0, 1, 0], [], []>} : vector<6x8xf32>, vector<6x8xf32>, vector<6x6xf32> -> vector<6x6xf32>
    %cst_366 = arith.constant dense<0xFF800000> : vector<6xf32>
    %653 = vector.multi_reduction <maximumf>, %652, %cst_366 [1] : vector<6x6xf32> to vector<6xf32>
    %654 = vector.shape_cast %653 : vector<6xf32> to vector<6x1xf32>
    %655 = vector.broadcast %654 : vector<6x1xf32> to vector<6x6xf32>
    %656 = arith.subf %652, %655 : vector<6x6xf32>
    %657 = math.exp %656 : vector<6x6xf32>
    %cst_367 = arith.constant dense<0.000000e+00> : vector<6xf32>
    %658 = vector.multi_reduction <add>, %657, %cst_367 [1] : vector<6x6xf32> to vector<6xf32>
    %659 = vector.shape_cast %658 : vector<6xf32> to vector<6x1xf32>
    %660 = tpu.reciprocal %659 {approx = true} : vector<6x1xf32> -> vector<6x1xf32>
    %661 = vector.broadcast %660 : vector<6x1xf32> to vector<6x6xf32>
    %662 = arith.mulf %657, %661 : vector<6x6xf32>
    %cst_368 = arith.constant dense<0.000000e+00> : vector<6x8xf32>
    %663 = tpu.matmul %662, %651, %cst_368 {dimension_numbers = #tpu.dot_dimension_numbers<[1], [0], [0], [1], [0, 0, 1, 1], [], []>} : vector<6x6xf32>, vector<6x8xf32>, vector<6x8xf32> -> vector<6x8xf32>
    %c4_369 = arith.constant 4 : index
    %c0_370 = arith.constant 0 : index
    %c0_371 = arith.constant 0 : index
    %664 = vector.load %arg8[%c4_369, %c0_370, %c0_371] : memref<8x8x32xf32, #tpu.memory_space<vmem>>, vector<1x8x32xf32>
    %665 = vector.shape_cast %664 : vector<1x8x32xf32> to vector<8x32xf32>
    %cst_372 = arith.constant dense<0.000000e+00> : vector<6x32xf32>
    %666 = tpu.matmul %663, %665, %cst_372 {dimension_numbers = #tpu.dot_dimension_numbers<[1], [0], [0], [1], [0, 0, 1, 1], [], []>} : vector<6x8xf32>, vector<8x32xf32>, vector<6x32xf32> -> vector<6x32xf32>
    %667 = arith.addf %638, %666 : vector<6x32xf32>
    %c13 = arith.constant 13 : index
    %c0_373 = arith.constant 0 : index
    %c0_374 = arith.constant 0 : index
    %668 = vector.load %arg6[%c13, %c0_373, %c0_374] : memref<24x32x8xf32, #tpu.memory_space<vmem>>, vector<1x32x8xf32>
    %669 = vector.shape_cast %668 : vector<1x32x8xf32> to vector<32x8xf32>
    %cst_375 = arith.constant dense<0.000000e+00> : vector<6x8xf32>
    %670 = tpu.matmul %637, %669, %cst_375 {dimension_numbers = #tpu.dot_dimension_numbers<[1], [0], [0], [1], [0, 0, 1, 1], [], []>} : vector<6x32xf32>, vector<32x8xf32>, vector<6x8xf32> -> vector<6x8xf32>
    %c5_376 = arith.constant 5 : index
    %c0_377 = arith.constant 0 : index
    %c0_378 = arith.constant 0 : index
    %671 = vector.load %arg7[%c5_376, %c0_377, %c0_378] : memref<8x1x8xf32, #tpu.memory_space<vmem>>, vector<1x1x8xf32>
    %672 = vector.shape_cast %671 : vector<1x1x8xf32> to vector<1x8xf32>
    %673 = vector.broadcast %672 : vector<1x8xf32> to vector<6x8xf32>
    %674 = arith.addf %670, %673 : vector<6x8xf32>
    %c17 = arith.constant 17 : index
    %c0_379 = arith.constant 0 : index
    %c0_380 = arith.constant 0 : index
    %675 = vector.load %arg6[%c17, %c0_379, %c0_380] : memref<24x32x8xf32, #tpu.memory_space<vmem>>, vector<1x32x8xf32>
    %676 = vector.shape_cast %675 : vector<1x32x8xf32> to vector<32x8xf32>
    %cst_381 = arith.constant dense<0.000000e+00> : vector<6x8xf32>
    %677 = tpu.matmul %637, %676, %cst_381 {dimension_numbers = #tpu.dot_dimension_numbers<[1], [0], [0], [1], [0, 0, 1, 1], [], []>} : vector<6x32xf32>, vector<32x8xf32>, vector<6x8xf32> -> vector<6x8xf32>
    %c21 = arith.constant 21 : index
    %c0_382 = arith.constant 0 : index
    %c0_383 = arith.constant 0 : index
    %678 = vector.load %arg6[%c21, %c0_382, %c0_383] : memref<24x32x8xf32, #tpu.memory_space<vmem>>, vector<1x32x8xf32>
    %679 = vector.shape_cast %678 : vector<1x32x8xf32> to vector<32x8xf32>
    %cst_384 = arith.constant dense<0.000000e+00> : vector<6x8xf32>
    %680 = tpu.matmul %637, %679, %cst_384 {dimension_numbers = #tpu.dot_dimension_numbers<[1], [0], [0], [1], [0, 0, 1, 1], [], []>} : vector<6x32xf32>, vector<32x8xf32>, vector<6x8xf32> -> vector<6x8xf32>
    %cst_385 = arith.constant dense<0.000000e+00> : vector<6x6xf32>
    %681 = tpu.matmul %674, %677, %cst_385 {dimension_numbers = #tpu.dot_dimension_numbers<[1], [1], [0], [0], [0, 0, 1, 0], [], []>} : vector<6x8xf32>, vector<6x8xf32>, vector<6x6xf32> -> vector<6x6xf32>
    %cst_386 = arith.constant dense<0xFF800000> : vector<6xf32>
    %682 = vector.multi_reduction <maximumf>, %681, %cst_386 [1] : vector<6x6xf32> to vector<6xf32>
    %683 = vector.shape_cast %682 : vector<6xf32> to vector<6x1xf32>
    %684 = vector.broadcast %683 : vector<6x1xf32> to vector<6x6xf32>
    %685 = arith.subf %681, %684 : vector<6x6xf32>
    %686 = math.exp %685 : vector<6x6xf32>
    %cst_387 = arith.constant dense<0.000000e+00> : vector<6xf32>
    %687 = vector.multi_reduction <add>, %686, %cst_387 [1] : vector<6x6xf32> to vector<6xf32>
    %688 = vector.shape_cast %687 : vector<6xf32> to vector<6x1xf32>
    %689 = tpu.reciprocal %688 {approx = true} : vector<6x1xf32> -> vector<6x1xf32>
    %690 = vector.broadcast %689 : vector<6x1xf32> to vector<6x6xf32>
    %691 = arith.mulf %686, %690 : vector<6x6xf32>
    %cst_388 = arith.constant dense<0.000000e+00> : vector<6x8xf32>
    %692 = tpu.matmul %691, %680, %cst_388 {dimension_numbers = #tpu.dot_dimension_numbers<[1], [0], [0], [1], [0, 0, 1, 1], [], []>} : vector<6x6xf32>, vector<6x8xf32>, vector<6x8xf32> -> vector<6x8xf32>
    %c5_389 = arith.constant 5 : index
    %c0_390 = arith.constant 0 : index
    %c0_391 = arith.constant 0 : index
    %693 = vector.load %arg8[%c5_389, %c0_390, %c0_391] : memref<8x8x32xf32, #tpu.memory_space<vmem>>, vector<1x8x32xf32>
    %694 = vector.shape_cast %693 : vector<1x8x32xf32> to vector<8x32xf32>
    %cst_392 = arith.constant dense<0.000000e+00> : vector<6x32xf32>
    %695 = tpu.matmul %692, %694, %cst_392 {dimension_numbers = #tpu.dot_dimension_numbers<[1], [0], [0], [1], [0, 0, 1, 1], [], []>} : vector<6x8xf32>, vector<8x32xf32>, vector<6x32xf32> -> vector<6x32xf32>
    %696 = arith.addf %667, %695 : vector<6x32xf32>
    %c14 = arith.constant 14 : index
    %c0_393 = arith.constant 0 : index
    %c0_394 = arith.constant 0 : index
    %697 = vector.load %arg6[%c14, %c0_393, %c0_394] : memref<24x32x8xf32, #tpu.memory_space<vmem>>, vector<1x32x8xf32>
    %698 = vector.shape_cast %697 : vector<1x32x8xf32> to vector<32x8xf32>
    %cst_395 = arith.constant dense<0.000000e+00> : vector<6x8xf32>
    %699 = tpu.matmul %637, %698, %cst_395 {dimension_numbers = #tpu.dot_dimension_numbers<[1], [0], [0], [1], [0, 0, 1, 1], [], []>} : vector<6x32xf32>, vector<32x8xf32>, vector<6x8xf32> -> vector<6x8xf32>
    %c6_396 = arith.constant 6 : index
    %c0_397 = arith.constant 0 : index
    %c0_398 = arith.constant 0 : index
    %700 = vector.load %arg7[%c6_396, %c0_397, %c0_398] : memref<8x1x8xf32, #tpu.memory_space<vmem>>, vector<1x1x8xf32>
    %701 = vector.shape_cast %700 : vector<1x1x8xf32> to vector<1x8xf32>
    %702 = vector.broadcast %701 : vector<1x8xf32> to vector<6x8xf32>
    %703 = arith.addf %699, %702 : vector<6x8xf32>
    %c18 = arith.constant 18 : index
    %c0_399 = arith.constant 0 : index
    %c0_400 = arith.constant 0 : index
    %704 = vector.load %arg6[%c18, %c0_399, %c0_400] : memref<24x32x8xf32, #tpu.memory_space<vmem>>, vector<1x32x8xf32>
    %705 = vector.shape_cast %704 : vector<1x32x8xf32> to vector<32x8xf32>
    %cst_401 = arith.constant dense<0.000000e+00> : vector<6x8xf32>
    %706 = tpu.matmul %637, %705, %cst_401 {dimension_numbers = #tpu.dot_dimension_numbers<[1], [0], [0], [1], [0, 0, 1, 1], [], []>} : vector<6x32xf32>, vector<32x8xf32>, vector<6x8xf32> -> vector<6x8xf32>
    %c22 = arith.constant 22 : index
    %c0_402 = arith.constant 0 : index
    %c0_403 = arith.constant 0 : index
    %707 = vector.load %arg6[%c22, %c0_402, %c0_403] : memref<24x32x8xf32, #tpu.memory_space<vmem>>, vector<1x32x8xf32>
    %708 = vector.shape_cast %707 : vector<1x32x8xf32> to vector<32x8xf32>
    %cst_404 = arith.constant dense<0.000000e+00> : vector<6x8xf32>
    %709 = tpu.matmul %637, %708, %cst_404 {dimension_numbers = #tpu.dot_dimension_numbers<[1], [0], [0], [1], [0, 0, 1, 1], [], []>} : vector<6x32xf32>, vector<32x8xf32>, vector<6x8xf32> -> vector<6x8xf32>
    %cst_405 = arith.constant dense<0.000000e+00> : vector<6x6xf32>
    %710 = tpu.matmul %703, %706, %cst_405 {dimension_numbers = #tpu.dot_dimension_numbers<[1], [1], [0], [0], [0, 0, 1, 0], [], []>} : vector<6x8xf32>, vector<6x8xf32>, vector<6x6xf32> -> vector<6x6xf32>
    %cst_406 = arith.constant dense<0xFF800000> : vector<6xf32>
    %711 = vector.multi_reduction <maximumf>, %710, %cst_406 [1] : vector<6x6xf32> to vector<6xf32>
    %712 = vector.shape_cast %711 : vector<6xf32> to vector<6x1xf32>
    %713 = vector.broadcast %712 : vector<6x1xf32> to vector<6x6xf32>
    %714 = arith.subf %710, %713 : vector<6x6xf32>
    %715 = math.exp %714 : vector<6x6xf32>
    %cst_407 = arith.constant dense<0.000000e+00> : vector<6xf32>
    %716 = vector.multi_reduction <add>, %715, %cst_407 [1] : vector<6x6xf32> to vector<6xf32>
    %717 = vector.shape_cast %716 : vector<6xf32> to vector<6x1xf32>
    %718 = tpu.reciprocal %717 {approx = true} : vector<6x1xf32> -> vector<6x1xf32>
    %719 = vector.broadcast %718 : vector<6x1xf32> to vector<6x6xf32>
    %720 = arith.mulf %715, %719 : vector<6x6xf32>
    %cst_408 = arith.constant dense<0.000000e+00> : vector<6x8xf32>
    %721 = tpu.matmul %720, %709, %cst_408 {dimension_numbers = #tpu.dot_dimension_numbers<[1], [0], [0], [1], [0, 0, 1, 1], [], []>} : vector<6x6xf32>, vector<6x8xf32>, vector<6x8xf32> -> vector<6x8xf32>
    %c6_409 = arith.constant 6 : index
    %c0_410 = arith.constant 0 : index
    %c0_411 = arith.constant 0 : index
    %722 = vector.load %arg8[%c6_409, %c0_410, %c0_411] : memref<8x8x32xf32, #tpu.memory_space<vmem>>, vector<1x8x32xf32>
    %723 = vector.shape_cast %722 : vector<1x8x32xf32> to vector<8x32xf32>
    %cst_412 = arith.constant dense<0.000000e+00> : vector<6x32xf32>
    %724 = tpu.matmul %721, %723, %cst_412 {dimension_numbers = #tpu.dot_dimension_numbers<[1], [0], [0], [1], [0, 0, 1, 1], [], []>} : vector<6x8xf32>, vector<8x32xf32>, vector<6x32xf32> -> vector<6x32xf32>
    %725 = arith.addf %696, %724 : vector<6x32xf32>
    %c15 = arith.constant 15 : index
    %c0_413 = arith.constant 0 : index
    %c0_414 = arith.constant 0 : index
    %726 = vector.load %arg6[%c15, %c0_413, %c0_414] : memref<24x32x8xf32, #tpu.memory_space<vmem>>, vector<1x32x8xf32>
    %727 = vector.shape_cast %726 : vector<1x32x8xf32> to vector<32x8xf32>
    %cst_415 = arith.constant dense<0.000000e+00> : vector<6x8xf32>
    %728 = tpu.matmul %637, %727, %cst_415 {dimension_numbers = #tpu.dot_dimension_numbers<[1], [0], [0], [1], [0, 0, 1, 1], [], []>} : vector<6x32xf32>, vector<32x8xf32>, vector<6x8xf32> -> vector<6x8xf32>
    %c7_416 = arith.constant 7 : index
    %c0_417 = arith.constant 0 : index
    %c0_418 = arith.constant 0 : index
    %729 = vector.load %arg7[%c7_416, %c0_417, %c0_418] : memref<8x1x8xf32, #tpu.memory_space<vmem>>, vector<1x1x8xf32>
    %730 = vector.shape_cast %729 : vector<1x1x8xf32> to vector<1x8xf32>
    %731 = vector.broadcast %730 : vector<1x8xf32> to vector<6x8xf32>
    %732 = arith.addf %728, %731 : vector<6x8xf32>
    %c19 = arith.constant 19 : index
    %c0_419 = arith.constant 0 : index
    %c0_420 = arith.constant 0 : index
    %733 = vector.load %arg6[%c19, %c0_419, %c0_420] : memref<24x32x8xf32, #tpu.memory_space<vmem>>, vector<1x32x8xf32>
    %734 = vector.shape_cast %733 : vector<1x32x8xf32> to vector<32x8xf32>
    %cst_421 = arith.constant dense<0.000000e+00> : vector<6x8xf32>
    %735 = tpu.matmul %637, %734, %cst_421 {dimension_numbers = #tpu.dot_dimension_numbers<[1], [0], [0], [1], [0, 0, 1, 1], [], []>} : vector<6x32xf32>, vector<32x8xf32>, vector<6x8xf32> -> vector<6x8xf32>
    %c23 = arith.constant 23 : index
    %c0_422 = arith.constant 0 : index
    %c0_423 = arith.constant 0 : index
    %736 = vector.load %arg6[%c23, %c0_422, %c0_423] : memref<24x32x8xf32, #tpu.memory_space<vmem>>, vector<1x32x8xf32>
    %737 = vector.shape_cast %736 : vector<1x32x8xf32> to vector<32x8xf32>
    %cst_424 = arith.constant dense<0.000000e+00> : vector<6x8xf32>
    %738 = tpu.matmul %637, %737, %cst_424 {dimension_numbers = #tpu.dot_dimension_numbers<[1], [0], [0], [1], [0, 0, 1, 1], [], []>} : vector<6x32xf32>, vector<32x8xf32>, vector<6x8xf32> -> vector<6x8xf32>
    %cst_425 = arith.constant dense<0.000000e+00> : vector<6x6xf32>
    %739 = tpu.matmul %732, %735, %cst_425 {dimension_numbers = #tpu.dot_dimension_numbers<[1], [1], [0], [0], [0, 0, 1, 0], [], []>} : vector<6x8xf32>, vector<6x8xf32>, vector<6x6xf32> -> vector<6x6xf32>
    %cst_426 = arith.constant dense<0xFF800000> : vector<6xf32>
    %740 = vector.multi_reduction <maximumf>, %739, %cst_426 [1] : vector<6x6xf32> to vector<6xf32>
    %741 = vector.shape_cast %740 : vector<6xf32> to vector<6x1xf32>
    %742 = vector.broadcast %741 : vector<6x1xf32> to vector<6x6xf32>
    %743 = arith.subf %739, %742 : vector<6x6xf32>
    %744 = math.exp %743 : vector<6x6xf32>
    %cst_427 = arith.constant dense<0.000000e+00> : vector<6xf32>
    %745 = vector.multi_reduction <add>, %744, %cst_427 [1] : vector<6x6xf32> to vector<6xf32>
    %746 = vector.shape_cast %745 : vector<6xf32> to vector<6x1xf32>
    %747 = tpu.reciprocal %746 {approx = true} : vector<6x1xf32> -> vector<6x1xf32>
    %748 = vector.broadcast %747 : vector<6x1xf32> to vector<6x6xf32>
    %749 = arith.mulf %744, %748 : vector<6x6xf32>
    %cst_428 = arith.constant dense<0.000000e+00> : vector<6x8xf32>
    %750 = tpu.matmul %749, %738, %cst_428 {dimension_numbers = #tpu.dot_dimension_numbers<[1], [0], [0], [1], [0, 0, 1, 1], [], []>} : vector<6x6xf32>, vector<6x8xf32>, vector<6x8xf32> -> vector<6x8xf32>
    %c7_429 = arith.constant 7 : index
    %c0_430 = arith.constant 0 : index
    %c0_431 = arith.constant 0 : index
    %751 = vector.load %arg8[%c7_429, %c0_430, %c0_431] : memref<8x8x32xf32, #tpu.memory_space<vmem>>, vector<1x8x32xf32>
    %752 = vector.shape_cast %751 : vector<1x8x32xf32> to vector<8x32xf32>
    %cst_432 = arith.constant dense<0.000000e+00> : vector<6x32xf32>
    %753 = tpu.matmul %750, %752, %cst_432 {dimension_numbers = #tpu.dot_dimension_numbers<[1], [0], [0], [1], [0, 0, 1, 1], [], []>} : vector<6x8xf32>, vector<8x32xf32>, vector<6x32xf32> -> vector<6x32xf32>
    %754 = arith.addf %725, %753 : vector<6x32xf32>
    %755 = arith.addf %613, %754 : vector<6x32xf32>
    %c12_433 = arith.constant 12 : index
    %c0_434 = arith.constant 0 : index
    %756 = vector.load %arg12[%c12_433, %c0_434] : memref<18x32xf32, #tpu.memory_space<vmem>>, vector<1x32xf32>
    %757 = vector.broadcast %756 : vector<1x32xf32> to vector<6x32xf32>
    %758 = arith.addf %755, %757 : vector<6x32xf32>
    %c13_435 = arith.constant 13 : index
    %c0_436 = arith.constant 0 : index
    %759 = vector.load %arg12[%c13_435, %c0_436] : memref<18x32xf32, #tpu.memory_space<vmem>>, vector<1x32xf32>
    %c14_437 = arith.constant 14 : index
    %c0_438 = arith.constant 0 : index
    %760 = vector.load %arg12[%c14_437, %c0_438] : memref<18x32xf32, #tpu.memory_space<vmem>>, vector<1x32xf32>
    %cst_439 = arith.constant dense<0.000000e+00> : vector<6xf32>
    %761 = vector.multi_reduction <add>, %758, %cst_439 [1] : vector<6x32xf32> to vector<6xf32>
    %762 = vector.shape_cast %761 : vector<6xf32> to vector<6x1xf32>
    %cst_440 = arith.constant 3.200000e+01 : f32
    %763 = vector.broadcast %cst_440 : f32 to vector<6x1xf32>
    %764 = arith.divf %762, %763 : vector<6x1xf32>
    %765 = vector.broadcast %764 : vector<6x1xf32> to vector<6x32xf32>
    %766 = arith.subf %758, %765 : vector<6x32xf32>
    %767 = arith.mulf %766, %766 : vector<6x32xf32>
    %cst_441 = arith.constant dense<0.000000e+00> : vector<6xf32>
    %768 = vector.multi_reduction <add>, %767, %cst_441 [1] : vector<6x32xf32> to vector<6xf32>
    %769 = vector.shape_cast %768 : vector<6xf32> to vector<6x1xf32>
    %cst_442 = arith.constant 3.200000e+01 : f32
    %770 = vector.broadcast %cst_442 : f32 to vector<6x1xf32>
    %771 = arith.divf %769, %770 : vector<6x1xf32>
    %772 = vector.broadcast %764 : vector<6x1xf32> to vector<6x32xf32>
    %773 = arith.subf %758, %772 : vector<6x32xf32>
    %cst_443 = arith.constant 9.99999974E-6 : f32
    %774 = vector.broadcast %cst_443 : f32 to vector<6x1xf32>
    %775 = arith.addf %771, %774 : vector<6x1xf32>
    %776 = math.rsqrt %775 : vector<6x1xf32>
    %777 = vector.broadcast %776 : vector<6x1xf32> to vector<6x32xf32>
    %778 = arith.mulf %773, %777 : vector<6x32xf32>
    %779 = vector.broadcast %759 : vector<1x32xf32> to vector<6x32xf32>
    %780 = arith.mulf %778, %779 : vector<6x32xf32>
    %781 = vector.broadcast %760 : vector<1x32xf32> to vector<6x32xf32>
    %782 = arith.addf %780, %781 : vector<6x32xf32>
    %c1_444 = arith.constant 1 : index
    %c0_445 = arith.constant 0 : index
    %c0_446 = arith.constant 0 : index
    %783 = vector.load %arg9[%c1_444, %c0_445, %c0_446] : memref<2x32x64xf32, #tpu.memory_space<vmem>>, vector<1x32x64xf32>
    %784 = vector.shape_cast %783 : vector<1x32x64xf32> to vector<32x64xf32>
    %cst_447 = arith.constant dense<0.000000e+00> : vector<6x64xf32>
    %785 = tpu.matmul %782, %784, %cst_447 {dimension_numbers = #tpu.dot_dimension_numbers<[1], [0], [0], [1], [0, 0, 1, 1], [], []>} : vector<6x32xf32>, vector<32x64xf32>, vector<6x64xf32> -> vector<6x64xf32>
    %c1_448 = arith.constant 1 : index
    %c0_449 = arith.constant 0 : index
    %c0_450 = arith.constant 0 : index
    %786 = vector.load %arg10[%c1_448, %c0_449, %c0_450] : memref<2x1x64xf32, #tpu.memory_space<vmem>>, vector<1x1x64xf32>
    %787 = vector.shape_cast %786 : vector<1x1x64xf32> to vector<1x64xf32>
    %788 = vector.broadcast %787 : vector<1x64xf32> to vector<6x64xf32>
    %789 = arith.addf %785, %788 : vector<6x64xf32>
    %cst_451 = arith.constant 5.000000e-01 : f32
    %790 = vector.broadcast %cst_451 : f32 to vector<6x64xf32>
    %791 = arith.mulf %790, %789 : vector<6x64xf32>
    %cst_452 = arith.constant 4.471500e-02 : f32
    %792 = vector.broadcast %cst_452 : f32 to vector<6x64xf32>
    %793 = arith.mulf %792, %789 : vector<6x64xf32>
    %794 = arith.mulf %793, %789 : vector<6x64xf32>
    %795 = arith.mulf %794, %789 : vector<6x64xf32>
    %796 = arith.addf %789, %795 : vector<6x64xf32>
    %cst_453 = arith.constant 0.797884583 : f32
    %797 = vector.broadcast %cst_453 : f32 to vector<6x64xf32>
    %798 = arith.mulf %797, %796 : vector<6x64xf32>
    %799 = math.tanh %798 : vector<6x64xf32>
    %cst_454 = arith.constant 1.000000e+00 : f32
    %800 = vector.broadcast %cst_454 : f32 to vector<6x64xf32>
    %801 = arith.addf %800, %799 : vector<6x64xf32>
    %802 = arith.mulf %791, %801 : vector<6x64xf32>
    %c1_455 = arith.constant 1 : index
    %c0_456 = arith.constant 0 : index
    %c0_457 = arith.constant 0 : index
    %803 = vector.load %arg11[%c1_455, %c0_456, %c0_457] : memref<2x64x32xf32, #tpu.memory_space<vmem>>, vector<1x64x32xf32>
    %804 = vector.shape_cast %803 : vector<1x64x32xf32> to vector<64x32xf32>
    %cst_458 = arith.constant dense<0.000000e+00> : vector<6x32xf32>
    %805 = tpu.matmul %802, %804, %cst_458 {dimension_numbers = #tpu.dot_dimension_numbers<[1], [0], [0], [1], [0, 0, 1, 1], [], []>} : vector<6x64xf32>, vector<64x32xf32>, vector<6x32xf32> -> vector<6x32xf32>
    %c15_459 = arith.constant 15 : index
    %c0_460 = arith.constant 0 : index
    %806 = vector.load %arg12[%c15_459, %c0_460] : memref<18x32xf32, #tpu.memory_space<vmem>>, vector<1x32xf32>
    %807 = vector.broadcast %806 : vector<1x32xf32> to vector<6x32xf32>
    %808 = arith.addf %805, %807 : vector<6x32xf32>
    %809 = arith.addf %758, %808 : vector<6x32xf32>
    %c16_461 = arith.constant 16 : index
    %c0_462 = arith.constant 0 : index
    %810 = vector.load %arg12[%c16_461, %c0_462] : memref<18x32xf32, #tpu.memory_space<vmem>>, vector<1x32xf32>
    %c17_463 = arith.constant 17 : index
    %c0_464 = arith.constant 0 : index
    %811 = vector.load %arg12[%c17_463, %c0_464] : memref<18x32xf32, #tpu.memory_space<vmem>>, vector<1x32xf32>
    %cst_465 = arith.constant dense<0.000000e+00> : vector<6xf32>
    %812 = vector.multi_reduction <add>, %809, %cst_465 [1] : vector<6x32xf32> to vector<6xf32>
    %813 = vector.shape_cast %812 : vector<6xf32> to vector<6x1xf32>
    %cst_466 = arith.constant 3.200000e+01 : f32
    %814 = vector.broadcast %cst_466 : f32 to vector<6x1xf32>
    %815 = arith.divf %813, %814 : vector<6x1xf32>
    %816 = vector.broadcast %815 : vector<6x1xf32> to vector<6x32xf32>
    %817 = arith.subf %809, %816 : vector<6x32xf32>
    %818 = arith.mulf %817, %817 : vector<6x32xf32>
    %cst_467 = arith.constant dense<0.000000e+00> : vector<6xf32>
    %819 = vector.multi_reduction <add>, %818, %cst_467 [1] : vector<6x32xf32> to vector<6xf32>
    %820 = vector.shape_cast %819 : vector<6xf32> to vector<6x1xf32>
    %cst_468 = arith.constant 3.200000e+01 : f32
    %821 = vector.broadcast %cst_468 : f32 to vector<6x1xf32>
    %822 = arith.divf %820, %821 : vector<6x1xf32>
    %823 = vector.broadcast %815 : vector<6x1xf32> to vector<6x32xf32>
    %824 = arith.subf %809, %823 : vector<6x32xf32>
    %cst_469 = arith.constant 9.99999974E-6 : f32
    %825 = vector.broadcast %cst_469 : f32 to vector<6x1xf32>
    %826 = arith.addf %822, %825 : vector<6x1xf32>
    %827 = math.rsqrt %826 : vector<6x1xf32>
    %828 = vector.broadcast %827 : vector<6x1xf32> to vector<6x32xf32>
    %829 = arith.mulf %824, %828 : vector<6x32xf32>
    %830 = vector.broadcast %810 : vector<1x32xf32> to vector<6x32xf32>
    %831 = arith.mulf %829, %830 : vector<6x32xf32>
    %832 = vector.broadcast %811 : vector<1x32xf32> to vector<6x32xf32>
    %833 = arith.addf %831, %832 : vector<6x32xf32>
    %c0_470 = arith.constant 0 : index
    %c0_471 = arith.constant 0 : index
    %c0_472 = arith.constant 0 : index
    %834 = vector.load %arg13[%c0_470, %c0_471, %c0_472] : memref<1x6x32xf32, #tpu.memory_space<vmem>>, vector<1x6x32xf32>
    %835 = vector.shape_cast %834 : vector<1x6x32xf32> to vector<6x32xf32>
    %836 = vector.shape_cast %833 : vector<6x32xf32> to vector<1x6x32xf32>
    tpu.vector_store %arg13[%c0_470, %c0_471, %c0_472], %836 {strides = array<i32>} : memref<1x6x32xf32, #tpu.memory_space<vmem>>, vector<1x6x32xf32>,
    return
  }
  func.func @transform_0(%arg0: i32) -> (i32, i32, i32) {
    %c0_i32 = arith.constant 0 : i32
    %c0_i32_0 = arith.constant 0 : i32
    %c0_i32_1 = arith.constant 0 : i32
    return %arg0, %c0_i32, %c0_i32_0 : i32, i32, i32
  }
  func.func @transform_1(%arg0: i32) -> (i32, i32, i32) {
    %c0_i32 = arith.constant 0 : i32
    %c0_i32_0 = arith.constant 0 : i32
    %c0_i32_1 = arith.constant 0 : i32
    %c0_i32_2 = arith.constant 0 : i32
    return %c0_i32, %c0_i32_0, %c0_i32_1 : i32, i32, i32
  }
  func.func @transform_2(%arg0: i32) -> (i32, i32, i32) {
    %c0_i32 = arith.constant 0 : i32
    %c0_i32_0 = arith.constant 0 : i32
    %c0_i32_1 = arith.constant 0 : i32
    %c0_i32_2 = arith.constant 0 : i32
    return %c0_i32, %c0_i32_0, %c0_i32_1 : i32, i32, i32
  }
  func.func @transform_3(%arg0: i32) -> (i32, i32) {
    %c0_i32 = arith.constant 0 : i32
    %c0_i32_0 = arith.constant 0 : i32
    %c0_i32_1 = arith.constant 0 : i32
    return %c0_i32, %c0_i32_0 : i32, i32
  }
  func.func @transform_4(%arg0: i32) -> (i32, i32) {
    %c0_i32 = arith.constant 0 : i32
    %c0_i32_0 = arith.constant 0 : i32
    %c0_i32_1 = arith.constant 0 : i32
    return %c0_i32, %c0_i32_0 : i32, i32
  }
  func.func @transform_5(%arg0: i32) -> (i32, i32, i32) {
    %c0_i32 = arith.constant 0 : i32
    %c0_i32_0 = arith.constant 0 : i32
    %c0_i32_1 = arith.constant 0 : i32
    %c0_i32_2 = arith.constant 0 : i32
    return %c0_i32, %c0_i32_0, %c0_i32_1 : i32, i32, i32
  }
  func.func @transform_6(%arg0: i32) -> (i32, i32, i32) {
    %c0_i32 = arith.constant 0 : i32
    %c0_i32_0 = arith.constant 0 : i32
    %c0_i32_1 = arith.constant 0 : i32
    %c0_i32_2 = arith.constant 0 : i32
    return %c0_i32, %c0_i32_0, %c0_i32_1 : i32, i32, i32
  }
  func.func @transform_7(%arg0: i32) -> (i32, i32, i32) {
    %c0_i32 = arith.constant 0 : i32
    %c0_i32_0 = arith.constant 0 : i32
    %c0_i32_1 = arith.constant 0 : i32
    %c0_i32_2 = arith.constant 0 : i32
    return %c0_i32, %c0_i32_0, %c0_i32_1 : i32, i32, i32
  }
  func.func @transform_8(%arg0: i32) -> (i32, i32, i32) {
    %c0_i32 = arith.constant 0 : i32
    %c0_i32_0 = arith.constant 0 : i32
    %c0_i32_1 = arith.constant 0 : i32
    %c0_i32_2 = arith.constant 0 : i32
    return %c0_i32, %c0_i32_0, %c0_i32_1 : i32, i32, i32
  }
  func.func @transform_9(%arg0: i32) -> (i32, i32, i32) {
    %c0_i32 = arith.constant 0 : i32
    %c0_i32_0 = arith.constant 0 : i32
    %c0_i32_1 = arith.constant 0 : i32
    %c0_i32_2 = arith.constant 0 : i32
    return %c0_i32, %c0_i32_0, %c0_i32_1 : i32, i32, i32
  }
  func.func @transform_10(%arg0: i32) -> (i32, i32, i32) {
    %c0_i32 = arith.constant 0 : i32
    %c0_i32_0 = arith.constant 0 : i32
    %c0_i32_1 = arith.constant 0 : i32
    %c0_i32_2 = arith.constant 0 : i32
    return %c0_i32, %c0_i32_0, %c0_i32_1 : i32, i32, i32
  }
  func.func @transform_11(%arg0: i32) -> (i32, i32) {
    %c0_i32 = arith.constant 0 : i32
    %c0_i32_0 = arith.constant 0 : i32
    %c0_i32_1 = arith.constant 0 : i32
    return %c0_i32, %c0_i32_0 : i32, i32
  }
  func.func @transform_12(%arg0: i32) -> (i32, i32, i32) {
    %c0_i32 = arith.constant 0 : i32
    %c0_i32_0 = arith.constant 0 : i32
    %c0_i32_1 = arith.constant 0 : i32
    return %arg0, %c0_i32, %c0_i32_0 : i32, i32, i32
  }
}

</mosaic_0001>

<llo_original>
// kernel: ssl_forward.1
$region0: #{ssl_forward.1}
  #allocation0 [shape = 'u32[]', space=smem, size = 0x4, offset = 0x4, fixed_abs, tag = 'smem constant byte address 0x4 - core index']
  #allocation1 [shape = 'u32[72,128]{1,0:T(1,128)}', space=vmem, size = 0x9000, scoped, tag = 'internal scratch']
  #allocation2 [shape = 'f32[408,32]{1,0:T(8,128)}', space=vmem, size = 0x33000, scoped, tag = 'scratch operand']
  #allocation3 [shape = 'f32[203,32]{1,0:T(8,128)}', space=vmem, size = 0x1a000, scoped, tag = 'scratch operand']
  %s0 = inlined_call_operand.vmem [shape: f32[2,410,5], index: 0, kind: input, shape index: {}]
  %s1 = inlined_call_operand.vmem [shape: f32[7,96,32], index: 1, kind: input, shape index: {}]
  %s2 = inlined_call_operand.vmem [shape: f32[7,3,32], index: 2, kind: input, shape index: {}]
  %s3 = inlined_call_operand.vmem [shape: f32[32,32], index: 3, kind: input, shape index: {}]
  %s4 = inlined_call_operand.vmem [shape: f32[352,32], index: 4, kind: input, shape index: {}]
  %s5 = inlined_call_operand.vmem [shape: f32[24,32,8], index: 5, kind: input, shape index: {}]
  %s6 = inlined_call_operand.vmem [shape: f32[8,1,8], index: 6, kind: input, shape index: {}]
  %s7 = inlined_call_operand.vmem [shape: f32[8,8,32], index: 7, kind: input, shape index: {}]
  %s8 = inlined_call_operand.vmem [shape: f32[2,32,64], index: 8, kind: input, shape index: {}]
  %s9 = inlined_call_operand.vmem [shape: f32[2,1,64], index: 9, kind: input, shape index: {}]
  %s10 = inlined_call_operand.vmem [shape: f32[2,64,32], index: 10, kind: input, shape index: {}]
  %s11 = inlined_call_operand.vmem [shape: f32[18,32], index: 11, kind: input, shape index: {}]
  %s12 = inlined_call_operand.vmem [shape: f32[2,6,32], index: 12, kind: output, shape index: {}]
  %s13 = sld [smem:[#allocation0]]
  $region81: #{ssl_forward.1} parent=0
    _
  %s15 = ssub.s32 1, %s13
  %s16 = scalar_select 0, %s15, %s13
  loop: start=0, step=1, limit=4
  $region2: #{ssl_forward.1} parent=0 // loop_pre_header
    _
  $region3: #{ssl_forward.1} parent=0 // loop_header
    %s18 = sphi 0, %s22
    %p19 = scmp.ge.s32.totalorder %s18, 4
    %s28 = sphi 0, %s30
    %s31 = sphi 0, %s28
    %s32 = sphi 0, %s31
    %s48 = sphi 0, %s32
    %s52 = sphi 0, %s52
    %s54 = sphi 0, %s52
    %s55 = sphi 0, %s54
    %s69 = sphi 0, %s55
    %s73 = sphi 0, %s73
    %s75 = sphi 0, %s73
    %s76 = sphi 0, %s75
    %s90 = sphi 0, %s76
    %s94 = sphi 0, %s94
    %s96 = sphi 0, %s94
    %s97 = sphi 0, %s96
    %s111 = sphi 0, %s97
    %s115 = sphi 0, %s115
    %s117 = sphi 0, %s115
    %s118 = sphi 0, %s117
    %s132 = sphi 0, %s118
    %s136 = sphi 0, %s136
    %s138 = sphi 0, %s136
    %s139 = sphi 0, %s138
    %s153 = sphi 0, %s139
    %s157 = sphi 0, %s157
    %s159 = sphi 0, %s157
    %s160 = sphi 0, %s159
    %s174 = sphi 0, %s160
    %s178 = sphi 0, %s178
    %s180 = sphi 0, %s178
    %s181 = sphi 0, %s180
    %s195 = sphi 0, %s181
    %s199 = sphi 0, %s199
    %s201 = sphi 0, %s199
    %s202 = sphi 0, %s201
    %s216 = sphi 0, %s202
    %s220 = sphi 0, %s220
    %s222 = sphi 0, %s220
    %s223 = sphi 0, %s222
    %s237 = sphi 0, %s223
    %s241 = sphi 0, %s241
    %s243 = sphi 0, %s241
    %s244 = sphi 0, %s243
    %s258 = sphi 0, %s244
    %s262 = sphi 0, %s262
    %s264 = sphi 0, %s262
    %s265 = sphi 0, %s264
    %s279 = sphi 0, %s265
    %s285 = sphi 0, %s287
    %s288 = sphi 0, %s285
    %s289 = sphi 0, %s288
    %s305 = sphi 0, %s289
  $region4: #{ssl_forward.1} parent=0 // loop_header_branch
    %21 = sbr.rel (%p19) target = $region8
  $region5: #{ssl_forward.1} parent=0 // loop_body
    %s23 = ssub.s32 %s18, 1
    %s24 = ssub.s32 %s18, 2
    %s25 = sadd.s32 %s18, 1
    %s26 = ssub.s32 %s18, %s25
    %p27 = scmp.eq.s32.totalorder %s26, 0
    %s29 = sadd.s32 %s28, 1
    %s30 = scalar_select %p27, %s28, %s29
    %p33 = pneg %p27
    %p34 = scmp.eq.s32.totalorder %s18, 1
    %p35 = por %p33, %p34
    %p36 = scmp.ne.s32.totalorder %s28, %s31
    %p37 = scmp.eq.s32.totalorder %s18, 0
    %p38 = por %p36, %p37
    %p39 = scmp.ne.s32.totalorder %s28, %s31
    %p40 = scmp.eq.s32.totalorder %s23, 1
    %p41 = por %p39, %p40
    %p42 = scmp.ne.s32.totalorder %s31, %s32
    %p43 = scmp.eq.s32.totalorder %s23, 0
    %p44 = por %p42, %p43
    %p45 = scmp.ne.s32.totalorder %s31, %s32
    %p46 = scmp.eq.s32.totalorder %s24, 1
    %p47 = por %p45, %p46
    %p49 = scmp.ne.s32.totalorder %s32, %s48
    %p50 = scmp.eq.s32.totalorder %s24, 0
    %p51 = por %p49, %p50
    %s53 = sadd.s32 %s52, 1
    %p56 = scmp.eq.s32.totalorder %s18, 1
    %p57 = scmp.ne.s32.totalorder %s52, %s54
    %p58 = scmp.eq.s32.totalorder %s18, 0
    %p59 = por %p57, %p58
    %p60 = scmp.ne.s32.totalorder %s52, %s54
    %p61 = scmp.eq.s32.totalorder %s23, 1
    %p62 = por %p60, %p61
    %p63 = scmp.ne.s32.totalorder %s54, %s55
    %p64 = scmp.eq.s32.totalorder %s23, 0
    %p65 = por %p63, %p64
    %p66 = scmp.ne.s32.totalorder %s54, %s55
    %p67 = scmp.eq.s32.totalorder %s24, 1
    %p68 = por %p66, %p67
    %p70 = scmp.ne.s32.totalorder %s55, %s69
    %p71 = scmp.eq.s32.totalorder %s24, 0
    %p72 = por %p70, %p71
    %s74 = sadd.s32 %s73, 1
    %p77 = scmp.eq.s32.totalorder %s18, 1
    %p78 = scmp.ne.s32.totalorder %s73, %s75
    %p79 = scmp.eq.s32.totalorder %s18, 0
    %p80 = por %p78, %p79
    %p81 = scmp.ne.s32.totalorder %s73, %s75
    %p82 = scmp.eq.s32.totalorder %s23, 1
    %p83 = por %p81, %p82
    %p84 = scmp.ne.s32.totalorder %s75, %s76
    %p85 = scmp.eq.s32.totalorder %s23, 0
    %p86 = por %p84, %p85
    %p87 = scmp.ne.s32.totalorder %s75, %s76
    %p88 = scmp.eq.s32.totalorder %s24, 1
    %p89 = por %p87, %p88
    %p91 = scmp.ne.s32.totalorder %s76, %s90
    %p92 = scmp.eq.s32.totalorder %s24, 0
    %p93 = por %p91, %p92
    %s95 = sadd.s32 %s94, 1
    %p98 = scmp.eq.s32.totalorder %s18, 1
    %p99 = scmp.ne.s32.totalorder %s94, %s96
    %p100 = scmp.eq.s32.totalorder %s18, 0
    %p101 = por %p99, %p100
    %p102 = scmp.ne.s32.totalorder %s94, %s96
    %p103 = scmp.eq.s32.totalorder %s23, 1
    %p104 = por %p102, %p103
    %p105 = scmp.ne.s32.totalorder %s96, %s97
    %p106 = scmp.eq.s32.totalorder %s23, 0
    %p107 = por %p105, %p106
    %p108 = scmp.ne.s32.totalorder %s96, %s97
    %p109 = scmp.eq.s32.totalorder %s24, 1
    %p110 = por %p108, %p109
    %p112 = scmp.ne.s32.totalorder %s97, %s111
    %p113 = scmp.eq.s32.totalorder %s24, 0
    %p114 = por %p112, %p113
    %s116 = sadd.s32 %s115, 1
    %p119 = scmp.eq.s32.totalorder %s18, 1
    %p120 = scmp.ne.s32.totalorder %s115, %s117
    %p121 = scmp.eq.s32.totalorder %s18, 0
    %p122 = por %p120, %p121
    %p123 = scmp.ne.s32.totalorder %s115, %s117
    %p124 = scmp.eq.s32.totalorder %s23, 1
    %p125 = por %p123, %p124
    %p126 = scmp.ne.s32.totalorder %s117, %s118
    %p127 = scmp.eq.s32.totalorder %s23, 0
    %p128 = por %p126, %p127
    %p129 = scmp.ne.s32.totalorder %s117, %s118
    %p130 = scmp.eq.s32.totalorder %s24, 1
    %p131 = por %p129, %p130
    %p133 = scmp.ne.s32.totalorder %s118, %s132
    %p134 = scmp.eq.s32.totalorder %s24, 0
    %p135 = por %p133, %p134
    %s137 = sadd.s32 %s136, 1
    %p140 = scmp.eq.s32.totalorder %s18, 1
    %p141 = scmp.ne.s32.totalorder %s136, %s138
    %p142 = scmp.eq.s32.totalorder %s18, 0
    %p143 = por %p141, %p142
    %p144 = scmp.ne.s32.totalorder %s136, %s138
    %p145 = scmp.eq.s32.totalorder %s23, 1
    %p146 = por %p144, %p145
    %p147 = scmp.ne.s32.totalorder %s138, %s139
    %p148 = scmp.eq.s32.totalorder %s23, 0
    %p149 = por %p147, %p148
    %p150 = scmp.ne.s32.totalorder %s138, %s139
    %p151 = scmp.eq.s32.totalorder %s24, 1
    %p152 = por %p150, %p151
    %p154 = scmp.ne.s32.totalorder %s139, %s153
    %p155 = scmp.eq.s32.totalorder %s24, 0
    %p156 = por %p154, %p155
    %s158 = sadd.s32 %s157, 1
    %p161 = scmp.eq.s32.totalorder %s18, 1
    %p162 = scmp.ne.s32.totalorder %s157, %s159
    %p163 = scmp.eq.s32.totalorder %s18, 0
    %p164 = por %p162, %p163
    %p165 = scmp.ne.s32.totalorder %s157, %s159
    %p166 = scmp.eq.s32.totalorder %s23, 1
    %p167 = por %p165, %p166
    %p168 = scmp.ne.s32.totalorder %s159, %s160
    %p169 = scmp.eq.s32.totalorder %s23, 0
    %p170 = por %p168, %p169
    %p171 = scmp.ne.s32.totalorder %s159, %s160
    %p172 = scmp.eq.s32.totalorder %s24, 1
    %p173 = por %p171, %p172
    %p175 = scmp.ne.s32.totalorder %s160, %s174
    %p176 = scmp.eq.s32.totalorder %s24, 0
    %p177 = por %p175, %p176
    %s179 = sadd.s32 %s178, 1
    %p182 = scmp.eq.s32.totalorder %s18, 1
    %p183 = scmp.ne.s32.totalorder %s178, %s180
    %p184 = scmp.eq.s32.totalorder %s18, 0
    %p185 = por %p183, %p184
    %p186 = scmp.ne.s32.totalorder %s178, %s180
    %p187 = scmp.eq.s32.totalorder %s23, 1
    %p188 = por %p186, %p187
    %p189 = scmp.ne.s32.totalorder %s180, %s181
    %p190 = scmp.eq.s32.totalorder %s23, 0
    %p191 = por %p189, %p190
    %p192 = scmp.ne.s32.totalorder %s180, %s181
    %p193 = scmp.eq.s32.totalorder %s24, 1
    %p194 = por %p192, %p193
    %p196 = scmp.ne.s32.totalorder %s181, %s195
    %p197 = scmp.eq.s32.totalorder %s24, 0
    %p198 = por %p196, %p197
    %s200 = sadd.s32 %s199, 1
    %p203 = scmp.eq.s32.totalorder %s18, 1
    %p204 = scmp.ne.s32.totalorder %s199, %s201
    %p205 = scmp.eq.s32.totalorder %s18, 0
    %p206 = por %p204, %p205
    %p207 = scmp.ne.s32.totalorder %s199, %s201
    %p208 = scmp.eq.s32.totalorder %s23, 1
    %p209 = por %p207, %p208
    %p210 = scmp.ne.s32.totalorder %s201, %s202
    %p211 = scmp.eq.s32.totalorder %s23, 0
    %p212 = por %p210, %p211
    %p213 = scmp.ne.s32.totalorder %s201, %s202
    %p214 = scmp.eq.s32.totalorder %s24, 1
    %p215 = por %p213, %p214
    %p217 = scmp.ne.s32.totalorder %s202, %s216
    %p218 = scmp.eq.s32.totalorder %s24, 0
    %p219 = por %p217, %p218
    %s221 = sadd.s32 %s220, 1
    %p224 = scmp.eq.s32.totalorder %s18, 1
    %p225 = scmp.ne.s32.totalorder %s220, %s222
    %p226 = scmp.eq.s32.totalorder %s18, 0
    %p227 = por %p225, %p226
    %p228 = scmp.ne.s32.totalorder %s220, %s222
    %p229 = scmp.eq.s32.totalorder %s23, 1
    %p230 = por %p228, %p229
    %p231 = scmp.ne.s32.totalorder %s222, %s223
    %p232 = scmp.eq.s32.totalorder %s23, 0
    %p233 = por %p231, %p232
    %p234 = scmp.ne.s32.totalorder %s222, %s223
    %p235 = scmp.eq.s32.totalorder %s24, 1
    %p236 = por %p234, %p235
    %p238 = scmp.ne.s32.totalorder %s223, %s237
    %p239 = scmp.eq.s32.totalorder %s24, 0
    %p240 = por %p238, %p239
    %s242 = sadd.s32 %s241, 1
    %p245 = scmp.eq.s32.totalorder %s18, 1
    %p246 = scmp.ne.s32.totalorder %s241, %s243
    %p247 = scmp.eq.s32.totalorder %s18, 0
    %p248 = por %p246, %p247
    %p249 = scmp.ne.s32.totalorder %s241, %s243
    %p250 = scmp.eq.s32.totalorder %s23, 1
    %p251 = por %p249, %p250
    %p252 = scmp.ne.s32.totalorder %s243, %s244
    %p253 = scmp.eq.s32.totalorder %s23, 0
    %p254 = por %p252, %p253
    %p255 = scmp.ne.s32.totalorder %s243, %s244
    %p256 = scmp.eq.s32.totalorder %s24, 1
    %p257 = por %p255, %p256
    %p259 = scmp.ne.s32.totalorder %s244, %s258
    %p260 = scmp.eq.s32.totalorder %s24, 0
    %p261 = por %p259, %p260
    %s263 = sadd.s32 %s262, 1
    %p266 = scmp.eq.s32.totalorder %s18, 1
    %p267 = scmp.ne.s32.totalorder %s262, %s264
    %p268 = scmp.eq.s32.totalorder %s18, 0
    %p269 = por %p267, %p268
    %p270 = scmp.ne.s32.totalorder %s262, %s264
    %p271 = scmp.eq.s32.totalorder %s23, 1
    %p272 = por %p270, %p271
    %p273 = scmp.ne.s32.totalorder %s264, %s265
    %p274 = scmp.eq.s32.totalorder %s23, 0
    %p275 = por %p273, %p274
    %p276 = scmp.ne.s32.totalorder %s264, %s265
    %p277 = scmp.eq.s32.totalorder %s24, 1
    %p278 = por %p276, %p277
    %p280 = scmp.ne.s32.totalorder %s265, %s279
    %p281 = scmp.eq.s32.totalorder %s24, 0
    %p282 = por %p280, %p281
    %s283 = ssub.s32 %s18, %s25
    %p284 = scmp.eq.s32.totalorder %s283, 0
    %s286 = sadd.s32 %s285, 1
    %s287 = scalar_select %p284, %s285, %s286
    %p290 = pneg %p284
    %p291 = scmp.eq.s32.totalorder %s18, 1
    %p292 = por %p290, %p291
    %p293 = scmp.ne.s32.totalorder %s285, %s288
    %p294 = scmp.eq.s32.totalorder %s18, 0
    %p295 = por %p293, %p294
    %p296 = scmp.ne.s32.totalorder %s285, %s288
    %p297 = scmp.eq.s32.totalorder %s23, 1
    %p298 = por %p296, %p297
    %p299 = scmp.ne.s32.totalorder %s288, %s289
    %p300 = scmp.eq.s32.totalorder %s23, 0
    %p301 = por %p299, %p300
    %p302 = scmp.ne.s32.totalorder %s288, %s289
    %p303 = scmp.eq.s32.totalorder %s24, 1
    %p304 = por %p302, %p303
    %p306 = scmp.ne.s32.totalorder %s289, %s305
    %p307 = scmp.eq.s32.totalorder %s24, 0
    %p308 = por %p306, %p307
    %p309 = scmp.le.s32.totalorder 1, %s18
    %p310 = scmp.lt.s32.totalorder %s18, 3
    %p311 = pnand %p309, %p310
    %p312 = pneg %p311
    // Predicated region
    $region9: #{ssl_forward.1} parent=5 // pred_check
      _
    $region10: #{ssl_forward.1} parent=5 // pred_check_branch
      %314 = sbr.rel (%p311) target = $region12
    $region11: #{ssl_forward.1} parent=5 // pred_region
      %s315 = ssub.s32 %s18, 1
      // Predicated region
      $region13: #{ssl_forward.1} parent=11 // pred_check
        %p316 = pneg %p65
      $region14: #{ssl_forward.1} parent=11 // pred_check_branch
        %318 = sbr.rel (%p316) target = $region16
      $region15: #{ssl_forward.1} parent=11 // pred_region
        _
      $region16: #{ssl_forward.1} parent=11 // pred_fallthru
        _
      // Predicated region
      $region17: #{ssl_forward.1} parent=11 // pred_check
        %p319 = pneg %p86
      $region18: #{ssl_forward.1} parent=11 // pred_check_branch
        %321 = sbr.rel (%p319) target = $region20
      $region19: #{ssl_forward.1} parent=11 // pred_region
        _
      $region20: #{ssl_forward.1} parent=11 // pred_fallthru
        _
      // Predicated region
      $region21: #{ssl_forward.1} parent=11 // pred_check
        %p322 = pneg %p107
      $region22: #{ssl_forward.1} parent=11 // pred_check_branch
        %324 = sbr.rel (%p322) target = $region24
      $region23: #{ssl_forward.1} parent=11 // pred_region
        _
      $region24: #{ssl_forward.1} parent=11 // pred_fallthru
        _
      // Predicated region
      $region25: #{ssl_forward.1} parent=11 // pred_check
        %p325 = pneg %p128
      $region26: #{ssl_forward.1} parent=11 // pred_check_branch
        %327 = sbr.rel (%p325) target = $region28
      $region27: #{ssl_forward.1} parent=11 // pred_region
        _
      $region28: #{ssl_forward.1} parent=11 // pred_fallthru
        _
      // Predicated region
      $region29: #{ssl_forward.1} parent=11 // pred_check
        %p328 = pneg %p149
      $region30: #{ssl_forward.1} parent=11 // pred_check_branch
        %330 = sbr.rel (%p328) target = $region32
      $region31: #{ssl_forward.1} parent=11 // pred_region
        _
      $region32: #{ssl_forward.1} parent=11 // pred_fallthru
        _
      // Predicated region
      $region33: #{ssl_forward.1} parent=11 // pred_check
        %p331 = pneg %p170
      $region34: #{ssl_forward.1} parent=11 // pred_check_branch
        %333 = sbr.rel (%p331) target = $region36
      $region35: #{ssl_forward.1} parent=11 // pred_region
        _
      $region36: #{ssl_forward.1} parent=11 // pred_fallthru
        _
      // Predicated region
      $region37: #{ssl_forward.1} parent=11 // pred_check
        %p334 = pneg %p191
      $region38: #{ssl_forward.1} parent=11 // pred_check_branch
        %336 = sbr.rel (%p334) target = $region40
      $region39: #{ssl_forward.1} parent=11 // pred_region
        _
      $region40: #{ssl_forward.1} parent=11 // pred_fallthru
        _
      // Predicated region
      $region41: #{ssl_forward.1} parent=11 // pred_check
        %p337 = pneg %p212
      $region42: #{ssl_forward.1} parent=11 // pred_check_branch
        %339 = sbr.rel (%p337) target = $region44
      $region43: #{ssl_forward.1} parent=11 // pred_region
        _
      $region44: #{ssl_forward.1} parent=11 // pred_fallthru
        _
      // Predicated region
      $region45: #{ssl_forward.1} parent=11 // pred_check
        %p340 = pneg %p233
      $region46: #{ssl_forward.1} parent=11 // pred_check_branch
        %342 = sbr.rel (%p340) target = $region48
      $region47: #{ssl_forward.1} parent=11 // pred_region
        _
      $region48: #{ssl_forward.1} parent=11 // pred_fallthru
        _
      // Predicated region
      $region49: #{ssl_forward.1} parent=11 // pred_check
        %p343 = pneg %p254
      $region50: #{ssl_forward.1} parent=11 // pred_check_branch
        %345 = sbr.rel (%p343) target = $region52
      $region51: #{ssl_forward.1} parent=11 // pred_region
        _
      $region52: #{ssl_forward.1} parent=11 // pred_fallthru
        _
      // Predicated region
      $region53: #{ssl_forward.1} parent=11 // pred_check
        %p346 = pneg %p275
      $region54: #{ssl_forward.1} parent=11 // pred_check_branch
        %348 = sbr.rel (%p346) target = $region56
      $region55: #{ssl_forward.1} parent=11 // pred_region
        _
      $region56: #{ssl_forward.1} parent=11 // pred_fallthru
        _
    $region12: #{ssl_forward.1} parent=5 // pred_fallthru
      _
    %p349 = scmp.lt.s32.totalorder %s18, 2
    // Predicated region
    $region57: #{ssl_forward.1} parent=5 // pred_check
      %p350 = pneg %p349
    $region58: #{ssl_forward.1} parent=5 // pred_check_branch
      %352 = sbr.rel (%p350) target = $region60
    $region59: #{ssl_forward.1} parent=5 // pred_region
      // Predicated region
      $region61: #{ssl_forward.1} parent=59 // pred_check
        %p353 = pneg %p38
      $region62: #{ssl_forward.1} parent=59 // pred_check_branch
        %355 = sbr.rel (%p353) target = $region64
      $region63: #{ssl_forward.1} parent=59 // pred_region
        %p356 = scmp.lt.s32.totalorder %s18, 1
        %s357 = scalar_select %p356, %s18, 1
        %s358 = smul.addr %s357, 52
        %s359 = smul.addr %s358, 8
        %s360 = scalar_lea.vmem %s0, %s359
      $region64: #{ssl_forward.1} parent=59 // pred_fallthru
        _
    $region60: #{ssl_forward.1} parent=5 // pred_fallthru
      _
    %p361 = scmp.le.s32.totalorder 1, %s18
    %p362 = scmp.lt.s32.totalorder %s18, 3
    %p363 = pnand %p361, %p362
    %p364 = pneg %p363
    // Predicated region
    $region65: #{ssl_forward.1} parent=5 // pred_check
      _
    $region66: #{ssl_forward.1} parent=5 // pred_check_branch
      %366 = sbr.rel (%p363) target = $region68
    $region67: #{ssl_forward.1} parent=5 // pred_region
      %s367 = ssub.s32 %s18, 1
      %p368 = scmp.lt.s32.totalorder %s23, 1
      %s369 = scalar_select %p368, %s23, 1
      %s370 = smul.addr %s369, 52
      %s371 = smul.addr %s370, 8
      %s372 = scalar_lea.vmem %s0, %s371
      %p373 = pneg %p44
      %p374 = pneg %p41
      %p375 = pneg %p65
      %p376 = pneg %p62
      %p377 = pneg %p86
      %p378 = pneg %p83
      %p379 = pneg %p107
      %p380 = pneg %p104
      %p381 = pneg %p128
      %p382 = pneg %p125
      %p383 = pneg %p149
      %p384 = pneg %p146
      %p385 = pneg %p170
      %p386 = pneg %p167
      %p387 = pneg %p191
      %p388 = pneg %p188
      %p389 = pneg %p212
      %p390 = pneg %p209
      %p391 = pneg %p233
      %p392 = pneg %p230
      %p393 = pneg %p254
      %p394 = pneg %p251
      %p395 = pneg %p275
      %p396 = pneg %p272
      %p397 = pneg %p301
      %p398 = pneg %p298
      %p399 = scmp.lt.s32.totalorder %s23, 1
      %s400 = scalar_select %p399, %s23, 1
      %s401 = smul.addr %s400, 8
      %s402 = scalar_lea.vmem %s12, %s401
      %p403 = scmp.lt.s32.totalorder %s23, 1
      %s404 = scalar_select %p403, %s23, 1
      %s405 = smul.addr %s404, 52
      %s406 = smul.addr %s405, 8
      %s407 = scalar_lea.vmem %s0, %s406
      %p408 = scmp.lt.s32.totalorder %s23, 1
      %s409 = scalar_select %p408, %s23, 1
      %s410 = smul.addr %s409, 8
      %s411 = scalar_lea.vmem %s12, %s410
      %v412 = vld [vmem:[%s407] sm:$0xff]
      %v413 = vld [vmem:[%s407 + $0x8] sm:$0xff]
      %v414 = vld [vmem:[%s407 + $0x10] sm:$0xff]
      %v415 = vld [vmem:[%s407 + $0x18] sm:$0xff]
      %v416 = vld [vmem:[%s407 + $0x20] sm:$0xff]
      %v417 = vld [vmem:[%s407 + $0x28] sm:$0xff]
      %v418 = vld [vmem:[%s407 + $0x30] sm:$0xff]
      %v419 = vld [vmem:[%s407 + $0x38] sm:$0xff]
      %v420 = vld [vmem:[%s407 + $0x40] sm:$0xff]
      %v421 = vld [vmem:[%s407 + $0x48] sm:$0xff]
      %v422 = vld [vmem:[%s407 + $0x50] sm:$0xff]
      %v423 = vld [vmem:[%s407 + $0x58] sm:$0xff]
      %v424 = vld [vmem:[%s407 + $0x60] sm:$0xff]
      %v425 = vld [vmem:[%s407 + $0x68] sm:$0xff]
      %v426 = vld [vmem:[%s407 + $0x70] sm:$0xff]
      %v427 = vld [vmem:[%s407 + $0x78] sm:$0xff]
      %v428 = vld [vmem:[%s407 + $0x80] sm:$0xff]
      %v429 = vld [vmem:[%s407 + $0x88] sm:$0xff]
      %v430 = vld [vmem:[%s407 + $0x90] sm:$0xff]
      %v431 = vld [vmem:[%s407 + $0x98] sm:$0xff]
      %v432 = vld [vmem:[%s407 + $0xa0] sm:$0xff]
      %v433 = vld [vmem:[%s407 + $0xa8] sm:$0xff]
      %v434 = vld [vmem:[%s407 + $0xb0] sm:$0xff]
      %v435 = vld [vmem:[%s407 + $0xb8] sm:$0xff]
      %v436 = vld [vmem:[%s407 + $0xc0] sm:$0xff]
      %v437 = vld [vmem:[%s407 + $0xc8] sm:$0xff]
      %v438 = vld [vmem:[%s407 + $0xd0] sm:$0xff]
      %v439 = vld [vmem:[%s407 + $0xd8] sm:$0xff]
      %v440 = vld [vmem:[%s407 + $0xe0] sm:$0xff]
      %v441 = vld [vmem:[%s407 + $0xe8] sm:$0xff]
      %v442 = vld [vmem:[%s407 + $0xf0] sm:$0xff]
      %v443 = vld [vmem:[%s407 + $0xf8] sm:$0xff]
      %v444 = vld [vmem:[%s407 + $0x100] sm:$0xff]
      %v445 = vld [vmem:[%s407 + $0x108] sm:$0xff]
      %v446 = vld [vmem:[%s407 + $0x110] sm:$0xff]
      %v447 = vld [vmem:[%s407 + $0x118] sm:$0xff]
      %v448 = vld [vmem:[%s407 + $0x120] sm:$0xff]
      %v449 = vld [vmem:[%s407 + $0x128] sm:$0xff]
      %v450 = vld [vmem:[%s407 + $0x130] sm:$0xff]
      %v451 = vld [vmem:[%s407 + $0x138] sm:$0xff]
      %v452 = vld [vmem:[%s407 + $0x140] sm:$0xff]
      %v453 = vld [vmem:[%s407 + $0x148] sm:$0xff]
      %v454 = vld [vmem:[%s407 + $0x150] sm:$0xff]
      %v455 = vld [vmem:[%s407 + $0x158] sm:$0xff]
      %v456 = vld [vmem:[%s407 + $0x160] sm:$0xff]
      %v457 = vld [vmem:[%s407 + $0x168] sm:$0xff]
      %v458 = vld [vmem:[%s407 + $0x170] sm:$0xff]
      %v459 = vld [vmem:[%s407 + $0x178] sm:$0xff]
      %v460 = vld [vmem:[%s407 + $0x180] sm:$0xff]
      %v461 = vld [vmem:[%s407 + $0x188] sm:$0xff]
      %v462 = vld [vmem:[%s407 + $0x190] sm:$0xff]
      %v463 = vld [vmem:[%s407 + $0x198] sm:$0x3]
      %vm516 = vcmask 1046528
      %v517 = vrot.slane %v412, 1
      %v518 = vrot.slane %v413, 1
      %v519 = vsel %vm516, %v517, %v518
      %v520 = vrot.slane %v414, 1
      %v521 = vsel %vm516, %v518, %v520
      %v522 = vrot.slane %v415, 1
      %v523 = vsel %vm516, %v520, %v522
      %v524 = vrot.slane %v416, 1
      %v525 = vsel %vm516, %v522, %v524
      %v526 = vrot.slane %v417, 1
      %v527 = vsel %vm516, %v524, %v526
      %v528 = vrot.slane %v418, 1
      %v529 = vsel %vm516, %v526, %v528
      %v530 = vrot.slane %v419, 1
      %v531 = vsel %vm516, %v528, %v530
      %v532 = vrot.slane %v420, 1
      %v533 = vsel %vm516, %v530, %v532
      %v534 = vrot.slane %v421, 1
      %v535 = vsel %vm516, %v532, %v534
      %v536 = vrot.slane %v422, 1
      %v537 = vsel %vm516, %v534, %v536
      %v538 = vrot.slane %v423, 1
      %v539 = vsel %vm516, %v536, %v538
      %v540 = vrot.slane %v424, 1
      %v541 = vsel %vm516, %v538, %v540
      %v542 = vrot.slane %v425, 1
      %v543 = vsel %vm516, %v540, %v542
      %v544 = vrot.slane %v426, 1
      %v545 = vsel %vm516, %v542, %v544
      %v546 = vrot.slane %v427, 1
      %v547 = vsel %vm516, %v544, %v546
      %v548 = vrot.slane %v428, 1
      %v549 = vsel %vm516, %v546, %v548
      %v550 = vrot.slane %v429, 1
      %v551 = vsel %vm516, %v548, %v550
      %v552 = vrot.slane %v430, 1
      %v553 = vsel %vm516, %v550, %v552
      %v554 = vrot.slane %v431, 1
      %v555 = vsel %vm516, %v552, %v554
      %v556 = vrot.slane %v432, 1
      %v557 = vsel %vm516, %v554, %v556
      %v558 = vrot.slane %v433, 1
      %v559 = vsel %vm516, %v556, %v558
      %v560 = vrot.slane %v434, 1
      %v561 = vsel %vm516, %v558, %v560
      %v562 = vrot.slane %v435, 1
      %v563 = vsel %vm516, %v560, %v562
      %v564 = vrot.slane %v436, 1
      %v565 = vsel %vm516, %v562, %v564
      %v566 = vrot.slane %v437, 1
      %v567 = vsel %vm516, %v564, %v566
      %v568 = vrot.slane %v438, 1
      %v569 = vsel %vm516, %v566, %v568
      %v570 = vrot.slane %v439, 1
      %v571 = vsel %vm516, %v568, %v570
      %v572 = vrot.slane %v440, 1
      %v573 = vsel %vm516, %v570, %v572
      %v574 = vrot.slane %v441, 1
      %v575 = vsel %vm516, %v572, %v574
      %v576 = vrot.slane %v442, 1
      %v577 = vsel %vm516, %v574, %v576
      %v578 = vrot.slane %v443, 1
      %v579 = vsel %vm516, %v576, %v578
      %v580 = vrot.slane %v444, 1
      %v581 = vsel %vm516, %v578, %v580
      %v582 = vrot.slane %v445, 1
      %v583 = vsel %vm516, %v580, %v582
      %v584 = vrot.slane %v446, 1
      %v585 = vsel %vm516, %v582, %v584
      %v586 = vrot.slane %v447, 1
      %v587 = vsel %vm516, %v584, %v586
      %v588 = vrot.slane %v448, 1
      %v589 = vsel %vm516, %v586, %v588
      %v590 = vrot.slane %v449, 1
      %v591 = vsel %vm516, %v588, %v590
      %v592 = vrot.slane %v450, 1
      %v593 = vsel %vm516, %v590, %v592
      %v594 = vrot.slane %v451, 1
      %v595 = vsel %vm516, %v592, %v594
      %v596 = vrot.slane %v452, 1
      %v597 = vsel %vm516, %v594, %v596
      %v598 = vrot.slane %v453, 1
      %v599 = vsel %vm516, %v596, %v598
      %v600 = vrot.slane %v454, 1
      %v601 = vsel %vm516, %v598, %v600
      %v602 = vrot.slane %v455, 1
      %v603 = vsel %vm516, %v600, %v602
      %v604 = vrot.slane %v456, 1
      %v605 = vsel %vm516, %v602, %v604
      %v606 = vrot.slane %v457, 1
      %v607 = vsel %vm516, %v604, %v606
      %v608 = vrot.slane %v458, 1
      %v609 = vsel %vm516, %v606, %v608
      %v610 = vrot.slane %v459, 1
      %v611 = vsel %vm516, %v608, %v610
      %v612 = vrot.slane %v460, 1
      %v613 = vsel %vm516, %v610, %v612
      %v614 = vrot.slane %v461, 1
      %v615 = vsel %vm516, %v612, %v614
      %v616 = vrot.slane %v462, 1
      %v617 = vsel %vm516, %v614, %v616
      %v618 = vrot.slane %v463, 1
      %v619 = vsel %vm516, %v616, %v618
      %620 = vrot.lane.b32.xlu0 %v519, 5
      %v621 = vpop.permute.xlu0 %620
      %622 = vrot.lane.b32.xlu0 %v521, 5
      %v623 = vpop.permute.xlu0 %622
      %624 = vrot.lane.b32.xlu0 %v523, 5
      %v625 = vpop.permute.xlu0 %624
      %626 = vrot.lane.b32.xlu0 %v525, 5
      %v627 = vpop.permute.xlu0 %626
      %628 = vrot.lane.b32.xlu0 %v527, 5
      %v629 = vpop.permute.xlu0 %628
      %630 = vrot.lane.b32.xlu0 %v529, 5
      %v631 = vpop.permute.xlu0 %630
      %632 = vrot.lane.b32.xlu0 %v531, 5
      %v633 = vpop.permute.xlu0 %632
      %634 = vrot.lane.b32.xlu0 %v533, 5
      %v635 = vpop.permute.xlu0 %634
      %636 = vrot.lane.b32.xlu0 %v535, 5
      %v637 = vpop.permute.xlu0 %636
      %638 = vrot.lane.b32.xlu0 %v537, 5
      %v639 = vpop.permute.xlu0 %638
      %640 = vrot.lane.b32.xlu0 %v539, 5
      %v641 = vpop.permute.xlu0 %640
      %642 = vrot.lane.b32.xlu0 %v541, 5
      %v643 = vpop.permute.xlu0 %642
      %644 = vrot.lane.b32.xlu0 %v543, 5
      %v645 = vpop.permute.xlu0 %644
      %646 = vrot.lane.b32.xlu0 %v545, 5
      %v647 = vpop.permute.xlu0 %646
      %648 = vrot.lane.b32.xlu0 %v547, 5
      %v649 = vpop.permute.xlu0 %648
      %650 = vrot.lane.b32.xlu0 %v549, 5
      %v651 = vpop.permute.xlu0 %650
      %652 = vrot.lane.b32.xlu0 %v551, 5
      %v653 = vpop.permute.xlu0 %652
      %654 = vrot.lane.b32.xlu0 %v553, 5
      %v655 = vpop.permute.xlu0 %654
      %656 = vrot.lane.b32.xlu0 %v555, 5
      %v657 = vpop.permute.xlu0 %656
      %658 = vrot.lane.b32.xlu0 %v557, 5
      %v659 = vpop.permute.xlu0 %658
      %660 = vrot.lane.b32.xlu0 %v559, 5
      %v661 = vpop.permute.xlu0 %660
      %662 = vrot.lane.b32.xlu0 %v561, 5
      %v663 = vpop.permute.xlu0 %662
      %664 = vrot.lane.b32.xlu0 %v563, 5
      %v665 = vpop.permute.xlu0 %664
      %666 = vrot.lane.b32.xlu0 %v565, 5
      %v667 = vpop.permute.xlu0 %666
      %668 = vrot.lane.b32.xlu0 %v567, 5
      %v669 = vpop.permute.xlu0 %668
      %670 = vrot.lane.b32.xlu0 %v569, 5
      %v671 = vpop.permute.xlu0 %670
      %672 = vrot.lane.b32.xlu0 %v571, 5
      %v673 = vpop.permute.xlu0 %672
      %674 = vrot.lane.b32.xlu0 %v573, 5
      %v675 = vpop.permute.xlu0 %674
      %676 = vrot.lane.b32.xlu0 %v575, 5
      %v677 = vpop.permute.xlu0 %676
      %678 = vrot.lane.b32.xlu0 %v577, 5
      %v679 = vpop.permute.xlu0 %678
      %680 = vrot.lane.b32.xlu0 %v579, 5
      %v681 = vpop.permute.xlu0 %680
      %682 = vrot.lane.b32.xlu0 %v581, 5
      %v683 = vpop.permute.xlu0 %682
      %684 = vrot.lane.b32.xlu0 %v583, 5
      %v685 = vpop.permute.xlu0 %684
      %686 = vrot.lane.b32.xlu0 %v585, 5
      %v687 = vpop.permute.xlu0 %686
      %688 = vrot.lane.b32.xlu0 %v587, 5
      %v689 = vpop.permute.xlu0 %688
      %690 = vrot.lane.b32.xlu0 %v589, 5
      %v691 = vpop.permute.xlu0 %690
      %692 = vrot.lane.b32.xlu0 %v591, 5
      %v693 = vpop.permute.xlu0 %692
      %694 = vrot.lane.b32.xlu0 %v593, 5
      %v695 = vpop.permute.xlu0 %694
      %696 = vrot.lane.b32.xlu0 %v595, 5
      %v697 = vpop.permute.xlu0 %696
      %698 = vrot.lane.b32.xlu0 %v597, 5
      %v699 = vpop.permute.xlu0 %698
      %700 = vrot.lane.b32.xlu0 %v599, 5
      %v701 = vpop.permute.xlu0 %700
      %702 = vrot.lane.b32.xlu0 %v601, 5
      %v703 = vpop.permute.xlu0 %702
      %704 = vrot.lane.b32.xlu0 %v603, 5
      %v705 = vpop.permute.xlu0 %704
      %706 = vrot.lane.b32.xlu0 %v605, 5
      %v707 = vpop.permute.xlu0 %706
      %708 = vrot.lane.b32.xlu0 %v607, 5
      %v709 = vpop.permute.xlu0 %708
      %710 = vrot.lane.b32.xlu0 %v609, 5
      %v711 = vpop.permute.xlu0 %710
      %712 = vrot.lane.b32.xlu0 %v611, 5
      %v713 = vpop.permute.xlu0 %712
      %714 = vrot.lane.b32.xlu0 %v613, 5
      %v715 = vpop.permute.xlu0 %714
      %716 = vrot.lane.b32.xlu0 %v615, 5
      %v717 = vpop.permute.xlu0 %716
      %718 = vrot.lane.b32.xlu0 %v617, 5
      %v719 = vpop.permute.xlu0 %718
      %720 = vrot.lane.b32.xlu0 %v619, 5
      %v721 = vpop.permute.xlu0 %720
      %vm773 = vcmask 39936
      %v774 = vsel %vm773, %v412, %v621
      %v775 = vsel %vm773, %v413, %v623
      %v776 = vsel %vm773, %v414, %v625
      %v777 = vsel %vm773, %v415, %v627
      %v778 = vsel %vm773, %v416, %v629
      %v779 = vsel %vm773, %v417, %v631
      %v780 = vsel %vm773, %v418, %v633
      %v781 = vsel %vm773, %v419, %v635
      %v782 = vsel %vm773, %v420, %v637
      %v783 = vsel %vm773, %v421, %v639
      %v784 = vsel %vm773, %v422, %v641
      %v785 = vsel %vm773, %v423, %v643
      %v786 = vsel %vm773, %v424, %v645
      %v787 = vsel %vm773, %v425, %v647
      %v788 = vsel %vm773, %v426, %v649
      %v789 = vsel %vm773, %v427, %v651
      %v790 = vsel %vm773, %v428, %v653
      %v791 = vsel %vm773, %v429, %v655
      %v792 = vsel %vm773, %v430, %v657
      %v793 = vsel %vm773, %v431, %v659
      %v794 = vsel %vm773, %v432, %v661
      %v795 = vsel %vm773, %v433, %v663
      %v796 = vsel %vm773, %v434, %v665
      %v797 = vsel %vm773, %v435, %v667
      %v798 = vsel %vm773, %v436, %v669
      %v799 = vsel %vm773, %v437, %v671
      %v800 = vsel %vm773, %v438, %v673
      %v801 = vsel %vm773, %v439, %v675
      %v802 = vsel %vm773, %v440, %v677
      %v803 = vsel %vm773, %v441, %v679
      %v804 = vsel %vm773, %v442, %v681
      %v805 = vsel %vm773, %v443, %v683
      %v806 = vsel %vm773, %v444, %v685
      %v807 = vsel %vm773, %v445, %v687
      %v808 = vsel %vm773, %v446, %v689
      %v809 = vsel %vm773, %v447, %v691
      %v810 = vsel %vm773, %v448, %v693
      %v811 = vsel %vm773, %v449, %v695
      %v812 = vsel %vm773, %v450, %v697
      %v813 = vsel %vm773, %v451, %v699
      %v814 = vsel %vm773, %v452, %v701
      %v815 = vsel %vm773, %v453, %v703
      %v816 = vsel %vm773, %v454, %v705
      %v817 = vsel %vm773, %v455, %v707
      %v818 = vsel %vm773, %v456, %v709
      %v819 = vsel %vm773, %v457, %v711
      %v820 = vsel %vm773, %v458, %v713
      %v821 = vsel %vm773, %v459, %v715
      %v822 = vsel %vm773, %v460, %v717
      %v823 = vsel %vm773, %v461, %v719
      %v824 = vsel %vm773, %v462, %v721
      %v825 = vld [vmem:[%s1] sm:$0xff]
      %v826 = vld [vmem:[%s1 + $0x8] sm:$0x3]
      %v827 = vld [vmem:[%s2] sm:$0x1]
      %v828 = vperm.slane %v827, 0
      %vm829 = vcmask 80896
      %v831 = vsel %vm829, %v774, 0
      %v834 = vsel %vm829, %v775, 0
      %v837 = vsel %vm829, %v776, 0
      %v840 = vsel %vm829, %v777, 0
      %v843 = vsel %vm829, %v778, 0
      %v846 = vsel %vm829, %v779, 0
      %v849 = vsel %vm829, %v780, 0
      %v852 = vsel %vm829, %v781, 0
      %v855 = vsel %vm829, %v782, 0
      %v858 = vsel %vm829, %v783, 0
      %v861 = vsel %vm829, %v784, 0
      %v864 = vsel %vm829, %v785, 0
      %v867 = vsel %vm829, %v786, 0
      %v870 = vsel %vm829, %v787, 0
      %v873 = vsel %vm829, %v788, 0
      %v876 = vsel %vm829, %v789, 0
      %v879 = vsel %vm829, %v790, 0
      %v882 = vsel %vm829, %v791, 0
      %v885 = vsel %vm829, %v792, 0
      %v888 = vsel %vm829, %v793, 0
      %v891 = vsel %vm829, %v794, 0
      %v894 = vsel %vm829, %v795, 0
      %v897 = vsel %vm829, %v796, 0
      %v900 = vsel %vm829, %v797, 0
      %v903 = vsel %vm829, %v798, 0
      %v906 = vsel %vm829, %v799, 0
      %v909 = vsel %vm829, %v800, 0
      %v912 = vsel %vm829, %v801, 0
      %v915 = vsel %vm829, %v802, 0
      %v918 = vsel %vm829, %v803, 0
      %v921 = vsel %vm829, %v804, 0
      %v924 = vsel %vm829, %v805, 0
      %v927 = vsel %vm829, %v806, 0
      %v930 = vsel %vm829, %v807, 0
      %v933 = vsel %vm829, %v808, 0
      %v936 = vsel %vm829, %v809, 0
      %v939 = vsel %vm829, %v810, 0
      %v942 = vsel %vm829, %v811, 0
      %v945 = vsel %vm829, %v812, 0
      %v948 = vsel %vm829, %v813, 0
      %v951 = vsel %vm829, %v814, 0
      %v954 = vsel %vm829, %v815, 0
      %v957 = vsel %vm829, %v816, 0
      %v960 = vsel %vm829, %v817, 0
      %v963 = vsel %vm829, %v818, 0
      %v966 = vsel %vm829, %v819, 0
      %v969 = vsel %vm829, %v820, 0
      %v972 = vsel %vm829, %v821, 0
      %v975 = vsel %vm829, %v822, 0
      %v978 = vsel %vm829, %v823, 0
      %v981 = vsel %vm829, %v824, 0
      %vm983 = vcmask 1041408
      %v985 = vsel %vm983, %v826, 0
      %987 = vmatpush.msra.mxu0 0.0
      %988 = vmatpush.msra.mxu0 0.0
      %989 = vmatpush.msra.mxu0 0.0
      %990 = vmatpush.msra.mxu0 0.0
      %991 = vmatpush.msra.mxu0 0.0
      %992 = vmatpush.msra.mxu0 0.0
      %993 = vmatpush.msra.mxu0 0.0
      %994 = vmatpush.msra.mxu0 0.0
      %995 = vmatpush.msra.mxu0 0.0
      %996 = vmatpush.msra.mxu0 0.0
      %997 = vmatpush.msra.mxu0 0.0
      %998 = vmatpush.msra.mxu0 0.0
      %999 = vmatpush.msra.mxu0 0.0
      %1000 = vmatpush.msra.mxu0 0.0
      %1001 = vmatpush.msra.mxu0 %v985
      %1002 = vmatpush.msra.mxu0 %v825
      %1003 = vmatmul.f32.gmra.mxu0 %v831
      %v1004 = vpop.f32.mrf.mxu0
      %v1005 = vadd.f32 %v828, %v1004
      %1006 = vmatmul.f32.gmra.mxu0 %v834
      %v1007 = vpop.f32.mrf.mxu0
      %v1008 = vadd.f32 %v828, %v1007
      %1009 = vmatmul.f32.gmra.mxu0 %v837
      %v1010 = vpop.f32.mrf.mxu0
      %v1011 = vadd.f32 %v828, %v1010
      %1012 = vmatmul.f32.gmra.mxu0 %v840
      %v1013 = vpop.f32.mrf.mxu0
      %v1014 = vadd.f32 %v828, %v1013
      %1015 = vmatmul.f32.gmra.mxu0 %v843
      %v1016 = vpop.f32.mrf.mxu0
      %v1017 = vadd.f32 %v828, %v1016
      %1018 = vmatmul.f32.gmra.mxu0 %v846
      %v1019 = vpop.f32.mrf.mxu0
      %v1020 = vadd.f32 %v828, %v1019
      %1021 = vmatmul.f32.gmra.mxu0 %v849
      %v1022 = vpop.f32.mrf.mxu0
      %v1023 = vadd.f32 %v828, %v1022
      %1024 = vmatmul.f32.gmra.mxu0 %v852
      %v1025 = vpop.f32.mrf.mxu0
      %v1026 = vadd.f32 %v828, %v1025
      %1027 = vmatmul.f32.gmra.mxu0 %v855
      %v1028 = vpop.f32.mrf.mxu0
      %v1029 = vadd.f32 %v828, %v1028
      %1030 = vmatmul.f32.gmra.mxu0 %v858
      %v1031 = vpop.f32.mrf.mxu0
      %v1032 = vadd.f32 %v828, %v1031
      %1033 = vmatmul.f32.gmra.mxu0 %v861
      %v1034 = vpop.f32.mrf.mxu0
      %v1035 = vadd.f32 %v828, %v1034
      %1036 = vmatmul.f32.gmra.mxu0 %v864
      %v1037 = vpop.f32.mrf.mxu0
      %v1038 = vadd.f32 %v828, %v1037
      %1039 = vmatmul.f32.gmra.mxu0 %v867
      %v1040 = vpop.f32.mrf.mxu0
      %v1041 = vadd.f32 %v828, %v1040
      %1042 = vmatmul.f32.gmra.mxu0 %v870
      %v1043 = vpop.f32.mrf.mxu0
      %v1044 = vadd.f32 %v828, %v1043
      %1045 = vmatmul.f32.gmra.mxu0 %v873
      %v1046 = vpop.f32.mrf.mxu0
      %v1047 = vadd.f32 %v828, %v1046
      %1048 = vmatmul.f32.gmra.mxu0 %v876
      %v1049 = vpop.f32.mrf.mxu0
      %v1050 = vadd.f32 %v828, %v1049
      %1051 = vmatmul.f32.gmra.mxu0 %v879
      %v1052 = vpop.f32.mrf.mxu0
      %v1053 = vadd.f32 %v828, %v1052
      %1054 = vmatmul.f32.gmra.mxu0 %v882
      %v1055 = vpop.f32.mrf.mxu0
      %v1056 = vadd.f32 %v828, %v1055
      %1057 = vmatmul.f32.gmra.mxu0 %v885
      %v1058 = vpop.f32.mrf.mxu0
      %v1059 = vadd.f32 %v828, %v1058
      %1060 = vmatmul.f32.gmra.mxu0 %v888
      %v1061 = vpop.f32.mrf.mxu0
      %v1062 = vadd.f32 %v828, %v1061
      %1063 = vmatmul.f32.gmra.mxu0 %v891
      %v1064 = vpop.f32.mrf.mxu0
      %v1065 = vadd.f32 %v828, %v1064
      %1066 = vmatmul.f32.gmra.mxu0 %v894
      %v1067 = vpop.f32.mrf.mxu0
      %v1068 = vadd.f32 %v828, %v1067
      %1069 = vmatmul.f32.gmra.mxu0 %v897
      %v1070 = vpop.f32.mrf.mxu0
      %v1071 = vadd.f32 %v828, %v1070
      %1072 = vmatmul.f32.gmra.mxu0 %v900
      %v1073 = vpop.f32.mrf.mxu0
      %v1074 = vadd.f32 %v828, %v1073
      %1075 = vmatmul.f32.gmra.mxu0 %v903
      %v1076 = vpop.f32.mrf.mxu0
      %v1077 = vadd.f32 %v828, %v1076
      %1078 = vmatmul.f32.gmra.mxu0 %v906
      %v1079 = vpop.f32.mrf.mxu0
      %v1080 = vadd.f32 %v828, %v1079
      %1081 = vmatmul.f32.gmra.mxu0 %v909
      %v1082 = vpop.f32.mrf.mxu0
      %v1083 = vadd.f32 %v828, %v1082
      %1084 = vmatmul.f32.gmra.mxu0 %v912
      %v1085 = vpop.f32.mrf.mxu0
      %v1086 = vadd.f32 %v828, %v1085
      %1087 = vmatmul.f32.gmra.mxu0 %v915
      %v1088 = vpop.f32.mrf.mxu0
      %v1089 = vadd.f32 %v828, %v1088
      %1090 = vmatmul.f32.gmra.mxu0 %v918
      %v1091 = vpop.f32.mrf.mxu0
      %v1092 = vadd.f32 %v828, %v1091
      %1093 = vmatmul.f32.gmra.mxu0 %v921
      %v1094 = vpop.f32.mrf.mxu0
      %v1095 = vadd.f32 %v828, %v1094
      %1096 = vmatmul.f32.gmra.mxu0 %v924
      %v1097 = vpop.f32.mrf.mxu0
      %v1098 = vadd.f32 %v828, %v1097
      %1099 = vmatmul.f32.gmra.mxu0 %v927
      %v1100 = vpop.f32.mrf.mxu0
      %v1101 = vadd.f32 %v828, %v1100
      %1102 = vmatmul.f32.gmra.mxu0 %v930
      %v1103 = vpop.f32.mrf.mxu0
      %v1104 = vadd.f32 %v828, %v1103
      %1105 = vmatmul.f32.gmra.mxu0 %v933
      %v1106 = vpop.f32.mrf.mxu0
      %v1107 = vadd.f32 %v828, %v1106
      %1108 = vmatmul.f32.gmra.mxu0 %v936
      %v1109 = vpop.f32.mrf.mxu0
      %v1110 = vadd.f32 %v828, %v1109
      %1111 = vmatmul.f32.gmra.mxu0 %v939
      %v1112 = vpop.f32.mrf.mxu0
      %v1113 = vadd.f32 %v828, %v1112
      %1114 = vmatmul.f32.gmra.mxu0 %v942
      %v1115 = vpop.f32.mrf.mxu0
      %v1116 = vadd.f32 %v828, %v1115
      %1117 = vmatmul.f32.gmra.mxu0 %v945
      %v1118 = vpop.f32.mrf.mxu0
      %v1119 = vadd.f32 %v828, %v1118
      %1120 = vmatmul.f32.gmra.mxu0 %v948
      %v1121 = vpop.f32.mrf.mxu0
      %v1122 = vadd.f32 %v828, %v1121
      %1123 = vmatmul.f32.gmra.mxu0 %v951
      %v1124 = vpop.f32.mrf.mxu0
      %v1125 = vadd.f32 %v828, %v1124
      %1126 = vmatmul.f32.gmra.mxu0 %v954
      %v1127 = vpop.f32.mrf.mxu0
      %v1128 = vadd.f32 %v828, %v1127
      %1129 = vmatmul.f32.gmra.mxu0 %v957
      %v1130 = vpop.f32.mrf.mxu0
      %v1131 = vadd.f32 %v828, %v1130
      %1132 = vmatmul.f32.gmra.mxu0 %v960
      %v1133 = vpop.f32.mrf.mxu0
      %v1134 = vadd.f32 %v828, %v1133
      %1135 = vmatmul.f32.gmra.mxu0 %v963
      %v1136 = vpop.f32.mrf.mxu0
      %v1137 = vadd.f32 %v828, %v1136
      %1138 = vmatmul.f32.gmra.mxu0 %v966
      %v1139 = vpop.f32.mrf.mxu0
      %v1140 = vadd.f32 %v828, %v1139
      %1141 = vmatmul.f32.gmra.mxu0 %v969
      %v1142 = vpop.f32.mrf.mxu0
      %v1143 = vadd.f32 %v828, %v1142
      %1144 = vmatmul.f32.gmra.mxu0 %v972
      %v1145 = vpop.f32.mrf.mxu0
      %v1146 = vadd.f32 %v828, %v1145
      %1147 = vmatmul.f32.gmra.mxu0 %v975
      %v1148 = vpop.f32.mrf.mxu0
      %v1149 = vadd.f32 %v828, %v1148
      %1150 = vmatmul.f32.gmra.mxu0 %v978
      %v1151 = vpop.f32.mrf.mxu0
      %v1152 = vadd.f32 %v828, %v1151
      %1153 = vmatmul.f32.gmra.mxu0 %v981
      %v1154 = vpop.f32.mrf.mxu0
      %v1155 = vadd.f32 %v828, %v1154
      %1156 = vdwg.mxu0
      %v1157 = vld [vmem:[%s2 + $0x1] sm:$0x1]
      %v1158 = vld [vmem:[%s2 + $0x2] sm:$0x1]
      %vm1159 = vcmask 261120
      %v1160 = vsel %vm1159, %v1005, 0.0
      %1161 = vadd.xlane.f32.xlu0 %v1160
      %v1162 = vpop.xlane.xlu0 %1161
      %v1163 = vsel %vm1159, %v1008, 0.0
      %1164 = vadd.xlane.f32.xlu0 %v1163
      %v1165 = vpop.xlane.xlu0 %1164
      %v1166 = vsel %vm1159, %v1011, 0.0
      %1167 = vadd.xlane.f32.xlu0 %v1166
      %v1168 = vpop.xlane.xlu0 %1167
      %v1169 = vsel %vm1159, %v1014, 0.0
      %1170 = vadd.xlane.f32.xlu0 %v1169
      %v1171 = vpop.xlane.xlu0 %1170
      %v1172 = vsel %vm1159, %v1017, 0.0
      %1173 = vadd.xlane.f32.xlu0 %v1172
      %v1174 = vpop.xlane.xlu0 %1173
      %v1175 = vsel %vm1159, %v1020, 0.0
      %1176 = vadd.xlane.f32.xlu0 %v1175
      %v1177 = vpop.xlane.xlu0 %1176
      %v1178 = vsel %vm1159, %v1023, 0.0
      %1179 = vadd.xlane.f32.xlu0 %v1178
      %v1180 = vpop.xlane.xlu0 %1179
      %v1181 = vsel %vm1159, %v1026, 0.0
      %1182 = vadd.xlane.f32.xlu0 %v1181
      %v1183 = vpop.xlane.xlu0 %1182
      %v1184 = vsel %vm1159, %v1029, 0.0
      %1185 = vadd.xlane.f32.xlu0 %v1184
      %v1186 = vpop.xlane.xlu0 %1185
      %v1187 = vsel %vm1159, %v1032, 0.0
      %1188 = vadd.xlane.f32.xlu0 %v1187
      %v1189 = vpop.xlane.xlu0 %1188
      %v1190 = vsel %vm1159, %v1035, 0.0
      %1191 = vadd.xlane.f32.xlu0 %v1190
      %v1192 = vpop.xlane.xlu0 %1191
      %v1193 = vsel %vm1159, %v1038, 0.0
      %1194 = vadd.xlane.f32.xlu0 %v1193
      %v1195 = vpop.xlane.xlu0 %1194
      %v1196 = vsel %vm1159, %v1041, 0.0
      %1197 = vadd.xlane.f32.xlu0 %v1196
      %v1198 = vpop.xlane.xlu0 %1197
      %v1199 = vsel %vm1159, %v1044, 0.0
      %1200 = vadd.xlane.f32.xlu0 %v1199
      %v1201 = vpop.xlane.xlu0 %1200
      %v1202 = vsel %vm1159, %v1047, 0.0
      %1203 = vadd.xlane.f32.xlu0 %v1202
      %v1204 = vpop.xlane.xlu0 %1203
      %v1205 = vsel %vm1159, %v1050, 0.0
      %1206 = vadd.xlane.f32.xlu0 %v1205
      %v1207 = vpop.xlane.xlu0 %1206
      %v1208 = vsel %vm1159, %v1053, 0.0
      %1209 = vadd.xlane.f32.xlu0 %v1208
      %v1210 = vpop.xlane.xlu0 %1209
      %v1211 = vsel %vm1159, %v1056, 0.0
      %1212 = vadd.xlane.f32.xlu0 %v1211
      %v1213 = vpop.xlane.xlu0 %1212
      %v1214 = vsel %vm1159, %v1059, 0.0
      %1215 = vadd.xlane.f32.xlu0 %v1214
      %v1216 = vpop.xlane.xlu0 %1215
      %v1217 = vsel %vm1159, %v1062, 0.0
      %1218 = vadd.xlane.f32.xlu0 %v1217
      %v1219 = vpop.xlane.xlu0 %1218
      %v1220 = vsel %vm1159, %v1065, 0.0
      %1221 = vadd.xlane.f32.xlu0 %v1220
      %v1222 = vpop.xlane.xlu0 %1221
      %v1223 = vsel %vm1159, %v1068, 0.0
      %1224 = vadd.xlane.f32.xlu0 %v1223
      %v1225 = vpop.xlane.xlu0 %1224
      %v1226 = vsel %vm1159, %v1071, 0.0
      %1227 = vadd.xlane.f32.xlu0 %v1226
      %v1228 = vpop.xlane.xlu0 %1227
      %v1229 = vsel %vm1159, %v1074, 0.0
      %1230 = vadd.xlane.f32.xlu0 %v1229
      %v1231 = vpop.xlane.xlu0 %1230
      %v1232 = vsel %vm1159, %v1077, 0.0
      %1233 = vadd.xlane.f32.xlu0 %v1232
      %v1234 = vpop.xlane.xlu0 %1233
      %v1235 = vsel %vm1159, %v1080, 0.0
      %1236 = vadd.xlane.f32.xlu0 %v1235
      %v1237 = vpop.xlane.xlu0 %1236
      %v1238 = vsel %vm1159, %v1083, 0.0
      %1239 = vadd.xlane.f32.xlu0 %v1238
      %v1240 = vpop.xlane.xlu0 %1239
      %v1241 = vsel %vm1159, %v1086, 0.0
      %1242 = vadd.xlane.f32.xlu0 %v1241
      %v1243 = vpop.xlane.xlu0 %1242
      %v1244 = vsel %vm1159, %v1089, 0.0
      %1245 = vadd.xlane.f32.xlu0 %v1244
      %v1246 = vpop.xlane.xlu0 %1245
      %v1247 = vsel %vm1159, %v1092, 0.0
      %1248 = vadd.xlane.f32.xlu0 %v1247
      %v1249 = vpop.xlane.xlu0 %1248
      %v1250 = vsel %vm1159, %v1095, 0.0
      %1251 = vadd.xlane.f32.xlu0 %v1250
      %v1252 = vpop.xlane.xlu0 %1251
      %v1253 = vsel %vm1159, %v1098, 0.0
      %1254 = vadd.xlane.f32.xlu0 %v1253
      %v1255 = vpop.xlane.xlu0 %1254
      %v1256 = vsel %vm1159, %v1101, 0.0
      %1257 = vadd.xlane.f32.xlu0 %v1256
      %v1258 = vpop.xlane.xlu0 %1257
      %v1259 = vsel %vm1159, %v1104, 0.0
      %1260 = vadd.xlane.f32.xlu0 %v1259
      %v1261 = vpop.xlane.xlu0 %1260
      %v1262 = vsel %vm1159, %v1107, 0.0
      %1263 = vadd.xlane.f32.xlu0 %v1262
      %v1264 = vpop.xlane.xlu0 %1263
      %v1265 = vsel %vm1159, %v1110, 0.0
      %1266 = vadd.xlane.f32.xlu0 %v1265
      %v1267 = vpop.xlane.xlu0 %1266
      %v1268 = vsel %vm1159, %v1113, 0.0
      %1269 = vadd.xlane.f32.xlu0 %v1268
      %v1270 = vpop.xlane.xlu0 %1269
      %v1271 = vsel %vm1159, %v1116, 0.0
      %1272 = vadd.xlane.f32.xlu0 %v1271
      %v1273 = vpop.xlane.xlu0 %1272
      %v1274 = vsel %vm1159, %v1119, 0.0
      %1275 = vadd.xlane.f32.xlu0 %v1274
      %v1276 = vpop.xlane.xlu0 %1275
      %v1277 = vsel %vm1159, %v1122, 0.0
      %1278 = vadd.xlane.f32.xlu0 %v1277
      %v1279 = vpop.xlane.xlu0 %1278
      %v1280 = vsel %vm1159, %v1125, 0.0
      %1281 = vadd.xlane.f32.xlu0 %v1280
      %v1282 = vpop.xlane.xlu0 %1281
      %v1283 = vsel %vm1159, %v1128, 0.0
      %1284 = vadd.xlane.f32.xlu0 %v1283
      %v1285 = vpop.xlane.xlu0 %1284
      %v1286 = vsel %vm1159, %v1131, 0.0
      %1287 = vadd.xlane.f32.xlu0 %v1286
      %v1288 = vpop.xlane.xlu0 %1287
      %v1289 = vsel %vm1159, %v1134, 0.0
      %1290 = vadd.xlane.f32.xlu0 %v1289
      %v1291 = vpop.xlane.xlu0 %1290
      %v1292 = vsel %vm1159, %v1137, 0.0
      %1293 = vadd.xlane.f32.xlu0 %v1292
      %v1294 = vpop.xlane.xlu0 %1293
      %v1295 = vsel %vm1159, %v1140, 0.0
      %1296 = vadd.xlane.f32.xlu0 %v1295
      %v1297 = vpop.xlane.xlu0 %1296
      %v1298 = vsel %vm1159, %v1143, 0.0
      %1299 = vadd.xlane.f32.xlu0 %v1298
      %v1300 = vpop.xlane.xlu0 %1299
      %v1301 = vsel %vm1159, %v1146, 0.0
      %1302 = vadd.xlane.f32.xlu0 %v1301
      %v1303 = vpop.xlane.xlu0 %1302
      %v1304 = vsel %vm1159, %v1149, 0.0
      %1305 = vadd.xlane.f32.xlu0 %v1304
      %v1306 = vpop.xlane.xlu0 %1305
      %v1307 = vsel %vm1159, %v1152, 0.0
      %1308 = vadd.xlane.f32.xlu0 %v1307
      %v1309 = vpop.xlane.xlu0 %1308
      %v1310 = vsel %vm1159, %v1155, 0.0
      %1311 = vadd.xlane.f32.xlu0 %v1310
      %v1312 = vpop.xlane.xlu0 %1311
      %v1313 = vrcp.pop 32.0
      %v1314 = vmul.f32 32.0, %v1313
      %v1315 = vsub.f32 1.0, %v1314
      %v1316 = vmul.f32 %v1313, %v1315
      %v1317 = vadd.f32 %v1313, %v1316
      %vm1318 = vweird.f32 %v1313
      %v1319 = vsel %vm1318, %v1313, %v1317
      %v1320 = vmul.f32 %v1162, %v1319
      %v1321 = vmul.f32 %v1165, %v1319
      %v1322 = vmul.f32 %v1168, %v1319
      %v1323 = vmul.f32 %v1171, %v1319
      %v1324 = vmul.f32 %v1174, %v1319
      %v1325 = vmul.f32 %v1177, %v1319
      %v1326 = vmul.f32 %v1180, %v1319
      %v1327 = vmul.f32 %v1183, %v1319
      %v1328 = vmul.f32 %v1186, %v1319
      %v1329 = vmul.f32 %v1189, %v1319
      %v1330 = vmul.f32 %v1192, %v1319
      %v1331 = vmul.f32 %v1195, %v1319
      %v1332 = vmul.f32 %v1198, %v1319
      %v1333 = vmul.f32 %v1201, %v1319
      %v1334 = vmul.f32 %v1204, %v1319
      %v1335 = vmul.f32 %v1207, %v1319
      %v1336 = vmul.f32 %v1210, %v1319
      %v1337 = vmul.f32 %v1213, %v1319
      %v1338 = vmul.f32 %v1216, %v1319
      %v1339 = vmul.f32 %v1219, %v1319
      %v1340 = vmul.f32 %v1222, %v1319
      %v1341 = vmul.f32 %v1225, %v1319
      %v1342 = vmul.f32 %v1228, %v1319
      %v1343 = vmul.f32 %v1231, %v1319
      %v1344 = vmul.f32 %v1234, %v1319
      %v1345 = vmul.f32 %v1237, %v1319
      %v1346 = vmul.f32 %v1240, %v1319
      %v1347 = vmul.f32 %v1243, %v1319
      %v1348 = vmul.f32 %v1246, %v1319
      %v1349 = vmul.f32 %v1249, %v1319
      %v1350 = vmul.f32 %v1252, %v1319
      %v1351 = vmul.f32 %v1255, %v1319
      %v1352 = vmul.f32 %v1258, %v1319
      %v1353 = vmul.f32 %v1261, %v1319
      %v1354 = vmul.f32 %v1264, %v1319
      %v1355 = vmul.f32 %v1267, %v1319
      %v1356 = vmul.f32 %v1270, %v1319
      %v1357 = vmul.f32 %v1273, %v1319
      %v1358 = vmul.f32 %v1276, %v1319
      %v1359 = vmul.f32 %v1279, %v1319
      %v1360 = vmul.f32 %v1282, %v1319
      %v1361 = vmul.f32 %v1285, %v1319
      %v1362 = vmul.f32 %v1288, %v1319
      %v1363 = vmul.f32 %v1291, %v1319
      %v1364 = vmul.f32 %v1294, %v1319
      %v1365 = vmul.f32 %v1297, %v1319
      %v1366 = vmul.f32 %v1300, %v1319
      %v1367 = vmul.f32 %v1303, %v1319
      %v1368 = vmul.f32 %v1306, %v1319
      %v1369 = vmul.f32 %v1309, %v1319
      %v1370 = vmul.f32 %v1312, %v1319
      %v1371 = vsub.f32 %v1005, %v1320
      %v1372 = vsub.f32 %v1008, %v1321
      %v1373 = vsub.f32 %v1011, %v1322
      %v1374 = vsub.f32 %v1014, %v1323
      %v1375 = vsub.f32 %v1017, %v1324
      %v1376 = vsub.f32 %v1020, %v1325
      %v1377 = vsub.f32 %v1023, %v1326
      %v1378 = vsub.f32 %v1026, %v1327
      %v1379 = vsub.f32 %v1029, %v1328
      %v1380 = vsub.f32 %v1032, %v1329
      %v1381 = vsub.f32 %v1035, %v1330
      %v1382 = vsub.f32 %v1038, %v1331
      %v1383 = vsub.f32 %v1041, %v1332
      %v1384 = vsub.f32 %v1044, %v1333
      %v1385 = vsub.f32 %v1047, %v1334
      %v1386 = vsub.f32 %v1050, %v1335
      %v1387 = vsub.f32 %v1053, %v1336
      %v1388 = vsub.f32 %v1056, %v1337
      %v1389 = vsub.f32 %v1059, %v1338
      %v1390 = vsub.f32 %v1062, %v1339
      %v1391 = vsub.f32 %v1065, %v1340
      %v1392 = vsub.f32 %v1068, %v1341
      %v1393 = vsub.f32 %v1071, %v1342
      %v1394 = vsub.f32 %v1074, %v1343
      %v1395 = vsub.f32 %v1077, %v1344
      %v1396 = vsub.f32 %v1080, %v1345
      %v1397 = vsub.f32 %v1083, %v1346
      %v1398 = vsub.f32 %v1086, %v1347
      %v1399 = vsub.f32 %v1089, %v1348
      %v1400 = vsub.f32 %v1092, %v1349
      %v1401 = vsub.f32 %v1095, %v1350
      %v1402 = vsub.f32 %v1098, %v1351
      %v1403 = vsub.f32 %v1101, %v1352
      %v1404 = vsub.f32 %v1104, %v1353
      %v1405 = vsub.f32 %v1107, %v1354
      %v1406 = vsub.f32 %v1110, %v1355
      %v1407 = vsub.f32 %v1113, %v1356
      %v1408 = vsub.f32 %v1116, %v1357
      %v1409 = vsub.f32 %v1119, %v1358
      %v1410 = vsub.f32 %v1122, %v1359
      %v1411 = vsub.f32 %v1125, %v1360
      %v1412 = vsub.f32 %v1128, %v1361
      %v1413 = vsub.f32 %v1131, %v1362
      %v1414 = vsub.f32 %v1134, %v1363
      %v1415 = vsub.f32 %v1137, %v1364
      %v1416 = vsub.f32 %v1140, %v1365
      %v1417 = vsub.f32 %v1143, %v1366
      %v1418 = vsub.f32 %v1146, %v1367
      %v1419 = vsub.f32 %v1149, %v1368
      %v1420 = vsub.f32 %v1152, %v1369
      %v1421 = vsub.f32 %v1155, %v1370
      %v1422 = vmul.f32 %v1371, %v1371
      %v1423 = vmul.f32 %v1372, %v1372
      %v1424 = vmul.f32 %v1373, %v1373
      %v1425 = vmul.f32 %v1374, %v1374
      %v1426 = vmul.f32 %v1375, %v1375
      %v1427 = vmul.f32 %v1376, %v1376
      %v1428 = vmul.f32 %v1377, %v1377
      %v1429 = vmul.f32 %v1378, %v1378
      %v1430 = vmul.f32 %v1379, %v1379
      %v1431 = vmul.f32 %v1380, %v1380
      %v1432 = vmul.f32 %v1381, %v1381
      %v1433 = vmul.f32 %v1382, %v1382
      %v1434 = vmul.f32 %v1383, %v1383
      %v1435 = vmul.f32 %v1384, %v1384
      %v1436 = vmul.f32 %v1385, %v1385
      %v1437 = vmul.f32 %v1386, %v1386
      %v1438 = vmul.f32 %v1387, %v1387
      %v1439 = vmul.f32 %v1388, %v1388
      %v1440 = vmul.f32 %v1389, %v1389
      %v1441 = vmul.f32 %v1390, %v1390
      %v1442 = vmul.f32 %v1391, %v1391
      %v1443 = vmul.f32 %v1392, %v1392
      %v1444 = vmul.f32 %v1393, %v1393
      %v1445 = vmul.f32 %v1394, %v1394
      %v1446 = vmul.f32 %v1395, %v1395
      %v1447 = vmul.f32 %v1396, %v1396
      %v1448 = vmul.f32 %v1397, %v1397
      %v1449 = vmul.f32 %v1398, %v1398
      %v1450 = vmul.f32 %v1399, %v1399
      %v1451 = vmul.f32 %v1400, %v1400
      %v1452 = vmul.f32 %v1401, %v1401
      %v1453 = vmul.f32 %v1402, %v1402
      %v1454 = vmul.f32 %v1403, %v1403
      %v1455 = vmul.f32 %v1404, %v1404
      %v1456 = vmul.f32 %v1405, %v1405
      %v1457 = vmul.f32 %v1406, %v1406
      %v1458 = vmul.f32 %v1407, %v1407
      %v1459 = vmul.f32 %v1408, %v1408
      %v1460 = vmul.f32 %v1409, %v1409
      %v1461 = vmul.f32 %v1410, %v1410
      %v1462 = vmul.f32 %v1411, %v1411
      %v1463 = vmul.f32 %v1412, %v1412
      %v1464 = vmul.f32 %v1413, %v1413
      %v1465 = vmul.f32 %v1414, %v1414
      %v1466 = vmul.f32 %v1415, %v1415
      %v1467 = vmul.f32 %v1416, %v1416
      %v1468 = vmul.f32 %v1417, %v1417
      %v1469 = vmul.f32 %v1418, %v1418
      %v1470 = vmul.f32 %v1419, %v1419
      %v1471 = vmul.f32 %v1420, %v1420
      %v1472 = vmul.f32 %v1421, %v1421
      %v1473 = vsel %vm1159, %v1422, 0.0
      %1474 = vadd.xlane.f32.xlu0 %v1473
      %v1475 = vpop.xlane.xlu0 %1474
      %v1476 = vsel %vm1159, %v1423, 0.0
      %1477 = vadd.xlane.f32.xlu0 %v1476
      %v1478 = vpop.xlane.xlu0 %1477
      %v1479 = vsel %vm1159, %v1424, 0.0
      %1480 = vadd.xlane.f32.xlu0 %v1479
      %v1481 = vpop.xlane.xlu0 %1480
      %v1482 = vsel %vm1159, %v1425, 0.0
      %1483 = vadd.xlane.f32.xlu0 %v1482
      %v1484 = vpop.xlane.xlu0 %1483
      %v1485 = vsel %vm1159, %v1426, 0.0
      %1486 = vadd.xlane.f32.xlu0 %v1485
      %v1487 = vpop.xlane.xlu0 %1486
      %v1488 = vsel %vm1159, %v1427, 0.0
      %1489 = vadd.xlane.f32.xlu0 %v1488
      %v1490 = vpop.xlane.xlu0 %1489
      %v1491 = vsel %vm1159, %v1428, 0.0
      %1492 = vadd.xlane.f32.xlu0 %v1491
      %v1493 = vpop.xlane.xlu0 %1492
      %v1494 = vsel %vm1159, %v1429, 0.0
      %1495 = vadd.xlane.f32.xlu0 %v1494
      %v1496 = vpop.xlane.xlu0 %1495
      %v1497 = vsel %vm1159, %v1430, 0.0
      %1498 = vadd.xlane.f32.xlu0 %v1497
      %v1499 = vpop.xlane.xlu0 %1498
      %v1500 = vsel %vm1159, %v1431, 0.0
      %1501 = vadd.xlane.f32.xlu0 %v1500
      %v1502 = vpop.xlane.xlu0 %1501
      %v1503 = vsel %vm1159, %v1432, 0.0
      %1504 = vadd.xlane.f32.xlu0 %v1503
      %v1505 = vpop.xlane.xlu0 %1504
      %v1506 = vsel %vm1159, %v1433, 0.0
      %1507 = vadd.xlane.f32.xlu0 %v1506
      %v1508 = vpop.xlane.xlu0 %1507
      %v1509 = vsel %vm1159, %v1434, 0.0
      %1510 = vadd.xlane.f32.xlu0 %v1509
      %v1511 = vpop.xlane.xlu0 %1510
      %v1512 = vsel %vm1159, %v1435, 0.0
      %1513 = vadd.xlane.f32.xlu0 %v1512
      %v1514 = vpop.xlane.xlu0 %1513
      %v1515 = vsel %vm1159, %v1436, 0.0
      %1516 = vadd.xlane.f32.xlu0 %v1515
      %v1517 = vpop.xlane.xlu0 %1516
      %v1518 = vsel %vm1159, %v1437, 0.0
      %1519 = vadd.xlane.f32.xlu0 %v1518
      %v1520 = vpop.xlane.xlu0 %1519
      %v1521 = vsel %vm1159, %v1438, 0.0
      %1522 = vadd.xlane.f32.xlu0 %v1521
      %v1523 = vpop.xlane.xlu0 %1522
      %v1524 = vsel %vm1159, %v1439, 0.0
      %1525 = vadd.xlane.f32.xlu0 %v1524
      %v1526 = vpop.xlane.xlu0 %1525
      %v1527 = vsel %vm1159, %v1440, 0.0
      %1528 = vadd.xlane.f32.xlu0 %v1527
      %v1529 = vpop.xlane.xlu0 %1528
      %v1530 = vsel %vm1159, %v1441, 0.0
      %1531 = vadd.xlane.f32.xlu0 %v1530
      %v1532 = vpop.xlane.xlu0 %1531
      %v1533 = vsel %vm1159, %v1442, 0.0
      %1534 = vadd.xlane.f32.xlu0 %v1533
      %v1535 = vpop.xlane.xlu0 %1534
      %v1536 = vsel %vm1159, %v1443, 0.0
      %1537 = vadd.xlane.f32.xlu0 %v1536
      %v1538 = vpop.xlane.xlu0 %1537
      %v1539 = vsel %vm1159, %v1444, 0.0
      %1540 = vadd.xlane.f32.xlu0 %v1539
      %v1541 = vpop.xlane.xlu0 %1540
      %v1542 = vsel %vm1159, %v1445, 0.0
      %1543 = vadd.xlane.f32.xlu0 %v1542
      %v1544 = vpop.xlane.xlu0 %1543
      %v1545 = vsel %vm1159, %v1446, 0.0
      %1546 = vadd.xlane.f32.xlu0 %v1545
      %v1547 = vpop.xlane.xlu0 %1546
      %v1548 = vsel %vm1159, %v1447, 0.0
      %1549 = vadd.xlane.f32.xlu0 %v1548
      %v1550 = vpop.xlane.xlu0 %1549
      %v1551 = vsel %vm1159, %v1448, 0.0
      %1552 = vadd.xlane.f32.xlu0 %v1551
      %v1553 = vpop.xlane.xlu0 %1552
      %v1554 = vsel %vm1159, %v1449, 0.0
      %1555 = vadd.xlane.f32.xlu0 %v1554
      %v1556 = vpop.xlane.xlu0 %1555
      %v1557 = vsel %vm1159, %v1450, 0.0
      %1558 = vadd.xlane.f32.xlu0 %v1557
      %v1559 = vpop.xlane.xlu0 %1558
      %v1560 = vsel %vm1159, %v1451, 0.0
      %1561 = vadd.xlane.f32.xlu0 %v1560
      %v1562 = vpop.xlane.xlu0 %1561
      %v1563 = vsel %vm1159, %v1452, 0.0
      %1564 = vadd.xlane.f32.xlu0 %v1563
      %v1565 = vpop.xlane.xlu0 %1564
      %v1566 = vsel %vm1159, %v1453, 0.0
      %1567 = vadd.xlane.f32.xlu0 %v1566
      %v1568 = vpop.xlane.xlu0 %1567
      %v1569 = vsel %vm1159, %v1454, 0.0
      %1570 = vadd.xlane.f32.xlu0 %v1569
      %v1571 = vpop.xlane.xlu0 %1570
      %v1572 = vsel %vm1159, %v1455, 0.0
      %1573 = vadd.xlane.f32.xlu0 %v1572
      %v1574 = vpop.xlane.xlu0 %1573
      %v1575 = vsel %vm1159, %v1456, 0.0
      %1576 = vadd.xlane.f32.xlu0 %v1575
      %v1577 = vpop.xlane.xlu0 %1576
      %v1578 = vsel %vm1159, %v1457, 0.0
      %1579 = vadd.xlane.f32.xlu0 %v1578
      %v1580 = vpop.xlane.xlu0 %1579
      %v1581 = vsel %vm1159, %v1458, 0.0
      %1582 = vadd.xlane.f32.xlu0 %v1581
      %v1583 = vpop.xlane.xlu0 %1582
      %v1584 = vsel %vm1159, %v1459, 0.0
      %1585 = vadd.xlane.f32.xlu0 %v1584
      %v1586 = vpop.xlane.xlu0 %1585
      %v1587 = vsel %vm1159, %v1460, 0.0
      %1588 = vadd.xlane.f32.xlu0 %v1587
      %v1589 = vpop.xlane.xlu0 %1588
      %v1590 = vsel %vm1159, %v1461, 0.0
      %1591 = vadd.xlane.f32.xlu0 %v1590
      %v1592 = vpop.xlane.xlu0 %1591
      %v1593 = vsel %vm1159, %v1462, 0.0
      %1594 = vadd.xlane.f32.xlu0 %v1593
      %v1595 = vpop.xlane.xlu0 %1594
      %v1596 = vsel %vm1159, %v1463, 0.0
      %1597 = vadd.xlane.f32.xlu0 %v1596
      %v1598 = vpop.xlane.xlu0 %1597
      %v1599 = vsel %vm1159, %v1464, 0.0
      %1600 = vadd.xlane.f32.xlu0 %v1599
      %v1601 = vpop.xlane.xlu0 %1600
      %v1602 = vsel %vm1159, %v1465, 0.0
      %1603 = vadd.xlane.f32.xlu0 %v1602
      %v1604 = vpop.xlane.xlu0 %1603
      %v1605 = vsel %vm1159, %v1466, 0.0
      %1606 = vadd.xlane.f32.xlu0 %v1605
      %v1607 = vpop.xlane.xlu0 %1606
      %v1608 = vsel %vm1159, %v1467, 0.0
      %1609 = vadd.xlane.f32.xlu0 %v1608
      %v1610 = vpop.xlane.xlu0 %1609
      %v1611 = vsel %vm1159, %v1468, 0.0
      %1612 = vadd.xlane.f32.xlu0 %v1611
      %v1613 = vpop.xlane.xlu0 %1612
      %v1614 = vsel %vm1159, %v1469, 0.0
      %1615 = vadd.xlane.f32.xlu0 %v1614
      %v1616 = vpop.xlane.xlu0 %1615
      %v1617 = vsel %vm1159, %v1470, 0.0
      %1618 = vadd.xlane.f32.xlu0 %v1617
      %v1619 = vpop.xlane.xlu0 %1618
      %v1620 = vsel %vm1159, %v1471, 0.0
      %1621 = vadd.xlane.f32.xlu0 %v1620
      %v1622 = vpop.xlane.xlu0 %1621
      %v1623 = vsel %vm1159, %v1472, 0.0
      %1624 = vadd.xlane.f32.xlu0 %v1623
      %v1625 = vpop.xlane.xlu0 %1624
      %v1626 = vmul.f32 %v1475, %v1319
      %v1627 = vmul.f32 %v1478, %v1319
      %v1628 = vmul.f32 %v1481, %v1319
      %v1629 = vmul.f32 %v1484, %v1319
      %v1630 = vmul.f32 %v1487, %v1319
      %v1631 = vmul.f32 %v1490, %v1319
      %v1632 = vmul.f32 %v1493, %v1319
      %v1633 = vmul.f32 %v1496, %v1319
      %v1634 = vmul.f32 %v1499, %v1319
      %v1635 = vmul.f32 %v1502, %v1319
      %v1636 = vmul.f32 %v1505, %v1319
      %v1637 = vmul.f32 %v1508, %v1319
      %v1638 = vmul.f32 %v1511, %v1319
      %v1639 = vmul.f32 %v1514, %v1319
      %v1640 = vmul.f32 %v1517, %v1319
      %v1641 = vmul.f32 %v1520, %v1319
      %v1642 = vmul.f32 %v1523, %v1319
      %v1643 = vmul.f32 %v1526, %v1319
      %v1644 = vmul.f32 %v1529, %v1319
      %v1645 = vmul.f32 %v1532, %v1319
      %v1646 = vmul.f32 %v1535, %v1319
      %v1647 = vmul.f32 %v1538, %v1319
      %v1648 = vmul.f32 %v1541, %v1319
      %v1649 = vmul.f32 %v1544, %v1319
      %v1650 = vmul.f32 %v1547, %v1319
      %v1651 = vmul.f32 %v1550, %v1319
      %v1652 = vmul.f32 %v1553, %v1319
      %v1653 = vmul.f32 %v1556, %v1319
      %v1654 = vmul.f32 %v1559, %v1319
      %v1655 = vmul.f32 %v1562, %v1319
      %v1656 = vmul.f32 %v1565, %v1319
      %v1657 = vmul.f32 %v1568, %v1319
      %v1658 = vmul.f32 %v1571, %v1319
      %v1659 = vmul.f32 %v1574, %v1319
      %v1660 = vmul.f32 %v1577, %v1319
      %v1661 = vmul.f32 %v1580, %v1319
      %v1662 = vmul.f32 %v1583, %v1319
      %v1663 = vmul.f32 %v1586, %v1319
      %v1664 = vmul.f32 %v1589, %v1319
      %v1665 = vmul.f32 %v1592, %v1319
      %v1666 = vmul.f32 %v1595, %v1319
      %v1667 = vmul.f32 %v1598, %v1319
      %v1668 = vmul.f32 %v1601, %v1319
      %v1669 = vmul.f32 %v1604, %v1319
      %v1670 = vmul.f32 %v1607, %v1319
      %v1671 = vmul.f32 %v1610, %v1319
      %v1672 = vmul.f32 %v1613, %v1319
      %v1673 = vmul.f32 %v1616, %v1319
      %v1674 = vmul.f32 %v1619, %v1319
      %v1675 = vmul.f32 %v1622, %v1319
      %v1676 = vmul.f32 %v1625, %v1319
      %v1677 = vadd.f32 %v1626, 1e-05
      %v1678 = vadd.f32 %v1627, 1e-05
      %v1679 = vadd.f32 %v1628, 1e-05
      %v1680 = vadd.f32 %v1629, 1e-05
      %v1681 = vadd.f32 %v1630, 1e-05
      %v1682 = vadd.f32 %v1631, 1e-05
      %v1683 = vadd.f32 %v1632, 1e-05
      %v1684 = vadd.f32 %v1633, 1e-05
      %v1685 = vadd.f32 %v1634, 1e-05
      %v1686 = vadd.f32 %v1635, 1e-05
      %v1687 = vadd.f32 %v1636, 1e-05
      %v1688 = vadd.f32 %v1637, 1e-05
      %v1689 = vadd.f32 %v1638, 1e-05
      %v1690 = vadd.f32 %v1639, 1e-05
      %v1691 = vadd.f32 %v1640, 1e-05
      %v1692 = vadd.f32 %v1641, 1e-05
      %v1693 = vadd.f32 %v1642, 1e-05
      %v1694 = vadd.f32 %v1643, 1e-05
      %v1695 = vadd.f32 %v1644, 1e-05
      %v1696 = vadd.f32 %v1645, 1e-05
      %v1697 = vadd.f32 %v1646, 1e-05
      %v1698 = vadd.f32 %v1647, 1e-05
      %v1699 = vadd.f32 %v1648, 1e-05
      %v1700 = vadd.f32 %v1649, 1e-05
      %v1701 = vadd.f32 %v1650, 1e-05
      %v1702 = vadd.f32 %v1651, 1e-05
      %v1703 = vadd.f32 %v1652, 1e-05
      %v1704 = vadd.f32 %v1653, 1e-05
      %v1705 = vadd.f32 %v1654, 1e-05
      %v1706 = vadd.f32 %v1655, 1e-05
      %v1707 = vadd.f32 %v1656, 1e-05
      %v1708 = vadd.f32 %v1657, 1e-05
      %v1709 = vadd.f32 %v1658, 1e-05
      %v1710 = vadd.f32 %v1659, 1e-05
      %v1711 = vadd.f32 %v1660, 1e-05
      %v1712 = vadd.f32 %v1661, 1e-05
      %v1713 = vadd.f32 %v1662, 1e-05
      %v1714 = vadd.f32 %v1663, 1e-05
      %v1715 = vadd.f32 %v1664, 1e-05
      %v1716 = vadd.f32 %v1665, 1e-05
      %v1717 = vadd.f32 %v1666, 1e-05
      %v1718 = vadd.f32 %v1667, 1e-05
      %v1719 = vadd.f32 %v1668, 1e-05
      %v1720 = vadd.f32 %v1669, 1e-05
      %v1721 = vadd.f32 %v1670, 1e-05
      %v1722 = vadd.f32 %v1671, 1e-05
      %v1723 = vadd.f32 %v1672, 1e-05
      %v1724 = vadd.f32 %v1673, 1e-05
      %v1725 = vadd.f32 %v1674, 1e-05
      %v1726 = vadd.f32 %v1675, 1e-05
      %v1727 = vadd.f32 %v1676, 1e-05
      %v1728 = vrsqrt.pop %v1677
      %v1729 = vmul.f32 %v1728, %v1677
      %v1730 = vmul.f32 %v1729, %v1728
      %v1731 = vmul.f32 0.5, %v1730
      %v1732 = vsub.f32 1.5, %v1731
      %v1733 = vmul.f32 %v1728, %v1732
      %vm1734 = vweird.f32 %v1677
      %vm1735 = vweird.f32 %v1728
      %vm1736 = vmor %vm1734, %vm1735
      %v1737 = vsel %vm1736, %v1728, %v1733
      %v1738 = vrsqrt.pop %v1678
      %v1739 = vmul.f32 %v1738, %v1678
      %v1740 = vmul.f32 %v1739, %v1738
      %v1741 = vmul.f32 0.5, %v1740
      %v1742 = vsub.f32 1.5, %v1741
      %v1743 = vmul.f32 %v1738, %v1742
      %vm1744 = vweird.f32 %v1678
      %vm1745 = vweird.f32 %v1738
      %vm1746 = vmor %vm1744, %vm1745
      %v1747 = vsel %vm1746, %v1738, %v1743
      %v1748 = vrsqrt.pop %v1679
      %v1749 = vmul.f32 %v1748, %v1679
      %v1750 = vmul.f32 %v1749, %v1748
      %v1751 = vmul.f32 0.5, %v1750
      %v1752 = vsub.f32 1.5, %v1751
      %v1753 = vmul.f32 %v1748, %v1752
      %vm1754 = vweird.f32 %v1679
      %vm1755 = vweird.f32 %v1748
      %vm1756 = vmor %vm1754, %vm1755
      %v1757 = vsel %vm1756, %v1748, %v1753
      %v1758 = vrsqrt.pop %v1680
      %v1759 = vmul.f32 %v1758, %v1680
      %v1760 = vmul.f32 %v1759, %v1758
      %v1761 = vmul.f32 0.5, %v1760
      %v1762 = vsub.f32 1.5, %v1761
      %v1763 = vmul.f32 %v1758, %v1762
      %vm1764 = vweird.f32 %v1680
      %vm1765 = vweird.f32 %v1758
      %vm1766 = vmor %vm1764, %vm1765
      %v1767 = vsel %vm1766, %v1758, %v1763
      %v1768 = vrsqrt.pop %v1681
      %v1769 = vmul.f32 %v1768, %v1681
      %v1770 = vmul.f32 %v1769, %v1768
      %v1771 = vmul.f32 0.5, %v1770
      %v1772 = vsub.f32 1.5, %v1771
      %v1773 = vmul.f32 %v1768, %v1772
      %vm1774 = vweird.f32 %v1681
      %vm1775 = vweird.f32 %v1768
      %vm1776 = vmor %vm1774, %vm1775
      %v1777 = vsel %vm1776, %v1768, %v1773
      %v1778 = vrsqrt.pop %v1682
      %v1779 = vmul.f32 %v1778, %v1682
      %v1780 = vmul.f32 %v1779, %v1778
      %v1781 = vmul.f32 0.5, %v1780
      %v1782 = vsub.f32 1.5, %v1781
      %v1783 = vmul.f32 %v1778, %v1782
      %vm1784 = vweird.f32 %v1682
      %vm1785 = vweird.f32 %v1778
      %vm1786 = vmor %vm1784, %vm1785
      %v1787 = vsel %vm1786, %v1778, %v1783
      %v1788 = vrsqrt.pop %v1683
      %v1789 = vmul.f32 %v1788, %v1683
      %v1790 = vmul.f32 %v1789, %v1788
      %v1791 = vmul.f32 0.5, %v1790
      %v1792 = vsub.f32 1.5, %v1791
      %v1793 = vmul.f32 %v1788, %v1792
      %vm1794 = vweird.f32 %v1683
      %vm1795 = vweird.f32 %v1788
      %vm1796 = vmor %vm1794, %vm1795
      %v1797 = vsel %vm1796, %v1788, %v1793
      %v1798 = vrsqrt.pop %v1684
      %v1799 = vmul.f32 %v1798, %v1684
      %v1800 = vmul.f32 %v1799, %v1798
      %v1801 = vmul.f32 0.5, %v1800
      %v1802 = vsub.f32 1.5, %v1801
      %v1803 = vmul.f32 %v1798, %v1802
      %vm1804 = vweird.f32 %v1684
      %vm1805 = vweird.f32 %v1798
      %vm1806 = vmor %vm1804, %vm1805
      %v1807 = vsel %vm1806, %v1798, %v1803
      %v1808 = vrsqrt.pop %v1685
      %v1809 = vmul.f32 %v1808, %v1685
      %v1810 = vmul.f32 %v1809, %v1808
      %v1811 = vmul.f32 0.5, %v1810
      %v1812 = vsub.f32 1.5, %v1811
      %v1813 = vmul.f32 %v1808, %v1812
      %vm1814 = vweird.f32 %v1685
      %vm1815 = vweird.f32 %v1808
      %vm1816 = vmor %vm1814, %vm1815
      %v1817 = vsel %vm1816, %v1808, %v1813
      %v1818 = vrsqrt.pop %v1686
      %v1819 = vmul.f32 %v1818, %v1686
      %v1820 = vmul.f32 %v1819, %v1818
      %v1821 = vmul.f32 0.5, %v1820
      %v1822 = vsub.f32 1.5, %v1821
      %v1823 = vmul.f32 %v1818, %v1822
      %vm1824 = vweird.f32 %v1686
      %vm1825 = vweird.f32 %v1818
      %vm1826 = vmor %vm1824, %vm1825
      %v1827 = vsel %vm1826, %v1818, %v1823
      %v1828 = vrsqrt.pop %v1687
      %v1829 = vmul.f32 %v1828, %v1687
      %v1830 = vmul.f32 %v1829, %v1828
      %v1831 = vmul.f32 0.5, %v1830
      %v1832 = vsub.f32 1.5, %v1831
      %v1833 = vmul.f32 %v1828, %v1832
      %vm1834 = vweird.f32 %v1687
      %vm1835 = vweird.f32 %v1828
      %vm1836 = vmor %vm1834, %vm1835
      %v1837 = vsel %vm1836, %v1828, %v1833
      %v1838 = vrsqrt.pop %v1688
      %v1839 = vmul.f32 %v1838, %v1688
      %v1840 = vmul.f32 %v1839, %v1838
      %v1841 = vmul.f32 0.5, %v1840
      %v1842 = vsub.f32 1.5, %v1841
      %v1843 = vmul.f32 %v1838, %v1842
      %vm1844 = vweird.f32 %v1688
      %vm1845 = vweird.f32 %v1838
      %vm1846 = vmor %vm1844, %vm1845
      %v1847 = vsel %vm1846, %v1838, %v1843
      %v1848 = vrsqrt.pop %v1689
      %v1849 = vmul.f32 %v1848, %v1689
      %v1850 = vmul.f32 %v1849, %v1848
      %v1851 = vmul.f32 0.5, %v1850
      %v1852 = vsub.f32 1.5, %v1851
      %v1853 = vmul.f32 %v1848, %v1852
      %vm1854 = vweird.f32 %v1689
      %vm1855 = vweird.f32 %v1848
      %vm1856 = vmor %vm1854, %vm1855
      %v1857 = vsel %vm1856, %v1848, %v1853
      %v1858 = vrsqrt.pop %v1690
      %v1859 = vmul.f32 %v1858, %v1690
      %v1860 = vmul.f32 %v1859, %v1858
      %v1861 = vmul.f32 0.5, %v1860
      %v1862 = vsub.f32 1.5, %v1861
      %v1863 = vmul.f32 %v1858, %v1862
      %vm1864 = vweird.f32 %v1690
      %vm1865 = vweird.f32 %v1858
      %vm1866 = vmor %vm1864, %vm1865
      %v1867 = vsel %vm1866, %v1858, %v1863
      %v1868 = vrsqrt.pop %v1691
      %v1869 = vmul.f32 %v1868, %v1691
      %v1870 = vmul.f32 %v1869, %v1868
      %v1871 = vmul.f32 0.5, %v1870
      %v1872 = vsub.f32 1.5, %v1871
      %v1873 = vmul.f32 %v1868, %v1872
      %vm1874 = vweird.f32 %v1691
      %vm1875 = vweird.f32 %v1868
      %vm1876 = vmor %vm1874, %vm1875
      %v1877 = vsel %vm1876, %v1868, %v1873
      %v1878 = vrsqrt.pop %v1692
      %v1879 = vmul.f32 %v1878, %v1692
      %v1880 = vmul.f32 %v1879, %v1878
      %v1881 = vmul.f32 0.5, %v1880
      %v1882 = vsub.f32 1.5, %v1881
      %v1883 = vmul.f32 %v1878, %v1882
      %vm1884 = vweird.f32 %v1692
      %vm1885 = vweird.f32 %v1878
      %vm1886 = vmor %vm1884, %vm1885
      %v1887 = vsel %vm1886, %v1878, %v1883
      %v1888 = vrsqrt.pop %v1693
      %v1889 = vmul.f32 %v1888, %v1693
      %v1890 = vmul.f32 %v1889, %v1888
      %v1891 = vmul.f32 0.5, %v1890
      %v1892 = vsub.f32 1.5, %v1891
      %v1893 = vmul.f32 %v1888, %v1892
      %vm1894 = vweird.f32 %v1693
      %vm1895 = vweird.f32 %v1888
      %vm1896 = vmor %vm1894, %vm1895
      %v1897 = vsel %vm1896, %v1888, %v1893
      %v1898 = vrsqrt.pop %v1694
      %v1899 = vmul.f32 %v1898, %v1694
      %v1900 = vmul.f32 %v1899, %v1898
      %v1901 = vmul.f32 0.5, %v1900
      %v1902 = vsub.f32 1.5, %v1901
      %v1903 = vmul.f32 %v1898, %v1902
      %vm1904 = vweird.f32 %v1694
      %vm1905 = vweird.f32 %v1898
      %vm1906 = vmor %vm1904, %vm1905
      %v1907 = vsel %vm1906, %v1898, %v1903
      %v1908 = vrsqrt.pop %v1695
      %v1909 = vmul.f32 %v1908, %v1695
      %v1910 = vmul.f32 %v1909, %v1908
      %v1911 = vmul.f32 0.5, %v1910
      %v1912 = vsub.f32 1.5, %v1911
      %v1913 = vmul.f32 %v1908, %v1912
      %vm1914 = vweird.f32 %v1695
      %vm1915 = vweird.f32 %v1908
      %vm1916 = vmor %vm1914, %vm1915
      %v1917 = vsel %vm1916, %v1908, %v1913
      %v1918 = vrsqrt.pop %v1696
      %v1919 = vmul.f32 %v1918, %v1696
      %v1920 = vmul.f32 %v1919, %v1918
      %v1921 = vmul.f32 0.5, %v1920
      %v1922 = vsub.f32 1.5, %v1921
      %v1923 = vmul.f32 %v1918, %v1922
      %vm1924 = vweird.f32 %v1696
      %vm1925 = vweird.f32 %v1918
      %vm1926 = vmor %vm1924, %vm1925
      %v1927 = vsel %vm1926, %v1918, %v1923
      %v1928 = vrsqrt.pop %v1697
      %v1929 = vmul.f32 %v1928, %v1697
      %v1930 = vmul.f32 %v1929, %v1928
      %v1931 = vmul.f32 0.5, %v1930
      %v1932 = vsub.f32 1.5, %v1931
      %v1933 = vmul.f32 %v1928, %v1932
      %vm1934 = vweird.f32 %v1697
      %vm1935 = vweird.f32 %v1928
      %vm1936 = vmor %vm1934, %vm1935
      %v1937 = vsel %vm1936, %v1928, %v1933
      %v1938 = vrsqrt.pop %v1698
      %v1939 = vmul.f32 %v1938, %v1698
      %v1940 = vmul.f32 %v1939, %v1938
      %v1941 = vmul.f32 0.5, %v1940
      %v1942 = vsub.f32 1.5, %v1941
      %v1943 = vmul.f32 %v1938, %v1942
      %vm1944 = vweird.f32 %v1698
      %vm1945 = vweird.f32 %v1938
      %vm1946 = vmor %vm1944, %vm1945
      %v1947 = vsel %vm1946, %v1938, %v1943
      %v1948 = vrsqrt.pop %v1699
      %v1949 = vmul.f32 %v1948, %v1699
      %v1950 = vmul.f32 %v1949, %v1948
      %v1951 = vmul.f32 0.5, %v1950
      %v1952 = vsub.f32 1.5, %v1951
      %v1953 = vmul.f32 %v1948, %v1952
      %vm1954 = vweird.f32 %v1699
      %vm1955 = vweird.f32 %v1948
      %vm1956 = vmor %vm1954, %vm1955
      %v1957 = vsel %vm1956, %v1948, %v1953
      %v1958 = vrsqrt.pop %v1700
      %v1959 = vmul.f32 %v1958, %v1700
      %v1960 = vmul.f32 %v1959, %v1958
      %v1961 = vmul.f32 0.5, %v1960
      %v1962 = vsub.f32 1.5, %v1961
      %v1963 = vmul.f32 %v1958, %v1962
      %vm1964 = vweird.f32 %v1700
      %vm1965 = vweird.f32 %v1958
      %vm1966 = vmor %vm1964, %vm1965
      %v1967 = vsel %vm1966, %v1958, %v1963
      %v1968 = vrsqrt.pop %v1701
      %v1969 = vmul.f32 %v1968, %v1701
      %v1970 = vmul.f32 %v1969, %v1968
      %v1971 = vmul.f32 0.5, %v1970
      %v1972 = vsub.f32 1.5, %v1971
      %v1973 = vmul.f32 %v1968, %v1972
      %vm1974 = vweird.f32 %v1701
      %vm1975 = vweird.f32 %v1968
      %vm1976 = vmor %vm1974, %vm1975
      %v1977 = vsel %vm1976, %v1968, %v1973
      %v1978 = vrsqrt.pop %v1702
      %v1979 = vmul.f32 %v1978, %v1702
      %v1980 = vmul.f32 %v1979, %v1978
      %v1981 = vmul.f32 0.5, %v1980
      %v1982 = vsub.f32 1.5, %v1981
      %v1983 = vmul.f32 %v1978, %v1982
      %vm1984 = vweird.f32 %v1702
      %vm1985 = vweird.f32 %v1978
      %vm1986 = vmor %vm1984, %vm1985
      %v1987 = vsel %vm1986, %v1978, %v1983
      %v1988 = vrsqrt.pop %v1703
      %v1989 = vmul.f32 %v1988, %v1703
      %v1990 = vmul.f32 %v1989, %v1988
      %v1991 = vmul.f32 0.5, %v1990
      %v1992 = vsub.f32 1.5, %v1991
      %v1993 = vmul.f32 %v1988, %v1992
      %vm1994 = vweird.f32 %v1703
      %vm1995 = vweird.f32 %v1988
      %vm1996 = vmor %vm1994, %vm1995
      %v1997 = vsel %vm1996, %v1988, %v1993
      %v1998 = vrsqrt.pop %v1704
      %v1999 = vmul.f32 %v1998, %v1704
      %v2000 = vmul.f32 %v1999, %v1998
      %v2001 = vmul.f32 0.5, %v2000
      %v2002 = vsub.f32 1.5, %v2001
      %v2003 = vmul.f32 %v1998, %v2002
      %vm2004 = vweird.f32 %v1704
      %vm2005 = vweird.f32 %v1998
      %vm2006 = vmor %vm2004, %vm2005
      %v2007 = vsel %vm2006, %v1998, %v2003
      %v2008 = vrsqrt.pop %v1705
      %v2009 = vmul.f32 %v2008, %v1705
      %v2010 = vmul.f32 %v2009, %v2008
      %v2011 = vmul.f32 0.5, %v2010
      %v2012 = vsub.f32 1.5, %v2011
      %v2013 = vmul.f32 %v2008, %v2012
      %vm2014 = vweird.f32 %v1705
      %vm2015 = vweird.f32 %v2008
      %vm2016 = vmor %vm2014, %vm2015
      %v2017 = vsel %vm2016, %v2008, %v2013
      %v2018 = vrsqrt.pop %v1706
      %v2019 = vmul.f32 %v2018, %v1706
      %v2020 = vmul.f32 %v2019, %v2018
      %v2021 = vmul.f32 0.5, %v2020
      %v2022 = vsub.f32 1.5, %v2021
      %v2023 = vmul.f32 %v2018, %v2022
      %vm2024 = vweird.f32 %v1706
      %vm2025 = vweird.f32 %v2018
      %vm2026 = vmor %vm2024, %vm2025
      %v2027 = vsel %vm2026, %v2018, %v2023
      %v2028 = vrsqrt.pop %v1707
      %v2029 = vmul.f32 %v2028, %v1707
      %v2030 = vmul.f32 %v2029, %v2028
      %v2031 = vmul.f32 0.5, %v2030
      %v2032 = vsub.f32 1.5, %v2031
      %v2033 = vmul.f32 %v2028, %v2032
      %vm2034 = vweird.f32 %v1707
      %vm2035 = vweird.f32 %v2028
      %vm2036 = vmor %vm2034, %vm2035
      %v2037 = vsel %vm2036, %v2028, %v2033
      %v2038 = vrsqrt.pop %v1708
      %v2039 = vmul.f32 %v2038, %v1708
      %v2040 = vmul.f32 %v2039, %v2038
      %v2041 = vmul.f32 0.5, %v2040
      %v2042 = vsub.f32 1.5, %v2041
      %v2043 = vmul.f32 %v2038, %v2042
      %vm2044 = vweird.f32 %v1708
      %vm2045 = vweird.f32 %v2038
      %vm2046 = vmor %vm2044, %vm2045
      %v2047 = vsel %vm2046, %v2038, %v2043
      %v2048 = vrsqrt.pop %v1709
      %v2049 = vmul.f32 %v2048, %v1709
      %v2050 = vmul.f32 %v2049, %v2048
      %v2051 = vmul.f32 0.5, %v2050
      %v2052 = vsub.f32 1.5, %v2051
      %v2053 = vmul.f32 %v2048, %v2052
      %vm2054 = vweird.f32 %v1709
      %vm2055 = vweird.f32 %v2048
      %vm2056 = vmor %vm2054, %vm2055
      %v2057 = vsel %vm2056, %v2048, %v2053
      %v2058 = vrsqrt.pop %v1710
      %v2059 = vmul.f32 %v2058, %v1710
      %v2060 = vmul.f32 %v2059, %v2058
      %v2061 = vmul.f32 0.5, %v2060
      %v2062 = vsub.f32 1.5, %v2061
      %v2063 = vmul.f32 %v2058, %v2062
      %vm2064 = vweird.f32 %v1710
      %vm2065 = vweird.f32 %v2058
      %vm2066 = vmor %vm2064, %vm2065
      %v2067 = vsel %vm2066, %v2058, %v2063
      %v2068 = vrsqrt.pop %v1711
      %v2069 = vmul.f32 %v2068, %v1711
      %v2070 = vmul.f32 %v2069, %v2068
      %v2071 = vmul.f32 0.5, %v2070
      %v2072 = vsub.f32 1.5, %v2071
      %v2073 = vmul.f32 %v2068, %v2072
      %vm2074 = vweird.f32 %v1711
      %vm2075 = vweird.f32 %v2068
      %vm2076 = vmor %vm2074, %vm2075
      %v2077 = vsel %vm2076, %v2068, %v2073
      %v2078 = vrsqrt.pop %v1712
      %v2079 = vmul.f32 %v2078, %v1712
      %v2080 = vmul.f32 %v2079, %v2078
      %v2081 = vmul.f32 0.5, %v2080
      %v2082 = vsub.f32 1.5, %v2081
      %v2083 = vmul.f32 %v2078, %v2082
      %vm2084 = vweird.f32 %v1712
      %vm2085 = vweird.f32 %v2078
      %vm2086 = vmor %vm2084, %vm2085
      %v2087 = vsel %vm2086, %v2078, %v2083
      %v2088 = vrsqrt.pop %v1713
      %v2089 = vmul.f32 %v2088, %v1713
      %v2090 = vmul.f32 %v2089, %v2088
      %v2091 = vmul.f32 0.5, %v2090
      %v2092 = vsub.f32 1.5, %v2091
      %v2093 = vmul.f32 %v2088, %v2092
      %vm2094 = vweird.f32 %v1713
      %vm2095 = vweird.f32 %v2088
      %vm2096 = vmor %vm2094, %vm2095
      %v2097 = vsel %vm2096, %v2088, %v2093
      %v2098 = vrsqrt.pop %v1714
      %v2099 = vmul.f32 %v2098, %v1714
      %v2100 = vmul.f32 %v2099, %v2098
      %v2101 = vmul.f32 0.5, %v2100
      %v2102 = vsub.f32 1.5, %v2101
      %v2103 = vmul.f32 %v2098, %v2102
      %vm2104 = vweird.f32 %v1714
      %vm2105 = vweird.f32 %v2098
      %vm2106 = vmor %vm2104, %vm2105
      %v2107 = vsel %vm2106, %v2098, %v2103
      %v2108 = vrsqrt.pop %v1715
      %v2109 = vmul.f32 %v2108, %v1715
      %v2110 = vmul.f32 %v2109, %v2108
      %v2111 = vmul.f32 0.5, %v2110
      %v2112 = vsub.f32 1.5, %v2111
      %v2113 = vmul.f32 %v2108, %v2112
      %vm2114 = vweird.f32 %v1715
      %vm2115 = vweird.f32 %v2108
      %vm2116 = vmor %vm2114, %vm2115
      %v2117 = vsel %vm2116, %v2108, %v2113
      %v2118 = vrsqrt.pop %v1716
      %v2119 = vmul.f32 %v2118, %v1716
      %v2120 = vmul.f32 %v2119, %v2118
      %v2121 = vmul.f32 0.5, %v2120
      %v2122 = vsub.f32 1.5, %v2121
      %v2123 = vmul.f32 %v2118, %v2122
      %vm2124 = vweird.f32 %v1716
      %vm2125 = vweird.f32 %v2118
      %vm2126 = vmor %vm2124, %vm2125
      %v2127 = vsel %vm2126, %v2118, %v2123
      %v2128 = vrsqrt.pop %v1717
      %v2129 = vmul.f32 %v2128, %v1717
      %v2130 = vmul.f32 %v2129, %v2128
      %v2131 = vmul.f32 0.5, %v2130
      %v2132 = vsub.f32 1.5, %v2131
      %v2133 = vmul.f32 %v2128, %v2132
      %vm2134 = vweird.f32 %v1717
      %vm2135 = vweird.f32 %v2128
      %vm2136 = vmor %vm2134, %vm2135
      %v2137 = vsel %vm2136, %v2128, %v2133
      %v2138 = vrsqrt.pop %v1718
      %v2139 = vmul.f32 %v2138, %v1718
      %v2140 = vmul.f32 %v2139, %v2138
      %v2141 = vmul.f32 0.5, %v2140
      %v2142 = vsub.f32 1.5, %v2141
      %v2143 = vmul.f32 %v2138, %v2142
      %vm2144 = vweird.f32 %v1718
      %vm2145 = vweird.f32 %v2138
      %vm2146 = vmor %vm2144, %vm2145
      %v2147 = vsel %vm2146, %v2138, %v2143
      %v2148 = vrsqrt.pop %v1719
      %v2149 = vmul.f32 %v2148, %v1719
      %v2150 = vmul.f32 %v2149, %v2148
      %v2151 = vmul.f32 0.5, %v2150
      %v2152 = vsub.f32 1.5, %v2151
      %v2153 = vmul.f32 %v2148, %v2152
      %vm2154 = vweird.f32 %v1719
      %vm2155 = vweird.f32 %v2148
      %vm2156 = vmor %vm2154, %vm2155
      %v2157 = vsel %vm2156, %v2148, %v2153
      %v2158 = vrsqrt.pop %v1720
      %v2159 = vmul.f32 %v2158, %v1720
      %v2160 = vmul.f32 %v2159, %v2158
      %v2161 = vmul.f32 0.5, %v2160
      %v2162 = vsub.f32 1.5, %v2161
      %v2163 = vmul.f32 %v2158, %v2162
      %vm2164 = vweird.f32 %v1720
      %vm2165 = vweird.f32 %v2158
      %vm2166 = vmor %vm2164, %vm2165
      %v2167 = vsel %vm2166, %v2158, %v2163
      %v2168 = vrsqrt.pop %v1721
      %v2169 = vmul.f32 %v2168, %v1721
      %v2170 = vmul.f32 %v2169, %v2168
      %v2171 = vmul.f32 0.5, %v2170
      %v2172 = vsub.f32 1.5, %v2171
      %v2173 = vmul.f32 %v2168, %v2172
      %vm2174 = vweird.f32 %v1721
      %vm2175 = vweird.f32 %v2168
      %vm2176 = vmor %vm2174, %vm2175
      %v2177 = vsel %vm2176, %v2168, %v2173
      %v2178 = vrsqrt.pop %v1722
      %v2179 = vmul.f32 %v2178, %v1722
      %v2180 = vmul.f32 %v2179, %v2178
      %v2181 = vmul.f32 0.5, %v2180
      %v2182 = vsub.f32 1.5, %v2181
      %v2183 = vmul.f32 %v2178, %v2182
      %vm2184 = vweird.f32 %v1722
      %vm2185 = vweird.f32 %v2178
      %vm2186 = vmor %vm2184, %vm2185
      %v2187 = vsel %vm2186, %v2178, %v2183
      %v2188 = vrsqrt.pop %v1723
      %v2189 = vmul.f32 %v2188, %v1723
      %v2190 = vmul.f32 %v2189, %v2188
      %v2191 = vmul.f32 0.5, %v2190
      %v2192 = vsub.f32 1.5, %v2191
      %v2193 = vmul.f32 %v2188, %v2192
      %vm2194 = vweird.f32 %v1723
      %vm2195 = vweird.f32 %v2188
      %vm2196 = vmor %vm2194, %vm2195
      %v2197 = vsel %vm2196, %v2188, %v2193
      %v2198 = vrsqrt.pop %v1724
      %v2199 = vmul.f32 %v2198, %v1724
      %v2200 = vmul.f32 %v2199, %v2198
      %v2201 = vmul.f32 0.5, %v2200
      %v2202 = vsub.f32 1.5, %v2201
      %v2203 = vmul.f32 %v2198, %v2202
      %vm2204 = vweird.f32 %v1724
      %vm2205 = vweird.f32 %v2198
      %vm2206 = vmor %vm2204, %vm2205
      %v2207 = vsel %vm2206, %v2198, %v2203
      %v2208 = vrsqrt.pop %v1725
      %v2209 = vmul.f32 %v2208, %v1725
      %v2210 = vmul.f32 %v2209, %v2208
      %v2211 = vmul.f32 0.5, %v2210
      %v2212 = vsub.f32 1.5, %v2211
      %v2213 = vmul.f32 %v2208, %v2212
      %vm2214 = vweird.f32 %v1725
      %vm2215 = vweird.f32 %v2208
      %vm2216 = vmor %vm2214, %vm2215
      %v2217 = vsel %vm2216, %v2208, %v2213
      %v2218 = vrsqrt.pop %v1726
      %v2219 = vmul.f32 %v2218, %v1726
      %v2220 = vmul.f32 %v2219, %v2218
      %v2221 = vmul.f32 0.5, %v2220
      %v2222 = vsub.f32 1.5, %v2221
      %v2223 = vmul.f32 %v2218, %v2222
      %vm2224 = vweird.f32 %v1726
      %vm2225 = vweird.f32 %v2218
      %vm2226 = vmor %vm2224, %vm2225
      %v2227 = vsel %vm2226, %v2218, %v2223
      %v2228 = vrsqrt.pop %v1727
      %v2229 = vmul.f32 %v2228, %v1727
      %v2230 = vmul.f32 %v2229, %v2228
      %v2231 = vmul.f32 0.5, %v2230
      %v2232 = vsub.f32 1.5, %v2231
      %v2233 = vmul.f32 %v2228, %v2232
      %vm2234 = vweird.f32 %v1727
      %vm2235 = vweird.f32 %v2228
      %vm2236 = vmor %vm2234, %vm2235
      %v2237 = vsel %vm2236, %v2228, %v2233
      %v2238 = vmul.f32 %v1371, %v1737
      %v2239 = vmul.f32 %v1372, %v1747
      %v2240 = vmul.f32 %v1373, %v1757
      %v2241 = vmul.f32 %v1374, %v1767
      %v2242 = vmul.f32 %v1375, %v1777
      %v2243 = vmul.f32 %v1376, %v1787
      %v2244 = vmul.f32 %v1377, %v1797
      %v2245 = vmul.f32 %v1378, %v1807
      %v2246 = vmul.f32 %v1379, %v1817
      %v2247 = vmul.f32 %v1380, %v1827
      %v2248 = vmul.f32 %v1381, %v1837
      %v2249 = vmul.f32 %v1382, %v1847
      %v2250 = vmul.f32 %v1383, %v1857
      %v2251 = vmul.f32 %v1384, %v1867
      %v2252 = vmul.f32 %v1385, %v1877
      %v2253 = vmul.f32 %v1386, %v1887
      %v2254 = vmul.f32 %v1387, %v1897
      %v2255 = vmul.f32 %v1388, %v1907
      %v2256 = vmul.f32 %v1389, %v1917
      %v2257 = vmul.f32 %v1390, %v1927
      %v2258 = vmul.f32 %v1391, %v1937
      %v2259 = vmul.f32 %v1392, %v1947
      %v2260 = vmul.f32 %v1393, %v1957
      %v2261 = vmul.f32 %v1394, %v1967
      %v2262 = vmul.f32 %v1395, %v1977
      %v2263 = vmul.f32 %v1396, %v1987
      %v2264 = vmul.f32 %v1397, %v1997
      %v2265 = vmul.f32 %v1398, %v2007
      %v2266 = vmul.f32 %v1399, %v2017
      %v2267 = vmul.f32 %v1400, %v2027
      %v2268 = vmul.f32 %v1401, %v2037
      %v2269 = vmul.f32 %v1402, %v2047
      %v2270 = vmul.f32 %v1403, %v2057
      %v2271 = vmul.f32 %v1404, %v2067
      %v2272 = vmul.f32 %v1405, %v2077
      %v2273 = vmul.f32 %v1406, %v2087
      %v2274 = vmul.f32 %v1407, %v2097
      %v2275 = vmul.f32 %v1408, %v2107
      %v2276 = vmul.f32 %v1409, %v2117
      %v2277 = vmul.f32 %v1410, %v2127
      %v2278 = vmul.f32 %v1411, %v2137
      %v2279 = vmul.f32 %v1412, %v2147
      %v2280 = vmul.f32 %v1413, %v2157
      %v2281 = vmul.f32 %v1414, %v2167
      %v2282 = vmul.f32 %v1415, %v2177
      %v2283 = vmul.f32 %v1416, %v2187
      %v2284 = vmul.f32 %v1417, %v2197
      %v2285 = vmul.f32 %v1418, %v2207
      %v2286 = vmul.f32 %v1419, %v2217
      %v2287 = vmul.f32 %v1420, %v2227
      %v2288 = vmul.f32 %v1421, %v2237
      %v2289 = vperm.slane %v1157, 0
      %v2290 = vmul.f32 %v2238, %v2289
      %v2291 = vmul.f32 %v2239, %v2289
      %v2292 = vmul.f32 %v2240, %v2289
      %v2293 = vmul.f32 %v2241, %v2289
      %v2294 = vmul.f32 %v2242, %v2289
      %v2295 = vmul.f32 %v2243, %v2289
      %v2296 = vmul.f32 %v2244, %v2289
      %v2297 = vmul.f32 %v2245, %v2289
      %v2298 = vmul.f32 %v2246, %v2289
      %v2299 = vmul.f32 %v2247, %v2289
      %v2300 = vmul.f32 %v2248, %v2289
      %v2301 = vmul.f32 %v2249, %v2289
      %v2302 = vmul.f32 %v2250, %v2289
      %v2303 = vmul.f32 %v2251, %v2289
      %v2304 = vmul.f32 %v2252, %v2289
      %v2305 = vmul.f32 %v2253, %v2289
      %v2306 = vmul.f32 %v2254, %v2289
      %v2307 = vmul.f32 %v2255, %v2289
      %v2308 = vmul.f32 %v2256, %v2289
      %v2309 = vmul.f32 %v2257, %v2289
      %v2310 = vmul.f32 %v2258, %v2289
      %v2311 = vmul.f32 %v2259, %v2289
      %v2312 = vmul.f32 %v2260, %v2289
      %v2313 = vmul.f32 %v2261, %v2289
      %v2314 = vmul.f32 %v2262, %v2289
      %v2315 = vmul.f32 %v2263, %v2289
      %v2316 = vmul.f32 %v2264, %v2289
      %v2317 = vmul.f32 %v2265, %v2289
      %v2318 = vmul.f32 %v2266, %v2289
      %v2319 = vmul.f32 %v2267, %v2289
      %v2320 = vmul.f32 %v2268, %v2289
      %v2321 = vmul.f32 %v2269, %v2289
      %v2322 = vmul.f32 %v2270, %v2289
      %v2323 = vmul.f32 %v2271, %v2289
      %v2324 = vmul.f32 %v2272, %v2289
      %v2325 = vmul.f32 %v2273, %v2289
      %v2326 = vmul.f32 %v2274, %v2289
      %v2327 = vmul.f32 %v2275, %v2289
      %v2328 = vmul.f32 %v2276, %v2289
      %v2329 = vmul.f32 %v2277, %v2289
      %v2330 = vmul.f32 %v2278, %v2289
      %v2331 = vmul.f32 %v2279, %v2289
      %v2332 = vmul.f32 %v2280, %v2289
      %v2333 = vmul.f32 %v2281, %v2289
      %v2334 = vmul.f32 %v2282, %v2289
      %v2335 = vmul.f32 %v2283, %v2289
      %v2336 = vmul.f32 %v2284, %v2289
      %v2337 = vmul.f32 %v2285, %v2289
      %v2338 = vmul.f32 %v2286, %v2289
      %v2339 = vmul.f32 %v2287, %v2289
      %v2340 = vmul.f32 %v2288, %v2289
      %v2341 = vperm.slane %v1158, 0
      %v2342 = vadd.f32 %v2290, %v2341
      %v2343 = vadd.f32 %v2291, %v2341
      %v2344 = vadd.f32 %v2292, %v2341
      %v2345 = vadd.f32 %v2293, %v2341
      %v2346 = vadd.f32 %v2294, %v2341
      %v2347 = vadd.f32 %v2295, %v2341
      %v2348 = vadd.f32 %v2296, %v2341
      %v2349 = vadd.f32 %v2297, %v2341
      %v2350 = vadd.f32 %v2298, %v2341
      %v2351 = vadd.f32 %v2299, %v2341
      %v2352 = vadd.f32 %v2300, %v2341
      %v2353 = vadd.f32 %v2301, %v2341
      %v2354 = vadd.f32 %v2302, %v2341
      %v2355 = vadd.f32 %v2303, %v2341
      %v2356 = vadd.f32 %v2304, %v2341
      %v2357 = vadd.f32 %v2305, %v2341
      %v2358 = vadd.f32 %v2306, %v2341
      %v2359 = vadd.f32 %v2307, %v2341
      %v2360 = vadd.f32 %v2308, %v2341
      %v2361 = vadd.f32 %v2309, %v2341
      %v2362 = vadd.f32 %v2310, %v2341
      %v2363 = vadd.f32 %v2311, %v2341
      %v2364 = vadd.f32 %v2312, %v2341
      %v2365 = vadd.f32 %v2313, %v2341
      %v2366 = vadd.f32 %v2314, %v2341
      %v2367 = vadd.f32 %v2315, %v2341
      %v2368 = vadd.f32 %v2316, %v2341
      %v2369 = vadd.f32 %v2317, %v2341
      %v2370 = vadd.f32 %v2318, %v2341
      %v2371 = vadd.f32 %v2319, %v2341
      %v2372 = vadd.f32 %v2320, %v2341
      %v2373 = vadd.f32 %v2321, %v2341
      %v2374 = vadd.f32 %v2322, %v2341
      %v2375 = vadd.f32 %v2323, %v2341
      %v2376 = vadd.f32 %v2324, %v2341
      %v2377 = vadd.f32 %v2325, %v2341
      %v2378 = vadd.f32 %v2326, %v2341
      %v2379 = vadd.f32 %v2327, %v2341
      %v2380 = vadd.f32 %v2328, %v2341
      %v2381 = vadd.f32 %v2329, %v2341
      %v2382 = vadd.f32 %v2330, %v2341
      %v2383 = vadd.f32 %v2331, %v2341
      %v2384 = vadd.f32 %v2332, %v2341
      %v2385 = vadd.f32 %v2333, %v2341
      %v2386 = vadd.f32 %v2334, %v2341
      %v2387 = vadd.f32 %v2335, %v2341
      %v2388 = vadd.f32 %v2336, %v2341
      %v2389 = vadd.f32 %v2337, %v2341
      %v2390 = vadd.f32 %v2338, %v2341
      %v2391 = vadd.f32 %v2339, %v2341
      %v2392 = vadd.f32 %v2340, %v2341
      %v2393 = vmul.f32 %v2342, 0.5
      %v2394 = vmul.f32 %v2343, 0.5
      %v2395 = vmul.f32 %v2344, 0.5
      %v2396 = vmul.f32 %v2345, 0.5
      %v2397 = vmul.f32 %v2346, 0.5
      %v2398 = vmul.f32 %v2347, 0.5
      %v2399 = vmul.f32 %v2348, 0.5
      %v2400 = vmul.f32 %v2349, 0.5
      %v2401 = vmul.f32 %v2350, 0.5
      %v2402 = vmul.f32 %v2351, 0.5
      %v2403 = vmul.f32 %v2352, 0.5
      %v2404 = vmul.f32 %v2353, 0.5
      %v2405 = vmul.f32 %v2354, 0.5
      %v2406 = vmul.f32 %v2355, 0.5
      %v2407 = vmul.f32 %v2356, 0.5
      %v2408 = vmul.f32 %v2357, 0.5
      %v2409 = vmul.f32 %v2358, 0.5
      %v2410 = vmul.f32 %v2359, 0.5
      %v2411 = vmul.f32 %v2360, 0.5
      %v2412 = vmul.f32 %v2361, 0.5
      %v2413 = vmul.f32 %v2362, 0.5
      %v2414 = vmul.f32 %v2363, 0.5
      %v2415 = vmul.f32 %v2364, 0.5
      %v2416 = vmul.f32 %v2365, 0.5
      %v2417 = vmul.f32 %v2366, 0.5
      %v2418 = vmul.f32 %v2367, 0.5
      %v2419 = vmul.f32 %v2368, 0.5
      %v2420 = vmul.f32 %v2369, 0.5
      %v2421 = vmul.f32 %v2370, 0.5
      %v2422 = vmul.f32 %v2371, 0.5
      %v2423 = vmul.f32 %v2372, 0.5
      %v2424 = vmul.f32 %v2373, 0.5
      %v2425 = vmul.f32 %v2374, 0.5
      %v2426 = vmul.f32 %v2375, 0.5
      %v2427 = vmul.f32 %v2376, 0.5
      %v2428 = vmul.f32 %v2377, 0.5
      %v2429 = vmul.f32 %v2378, 0.5
      %v2430 = vmul.f32 %v2379, 0.5
      %v2431 = vmul.f32 %v2380, 0.5
      %v2432 = vmul.f32 %v2381, 0.5
      %v2433 = vmul.f32 %v2382, 0.5
      %v2434 = vmul.f32 %v2383, 0.5
      %v2435 = vmul.f32 %v2384, 0.5
      %v2436 = vmul.f32 %v2385, 0.5
      %v2437 = vmul.f32 %v2386, 0.5
      %v2438 = vmul.f32 %v2387, 0.5
      %v2439 = vmul.f32 %v2388, 0.5
      %v2440 = vmul.f32 %v2389, 0.5
      %v2441 = vmul.f32 %v2390, 0.5
      %v2442 = vmul.f32 %v2391, 0.5
      %v2443 = vmul.f32 %v2392, 0.5
      %v2444 = vmul.f32 %v2342, 0.044715
      %v2445 = vmul.f32 %v2343, 0.044715
      %v2446 = vmul.f32 %v2344, 0.044715
      %v2447 = vmul.f32 %v2345, 0.044715
      %v2448 = vmul.f32 %v2346, 0.044715
      %v2449 = vmul.f32 %v2347, 0.044715
      %v2450 = vmul.f32 %v2348, 0.044715
      %v2451 = vmul.f32 %v2349, 0.044715
      %v2452 = vmul.f32 %v2350, 0.044715
      %v2453 = vmul.f32 %v2351, 0.044715
      %v2454 = vmul.f32 %v2352, 0.044715
      %v2455 = vmul.f32 %v2353, 0.044715
      %v2456 = vmul.f32 %v2354, 0.044715
      %v2457 = vmul.f32 %v2355, 0.044715
      %v2458 = vmul.f32 %v2356, 0.044715
      %v2459 = vmul.f32 %v2357, 0.044715
      %v2460 = vmul.f32 %v2358, 0.044715
      %v2461 = vmul.f32 %v2359, 0.044715
      %v2462 = vmul.f32 %v2360, 0.044715
      %v2463 = vmul.f32 %v2361, 0.044715
      %v2464 = vmul.f32 %v2362, 0.044715
      %v2465 = vmul.f32 %v2363, 0.044715
      %v2466 = vmul.f32 %v2364, 0.044715
      %v2467 = vmul.f32 %v2365, 0.044715
      %v2468 = vmul.f32 %v2366, 0.044715
      %v2469 = vmul.f32 %v2367, 0.044715
      %v2470 = vmul.f32 %v2368, 0.044715
      %v2471 = vmul.f32 %v2369, 0.044715
      %v2472 = vmul.f32 %v2370, 0.044715
      %v2473 = vmul.f32 %v2371, 0.044715
      %v2474 = vmul.f32 %v2372, 0.044715
      %v2475 = vmul.f32 %v2373, 0.044715
      %v2476 = vmul.f32 %v2374, 0.044715
      %v2477 = vmul.f32 %v2375, 0.044715
      %v2478 = vmul.f32 %v2376, 0.044715
      %v2479 = vmul.f32 %v2377, 0.044715
      %v2480 = vmul.f32 %v2378, 0.044715
      %v2481 = vmul.f32 %v2379, 0.044715
      %v2482 = vmul.f32 %v2380, 0.044715
      %v2483 = vmul.f32 %v2381, 0.044715
      %v2484 = vmul.f32 %v2382, 0.044715
      %v2485 = vmul.f32 %v2383, 0.044715
      %v2486 = vmul.f32 %v2384, 0.044715
      %v2487 = vmul.f32 %v2385, 0.044715
      %v2488 = vmul.f32 %v2386, 0.044715
      %v2489 = vmul.f32 %v2387, 0.044715
      %v2490 = vmul.f32 %v2388, 0.044715
      %v2491 = vmul.f32 %v2389, 0.044715
      %v2492 = vmul.f32 %v2390, 0.044715
      %v2493 = vmul.f32 %v2391, 0.044715
      %v2494 = vmul.f32 %v2392, 0.044715
      %v2495 = vmul.f32 %v2444, %v2342
      %v2496 = vmul.f32 %v2445, %v2343
      %v2497 = vmul.f32 %v2446, %v2344
      %v2498 = vmul.f32 %v2447, %v2345
      %v2499 = vmul.f32 %v2448, %v2346
      %v2500 = vmul.f32 %v2449, %v2347
      %v2501 = vmul.f32 %v2450, %v2348
      %v2502 = vmul.f32 %v2451, %v2349
      %v2503 = vmul.f32 %v2452, %v2350
      %v2504 = vmul.f32 %v2453, %v2351
      %v2505 = vmul.f32 %v2454, %v2352
      %v2506 = vmul.f32 %v2455, %v2353
      %v2507 = vmul.f32 %v2456, %v2354
      %v2508 = vmul.f32 %v2457, %v2355
      %v2509 = vmul.f32 %v2458, %v2356
      %v2510 = vmul.f32 %v2459, %v2357
      %v2511 = vmul.f32 %v2460, %v2358
      %v2512 = vmul.f32 %v2461, %v2359
      %v2513 = vmul.f32 %v2462, %v2360
      %v2514 = vmul.f32 %v2463, %v2361
      %v2515 = vmul.f32 %v2464, %v2362
      %v2516 = vmul.f32 %v2465, %v2363
      %v2517 = vmul.f32 %v2466, %v2364
      %v2518 = vmul.f32 %v2467, %v2365
      %v2519 = vmul.f32 %v2468, %v2366
      %v2520 = vmul.f32 %v2469, %v2367
      %v2521 = vmul.f32 %v2470, %v2368
      %v2522 = vmul.f32 %v2471, %v2369
      %v2523 = vmul.f32 %v2472, %v2370
      %v2524 = vmul.f32 %v2473, %v2371
      %v2525 = vmul.f32 %v2474, %v2372
      %v2526 = vmul.f32 %v2475, %v2373
      %v2527 = vmul.f32 %v2476, %v2374
      %v2528 = vmul.f32 %v2477, %v2375
      %v2529 = vmul.f32 %v2478, %v2376
      %v2530 = vmul.f32 %v2479, %v2377
      %v2531 = vmul.f32 %v2480, %v2378
      %v2532 = vmul.f32 %v2481, %v2379
      %v2533 = vmul.f32 %v2482, %v2380
      %v2534 = vmul.f32 %v2483, %v2381
      %v2535 = vmul.f32 %v2484, %v2382
      %v2536 = vmul.f32 %v2485, %v2383
      %v2537 = vmul.f32 %v2486, %v2384
      %v2538 = vmul.f32 %v2487, %v2385
      %v2539 = vmul.f32 %v2488, %v2386
      %v2540 = vmul.f32 %v2489, %v2387
      %v2541 = vmul.f32 %v2490, %v2388
      %v2542 = vmul.f32 %v2491, %v2389
      %v2543 = vmul.f32 %v2492, %v2390
      %v2544 = vmul.f32 %v2493, %v2391
      %v2545 = vmul.f32 %v2494, %v2392
      %v2546 = vmul.f32 %v2495, %v2342
      %v2547 = vmul.f32 %v2496, %v2343
      %v2548 = vmul.f32 %v2497, %v2344
      %v2549 = vmul.f32 %v2498, %v2345
      %v2550 = vmul.f32 %v2499, %v2346
      %v2551 = vmul.f32 %v2500, %v2347
      %v2552 = vmul.f32 %v2501, %v2348
      %v2553 = vmul.f32 %v2502, %v2349
      %v2554 = vmul.f32 %v2503, %v2350
      %v2555 = vmul.f32 %v2504, %v2351
      %v2556 = vmul.f32 %v2505, %v2352
      %v2557 = vmul.f32 %v2506, %v2353
      %v2558 = vmul.f32 %v2507, %v2354
      %v2559 = vmul.f32 %v2508, %v2355
      %v2560 = vmul.f32 %v2509, %v2356
      %v2561 = vmul.f32 %v2510, %v2357
      %v2562 = vmul.f32 %v2511, %v2358
      %v2563 = vmul.f32 %v2512, %v2359
      %v2564 = vmul.f32 %v2513, %v2360
      %v2565 = vmul.f32 %v2514, %v2361
      %v2566 = vmul.f32 %v2515, %v2362
      %v2567 = vmul.f32 %v2516, %v2363
      %v2568 = vmul.f32 %v2517, %v2364
      %v2569 = vmul.f32 %v2518, %v2365
      %v2570 = vmul.f32 %v2519, %v2366
      %v2571 = vmul.f32 %v2520, %v2367
      %v2572 = vmul.f32 %v2521, %v2368
      %v2573 = vmul.f32 %v2522, %v2369
      %v2574 = vmul.f32 %v2523, %v2370
      %v2575 = vmul.f32 %v2524, %v2371
      %v2576 = vmul.f32 %v2525, %v2372
      %v2577 = vmul.f32 %v2526, %v2373
      %v2578 = vmul.f32 %v2527, %v2374
      %v2579 = vmul.f32 %v2528, %v2375
      %v2580 = vmul.f32 %v2529, %v2376
      %v2581 = vmul.f32 %v2530, %v2377
      %v2582 = vmul.f32 %v2531, %v2378
      %v2583 = vmul.f32 %v2532, %v2379
      %v2584 = vmul.f32 %v2533, %v2380
      %v2585 = vmul.f32 %v2534, %v2381
      %v2586 = vmul.f32 %v2535, %v2382
      %v2587 = vmul.f32 %v2536, %v2383
      %v2588 = vmul.f32 %v2537, %v2384
      %v2589 = vmul.f32 %v2538, %v2385
      %v2590 = vmul.f32 %v2539, %v2386
      %v2591 = vmul.f32 %v2540, %v2387
      %v2592 = vmul.f32 %v2541, %v2388
      %v2593 = vmul.f32 %v2542, %v2389
      %v2594 = vmul.f32 %v2543, %v2390
      %v2595 = vmul.f32 %v2544, %v2391
      %v2596 = vmul.f32 %v2545, %v2392
      %v2597 = vadd.f32 %v2342, %v2546
      %v2598 = vadd.f32 %v2343, %v2547
      %v2599 = vadd.f32 %v2344, %v2548
      %v2600 = vadd.f32 %v2345, %v2549
      %v2601 = vadd.f32 %v2346, %v2550
      %v2602 = vadd.f32 %v2347, %v2551
      %v2603 = vadd.f32 %v2348, %v2552
      %v2604 = vadd.f32 %v2349, %v2553
      %v2605 = vadd.f32 %v2350, %v2554
      %v2606 = vadd.f32 %v2351, %v2555
      %v2607 = vadd.f32 %v2352, %v2556
      %v2608 = vadd.f32 %v2353, %v2557
      %v2609 = vadd.f32 %v2354, %v2558
      %v2610 = vadd.f32 %v2355, %v2559
      %v2611 = vadd.f32 %v2356, %v2560
      %v2612 = vadd.f32 %v2357, %v2561
      %v2613 = vadd.f32 %v2358, %v2562
      %v2614 = vadd.f32 %v2359, %v2563
      %v2615 = vadd.f32 %v2360, %v2564
      %v2616 = vadd.f32 %v2361, %v2565
      %v2617 = vadd.f32 %v2362, %v2566
      %v2618 = vadd.f32 %v2363, %v2567
      %v2619 = vadd.f32 %v2364, %v2568
      %v2620 = vadd.f32 %v2365, %v2569
      %v2621 = vadd.f32 %v2366, %v2570
      %v2622 = vadd.f32 %v2367, %v2571
      %v2623 = vadd.f32 %v2368, %v2572
      %v2624 = vadd.f32 %v2369, %v2573
      %v2625 = vadd.f32 %v2370, %v2574
      %v2626 = vadd.f32 %v2371, %v2575
      %v2627 = vadd.f32 %v2372, %v2576
      %v2628 = vadd.f32 %v2373, %v2577
      %v2629 = vadd.f32 %v2374, %v2578
      %v2630 = vadd.f32 %v2375, %v2579
      %v2631 = vadd.f32 %v2376, %v2580
      %v2632 = vadd.f32 %v2377, %v2581
      %v2633 = vadd.f32 %v2378, %v2582
      %v2634 = vadd.f32 %v2379, %v2583
      %v2635 = vadd.f32 %v2380, %v2584
      %v2636 = vadd.f32 %v2381, %v2585
      %v2637 = vadd.f32 %v2382, %v2586
      %v2638 = vadd.f32 %v2383, %v2587
      %v2639 = vadd.f32 %v2384, %v2588
      %v2640 = vadd.f32 %v2385, %v2589
      %v2641 = vadd.f32 %v2386, %v2590
      %v2642 = vadd.f32 %v2387, %v2591
      %v2643 = vadd.f32 %v2388, %v2592
      %v2644 = vadd.f32 %v2389, %v2593
      %v2645 = vadd.f32 %v2390, %v2594
      %v2646 = vadd.f32 %v2391, %v2595
      %v2647 = vadd.f32 %v2392, %v2596
      %v2648 = vmul.f32 %v2597, 0.7978846
      %v2649 = vmul.f32 %v2598, 0.7978846
      %v2650 = vmul.f32 %v2599, 0.7978846
      %v2651 = vmul.f32 %v2600, 0.7978846
      %v2652 = vmul.f32 %v2601, 0.7978846
      %v2653 = vmul.f32 %v2602, 0.7978846
      %v2654 = vmul.f32 %v2603, 0.7978846
      %v2655 = vmul.f32 %v2604, 0.7978846
      %v2656 = vmul.f32 %v2605, 0.7978846
      %v2657 = vmul.f32 %v2606, 0.7978846
      %v2658 = vmul.f32 %v2607, 0.7978846
      %v2659 = vmul.f32 %v2608, 0.7978846
      %v2660 = vmul.f32 %v2609, 0.7978846
      %v2661 = vmul.f32 %v2610, 0.7978846
      %v2662 = vmul.f32 %v2611, 0.7978846
      %v2663 = vmul.f32 %v2612, 0.7978846
      %v2664 = vmul.f32 %v2613, 0.7978846
      %v2665 = vmul.f32 %v2614, 0.7978846
      %v2666 = vmul.f32 %v2615, 0.7978846
      %v2667 = vmul.f32 %v2616, 0.7978846
      %v2668 = vmul.f32 %v2617, 0.7978846
      %v2669 = vmul.f32 %v2618, 0.7978846
      %v2670 = vmul.f32 %v2619, 0.7978846
      %v2671 = vmul.f32 %v2620, 0.7978846
      %v2672 = vmul.f32 %v2621, 0.7978846
      %v2673 = vmul.f32 %v2622, 0.7978846
      %v2674 = vmul.f32 %v2623, 0.7978846
      %v2675 = vmul.f32 %v2624, 0.7978846
      %v2676 = vmul.f32 %v2625, 0.7978846
      %v2677 = vmul.f32 %v2626, 0.7978846
      %v2678 = vmul.f32 %v2627, 0.7978846
      %v2679 = vmul.f32 %v2628, 0.7978846
      %v2680 = vmul.f32 %v2629, 0.7978846
      %v2681 = vmul.f32 %v2630, 0.7978846
      %v2682 = vmul.f32 %v2631, 0.7978846
      %v2683 = vmul.f32 %v2632, 0.7978846
      %v2684 = vmul.f32 %v2633, 0.7978846
      %v2685 = vmul.f32 %v2634, 0.7978846
      %v2686 = vmul.f32 %v2635, 0.7978846
      %v2687 = vmul.f32 %v2636, 0.7978846
      %v2688 = vmul.f32 %v2637, 0.7978846
      %v2689 = vmul.f32 %v2638, 0.7978846
      %v2690 = vmul.f32 %v2639, 0.7978846
      %v2691 = vmul.f32 %v2640, 0.7978846
      %v2692 = vmul.f32 %v2641, 0.7978846
      %v2693 = vmul.f32 %v2642, 0.7978846
      %v2694 = vmul.f32 %v2643, 0.7978846
      %v2695 = vmul.f32 %v2644, 0.7978846
      %v2696 = vmul.f32 %v2645, 0.7978846
      %v2697 = vmul.f32 %v2646, 0.7978846
      %v2698 = vmul.f32 %v2647, 0.7978846
      %v2699 = vtanh.pop %v2648
      %v2700 = vtanh.pop %v2649
      %v2701 = vtanh.pop %v2650
      %v2702 = vtanh.pop %v2651
      %v2703 = vtanh.pop %v2652
      %v2704 = vtanh.pop %v2653
      %v2705 = vtanh.pop %v2654
      %v2706 = vtanh.pop %v2655
      %v2707 = vtanh.pop %v2656
      %v2708 = vtanh.pop %v2657
      %v2709 = vtanh.pop %v2658
      %v2710 = vtanh.pop %v2659
      %v2711 = vtanh.pop %v2660
      %v2712 = vtanh.pop %v2661
      %v2713 = vtanh.pop %v2662
      %v2714 = vtanh.pop %v2663
      %v2715 = vtanh.pop %v2664
      %v2716 = vtanh.pop %v2665
      %v2717 = vtanh.pop %v2666
      %v2718 = vtanh.pop %v2667
      %v2719 = vtanh.pop %v2668
      %v2720 = vtanh.pop %v2669
      %v2721 = vtanh.pop %v2670
      %v2722 = vtanh.pop %v2671
      %v2723 = vtanh.pop %v2672
      %v2724 = vtanh.pop %v2673
      %v2725 = vtanh.pop %v2674
      %v2726 = vtanh.pop %v2675
      %v2727 = vtanh.pop %v2676
      %v2728 = vtanh.pop %v2677
      %v2729 = vtanh.pop %v2678
      %v2730 = vtanh.pop %v2679
      %v2731 = vtanh.pop %v2680
      %v2732 = vtanh.pop %v2681
      %v2733 = vtanh.pop %v2682
      %v2734 = vtanh.pop %v2683
      %v2735 = vtanh.pop %v2684
      %v2736 = vtanh.pop %v2685
      %v2737 = vtanh.pop %v2686
      %v2738 = vtanh.pop %v2687
      %v2739 = vtanh.pop %v2688
      %v2740 = vtanh.pop %v2689
      %v2741 = vtanh.pop %v2690
      %v2742 = vtanh.pop %v2691
      %v2743 = vtanh.pop %v2692
      %v2744 = vtanh.pop %v2693
      %v2745 = vtanh.pop %v2694
      %v2746 = vtanh.pop %v2695
      %v2747 = vtanh.pop %v2696
      %v2748 = vtanh.pop %v2697
      %v2749 = vtanh.pop %v2698
      %v2750 = vadd.f32 %v2699, 1.0
      %v2751 = vadd.f32 %v2700, 1.0
      %v2752 = vadd.f32 %v2701, 1.0
      %v2753 = vadd.f32 %v2702, 1.0
      %v2754 = vadd.f32 %v2703, 1.0
      %v2755 = vadd.f32 %v2704, 1.0
      %v2756 = vadd.f32 %v2705, 1.0
      %v2757 = vadd.f32 %v2706, 1.0
      %v2758 = vadd.f32 %v2707, 1.0
      %v2759 = vadd.f32 %v2708, 1.0
      %v2760 = vadd.f32 %v2709, 1.0
      %v2761 = vadd.f32 %v2710, 1.0
      %v2762 = vadd.f32 %v2711, 1.0
      %v2763 = vadd.f32 %v2712, 1.0
      %v2764 = vadd.f32 %v2713, 1.0
      %v2765 = vadd.f32 %v2714, 1.0
      %v2766 = vadd.f32 %v2715, 1.0
      %v2767 = vadd.f32 %v2716, 1.0
      %v2768 = vadd.f32 %v2717, 1.0
      %v2769 = vadd.f32 %v2718, 1.0
      %v2770 = vadd.f32 %v2719, 1.0
      %v2771 = vadd.f32 %v2720, 1.0
      %v2772 = vadd.f32 %v2721, 1.0
      %v2773 = vadd.f32 %v2722, 1.0
      %v2774 = vadd.f32 %v2723, 1.0
      %v2775 = vadd.f32 %v2724, 1.0
      %v2776 = vadd.f32 %v2725, 1.0
      %v2777 = vadd.f32 %v2726, 1.0
      %v2778 = vadd.f32 %v2727, 1.0
      %v2779 = vadd.f32 %v2728, 1.0
      %v2780 = vadd.f32 %v2729, 1.0
      %v2781 = vadd.f32 %v2730, 1.0
      %v2782 = vadd.f32 %v2731, 1.0
      %v2783 = vadd.f32 %v2732, 1.0
      %v2784 = vadd.f32 %v2733, 1.0
      %v2785 = vadd.f32 %v2734, 1.0
      %v2786 = vadd.f32 %v2735, 1.0
      %v2787 = vadd.f32 %v2736, 1.0
      %v2788 = vadd.f32 %v2737, 1.0
      %v2789 = vadd.f32 %v2738, 1.0
      %v2790 = vadd.f32 %v2739, 1.0
      %v2791 = vadd.f32 %v2740, 1.0
      %v2792 = vadd.f32 %v2741, 1.0
      %v2793 = vadd.f32 %v2742, 1.0
      %v2794 = vadd.f32 %v2743, 1.0
      %v2795 = vadd.f32 %v2744, 1.0
      %v2796 = vadd.f32 %v2745, 1.0
      %v2797 = vadd.f32 %v2746, 1.0
      %v2798 = vadd.f32 %v2747, 1.0
      %v2799 = vadd.f32 %v2748, 1.0
      %v2800 = vadd.f32 %v2749, 1.0
      %v2801 = vmul.f32 %v2393, %v2750
      %v2802 = vmul.f32 %v2394, %v2751
      %v2803 = vmul.f32 %v2395, %v2752
      %v2804 = vmul.f32 %v2396, %v2753
      %v2805 = vmul.f32 %v2397, %v2754
      %v2806 = vmul.f32 %v2398, %v2755
      %v2807 = vmul.f32 %v2399, %v2756
      %v2808 = vmul.f32 %v2400, %v2757
      %v2809 = vmul.f32 %v2401, %v2758
      %v2810 = vmul.f32 %v2402, %v2759
      %v2811 = vmul.f32 %v2403, %v2760
      %v2812 = vmul.f32 %v2404, %v2761
      %v2813 = vmul.f32 %v2405, %v2762
      %v2814 = vmul.f32 %v2406, %v2763
      %v2815 = vmul.f32 %v2407, %v2764
      %v2816 = vmul.f32 %v2408, %v2765
      %v2817 = vmul.f32 %v2409, %v2766
      %v2818 = vmul.f32 %v2410, %v2767
      %v2819 = vmul.f32 %v2411, %v2768
      %v2820 = vmul.f32 %v2412, %v2769
      %v2821 = vmul.f32 %v2413, %v2770
      %v2822 = vmul.f32 %v2414, %v2771
      %v2823 = vmul.f32 %v2415, %v2772
      %v2824 = vmul.f32 %v2416, %v2773
      %v2825 = vmul.f32 %v2417, %v2774
      %v2826 = vmul.f32 %v2418, %v2775
      %v2827 = vmul.f32 %v2419, %v2776
      %v2828 = vmul.f32 %v2420, %v2777
      %v2829 = vmul.f32 %v2421, %v2778
      %v2830 = vmul.f32 %v2422, %v2779
      %v2831 = vmul.f32 %v2423, %v2780
      %v2832 = vmul.f32 %v2424, %v2781
      %v2833 = vmul.f32 %v2425, %v2782
      %v2834 = vmul.f32 %v2426, %v2783
      %v2835 = vmul.f32 %v2427, %v2784
      %v2836 = vmul.f32 %v2428, %v2785
      %v2837 = vmul.f32 %v2429, %v2786
      %v2838 = vmul.f32 %v2430, %v2787
      %v2839 = vmul.f32 %v2431, %v2788
      %v2840 = vmul.f32 %v2432, %v2789
      %v2841 = vmul.f32 %v2433, %v2790
      %v2842 = vmul.f32 %v2434, %v2791
      %v2843 = vmul.f32 %v2435, %v2792
      %v2844 = vmul.f32 %v2436, %v2793
      %v2845 = vmul.f32 %v2437, %v2794
      %v2846 = vmul.f32 %v2438, %v2795
      %v2847 = vmul.f32 %v2439, %v2796
      %v2848 = vmul.f32 %v2440, %v2797
      %v2849 = vmul.f32 %v2441, %v2798
      %v2850 = vmul.f32 %v2442, %v2799
      %v2851 = vmul.f32 %v2443, %v2800
      %2852 = vst.msk [vmem:[#allocation2] sm:$0xff] %vm1159, %v2801
      %2853 = vst.msk [vmem:[#allocation2 + $0x8] sm:$0xff] %vm1159, %v2802
      %2854 = vst.msk [vmem:[#allocation2 + $0x10] sm:$0xff] %vm1159, %v2803
      %2855 = vst.msk [vmem:[#allocation2 + $0x18] sm:$0xff] %vm1159, %v2804
      %2856 = vst.msk [vmem:[#allocation2 + $0x20] sm:$0xff] %vm1159, %v2805
      %2857 = vst.msk [vmem:[#allocation2 + $0x28] sm:$0xff] %vm1159, %v2806
      %2858 = vst.msk [vmem:[#allocation2 + $0x30] sm:$0xff] %vm1159, %v2807
      %2859 = vst.msk [vmem:[#allocation2 + $0x38] sm:$0xff] %vm1159, %v2808
      %2860 = vst.msk [vmem:[#allocation2 + $0x40] sm:$0xff] %vm1159, %v2809
      %2861 = vst.msk [vmem:[#allocation2 + $0x48] sm:$0xff] %vm1159, %v2810
      %2862 = vst.msk [vmem:[#allocation2 + $0x50] sm:$0xff] %vm1159, %v2811
      %2863 = vst.msk [vmem:[#allocation2 + $0x58] sm:$0xff] %vm1159, %v2812
      %2864 = vst.msk [vmem:[#allocation2 + $0x60] sm:$0xff] %vm1159, %v2813
      %2865 = vst.msk [vmem:[#allocation2 + $0x68] sm:$0xff] %vm1159, %v2814
      %2866 = vst.msk [vmem:[#allocation2 + $0x70] sm:$0xff] %vm1159, %v2815
      %2867 = vst.msk [vmem:[#allocation2 + $0x78] sm:$0xff] %vm1159, %v2816
      %2868 = vst.msk [vmem:[#allocation2 + $0x80] sm:$0xff] %vm1159, %v2817
      %2869 = vst.msk [vmem:[#allocation2 + $0x88] sm:$0xff] %vm1159, %v2818
      %2870 = vst.msk [vmem:[#allocation2 + $0x90] sm:$0xff] %vm1159, %v2819
      %2871 = vst.msk [vmem:[#allocation2 + $0x98] sm:$0xff] %vm1159, %v2820
      %2872 = vst.msk [vmem:[#allocation2 + $0xa0] sm:$0xff] %vm1159, %v2821
      %2873 = vst.msk [vmem:[#allocation2 + $0xa8] sm:$0xff] %vm1159, %v2822
      %2874 = vst.msk [vmem:[#allocation2 + $0xb0] sm:$0xff] %vm1159, %v2823
      %2875 = vst.msk [vmem:[#allocation2 + $0xb8] sm:$0xff] %vm1159, %v2824
      %2876 = vst.msk [vmem:[#allocation2 + $0xc0] sm:$0xff] %vm1159, %v2825
      %2877 = vst.msk [vmem:[#allocation2 + $0xc8] sm:$0xff] %vm1159, %v2826
      %2878 = vst.msk [vmem:[#allocation2 + $0xd0] sm:$0xff] %vm1159, %v2827
      %2879 = vst.msk [vmem:[#allocation2 + $0xd8] sm:$0xff] %vm1159, %v2828
      %2880 = vst.msk [vmem:[#allocation2 + $0xe0] sm:$0xff] %vm1159, %v2829
      %2881 = vst.msk [vmem:[#allocation2 + $0xe8] sm:$0xff] %vm1159, %v2830
      %2882 = vst.msk [vmem:[#allocation2 + $0xf0] sm:$0xff] %vm1159, %v2831
      %2883 = vst.msk [vmem:[#allocation2 + $0xf8] sm:$0xff] %vm1159, %v2832
      %2884 = vst.msk [vmem:[#allocation2 + $0x100] sm:$0xff] %vm1159, %v2833
      %2885 = vst.msk [vmem:[#allocation2 + $0x108] sm:$0xff] %vm1159, %v2834
      %2886 = vst.msk [vmem:[#allocation2 + $0x110] sm:$0xff] %vm1159, %v2835
      %2887 = vst.msk [vmem:[#allocation2 + $0x118] sm:$0xff] %vm1159, %v2836
      %2888 = vst.msk [vmem:[#allocation2 + $0x120] sm:$0xff] %vm1159, %v2837
      %2889 = vst.msk [vmem:[#allocation2 + $0x128] sm:$0xff] %vm1159, %v2838
      %2890 = vst.msk [vmem:[#allocation2 + $0x130] sm:$0xff] %vm1159, %v2839
      %2891 = vst.msk [vmem:[#allocation2 + $0x138] sm:$0xff] %vm1159, %v2840
      %2892 = vst.msk [vmem:[#allocation2 + $0x140] sm:$0xff] %vm1159, %v2841
      %2893 = vst.msk [vmem:[#allocation2 + $0x148] sm:$0xff] %vm1159, %v2842
      %2894 = vst.msk [vmem:[#allocation2 + $0x150] sm:$0xff] %vm1159, %v2843
      %2895 = vst.msk [vmem:[#allocation2 + $0x158] sm:$0xff] %vm1159, %v2844
      %2896 = vst.msk [vmem:[#allocation2 + $0x160] sm:$0xff] %vm1159, %v2845
      %2897 = vst.msk [vmem:[#allocation2 + $0x168] sm:$0xff] %vm1159, %v2846
      %2898 = vst.msk [vmem:[#allocation2 + $0x170] sm:$0xff] %vm1159, %v2847
      %2899 = vst.msk [vmem:[#allocation2 + $0x178] sm:$0xff] %vm1159, %v2848
      %2900 = vst.msk [vmem:[#allocation2 + $0x180] sm:$0xff] %vm1159, %v2849
      %2901 = vst.msk [vmem:[#allocation2 + $0x188] sm:$0xff] %vm1159, %v2850
      %2902 = vst.msk [vmem:[#allocation2 + $0x190] sm:$0xff] %vm1159, %v2851
      %v2903 = vld [vmem:[#allocation2] ss:$2 sm:$0xff]
      %s2904 = scalar_lea.vmem [#allocation2], 16
      %v2905 = vld [vmem:[%s2904] ss:$2 sm:$0xff]
      %s2906 = scalar_lea.vmem [#allocation2], 32
      %v2907 = vld [vmem:[%s2906] ss:$2 sm:$0xff]
      %s2908 = scalar_lea.vmem [#allocation2], 48
      %v2909 = vld [vmem:[%s2908] ss:$2 sm:$0xff]
      %s2910 = scalar_lea.vmem [#allocation2], 64
      %v2911 = vld [vmem:[%s2910] ss:$2 sm:$0xff]
      %s2912 = scalar_lea.vmem [#allocation2], 80
      %v2913 = vld [vmem:[%s2912] ss:$2 sm:$0xff]
      %s2914 = scalar_lea.vmem [#allocation2], 96
      %v2915 = vld [vmem:[%s2914] ss:$2 sm:$0xff]
      %s2916 = scalar_lea.vmem [#allocation2], 112
      %v2917 = vld [vmem:[%s2916] ss:$2 sm:$0xff]
      %s2918 = scalar_lea.vmem [#allocation2], 128
      %v2919 = vld [vmem:[%s2918] ss:$2 sm:$0xff]
      %s2920 = scalar_lea.vmem [#allocation2], 144
      %v2921 = vld [vmem:[%s2920] ss:$2 sm:$0xff]
      %s2922 = scalar_lea.vmem [#allocation2], 160
      %v2923 = vld [vmem:[%s2922] ss:$2 sm:$0xff]
      %s2924 = scalar_lea.vmem [#allocation2], 176
      %v2925 = vld [vmem:[%s2924] ss:$2 sm:$0xff]
      %s2926 = scalar_lea.vmem [#allocation2], 192
      %v2927 = vld [vmem:[%s2926] ss:$2 sm:$0xff]
      %s2928 = scalar_lea.vmem [#allocation2], 208
      %v2929 = vld [vmem:[%s2928] ss:$2 sm:$0xff]
      %s2930 = scalar_lea.vmem [#allocation2], 224
      %v2931 = vld [vmem:[%s2930] ss:$2 sm:$0xff]
      %s2932 = scalar_lea.vmem [#allocation2], 240
      %v2933 = vld [vmem:[%s2932] ss:$2 sm:$0xff]
      %s2934 = scalar_lea.vmem [#allocation2], 256
      %v2935 = vld [vmem:[%s2934] ss:$2 sm:$0xff]
      %s2936 = scalar_lea.vmem [#allocation2], 272
      %v2937 = vld [vmem:[%s2936] ss:$2 sm:$0xff]
      %s2938 = scalar_lea.vmem [#allocation2], 288
      %v2939 = vld [vmem:[%s2938] ss:$2 sm:$0xff]
      %s2940 = scalar_lea.vmem [#allocation2], 304
      %v2941 = vld [vmem:[%s2940] ss:$2 sm:$0xff]
      %s2942 = scalar_lea.vmem [#allocation2], 320
      %v2943 = vld [vmem:[%s2942] ss:$2 sm:$0xff]
      %s2944 = scalar_lea.vmem [#allocation2], 336
      %v2945 = vld [vmem:[%s2944] ss:$2 sm:$0xff]
      %s2946 = scalar_lea.vmem [#allocation2], 352
      %v2947 = vld [vmem:[%s2946] ss:$2 sm:$0xff]
      %s2948 = scalar_lea.vmem [#allocation2], 368
      %v2949 = vld [vmem:[%s2948] ss:$2 sm:$0xff]
      %s2950 = scalar_lea.vmem [#allocation2], 384
      %v2951 = vld [vmem:[%s2950] ss:$2 sm:$0xff]
      %s2952 = scalar_lea.vmem [#allocation2], 400
      %v2953 = vld [vmem:[%s2952] ss:$2 sm:$0x7]
      %s2954 = scalar_lea.vmem [#allocation2], 1
      %v2955 = vld [vmem:[%s2954] ss:$2 sm:$0xff]
      %s2956 = scalar_lea.vmem [#allocation2], 17
      %v2957 = vld [vmem:[%s2956] ss:$2 sm:$0xff]
      %s2958 = scalar_lea.vmem [#allocation2], 33
      %v2959 = vld [vmem:[%s2958] ss:$2 sm:$0xff]
      %s2960 = scalar_lea.vmem [#allocation2], 49
      %v2961 = vld [vmem:[%s2960] ss:$2 sm:$0xff]
      %s2962 = scalar_lea.vmem [#allocation2], 65
      %v2963 = vld [vmem:[%s2962] ss:$2 sm:$0xff]
      %s2964 = scalar_lea.vmem [#allocation2], 81
      %v2965 = vld [vmem:[%s2964] ss:$2 sm:$0xff]
      %s2966 = scalar_lea.vmem [#allocation2], 97
      %v2967 = vld [vmem:[%s2966] ss:$2 sm:$0xff]
      %s2968 = scalar_lea.vmem [#allocation2], 113
      %v2969 = vld [vmem:[%s2968] ss:$2 sm:$0xff]
      %s2970 = scalar_lea.vmem [#allocation2], 129
      %v2971 = vld [vmem:[%s2970] ss:$2 sm:$0xff]
      %s2972 = scalar_lea.vmem [#allocation2], 145
      %v2973 = vld [vmem:[%s2972] ss:$2 sm:$0xff]
      %s2974 = scalar_lea.vmem [#allocation2], 161
      %v2975 = vld [vmem:[%s2974] ss:$2 sm:$0xff]
      %s2976 = scalar_lea.vmem [#allocation2], 177
      %v2977 = vld [vmem:[%s2976] ss:$2 sm:$0xff]
      %s2978 = scalar_lea.vmem [#allocation2], 193
      %v2979 = vld [vmem:[%s2978] ss:$2 sm:$0xff]
      %s2980 = scalar_lea.vmem [#allocation2], 209
      %v2981 = vld [vmem:[%s2980] ss:$2 sm:$0xff]
      %s2982 = scalar_lea.vmem [#allocation2], 225
      %v2983 = vld [vmem:[%s2982] ss:$2 sm:$0xff]
      %s2984 = scalar_lea.vmem [#allocation2], 241
      %v2985 = vld [vmem:[%s2984] ss:$2 sm:$0xff]
      %s2986 = scalar_lea.vmem [#allocation2], 257
      %v2987 = vld [vmem:[%s2986] ss:$2 sm:$0xff]
      %s2988 = scalar_lea.vmem [#allocation2], 273
      %v2989 = vld [vmem:[%s2988] ss:$2 sm:$0xff]
      %s2990 = scalar_lea.vmem [#allocation2], 289
      %v2991 = vld [vmem:[%s2990] ss:$2 sm:$0xff]
      %s2992 = scalar_lea.vmem [#allocation2], 305
      %v2993 = vld [vmem:[%s2992] ss:$2 sm:$0xff]
      %s2994 = scalar_lea.vmem [#allocation2], 321
      %v2995 = vld [vmem:[%s2994] ss:$2 sm:$0xff]
      %s2996 = scalar_lea.vmem [#allocation2], 337
      %v2997 = vld [vmem:[%s2996] ss:$2 sm:$0xff]
      %s2998 = scalar_lea.vmem [#allocation2], 353
      %v2999 = vld [vmem:[%s2998] ss:$2 sm:$0xff]
      %s3000 = scalar_lea.vmem [#allocation2], 369
      %v3001 = vld [vmem:[%s3000] ss:$2 sm:$0xff]
      %s3002 = scalar_lea.vmem [#allocation2], 385
      %v3003 = vld [vmem:[%s3002] ss:$2 sm:$0xff]
      %s3004 = scalar_lea.vmem [#allocation2], 401
      %v3005 = vld [vmem:[%s3004] ss:$2 sm:$0x7]
      %s3006 = scalar_lea.vmem [#allocation2], 2
      %v3007 = vld [vmem:[%s3006] ss:$2 sm:$0xff]
      %s3008 = scalar_lea.vmem [#allocation2], 18
      %v3009 = vld [vmem:[%s3008] ss:$2 sm:$0xff]
      %s3010 = scalar_lea.vmem [#allocation2], 34
      %v3011 = vld [vmem:[%s3010] ss:$2 sm:$0xff]
      %s3012 = scalar_lea.vmem [#allocation2], 50
      %v3013 = vld [vmem:[%s3012] ss:$2 sm:$0xff]
      %s3014 = scalar_lea.vmem [#allocation2], 66
      %v3015 = vld [vmem:[%s3014] ss:$2 sm:$0xff]
      %s3016 = scalar_lea.vmem [#allocation2], 82
      %v3017 = vld [vmem:[%s3016] ss:$2 sm:$0xff]
      %s3018 = scalar_lea.vmem [#allocation2], 98
      %v3019 = vld [vmem:[%s3018] ss:$2 sm:$0xff]
      %s3020 = scalar_lea.vmem [#allocation2], 114
      %v3021 = vld [vmem:[%s3020] ss:$2 sm:$0xff]
      %s3022 = scalar_lea.vmem [#allocation2], 130
      %v3023 = vld [vmem:[%s3022] ss:$2 sm:$0xff]
      %s3024 = scalar_lea.vmem [#allocation2], 146
      %v3025 = vld [vmem:[%s3024] ss:$2 sm:$0xff]
      %s3026 = scalar_lea.vmem [#allocation2], 162
      %v3027 = vld [vmem:[%s3026] ss:$2 sm:$0xff]
      %s3028 = scalar_lea.vmem [#allocation2], 178
      %v3029 = vld [vmem:[%s3028] ss:$2 sm:$0xff]
      %s3030 = scalar_lea.vmem [#allocation2], 194
      %v3031 = vld [vmem:[%s3030] ss:$2 sm:$0xff]
      %s3032 = scalar_lea.vmem [#allocation2], 210
      %v3033 = vld [vmem:[%s3032] ss:$2 sm:$0xff]
      %s3034 = scalar_lea.vmem [#allocation2], 226
      %v3035 = vld [vmem:[%s3034] ss:$2 sm:$0xff]
      %s3036 = scalar_lea.vmem [#allocation2], 242
      %v3037 = vld [vmem:[%s3036] ss:$2 sm:$0xff]
      %s3038 = scalar_lea.vmem [#allocation2], 258
      %v3039 = vld [vmem:[%s3038] ss:$2 sm:$0xff]
      %s3040 = scalar_lea.vmem [#allocation2], 274
      %v3041 = vld [vmem:[%s3040] ss:$2 sm:$0xff]
      %s3042 = scalar_lea.vmem [#allocation2], 290
      %v3043 = vld [vmem:[%s3042] ss:$2 sm:$0xff]
      %s3044 = scalar_lea.vmem [#allocation2], 306
      %v3045 = vld [vmem:[%s3044] ss:$2 sm:$0xff]
      %s3046 = scalar_lea.vmem [#allocation2], 322
      %v3047 = vld [vmem:[%s3046] ss:$2 sm:$0xff]
      %s3048 = scalar_lea.vmem [#allocation2], 338
      %v3049 = vld [vmem:[%s3048] ss:$2 sm:$0xff]
      %s3050 = scalar_lea.vmem [#allocation2], 354
      %v3051 = vld [vmem:[%s3050] ss:$2 sm:$0xff]
      %s3052 = scalar_lea.vmem [#allocation2], 370
      %v3053 = vld [vmem:[%s3052] ss:$2 sm:$0xff]
      %s3054 = scalar_lea.vmem [#allocation2], 386
      %v3055 = vld [vmem:[%s3054] ss:$2 sm:$0xff]
      %s3056 = scalar_lea.vmem [#allocation2], 402
      %v3057 = vld [vmem:[%s3056] ss:$2 sm:$0x7]
      %3084 = vrot.lane.b32.xlu0 %v2955, 32
      %v3085 = vpop.permute.xlu0 %3084
      %3086 = vrot.lane.b32.xlu0 %v2957, 32
      %v3087 = vpop.permute.xlu0 %3086
      %3088 = vrot.lane.b32.xlu0 %v2959, 32
      %v3089 = vpop.permute.xlu0 %3088
      %3090 = vrot.lane.b32.xlu0 %v2961, 32
      %v3091 = vpop.permute.xlu0 %3090
      %3092 = vrot.lane.b32.xlu0 %v2963, 32
      %v3093 = vpop.permute.xlu0 %3092
      %3094 = vrot.lane.b32.xlu0 %v2965, 32
      %v3095 = vpop.permute.xlu0 %3094
      %3096 = vrot.lane.b32.xlu0 %v2967, 32
      %v3097 = vpop.permute.xlu0 %3096
      %3098 = vrot.lane.b32.xlu0 %v2969, 32
      %v3099 = vpop.permute.xlu0 %3098
      %3100 = vrot.lane.b32.xlu0 %v2971, 32
      %v3101 = vpop.permute.xlu0 %3100
      %3102 = vrot.lane.b32.xlu0 %v2973, 32
      %v3103 = vpop.permute.xlu0 %3102
      %3104 = vrot.lane.b32.xlu0 %v2975, 32
      %v3105 = vpop.permute.xlu0 %3104
      %3106 = vrot.lane.b32.xlu0 %v2977, 32
      %v3107 = vpop.permute.xlu0 %3106
      %3108 = vrot.lane.b32.xlu0 %v2979, 32
      %v3109 = vpop.permute.xlu0 %3108
      %3110 = vrot.lane.b32.xlu0 %v2981, 32
      %v3111 = vpop.permute.xlu0 %3110
      %3112 = vrot.lane.b32.xlu0 %v2983, 32
      %v3113 = vpop.permute.xlu0 %3112
      %3114 = vrot.lane.b32.xlu0 %v2985, 32
      %v3115 = vpop.permute.xlu0 %3114
      %3116 = vrot.lane.b32.xlu0 %v2987, 32
      %v3117 = vpop.permute.xlu0 %3116
      %3118 = vrot.lane.b32.xlu0 %v2989, 32
      %v3119 = vpop.permute.xlu0 %3118
      %3120 = vrot.lane.b32.xlu0 %v2991, 32
      %v3121 = vpop.permute.xlu0 %3120
      %3122 = vrot.lane.b32.xlu0 %v2993, 32
      %v3123 = vpop.permute.xlu0 %3122
      %3124 = vrot.lane.b32.xlu0 %v2995, 32
      %v3125 = vpop.permute.xlu0 %3124
      %3126 = vrot.lane.b32.xlu0 %v2997, 32
      %v3127 = vpop.permute.xlu0 %3126
      %3128 = vrot.lane.b32.xlu0 %v2999, 32
      %v3129 = vpop.permute.xlu0 %3128
      %3130 = vrot.lane.b32.xlu0 %v3001, 32
      %v3131 = vpop.permute.xlu0 %3130
      %3132 = vrot.lane.b32.xlu0 %v3003, 32
      %v3133 = vpop.permute.xlu0 %3132
      %3134 = vrot.lane.b32.xlu0 %v3005, 32
      %v3135 = vpop.permute.xlu0 %3134
      %3188 = vrot.lane.b32.xlu0 %v3007, 64
      %v3189 = vpop.permute.xlu0 %3188
      %3190 = vrot.lane.b32.xlu0 %v3009, 64
      %v3191 = vpop.permute.xlu0 %3190
      %3192 = vrot.lane.b32.xlu0 %v3011, 64
      %v3193 = vpop.permute.xlu0 %3192
      %3194 = vrot.lane.b32.xlu0 %v3013, 64
      %v3195 = vpop.permute.xlu0 %3194
      %3196 = vrot.lane.b32.xlu0 %v3015, 64
      %v3197 = vpop.permute.xlu0 %3196
      %3198 = vrot.lane.b32.xlu0 %v3017, 64
      %v3199 = vpop.permute.xlu0 %3198
      %3200 = vrot.lane.b32.xlu0 %v3019, 64
      %v3201 = vpop.permute.xlu0 %3200
      %3202 = vrot.lane.b32.xlu0 %v3021, 64
      %v3203 = vpop.permute.xlu0 %3202
      %3204 = vrot.lane.b32.xlu0 %v3023, 64
      %v3205 = vpop.permute.xlu0 %3204
      %3206 = vrot.lane.b32.xlu0 %v3025, 64
      %v3207 = vpop.permute.xlu0 %3206
      %3208 = vrot.lane.b32.xlu0 %v3027, 64
      %v3209 = vpop.permute.xlu0 %3208
      %3210 = vrot.lane.b32.xlu0 %v3029, 64
      %v3211 = vpop.permute.xlu0 %3210
      %3212 = vrot.lane.b32.xlu0 %v3031, 64
      %v3213 = vpop.permute.xlu0 %3212
      %3214 = vrot.lane.b32.xlu0 %v3033, 64
      %v3215 = vpop.permute.xlu0 %3214
      %3216 = vrot.lane.b32.xlu0 %v3035, 64
      %v3217 = vpop.permute.xlu0 %3216
      %3218 = vrot.lane.b32.xlu0 %v3037, 64
      %v3219 = vpop.permute.xlu0 %3218
      %3220 = vrot.lane.b32.xlu0 %v3039, 64
      %v3221 = vpop.permute.xlu0 %3220
      %3222 = vrot.lane.b32.xlu0 %v3041, 64
      %v3223 = vpop.permute.xlu0 %3222
      %3224 = vrot.lane.b32.xlu0 %v3043, 64
      %v3225 = vpop.permute.xlu0 %3224
      %3226 = vrot.lane.b32.xlu0 %v3045, 64
      %v3227 = vpop.permute.xlu0 %3226
      %3228 = vrot.lane.b32.xlu0 %v3047, 64
      %v3229 = vpop.permute.xlu0 %3228
      %3230 = vrot.lane.b32.xlu0 %v3049, 64
      %v3231 = vpop.permute.xlu0 %3230
      %3232 = vrot.lane.b32.xlu0 %v3051, 64
      %v3233 = vpop.permute.xlu0 %3232
      %3234 = vrot.lane.b32.xlu0 %v3053, 64
      %v3235 = vpop.permute.xlu0 %3234
      %3236 = vrot.lane.b32.xlu0 %v3055, 64
      %v3237 = vpop.permute.xlu0 %3236
      %3238 = vrot.lane.b32.xlu0 %v3057, 64
      %v3239 = vpop.permute.xlu0 %3238
      %v3266 = vsel %vm1159, %v2903, %v3085
      %v3267 = vsel %vm1159, %v2905, %v3087
      %v3268 = vsel %vm1159, %v2907, %v3089
      %v3269 = vsel %vm1159, %v2909, %v3091
      %v3270 = vsel %vm1159, %v2911, %v3093
      %v3271 = vsel %vm1159, %v2913, %v3095
      %v3272 = vsel %vm1159, %v2915, %v3097
      %v3273 = vsel %vm1159, %v2917, %v3099
      %v3274 = vsel %vm1159, %v2919, %v3101
      %v3275 = vsel %vm1159, %v2921, %v3103
      %v3276 = vsel %vm1159, %v2923, %v3105
      %v3277 = vsel %vm1159, %v2925, %v3107
      %v3278 = vsel %vm1159, %v2927, %v3109
      %v3279 = vsel %vm1159, %v2929, %v3111
      %v3280 = vsel %vm1159, %v2931, %v3113
      %v3281 = vsel %vm1159, %v2933, %v3115
      %v3282 = vsel %vm1159, %v2935, %v3117
      %v3283 = vsel %vm1159, %v2937, %v3119
      %v3284 = vsel %vm1159, %v2939, %v3121
      %v3285 = vsel %vm1159, %v2941, %v3123
      %v3286 = vsel %vm1159, %v2943, %v3125
      %v3287 = vsel %vm1159, %v2945, %v3127
      %v3288 = vsel %vm1159, %v2947, %v3129
      %v3289 = vsel %vm1159, %v2949, %v3131
      %v3290 = vsel %vm1159, %v2951, %v3133
      %v3291 = vsel %vm1159, %v2953, %v3135
      %vm3292 = vcmask 523264
      %v3293 = vsel %vm3292, %v3266, %v3189
      %v3294 = vsel %vm3292, %v3267, %v3191
      %v3295 = vsel %vm3292, %v3268, %v3193
      %v3296 = vsel %vm3292, %v3269, %v3195
      %v3297 = vsel %vm3292, %v3270, %v3197
      %v3298 = vsel %vm3292, %v3271, %v3199
      %v3299 = vsel %vm3292, %v3272, %v3201
      %v3300 = vsel %vm3292, %v3273, %v3203
      %v3301 = vsel %vm3292, %v3274, %v3205
      %v3302 = vsel %vm3292, %v3275, %v3207
      %v3303 = vsel %vm3292, %v3276, %v3209
      %v3304 = vsel %vm3292, %v3277, %v3211
      %v3305 = vsel %vm3292, %v3278, %v3213
      %v3306 = vsel %vm3292, %v3279, %v3215
      %v3307 = vsel %vm3292, %v3280, %v3217
      %v3308 = vsel %vm3292, %v3281, %v3219
      %v3309 = vsel %vm3292, %v3282, %v3221
      %v3310 = vsel %vm3292, %v3283, %v3223
      %v3311 = vsel %vm3292, %v3284, %v3225
      %v3312 = vsel %vm3292, %v3285, %v3227
      %v3313 = vsel %vm3292, %v3286, %v3229
      %v3314 = vsel %vm3292, %v3287, %v3231
      %v3315 = vsel %vm3292, %v3288, %v3233
      %v3316 = vsel %vm3292, %v3289, %v3235
      %v3317 = vsel %vm3292, %v3290, %v3237
      %v3318 = vsel %vm3292, %v3291, %v3239
      %s3319 = scalar_lea.vmem %s1, 96
      %v3320 = vld [vmem:[%s3319] sm:$0xff]
      %v3321 = vld [vmem:[%s3319 + $0x8] sm:$0xff]
      %v3322 = vld [vmem:[%s3319 + $0x10] sm:$0xff]
      %v3323 = vld [vmem:[%s3319 + $0x18] sm:$0xff]
      %v3324 = vld [vmem:[%s3319 + $0x20] sm:$0xff]
      %v3325 = vld [vmem:[%s3319 + $0x28] sm:$0xff]
      %v3326 = vld [vmem:[%s3319 + $0x30] sm:$0xff]
      %v3327 = vld [vmem:[%s3319 + $0x38] sm:$0xff]
      %v3328 = vld [vmem:[%s3319 + $0x40] sm:$0xff]
      %v3329 = vld [vmem:[%s3319 + $0x48] sm:$0xff]
      %v3330 = vld [vmem:[%s3319 + $0x50] sm:$0xff]
      %v3331 = vld [vmem:[%s3319 + $0x58] sm:$0xff]
      %s3332 = scalar_lea.vmem %s2, 4
      %v3333 = vld [vmem:[%s3332] sm:$0x1]
      %v3334 = vperm.slane %v3333, 0
      %vm3335 = vcmask 785408
      %v3337 = vsel %vm3335, %v3293, 0
      %v3340 = vsel %vm3335, %v3294, 0
      %v3343 = vsel %vm3335, %v3295, 0
      %v3346 = vsel %vm3335, %v3296, 0
      %v3349 = vsel %vm3335, %v3297, 0
      %v3352 = vsel %vm3335, %v3298, 0
      %v3355 = vsel %vm3335, %v3299, 0
      %v3358 = vsel %vm3335, %v3300, 0
      %v3361 = vsel %vm3335, %v3301, 0
      %v3364 = vsel %vm3335, %v3302, 0
      %v3367 = vsel %vm3335, %v3303, 0
      %v3370 = vsel %vm3335, %v3304, 0
      %v3373 = vsel %vm3335, %v3305, 0
      %v3376 = vsel %vm3335, %v3306, 0
      %v3379 = vsel %vm3335, %v3307, 0
      %v3382 = vsel %vm3335, %v3308, 0
      %v3385 = vsel %vm3335, %v3309, 0
      %v3388 = vsel %vm3335, %v3310, 0
      %v3391 = vsel %vm3335, %v3311, 0
      %v3394 = vsel %vm3335, %v3312, 0
      %v3397 = vsel %vm3335, %v3313, 0
      %v3400 = vsel %vm3335, %v3314, 0
      %v3403 = vsel %vm3335, %v3315, 0
      %v3406 = vsel %vm3335, %v3316, 0
      %v3409 = vsel %vm3335, %v3317, 0
      %v3412 = vsel %vm3335, %v3318, 0
      %3414 = vmatpush.msra.mxu0 0.0
      %3415 = vmatpush.msra.mxu0 0.0
      %3416 = vmatpush.msra.mxu0 0.0
      %3417 = vmatpush.msra.mxu0 0.0
      %3418 = vmatpush.msra.mxu0 %v3331
      %3419 = vmatpush.msra.mxu0 %v3330
      %3420 = vmatpush.msra.mxu0 %v3329
      %3421 = vmatpush.msra.mxu0 %v3328
      %3422 = vmatpush.msra.mxu0 %v3327
      %3423 = vmatpush.msra.mxu0 %v3326
      %3424 = vmatpush.msra.mxu0 %v3325
      %3425 = vmatpush.msra.mxu0 %v3324
      %3426 = vmatpush.msra.mxu0 %v3323
      %3427 = vmatpush.msra.mxu0 %v3322
      %3428 = vmatpush.msra.mxu0 %v3321
      %3429 = vmatpush.msra.mxu0 %v3320
      %3430 = vmatmul.f32.gmra.mxu0 %v3337
      %v3431 = vpop.f32.mrf.mxu0
      %v3432 = vadd.f32 %v3334, %v3431
      %3433 = vmatmul.f32.gmra.mxu0 %v3340
      %v3434 = vpop.f32.mrf.mxu0
      %v3435 = vadd.f32 %v3334, %v3434
      %3436 = vmatmul.f32.gmra.mxu0 %v3343
      %v3437 = vpop.f32.mrf.mxu0
      %v3438 = vadd.f32 %v3334, %v3437
      %3439 = vmatmul.f32.gmra.mxu0 %v3346
      %v3440 = vpop.f32.mrf.mxu0
      %v3441 = vadd.f32 %v3334, %v3440
      %3442 = vmatmul.f32.gmra.mxu0 %v3349
      %v3443 = vpop.f32.mrf.mxu0
      %v3444 = vadd.f32 %v3334, %v3443
      %3445 = vmatmul.f32.gmra.mxu0 %v3352
      %v3446 = vpop.f32.mrf.mxu0
      %v3447 = vadd.f32 %v3334, %v3446
      %3448 = vmatmul.f32.gmra.mxu0 %v3355
      %v3449 = vpop.f32.mrf.mxu0
      %v3450 = vadd.f32 %v3334, %v3449
      %3451 = vmatmul.f32.gmra.mxu0 %v3358
      %v3452 = vpop.f32.mrf.mxu0
      %v3453 = vadd.f32 %v3334, %v3452
      %3454 = vmatmul.f32.gmra.mxu0 %v3361
      %v3455 = vpop.f32.mrf.mxu0
      %v3456 = vadd.f32 %v3334, %v3455
      %3457 = vmatmul.f32.gmra.mxu0 %v3364
      %v3458 = vpop.f32.mrf.mxu0
      %v3459 = vadd.f32 %v3334, %v3458
      %3460 = vmatmul.f32.gmra.mxu0 %v3367
      %v3461 = vpop.f32.mrf.mxu0
      %v3462 = vadd.f32 %v3334, %v3461
      %3463 = vmatmul.f32.gmra.mxu0 %v3370
      %v3464 = vpop.f32.mrf.mxu0
      %v3465 = vadd.f32 %v3334, %v3464
      %3466 = vmatmul.f32.gmra.mxu0 %v3373
      %v3467 = vpop.f32.mrf.mxu0
      %v3468 = vadd.f32 %v3334, %v3467
      %3469 = vmatmul.f32.gmra.mxu0 %v3376
      %v3470 = vpop.f32.mrf.mxu0
      %v3471 = vadd.f32 %v3334, %v3470
      %3472 = vmatmul.f32.gmra.mxu0 %v3379
      %v3473 = vpop.f32.mrf.mxu0
      %v3474 = vadd.f32 %v3334, %v3473
      %3475 = vmatmul.f32.gmra.mxu0 %v3382
      %v3476 = vpop.f32.mrf.mxu0
      %v3477 = vadd.f32 %v3334, %v3476
      %3478 = vmatmul.f32.gmra.mxu0 %v3385
      %v3479 = vpop.f32.mrf.mxu0
      %v3480 = vadd.f32 %v3334, %v3479
      %3481 = vmatmul.f32.gmra.mxu0 %v3388
      %v3482 = vpop.f32.mrf.mxu0
      %v3483 = vadd.f32 %v3334, %v3482
      %3484 = vmatmul.f32.gmra.mxu0 %v3391
      %v3485 = vpop.f32.mrf.mxu0
      %v3486 = vadd.f32 %v3334, %v3485
      %3487 = vmatmul.f32.gmra.mxu0 %v3394
      %v3488 = vpop.f32.mrf.mxu0
      %v3489 = vadd.f32 %v3334, %v3488
      %3490 = vmatmul.f32.gmra.mxu0 %v3397
      %v3491 = vpop.f32.mrf.mxu0
      %v3492 = vadd.f32 %v3334, %v3491
      %3493 = vmatmul.f32.gmra.mxu0 %v3400
      %v3494 = vpop.f32.mrf.mxu0
      %v3495 = vadd.f32 %v3334, %v3494
      %3496 = vmatmul.f32.gmra.mxu0 %v3403
      %v3497 = vpop.f32.mrf.mxu0
      %v3498 = vadd.f32 %v3334, %v3497
      %3499 = vmatmul.f32.gmra.mxu0 %v3406
      %v3500 = vpop.f32.mrf.mxu0
      %v3501 = vadd.f32 %v3334, %v3500
      %3502 = vmatmul.f32.gmra.mxu0 %v3409
      %v3503 = vpop.f32.mrf.mxu0
      %v3504 = vadd.f32 %v3334, %v3503
      %3505 = vmatmul.f32.gmra.mxu0 %v3412
      %v3506 = vpop.f32.mrf.mxu0
      %v3507 = vadd.f32 %v3334, %v3506
      %3508 = vdwg.mxu0
      %v3509 = vld [vmem:[%s3332 + $0x1] sm:$0x1]
      %v3510 = vld [vmem:[%s3332 + $0x2] sm:$0x1]
      %v3511 = vsel %vm1159, %v3432, 0.0
      %3512 = vadd.xlane.f32.xlu0 %v3511
      %v3513 = vpop.xlane.xlu0 %3512
      %v3514 = vsel %vm1159, %v3435, 0.0
      %3515 = vadd.xlane.f32.xlu0 %v3514
      %v3516 = vpop.xlane.xlu0 %3515
      %v3517 = vsel %vm1159, %v3438, 0.0
      %3518 = vadd.xlane.f32.xlu0 %v3517
      %v3519 = vpop.xlane.xlu0 %3518
      %v3520 = vsel %vm1159, %v3441, 0.0
      %3521 = vadd.xlane.f32.xlu0 %v3520
      %v3522 = vpop.xlane.xlu0 %3521
      %v3523 = vsel %vm1159, %v3444, 0.0
      %3524 = vadd.xlane.f32.xlu0 %v3523
      %v3525 = vpop.xlane.xlu0 %3524
      %v3526 = vsel %vm1159, %v3447, 0.0
      %3527 = vadd.xlane.f32.xlu0 %v3526
      %v3528 = vpop.xlane.xlu0 %3527
      %v3529 = vsel %vm1159, %v3450, 0.0
      %3530 = vadd.xlane.f32.xlu0 %v3529
      %v3531 = vpop.xlane.xlu0 %3530
      %v3532 = vsel %vm1159, %v3453, 0.0
      %3533 = vadd.xlane.f32.xlu0 %v3532
      %v3534 = vpop.xlane.xlu0 %3533
      %v3535 = vsel %vm1159, %v3456, 0.0
      %3536 = vadd.xlane.f32.xlu0 %v3535
      %v3537 = vpop.xlane.xlu0 %3536
      %v3538 = vsel %vm1159, %v3459, 0.0
      %3539 = vadd.xlane.f32.xlu0 %v3538
      %v3540 = vpop.xlane.xlu0 %3539
      %v3541 = vsel %vm1159, %v3462, 0.0
      %3542 = vadd.xlane.f32.xlu0 %v3541
      %v3543 = vpop.xlane.xlu0 %3542
      %v3544 = vsel %vm1159, %v3465, 0.0
      %3545 = vadd.xlane.f32.xlu0 %v3544
      %v3546 = vpop.xlane.xlu0 %3545
      %v3547 = vsel %vm1159, %v3468, 0.0
      %3548 = vadd.xlane.f32.xlu0 %v3547
      %v3549 = vpop.xlane.xlu0 %3548
      %v3550 = vsel %vm1159, %v3471, 0.0
      %3551 = vadd.xlane.f32.xlu0 %v3550
      %v3552 = vpop.xlane.xlu0 %3551
      %v3553 = vsel %vm1159, %v3474, 0.0
      %3554 = vadd.xlane.f32.xlu0 %v3553
      %v3555 = vpop.xlane.xlu0 %3554
      %v3556 = vsel %vm1159, %v3477, 0.0
      %3557 = vadd.xlane.f32.xlu0 %v3556
      %v3558 = vpop.xlane.xlu0 %3557
      %v3559 = vsel %vm1159, %v3480, 0.0
      %3560 = vadd.xlane.f32.xlu0 %v3559
      %v3561 = vpop.xlane.xlu0 %3560
      %v3562 = vsel %vm1159, %v3483, 0.0
      %3563 = vadd.xlane.f32.xlu0 %v3562
      %v3564 = vpop.xlane.xlu0 %3563
      %v3565 = vsel %vm1159, %v3486, 0.0
      %3566 = vadd.xlane.f32.xlu0 %v3565
      %v3567 = vpop.xlane.xlu0 %3566
      %v3568 = vsel %vm1159, %v3489, 0.0
      %3569 = vadd.xlane.f32.xlu0 %v3568
      %v3570 = vpop.xlane.xlu0 %3569
      %v3571 = vsel %vm1159, %v3492, 0.0
      %3572 = vadd.xlane.f32.xlu0 %v3571
      %v3573 = vpop.xlane.xlu0 %3572
      %v3574 = vsel %vm1159, %v3495, 0.0
      %3575 = vadd.xlane.f32.xlu0 %v3574
      %v3576 = vpop.xlane.xlu0 %3575
      %v3577 = vsel %vm1159, %v3498, 0.0
      %3578 = vadd.xlane.f32.xlu0 %v3577
      %v3579 = vpop.xlane.xlu0 %3578
      %v3580 = vsel %vm1159, %v3501, 0.0
      %3581 = vadd.xlane.f32.xlu0 %v3580
      %v3582 = vpop.xlane.xlu0 %3581
      %v3583 = vsel %vm1159, %v3504, 0.0
      %3584 = vadd.xlane.f32.xlu0 %v3583
      %v3585 = vpop.xlane.xlu0 %3584
      %vm3586 = vcmask 256000
      %v3587 = vsel %vm3586, %v3507, 0.0
      %3588 = vadd.xlane.f32.xlu0 %v3587
      %v3589 = vpop.xlane.xlu0 %3588
      %v3590 = vmul.f32 %v3513, %v1319
      %v3591 = vmul.f32 %v3516, %v1319
      %v3592 = vmul.f32 %v3519, %v1319
      %v3593 = vmul.f32 %v3522, %v1319
      %v3594 = vmul.f32 %v3525, %v1319
      %v3595 = vmul.f32 %v3528, %v1319
      %v3596 = vmul.f32 %v3531, %v1319
      %v3597 = vmul.f32 %v3534, %v1319
      %v3598 = vmul.f32 %v3537, %v1319
      %v3599 = vmul.f32 %v3540, %v1319
      %v3600 = vmul.f32 %v3543, %v1319
      %v3601 = vmul.f32 %v3546, %v1319
      %v3602 = vmul.f32 %v3549, %v1319
      %v3603 = vmul.f32 %v3552, %v1319
      %v3604 = vmul.f32 %v3555, %v1319
      %v3605 = vmul.f32 %v3558, %v1319
      %v3606 = vmul.f32 %v3561, %v1319
      %v3607 = vmul.f32 %v3564, %v1319
      %v3608 = vmul.f32 %v3567, %v1319
      %v3609 = vmul.f32 %v3570, %v1319
      %v3610 = vmul.f32 %v3573, %v1319
      %v3611 = vmul.f32 %v3576, %v1319
      %v3612 = vmul.f32 %v3579, %v1319
      %v3613 = vmul.f32 %v3582, %v1319
      %v3614 = vmul.f32 %v3585, %v1319
      %v3615 = vmul.f32 %v3589, %v1319
      %v3616 = vsub.f32 %v3432, %v3590
      %v3617 = vsub.f32 %v3435, %v3591
      %v3618 = vsub.f32 %v3438, %v3592
      %v3619 = vsub.f32 %v3441, %v3593
      %v3620 = vsub.f32 %v3444, %v3594
      %v3621 = vsub.f32 %v3447, %v3595
      %v3622 = vsub.f32 %v3450, %v3596
      %v3623 = vsub.f32 %v3453, %v3597
      %v3624 = vsub.f32 %v3456, %v3598
      %v3625 = vsub.f32 %v3459, %v3599
      %v3626 = vsub.f32 %v3462, %v3600
      %v3627 = vsub.f32 %v3465, %v3601
      %v3628 = vsub.f32 %v3468, %v3602
      %v3629 = vsub.f32 %v3471, %v3603
      %v3630 = vsub.f32 %v3474, %v3604
      %v3631 = vsub.f32 %v3477, %v3605
      %v3632 = vsub.f32 %v3480, %v3606
      %v3633 = vsub.f32 %v3483, %v3607
      %v3634 = vsub.f32 %v3486, %v3608
      %v3635 = vsub.f32 %v3489, %v3609
      %v3636 = vsub.f32 %v3492, %v3610
      %v3637 = vsub.f32 %v3495, %v3611
      %v3638 = vsub.f32 %v3498, %v3612
      %v3639 = vsub.f32 %v3501, %v3613
      %v3640 = vsub.f32 %v3504, %v3614
      %v3641 = vsub.f32 %v3507, %v3615
      %v3642 = vmul.f32 %v3616, %v3616
      %v3643 = vmul.f32 %v3617, %v3617
      %v3644 = vmul.f32 %v3618, %v3618
      %v3645 = vmul.f32 %v3619, %v3619
      %v3646 = vmul.f32 %v3620, %v3620
      %v3647 = vmul.f32 %v3621, %v3621
      %v3648 = vmul.f32 %v3622, %v3622
      %v3649 = vmul.f32 %v3623, %v3623
      %v3650 = vmul.f32 %v3624, %v3624
      %v3651 = vmul.f32 %v3625, %v3625
      %v3652 = vmul.f32 %v3626, %v3626
      %v3653 = vmul.f32 %v3627, %v3627
      %v3654 = vmul.f32 %v3628, %v3628
      %v3655 = vmul.f32 %v3629, %v3629
      %v3656 = vmul.f32 %v3630, %v3630
      %v3657 = vmul.f32 %v3631, %v3631
      %v3658 = vmul.f32 %v3632, %v3632
      %v3659 = vmul.f32 %v3633, %v3633
      %v3660 = vmul.f32 %v3634, %v3634
      %v3661 = vmul.f32 %v3635, %v3635
      %v3662 = vmul.f32 %v3636, %v3636
      %v3663 = vmul.f32 %v3637, %v3637
      %v3664 = vmul.f32 %v3638, %v3638
      %v3665 = vmul.f32 %v3639, %v3639
      %v3666 = vmul.f32 %v3640, %v3640
      %v3667 = vmul.f32 %v3641, %v3641
      %v3668 = vsel %vm1159, %v3642, 0.0
      %3669 = vadd.xlane.f32.xlu0 %v3668
      %v3670 = vpop.xlane.xlu0 %3669
      %v3671 = vsel %vm1159, %v3643, 0.0
      %3672 = vadd.xlane.f32.xlu0 %v3671
      %v3673 = vpop.xlane.xlu0 %3672
      %v3674 = vsel %vm1159, %v3644, 0.0
      %3675 = vadd.xlane.f32.xlu0 %v3674
      %v3676 = vpop.xlane.xlu0 %3675
      %v3677 = vsel %vm1159, %v3645, 0.0
      %3678 = vadd.xlane.f32.xlu0 %v3677
      %v3679 = vpop.xlane.xlu0 %3678
      %v3680 = vsel %vm1159, %v3646, 0.0
      %3681 = vadd.xlane.f32.xlu0 %v3680
      %v3682 = vpop.xlane.xlu0 %3681
      %v3683 = vsel %vm1159, %v3647, 0.0
      %3684 = vadd.xlane.f32.xlu0 %v3683
      %v3685 = vpop.xlane.xlu0 %3684
      %v3686 = vsel %vm1159, %v3648, 0.0
      %3687 = vadd.xlane.f32.xlu0 %v3686
      %v3688 = vpop.xlane.xlu0 %3687
      %v3689 = vsel %vm1159, %v3649, 0.0
      %3690 = vadd.xlane.f32.xlu0 %v3689
      %v3691 = vpop.xlane.xlu0 %3690
      %v3692 = vsel %vm1159, %v3650, 0.0
      %3693 = vadd.xlane.f32.xlu0 %v3692
      %v3694 = vpop.xlane.xlu0 %3693
      %v3695 = vsel %vm1159, %v3651, 0.0
      %3696 = vadd.xlane.f32.xlu0 %v3695
      %v3697 = vpop.xlane.xlu0 %3696
      %v3698 = vsel %vm1159, %v3652, 0.0
      %3699 = vadd.xlane.f32.xlu0 %v3698
      %v3700 = vpop.xlane.xlu0 %3699
      %v3701 = vsel %vm1159, %v3653, 0.0
      %3702 = vadd.xlane.f32.xlu0 %v3701
      %v3703 = vpop.xlane.xlu0 %3702
      %v3704 = vsel %vm1159, %v3654, 0.0
      %3705 = vadd.xlane.f32.xlu0 %v3704
      %v3706 = vpop.xlane.xlu0 %3705
      %v3707 = vsel %vm1159, %v3655, 0.0
      %3708 = vadd.xlane.f32.xlu0 %v3707
      %v3709 = vpop.xlane.xlu0 %3708
      %v3710 = vsel %vm1159, %v3656, 0.0
      %3711 = vadd.xlane.f32.xlu0 %v3710
      %v3712 = vpop.xlane.xlu0 %3711
      %v3713 = vsel %vm1159, %v3657, 0.0
      %3714 = vadd.xlane.f32.xlu0 %v3713
      %v3715 = vpop.xlane.xlu0 %3714
      %v3716 = vsel %vm1159, %v3658, 0.0
      %3717 = vadd.xlane.f32.xlu0 %v3716
      %v3718 = vpop.xlane.xlu0 %3717
      %v3719 = vsel %vm1159, %v3659, 0.0
      %3720 = vadd.xlane.f32.xlu0 %v3719
      %v3721 = vpop.xlane.xlu0 %3720
      %v3722 = vsel %vm1159, %v3660, 0.0
      %3723 = vadd.xlane.f32.xlu0 %v3722
      %v3724 = vpop.xlane.xlu0 %3723
      %v3725 = vsel %vm1159, %v3661, 0.0
      %3726 = vadd.xlane.f32.xlu0 %v3725
      %v3727 = vpop.xlane.xlu0 %3726
      %v3728 = vsel %vm1159, %v3662, 0.0
      %3729 = vadd.xlane.f32.xlu0 %v3728
      %v3730 = vpop.xlane.xlu0 %3729
      %v3731 = vsel %vm1159, %v3663, 0.0
      %3732 = vadd.xlane.f32.xlu0 %v3731
      %v3733 = vpop.xlane.xlu0 %3732
      %v3734 = vsel %vm1159, %v3664, 0.0
      %3735 = vadd.xlane.f32.xlu0 %v3734
      %v3736 = vpop.xlane.xlu0 %3735
      %v3737 = vsel %vm1159, %v3665, 0.0
      %3738 = vadd.xlane.f32.xlu0 %v3737
      %v3739 = vpop.xlane.xlu0 %3738
      %v3740 = vsel %vm1159, %v3666, 0.0
      %3741 = vadd.xlane.f32.xlu0 %v3740
      %v3742 = vpop.xlane.xlu0 %3741
      %v3743 = vsel %vm3586, %v3667, 0.0
      %3744 = vadd.xlane.f32.xlu0 %v3743
      %v3745 = vpop.xlane.xlu0 %3744
      %v3746 = vmul.f32 %v3670, %v1319
      %v3747 = vmul.f32 %v3673, %v1319
      %v3748 = vmul.f32 %v3676, %v1319
      %v3749 = vmul.f32 %v3679, %v1319
      %v3750 = vmul.f32 %v3682, %v1319
      %v3751 = vmul.f32 %v3685, %v1319
      %v3752 = vmul.f32 %v3688, %v1319
      %v3753 = vmul.f32 %v3691, %v1319
      %v3754 = vmul.f32 %v3694, %v1319
      %v3755 = vmul.f32 %v3697, %v1319
      %v3756 = vmul.f32 %v3700, %v1319
      %v3757 = vmul.f32 %v3703, %v1319
      %v3758 = vmul.f32 %v3706, %v1319
      %v3759 = vmul.f32 %v3709, %v1319
      %v3760 = vmul.f32 %v3712, %v1319
      %v3761 = vmul.f32 %v3715, %v1319
      %v3762 = vmul.f32 %v3718, %v1319
      %v3763 = vmul.f32 %v3721, %v1319
      %v3764 = vmul.f32 %v3724, %v1319
      %v3765 = vmul.f32 %v3727, %v1319
      %v3766 = vmul.f32 %v3730, %v1319
      %v3767 = vmul.f32 %v3733, %v1319
      %v3768 = vmul.f32 %v3736, %v1319
      %v3769 = vmul.f32 %v3739, %v1319
      %v3770 = vmul.f32 %v3742, %v1319
      %v3771 = vmul.f32 %v3745, %v1319
      %v3772 = vadd.f32 %v3746, 1e-05
      %v3773 = vadd.f32 %v3747, 1e-05
      %v3774 = vadd.f32 %v3748, 1e-05
      %v3775 = vadd.f32 %v3749, 1e-05
      %v3776 = vadd.f32 %v3750, 1e-05
      %v3777 = vadd.f32 %v3751, 1e-05
      %v3778 = vadd.f32 %v3752, 1e-05
      %v3779 = vadd.f32 %v3753, 1e-05
      %v3780 = vadd.f32 %v3754, 1e-05
      %v3781 = vadd.f32 %v3755, 1e-05
      %v3782 = vadd.f32 %v3756, 1e-05
      %v3783 = vadd.f32 %v3757, 1e-05
      %v3784 = vadd.f32 %v3758, 1e-05
      %v3785 = vadd.f32 %v3759, 1e-05
      %v3786 = vadd.f32 %v3760, 1e-05
      %v3787 = vadd.f32 %v3761, 1e-05
      %v3788 = vadd.f32 %v3762, 1e-05
      %v3789 = vadd.f32 %v3763, 1e-05
      %v3790 = vadd.f32 %v3764, 1e-05
      %v3791 = vadd.f32 %v3765, 1e-05
      %v3792 = vadd.f32 %v3766, 1e-05
      %v3793 = vadd.f32 %v3767, 1e-05
      %v3794 = vadd.f32 %v3768, 1e-05
      %v3795 = vadd.f32 %v3769, 1e-05
      %v3796 = vadd.f32 %v3770, 1e-05
      %v3797 = vadd.f32 %v3771, 1e-05
      %v3798 = vrsqrt.pop %v3772
      %v3799 = vmul.f32 %v3798, %v3772
      %v3800 = vmul.f32 %v3799, %v3798
      %v3801 = vmul.f32 0.5, %v3800
      %v3802 = vsub.f32 1.5, %v3801
      %v3803 = vmul.f32 %v3798, %v3802
      %vm3804 = vweird.f32 %v3772
      %vm3805 = vweird.f32 %v3798
      %vm3806 = vmor %vm3804, %vm3805
      %v3807 = vsel %vm3806, %v3798, %v3803
      %v3808 = vrsqrt.pop %v3773
      %v3809 = vmul.f32 %v3808, %v3773
      %v3810 = vmul.f32 %v3809, %v3808
      %v3811 = vmul.f32 0.5, %v3810
      %v3812 = vsub.f32 1.5, %v3811
      %v3813 = vmul.f32 %v3808, %v3812
      %vm3814 = vweird.f32 %v3773
      %vm3815 = vweird.f32 %v3808
      %vm3816 = vmor %vm3814, %vm3815
      %v3817 = vsel %vm3816, %v3808, %v3813
      %v3818 = vrsqrt.pop %v3774
      %v3819 = vmul.f32 %v3818, %v3774
      %v3820 = vmul.f32 %v3819, %v3818
      %v3821 = vmul.f32 0.5, %v3820
      %v3822 = vsub.f32 1.5, %v3821
      %v3823 = vmul.f32 %v3818, %v3822
      %vm3824 = vweird.f32 %v3774
      %vm3825 = vweird.f32 %v3818
      %vm3826 = vmor %vm3824, %vm3825
      %v3827 = vsel %vm3826, %v3818, %v3823
      %v3828 = vrsqrt.pop %v3775
      %v3829 = vmul.f32 %v3828, %v3775
      %v3830 = vmul.f32 %v3829, %v3828
      %v3831 = vmul.f32 0.5, %v3830
      %v3832 = vsub.f32 1.5, %v3831
      %v3833 = vmul.f32 %v3828, %v3832
      %vm3834 = vweird.f32 %v3775
      %vm3835 = vweird.f32 %v3828
      %vm3836 = vmor %vm3834, %vm3835
      %v3837 = vsel %vm3836, %v3828, %v3833
      %v3838 = vrsqrt.pop %v3776
      %v3839 = vmul.f32 %v3838, %v3776
      %v3840 = vmul.f32 %v3839, %v3838
      %v3841 = vmul.f32 0.5, %v3840
      %v3842 = vsub.f32 1.5, %v3841
      %v3843 = vmul.f32 %v3838, %v3842
      %vm3844 = vweird.f32 %v3776
      %vm3845 = vweird.f32 %v3838
      %vm3846 = vmor %vm3844, %vm3845
      %v3847 = vsel %vm3846, %v3838, %v3843
      %v3848 = vrsqrt.pop %v3777
      %v3849 = vmul.f32 %v3848, %v3777
      %v3850 = vmul.f32 %v3849, %v3848
      %v3851 = vmul.f32 0.5, %v3850
      %v3852 = vsub.f32 1.5, %v3851
      %v3853 = vmul.f32 %v3848, %v3852
      %vm3854 = vweird.f32 %v3777
      %vm3855 = vweird.f32 %v3848
      %vm3856 = vmor %vm3854, %vm3855
      %v3857 = vsel %vm3856, %v3848, %v3853
      %v3858 = vrsqrt.pop %v3778
      %v3859 = vmul.f32 %v3858, %v3778
      %v3860 = vmul.f32 %v3859, %v3858
      %v3861 = vmul.f32 0.5, %v3860
      %v3862 = vsub.f32 1.5, %v3861
      %v3863 = vmul.f32 %v3858, %v3862
      %vm3864 = vweird.f32 %v3778
      %vm3865 = vweird.f32 %v3858
      %vm3866 = vmor %vm3864, %vm3865
      %v3867 = vsel %vm3866, %v3858, %v3863
      %v3868 = vrsqrt.pop %v3779
      %v3869 = vmul.f32 %v3868, %v3779
      %v3870 = vmul.f32 %v3869, %v3868
      %v3871 = vmul.f32 0.5, %v3870
      %v3872 = vsub.f32 1.5, %v3871
      %v3873 = vmul.f32 %v3868, %v3872
      %vm3874 = vweird.f32 %v3779
      %vm3875 = vweird.f32 %v3868
      %vm3876 = vmor %vm3874, %vm3875
      %v3877 = vsel %vm3876, %v3868, %v3873
      %v3878 = vrsqrt.pop %v3780
      %v3879 = vmul.f32 %v3878, %v3780
      %v3880 = vmul.f32 %v3879, %v3878
      %v3881 = vmul.f32 0.5, %v3880
      %v3882 = vsub.f32 1.5, %v3881
      %v3883 = vmul.f32 %v3878, %v3882
      %vm3884 = vweird.f32 %v3780
      %vm3885 = vweird.f32 %v3878
      %vm3886 = vmor %vm3884, %vm3885
      %v3887 = vsel %vm3886, %v3878, %v3883
      %v3888 = vrsqrt.pop %v3781
      %v3889 = vmul.f32 %v3888, %v3781
      %v3890 = vmul.f32 %v3889, %v3888
      %v3891 = vmul.f32 0.5, %v3890
      %v3892 = vsub.f32 1.5, %v3891
      %v3893 = vmul.f32 %v3888, %v3892
      %vm3894 = vweird.f32 %v3781
      %vm3895 = vweird.f32 %v3888
      %vm3896 = vmor %vm3894, %vm3895
      %v3897 = vsel %vm3896, %v3888, %v3893
      %v3898 = vrsqrt.pop %v3782
      %v3899 = vmul.f32 %v3898, %v3782
      %v3900 = vmul.f32 %v3899, %v3898
      %v3901 = vmul.f32 0.5, %v3900
      %v3902 = vsub.f32 1.5, %v3901
      %v3903 = vmul.f32 %v3898, %v3902
      %vm3904 = vweird.f32 %v3782
      %vm3905 = vweird.f32 %v3898
      %vm3906 = vmor %vm3904, %vm3905
      %v3907 = vsel %vm3906, %v3898, %v3903
      %v3908 = vrsqrt.pop %v3783
      %v3909 = vmul.f32 %v3908, %v3783
      %v3910 = vmul.f32 %v3909, %v3908
      %v3911 = vmul.f32 0.5, %v3910
      %v3912 = vsub.f32 1.5, %v3911
      %v3913 = vmul.f32 %v3908, %v3912
      %vm3914 = vweird.f32 %v3783
      %vm3915 = vweird.f32 %v3908
      %vm3916 = vmor %vm3914, %vm3915
      %v3917 = vsel %vm3916, %v3908, %v3913
      %v3918 = vrsqrt.pop %v3784
      %v3919 = vmul.f32 %v3918, %v3784
      %v3920 = vmul.f32 %v3919, %v3918
      %v3921 = vmul.f32 0.5, %v3920
      %v3922 = vsub.f32 1.5, %v3921
      %v3923 = vmul.f32 %v3918, %v3922
      %vm3924 = vweird.f32 %v3784
      %vm3925 = vweird.f32 %v3918
      %vm3926 = vmor %vm3924, %vm3925
      %v3927 = vsel %vm3926, %v3918, %v3923
      %v3928 = vrsqrt.pop %v3785
      %v3929 = vmul.f32 %v3928, %v3785
      %v3930 = vmul.f32 %v3929, %v3928
      %v3931 = vmul.f32 0.5, %v3930
      %v3932 = vsub.f32 1.5, %v3931
      %v3933 = vmul.f32 %v3928, %v3932
      %vm3934 = vweird.f32 %v3785
      %vm3935 = vweird.f32 %v3928
      %vm3936 = vmor %vm3934, %vm3935
      %v3937 = vsel %vm3936, %v3928, %v3933
      %v3938 = vrsqrt.pop %v3786
      %v3939 = vmul.f32 %v3938, %v3786
      %v3940 = vmul.f32 %v3939, %v3938
      %v3941 = vmul.f32 0.5, %v3940
      %v3942 = vsub.f32 1.5, %v3941
      %v3943 = vmul.f32 %v3938, %v3942
      %vm3944 = vweird.f32 %v3786
      %vm3945 = vweird.f32 %v3938
      %vm3946 = vmor %vm3944, %vm3945
      %v3947 = vsel %vm3946, %v3938, %v3943
      %v3948 = vrsqrt.pop %v3787
      %v3949 = vmul.f32 %v3948, %v3787
      %v3950 = vmul.f32 %v3949, %v3948
      %v3951 = vmul.f32 0.5, %v3950
      %v3952 = vsub.f32 1.5, %v3951
      %v3953 = vmul.f32 %v3948, %v3952
      %vm3954 = vweird.f32 %v3787
      %vm3955 = vweird.f32 %v3948
      %vm3956 = vmor %vm3954, %vm3955
      %v3957 = vsel %vm3956, %v3948, %v3953
      %v3958 = vrsqrt.pop %v3788
      %v3959 = vmul.f32 %v3958, %v3788
      %v3960 = vmul.f32 %v3959, %v3958
      %v3961 = vmul.f32 0.5, %v3960
      %v3962 = vsub.f32 1.5, %v3961
      %v3963 = vmul.f32 %v3958, %v3962
      %vm3964 = vweird.f32 %v3788
      %vm3965 = vweird.f32 %v3958
      %vm3966 = vmor %vm3964, %vm3965
      %v3967 = vsel %vm3966, %v3958, %v3963
      %v3968 = vrsqrt.pop %v3789
      %v3969 = vmul.f32 %v3968, %v3789
      %v3970 = vmul.f32 %v3969, %v3968
      %v3971 = vmul.f32 0.5, %v3970
      %v3972 = vsub.f32 1.5, %v3971
      %v3973 = vmul.f32 %v3968, %v3972
      %vm3974 = vweird.f32 %v3789
      %vm3975 = vweird.f32 %v3968
      %vm3976 = vmor %vm3974, %vm3975
      %v3977 = vsel %vm3976, %v3968, %v3973
      %v3978 = vrsqrt.pop %v3790
      %v3979 = vmul.f32 %v3978, %v3790
      %v3980 = vmul.f32 %v3979, %v3978
      %v3981 = vmul.f32 0.5, %v3980
      %v3982 = vsub.f32 1.5, %v3981
      %v3983 = vmul.f32 %v3978, %v3982
      %vm3984 = vweird.f32 %v3790
      %vm3985 = vweird.f32 %v3978
      %vm3986 = vmor %vm3984, %vm3985
      %v3987 = vsel %vm3986, %v3978, %v3983
      %v3988 = vrsqrt.pop %v3791
      %v3989 = vmul.f32 %v3988, %v3791
      %v3990 = vmul.f32 %v3989, %v3988
      %v3991 = vmul.f32 0.5, %v3990
      %v3992 = vsub.f32 1.5, %v3991
      %v3993 = vmul.f32 %v3988, %v3992
      %vm3994 = vweird.f32 %v3791
      %vm3995 = vweird.f32 %v3988
      %vm3996 = vmor %vm3994, %vm3995
      %v3997 = vsel %vm3996, %v3988, %v3993
      %v3998 = vrsqrt.pop %v3792
      %v3999 = vmul.f32 %v3998, %v3792
      %v4000 = vmul.f32 %v3999, %v3998
      %v4001 = vmul.f32 0.5, %v4000
      %v4002 = vsub.f32 1.5, %v4001
      %v4003 = vmul.f32 %v3998, %v4002
      %vm4004 = vweird.f32 %v3792
      %vm4005 = vweird.f32 %v3998
      %vm4006 = vmor %vm4004, %vm4005
      %v4007 = vsel %vm4006, %v3998, %v4003
      %v4008 = vrsqrt.pop %v3793
      %v4009 = vmul.f32 %v4008, %v3793
      %v4010 = vmul.f32 %v4009, %v4008
      %v4011 = vmul.f32 0.5, %v4010
      %v4012 = vsub.f32 1.5, %v4011
      %v4013 = vmul.f32 %v4008, %v4012
      %vm4014 = vweird.f32 %v3793
      %vm4015 = vweird.f32 %v4008
      %vm4016 = vmor %vm4014, %vm4015
      %v4017 = vsel %vm4016, %v4008, %v4013
      %v4018 = vrsqrt.pop %v3794
      %v4019 = vmul.f32 %v4018, %v3794
      %v4020 = vmul.f32 %v4019, %v4018
      %v4021 = vmul.f32 0.5, %v4020
      %v4022 = vsub.f32 1.5, %v4021
      %v4023 = vmul.f32 %v4018, %v4022
      %vm4024 = vweird.f32 %v3794
      %vm4025 = vweird.f32 %v4018
      %vm4026 = vmor %vm4024, %vm4025
      %v4027 = vsel %vm4026, %v4018, %v4023
      %v4028 = vrsqrt.pop %v3795
      %v4029 = vmul.f32 %v4028, %v3795
      %v4030 = vmul.f32 %v4029, %v4028
      %v4031 = vmul.f32 0.5, %v4030
      %v4032 = vsub.f32 1.5, %v4031
      %v4033 = vmul.f32 %v4028, %v4032
      %vm4034 = vweird.f32 %v3795
      %vm4035 = vweird.f32 %v4028
      %vm4036 = vmor %vm4034, %vm4035
      %v4037 = vsel %vm4036, %v4028, %v4033
      %v4038 = vrsqrt.pop %v3796
      %v4039 = vmul.f32 %v4038, %v3796
      %v4040 = vmul.f32 %v4039, %v4038
      %v4041 = vmul.f32 0.5, %v4040
      %v4042 = vsub.f32 1.5, %v4041
      %v4043 = vmul.f32 %v4038, %v4042
      %vm4044 = vweird.f32 %v3796
      %vm4045 = vweird.f32 %v4038
      %vm4046 = vmor %vm4044, %vm4045
      %v4047 = vsel %vm4046, %v4038, %v4043
      %v4048 = vrsqrt.pop %v3797
      %v4049 = vmul.f32 %v4048, %v3797
      %v4050 = vmul.f32 %v4049, %v4048
      %v4051 = vmul.f32 0.5, %v4050
      %v4052 = vsub.f32 1.5, %v4051
      %v4053 = vmul.f32 %v4048, %v4052
      %vm4054 = vweird.f32 %v3797
      %vm4055 = vweird.f32 %v4048
      %vm4056 = vmor %vm4054, %vm4055
      %v4057 = vsel %vm4056, %v4048, %v4053
      %v4058 = vmul.f32 %v3616, %v3807
      %v4059 = vmul.f32 %v3617, %v3817
      %v4060 = vmul.f32 %v3618, %v3827
      %v4061 = vmul.f32 %v3619, %v3837
      %v4062 = vmul.f32 %v3620, %v3847
      %v4063 = vmul.f32 %v3621, %v3857
      %v4064 = vmul.f32 %v3622, %v3867
      %v4065 = vmul.f32 %v3623, %v3877
      %v4066 = vmul.f32 %v3624, %v3887
      %v4067 = vmul.f32 %v3625, %v3897
      %v4068 = vmul.f32 %v3626, %v3907
      %v4069 = vmul.f32 %v3627, %v3917
      %v4070 = vmul.f32 %v3628, %v3927
      %v4071 = vmul.f32 %v3629, %v3937
      %v4072 = vmul.f32 %v3630, %v3947
      %v4073 = vmul.f32 %v3631, %v3957
      %v4074 = vmul.f32 %v3632, %v3967
      %v4075 = vmul.f32 %v3633, %v3977
      %v4076 = vmul.f32 %v3634, %v3987
      %v4077 = vmul.f32 %v3635, %v3997
      %v4078 = vmul.f32 %v3636, %v4007
      %v4079 = vmul.f32 %v3637, %v4017
      %v4080 = vmul.f32 %v3638, %v4027
      %v4081 = vmul.f32 %v3639, %v4037
      %v4082 = vmul.f32 %v3640, %v4047
      %v4083 = vmul.f32 %v3641, %v4057
      %v4084 = vperm.slane %v3509, 0
      %v4085 = vmul.f32 %v4058, %v4084
      %v4086 = vmul.f32 %v4059, %v4084
      %v4087 = vmul.f32 %v4060, %v4084
      %v4088 = vmul.f32 %v4061, %v4084
      %v4089 = vmul.f32 %v4062, %v4084
      %v4090 = vmul.f32 %v4063, %v4084
      %v4091 = vmul.f32 %v4064, %v4084
      %v4092 = vmul.f32 %v4065, %v4084
      %v4093 = vmul.f32 %v4066, %v4084
      %v4094 = vmul.f32 %v4067, %v4084
      %v4095 = vmul.f32 %v4068, %v4084
      %v4096 = vmul.f32 %v4069, %v4084
      %v4097 = vmul.f32 %v4070, %v4084
      %v4098 = vmul.f32 %v4071, %v4084
      %v4099 = vmul.f32 %v4072, %v4084
      %v4100 = vmul.f32 %v4073, %v4084
      %v4101 = vmul.f32 %v4074, %v4084
      %v4102 = vmul.f32 %v4075, %v4084
      %v4103 = vmul.f32 %v4076, %v4084
      %v4104 = vmul.f32 %v4077, %v4084
      %v4105 = vmul.f32 %v4078, %v4084
      %v4106 = vmul.f32 %v4079, %v4084
      %v4107 = vmul.f32 %v4080, %v4084
      %v4108 = vmul.f32 %v4081, %v4084
      %v4109 = vmul.f32 %v4082, %v4084
      %v4110 = vmul.f32 %v4083, %v4084
      %v4111 = vperm.slane %v3510, 0
      %v4112 = vadd.f32 %v4085, %v4111
      %v4113 = vadd.f32 %v4086, %v4111
      %v4114 = vadd.f32 %v4087, %v4111
      %v4115 = vadd.f32 %v4088, %v4111
      %v4116 = vadd.f32 %v4089, %v4111
      %v4117 = vadd.f32 %v4090, %v4111
      %v4118 = vadd.f32 %v4091, %v4111
      %v4119 = vadd.f32 %v4092, %v4111
      %v4120 = vadd.f32 %v4093, %v4111
      %v4121 = vadd.f32 %v4094, %v4111
      %v4122 = vadd.f32 %v4095, %v4111
      %v4123 = vadd.f32 %v4096, %v4111
      %v4124 = vadd.f32 %v4097, %v4111
      %v4125 = vadd.f32 %v4098, %v4111
      %v4126 = vadd.f32 %v4099, %v4111
      %v4127 = vadd.f32 %v4100, %v4111
      %v4128 = vadd.f32 %v4101, %v4111
      %v4129 = vadd.f32 %v4102, %v4111
      %v4130 = vadd.f32 %v4103, %v4111
      %v4131 = vadd.f32 %v4104, %v4111
      %v4132 = vadd.f32 %v4105, %v4111
      %v4133 = vadd.f32 %v4106, %v4111
      %v4134 = vadd.f32 %v4107, %v4111
      %v4135 = vadd.f32 %v4108, %v4111
      %v4136 = vadd.f32 %v4109, %v4111
      %v4137 = vadd.f32 %v4110, %v4111
      %v4138 = vmul.f32 %v4112, 0.5
      %v4139 = vmul.f32 %v4113, 0.5
      %v4140 = vmul.f32 %v4114, 0.5
      %v4141 = vmul.f32 %v4115, 0.5
      %v4142 = vmul.f32 %v4116, 0.5
      %v4143 = vmul.f32 %v4117, 0.5
      %v4144 = vmul.f32 %v4118, 0.5
      %v4145 = vmul.f32 %v4119, 0.5
      %v4146 = vmul.f32 %v4120, 0.5
      %v4147 = vmul.f32 %v4121, 0.5
      %v4148 = vmul.f32 %v4122, 0.5
      %v4149 = vmul.f32 %v4123, 0.5
      %v4150 = vmul.f32 %v4124, 0.5
      %v4151 = vmul.f32 %v4125, 0.5
      %v4152 = vmul.f32 %v4126, 0.5
      %v4153 = vmul.f32 %v4127, 0.5
      %v4154 = vmul.f32 %v4128, 0.5
      %v4155 = vmul.f32 %v4129, 0.5
      %v4156 = vmul.f32 %v4130, 0.5
      %v4157 = vmul.f32 %v4131, 0.5
      %v4158 = vmul.f32 %v4132, 0.5
      %v4159 = vmul.f32 %v4133, 0.5
      %v4160 = vmul.f32 %v4134, 0.5
      %v4161 = vmul.f32 %v4135, 0.5
      %v4162 = vmul.f32 %v4136, 0.5
      %v4163 = vmul.f32 %v4137, 0.5
      %v4164 = vmul.f32 %v4112, 0.044715
      %v4165 = vmul.f32 %v4113, 0.044715
      %v4166 = vmul.f32 %v4114, 0.044715
      %v4167 = vmul.f32 %v4115, 0.044715
      %v4168 = vmul.f32 %v4116, 0.044715
      %v4169 = vmul.f32 %v4117, 0.044715
      %v4170 = vmul.f32 %v4118, 0.044715
      %v4171 = vmul.f32 %v4119, 0.044715
      %v4172 = vmul.f32 %v4120, 0.044715
      %v4173 = vmul.f32 %v4121, 0.044715
      %v4174 = vmul.f32 %v4122, 0.044715
      %v4175 = vmul.f32 %v4123, 0.044715
      %v4176 = vmul.f32 %v4124, 0.044715
      %v4177 = vmul.f32 %v4125, 0.044715
      %v4178 = vmul.f32 %v4126, 0.044715
      %v4179 = vmul.f32 %v4127, 0.044715
      %v4180 = vmul.f32 %v4128, 0.044715
      %v4181 = vmul.f32 %v4129, 0.044715
      %v4182 = vmul.f32 %v4130, 0.044715
      %v4183 = vmul.f32 %v4131, 0.044715
      %v4184 = vmul.f32 %v4132, 0.044715
      %v4185 = vmul.f32 %v4133, 0.044715
      %v4186 = vmul.f32 %v4134, 0.044715
      %v4187 = vmul.f32 %v4135, 0.044715
      %v4188 = vmul.f32 %v4136, 0.044715
      %v4189 = vmul.f32 %v4137, 0.044715
      %v4190 = vmul.f32 %v4164, %v4112
      %v4191 = vmul.f32 %v4165, %v4113
      %v4192 = vmul.f32 %v4166, %v4114
      %v4193 = vmul.f32 %v4167, %v4115
      %v4194 = vmul.f32 %v4168, %v4116
      %v4195 = vmul.f32 %v4169, %v4117
      %v4196 = vmul.f32 %v4170, %v4118
      %v4197 = vmul.f32 %v4171, %v4119
      %v4198 = vmul.f32 %v4172, %v4120
      %v4199 = vmul.f32 %v4173, %v4121
      %v4200 = vmul.f32 %v4174, %v4122
      %v4201 = vmul.f32 %v4175, %v4123
      %v4202 = vmul.f32 %v4176, %v4124
      %v4203 = vmul.f32 %v4177, %v4125
      %v4204 = vmul.f32 %v4178, %v4126
      %v4205 = vmul.f32 %v4179, %v4127
      %v4206 = vmul.f32 %v4180, %v4128
      %v4207 = vmul.f32 %v4181, %v4129
      %v4208 = vmul.f32 %v4182, %v4130
      %v4209 = vmul.f32 %v4183, %v4131
      %v4210 = vmul.f32 %v4184, %v4132
      %v4211 = vmul.f32 %v4185, %v4133
      %v4212 = vmul.f32 %v4186, %v4134
      %v4213 = vmul.f32 %v4187, %v4135
      %v4214 = vmul.f32 %v4188, %v4136
      %v4215 = vmul.f32 %v4189, %v4137
      %v4216 = vmul.f32 %v4190, %v4112
      %v4217 = vmul.f32 %v4191, %v4113
      %v4218 = vmul.f32 %v4192, %v4114
      %v4219 = vmul.f32 %v4193, %v4115
      %v4220 = vmul.f32 %v4194, %v4116
      %v4221 = vmul.f32 %v4195, %v4117
      %v4222 = vmul.f32 %v4196, %v4118
      %v4223 = vmul.f32 %v4197, %v4119
      %v4224 = vmul.f32 %v4198, %v4120
      %v4225 = vmul.f32 %v4199, %v4121
      %v4226 = vmul.f32 %v4200, %v4122
      %v4227 = vmul.f32 %v4201, %v4123
      %v4228 = vmul.f32 %v4202, %v4124
      %v4229 = vmul.f32 %v4203, %v4125
      %v4230 = vmul.f32 %v4204, %v4126
      %v4231 = vmul.f32 %v4205, %v4127
      %v4232 = vmul.f32 %v4206, %v4128
      %v4233 = vmul.f32 %v4207, %v4129
      %v4234 = vmul.f32 %v4208, %v4130
      %v4235 = vmul.f32 %v4209, %v4131
      %v4236 = vmul.f32 %v4210, %v4132
      %v4237 = vmul.f32 %v4211, %v4133
      %v4238 = vmul.f32 %v4212, %v4134
      %v4239 = vmul.f32 %v4213, %v4135
      %v4240 = vmul.f32 %v4214, %v4136
      %v4241 = vmul.f32 %v4215, %v4137
      %v4242 = vadd.f32 %v4112, %v4216
      %v4243 = vadd.f32 %v4113, %v4217
      %v4244 = vadd.f32 %v4114, %v4218
      %v4245 = vadd.f32 %v4115, %v4219
      %v4246 = vadd.f32 %v4116, %v4220
      %v4247 = vadd.f32 %v4117, %v4221
      %v4248 = vadd.f32 %v4118, %v4222
      %v4249 = vadd.f32 %v4119, %v4223
      %v4250 = vadd.f32 %v4120, %v4224
      %v4251 = vadd.f32 %v4121, %v4225
      %v4252 = vadd.f32 %v4122, %v4226
      %v4253 = vadd.f32 %v4123, %v4227
      %v4254 = vadd.f32 %v4124, %v4228
      %v4255 = vadd.f32 %v4125, %v4229
      %v4256 = vadd.f32 %v4126, %v4230
      %v4257 = vadd.f32 %v4127, %v4231
      %v4258 = vadd.f32 %v4128, %v4232
      %v4259 = vadd.f32 %v4129, %v4233
      %v4260 = vadd.f32 %v4130, %v4234
      %v4261 = vadd.f32 %v4131, %v4235
      %v4262 = vadd.f32 %v4132, %v4236
      %v4263 = vadd.f32 %v4133, %v4237
      %v4264 = vadd.f32 %v4134, %v4238
      %v4265 = vadd.f32 %v4135, %v4239
      %v4266 = vadd.f32 %v4136, %v4240
      %v4267 = vadd.f32 %v4137, %v4241
      %v4268 = vmul.f32 %v4242, 0.7978846
      %v4269 = vmul.f32 %v4243, 0.7978846
      %v4270 = vmul.f32 %v4244, 0.7978846
      %v4271 = vmul.f32 %v4245, 0.7978846
      %v4272 = vmul.f32 %v4246, 0.7978846
      %v4273 = vmul.f32 %v4247, 0.7978846
      %v4274 = vmul.f32 %v4248, 0.7978846
      %v4275 = vmul.f32 %v4249, 0.7978846
      %v4276 = vmul.f32 %v4250, 0.7978846
      %v4277 = vmul.f32 %v4251, 0.7978846
      %v4278 = vmul.f32 %v4252, 0.7978846
      %v4279 = vmul.f32 %v4253, 0.7978846
      %v4280 = vmul.f32 %v4254, 0.7978846
      %v4281 = vmul.f32 %v4255, 0.7978846
      %v4282 = vmul.f32 %v4256, 0.7978846
      %v4283 = vmul.f32 %v4257, 0.7978846
      %v4284 = vmul.f32 %v4258, 0.7978846
      %v4285 = vmul.f32 %v4259, 0.7978846
      %v4286 = vmul.f32 %v4260, 0.7978846
      %v4287 = vmul.f32 %v4261, 0.7978846
      %v4288 = vmul.f32 %v4262, 0.7978846
      %v4289 = vmul.f32 %v4263, 0.7978846
      %v4290 = vmul.f32 %v4264, 0.7978846
      %v4291 = vmul.f32 %v4265, 0.7978846
      %v4292 = vmul.f32 %v4266, 0.7978846
      %v4293 = vmul.f32 %v4267, 0.7978846
      %v4294 = vtanh.pop %v4268
      %v4295 = vtanh.pop %v4269
      %v4296 = vtanh.pop %v4270
      %v4297 = vtanh.pop %v4271
      %v4298 = vtanh.pop %v4272
      %v4299 = vtanh.pop %v4273
      %v4300 = vtanh.pop %v4274
      %v4301 = vtanh.pop %v4275
      %v4302 = vtanh.pop %v4276
      %v4303 = vtanh.pop %v4277
      %v4304 = vtanh.pop %v4278
      %v4305 = vtanh.pop %v4279
      %v4306 = vtanh.pop %v4280
      %v4307 = vtanh.pop %v4281
      %v4308 = vtanh.pop %v4282
      %v4309 = vtanh.pop %v4283
      %v4310 = vtanh.pop %v4284
      %v4311 = vtanh.pop %v4285
      %v4312 = vtanh.pop %v4286
      %v4313 = vtanh.pop %v4287
      %v4314 = vtanh.pop %v4288
      %v4315 = vtanh.pop %v4289
      %v4316 = vtanh.pop %v4290
      %v4317 = vtanh.pop %v4291
      %v4318 = vtanh.pop %v4292
      %v4319 = vtanh.pop %v4293
      %v4320 = vadd.f32 %v4294, 1.0
      %v4321 = vadd.f32 %v4295, 1.0
      %v4322 = vadd.f32 %v4296, 1.0
      %v4323 = vadd.f32 %v4297, 1.0
      %v4324 = vadd.f32 %v4298, 1.0
      %v4325 = vadd.f32 %v4299, 1.0
      %v4326 = vadd.f32 %v4300, 1.0
      %v4327 = vadd.f32 %v4301, 1.0
      %v4328 = vadd.f32 %v4302, 1.0
      %v4329 = vadd.f32 %v4303, 1.0
      %v4330 = vadd.f32 %v4304, 1.0
      %v4331 = vadd.f32 %v4305, 1.0
      %v4332 = vadd.f32 %v4306, 1.0
      %v4333 = vadd.f32 %v4307, 1.0
      %v4334 = vadd.f32 %v4308, 1.0
      %v4335 = vadd.f32 %v4309, 1.0
      %v4336 = vadd.f32 %v4310, 1.0
      %v4337 = vadd.f32 %v4311, 1.0
      %v4338 = vadd.f32 %v4312, 1.0
      %v4339 = vadd.f32 %v4313, 1.0
      %v4340 = vadd.f32 %v4314, 1.0
      %v4341 = vadd.f32 %v4315, 1.0
      %v4342 = vadd.f32 %v4316, 1.0
      %v4343 = vadd.f32 %v4317, 1.0
      %v4344 = vadd.f32 %v4318, 1.0
      %v4345 = vadd.f32 %v4319, 1.0
      %v4346 = vmul.f32 %v4138, %v4320
      %v4347 = vmul.f32 %v4139, %v4321
      %v4348 = vmul.f32 %v4140, %v4322
      %v4349 = vmul.f32 %v4141, %v4323
      %v4350 = vmul.f32 %v4142, %v4324
      %v4351 = vmul.f32 %v4143, %v4325
      %v4352 = vmul.f32 %v4144, %v4326
      %v4353 = vmul.f32 %v4145, %v4327
      %v4354 = vmul.f32 %v4146, %v4328
      %v4355 = vmul.f32 %v4147, %v4329
      %v4356 = vmul.f32 %v4148, %v4330
      %v4357 = vmul.f32 %v4149, %v4331
      %v4358 = vmul.f32 %v4150, %v4332
      %v4359 = vmul.f32 %v4151, %v4333
      %v4360 = vmul.f32 %v4152, %v4334
      %v4361 = vmul.f32 %v4153, %v4335
      %v4362 = vmul.f32 %v4154, %v4336
      %v4363 = vmul.f32 %v4155, %v4337
      %v4364 = vmul.f32 %v4156, %v4338
      %v4365 = vmul.f32 %v4157, %v4339
      %v4366 = vmul.f32 %v4158, %v4340
      %v4367 = vmul.f32 %v4159, %v4341
      %v4368 = vmul.f32 %v4160, %v4342
      %v4369 = vmul.f32 %v4161, %v4343
      %v4370 = vmul.f32 %v4162, %v4344
      %v4371 = vmul.f32 %v4163, %v4345
      %4372 = vst.msk [vmem:[#allocation3] sm:$0xff] %vm1159, %v4346
      %4373 = vst.msk [vmem:[#allocation3 + $0x8] sm:$0xff] %vm1159, %v4347
      %4374 = vst.msk [vmem:[#allocation3 + $0x10] sm:$0xff] %vm1159, %v4348
      %4375 = vst.msk [vmem:[#allocation3 + $0x18] sm:$0xff] %vm1159, %v4349
      %4376 = vst.msk [vmem:[#allocation3 + $0x20] sm:$0xff] %vm1159, %v4350
      %4377 = vst.msk [vmem:[#allocation3 + $0x28] sm:$0xff] %vm1159, %v4351
      %4378 = vst.msk [vmem:[#allocation3 + $0x30] sm:$0xff] %vm1159, %v4352
      %4379 = vst.msk [vmem:[#allocation3 + $0x38] sm:$0xff] %vm1159, %v4353
      %4380 = vst.msk [vmem:[#allocation3 + $0x40] sm:$0xff] %vm1159, %v4354
      %4381 = vst.msk [vmem:[#allocation3 + $0x48] sm:$0xff] %vm1159, %v4355
      %4382 = vst.msk [vmem:[#allocation3 + $0x50] sm:$0xff] %vm1159, %v4356
      %4383 = vst.msk [vmem:[#allocation3 + $0x58] sm:$0xff] %vm1159, %v4357
      %4384 = vst.msk [vmem:[#allocation3 + $0x60] sm:$0xff] %vm1159, %v4358
      %4385 = vst.msk [vmem:[#allocation3 + $0x68] sm:$0xff] %vm1159, %v4359
      %4386 = vst.msk [vmem:[#allocation3 + $0x70] sm:$0xff] %vm1159, %v4360
      %4387 = vst.msk [vmem:[#allocation3 + $0x78] sm:$0xff] %vm1159, %v4361
      %4388 = vst.msk [vmem:[#allocation3 + $0x80] sm:$0xff] %vm1159, %v4362
      %4389 = vst.msk [vmem:[#allocation3 + $0x88] sm:$0xff] %vm1159, %v4363
      %4390 = vst.msk [vmem:[#allocation3 + $0x90] sm:$0xff] %vm1159, %v4364
      %4391 = vst.msk [vmem:[#allocation3 + $0x98] sm:$0xff] %vm1159, %v4365
      %4392 = vst.msk [vmem:[#allocation3 + $0xa0] sm:$0xff] %vm1159, %v4366
      %4393 = vst.msk [vmem:[#allocation3 + $0xa8] sm:$0xff] %vm1159, %v4367
      %4394 = vst.msk [vmem:[#allocation3 + $0xb0] sm:$0xff] %vm1159, %v4368
      %4395 = vst.msk [vmem:[#allocation3 + $0xb8] sm:$0xff] %vm1159, %v4369
      %4396 = vst.msk [vmem:[#allocation3 + $0xc0] sm:$0xff] %vm1159, %v4370
      %4397 = vst.msk [vmem:[#allocation3 + $0xc8] sm:$0x7] %vm3586, %v4371
      %v4398 = vld [vmem:[#allocation3] ss:$2 sm:$0xff]
      %s4399 = scalar_lea.vmem [#allocation3], 16
      %v4400 = vld [vmem:[%s4399] ss:$2 sm:$0xff]
      %s4401 = scalar_lea.vmem [#allocation3], 32
      %v4402 = vld [vmem:[%s4401] ss:$2 sm:$0xff]
      %s4403 = scalar_lea.vmem [#allocation3], 48
      %v4404 = vld [vmem:[%s4403] ss:$2 sm:$0xff]
      %s4405 = scalar_lea.vmem [#allocation3], 64
      %v4406 = vld [vmem:[%s4405] ss:$2 sm:$0xff]
      %s4407 = scalar_lea.vmem [#allocation3], 80
      %v4408 = vld [vmem:[%s4407] ss:$2 sm:$0xff]
      %s4409 = scalar_lea.vmem [#allocation3], 96
      %v4410 = vld [vmem:[%s4409] ss:$2 sm:$0xff]
      %s4411 = scalar_lea.vmem [#allocation3], 112
      %v4412 = vld [vmem:[%s4411] ss:$2 sm:$0xff]
      %s4413 = scalar_lea.vmem [#allocation3], 128
      %v4414 = vld [vmem:[%s4413] ss:$2 sm:$0xff]
      %s4415 = scalar_lea.vmem [#allocation3], 144
      %v4416 = vld [vmem:[%s4415] ss:$2 sm:$0xff]
      %s4417 = scalar_lea.vmem [#allocation3], 160
      %v4418 = vld [vmem:[%s4417] ss:$2 sm:$0xff]
      %s4419 = scalar_lea.vmem [#allocation3], 176
      %v4420 = vld [vmem:[%s4419] ss:$2 sm:$0xff]
      %s4421 = scalar_lea.vmem [#allocation3], 192
      %v4422 = vld [vmem:[%s4421] ss:$2 sm:$0x1f]
      %s4423 = scalar_lea.vmem [#allocation3], 1
      %v4424 = vld [vmem:[%s4423] ss:$2 sm:$0xff]
      %s4425 = scalar_lea.vmem [#allocation3], 17
      %v4426 = vld [vmem:[%s4425] ss:$2 sm:$0xff]
      %s4427 = scalar_lea.vmem [#allocation3], 33
      %v4428 = vld [vmem:[%s4427] ss:$2 sm:$0xff]
      %s4429 = scalar_lea.vmem [#allocation3], 49
      %v4430 = vld [vmem:[%s4429] ss:$2 sm:$0xff]
      %s4431 = scalar_lea.vmem [#allocation3], 65
      %v4432 = vld [vmem:[%s4431] ss:$2 sm:$0xff]
      %s4433 = scalar_lea.vmem [#allocation3], 81
      %v4434 = vld [vmem:[%s4433] ss:$2 sm:$0xff]
      %s4435 = scalar_lea.vmem [#allocation3], 97
      %v4436 = vld [vmem:[%s4435] ss:$2 sm:$0xff]
      %s4437 = scalar_lea.vmem [#allocation3], 113
      %v4438 = vld [vmem:[%s4437] ss:$2 sm:$0xff]
      %s4439 = scalar_lea.vmem [#allocation3], 129
      %v4440 = vld [vmem:[%s4439] ss:$2 sm:$0xff]
      %s4441 = scalar_lea.vmem [#allocation3], 145
      %v4442 = vld [vmem:[%s4441] ss:$2 sm:$0xff]
      %s4443 = scalar_lea.vmem [#allocation3], 161
      %v4444 = vld [vmem:[%s4443] ss:$2 sm:$0xff]
      %s4445 = scalar_lea.vmem [#allocation3], 177
      %v4446 = vld [vmem:[%s4445] ss:$2 sm:$0xff]
      %s4447 = scalar_lea.vmem [#allocation3], 193
      %v4448 = vld [vmem:[%s4447] ss:$2 sm:$0x1f]
      %s4449 = scalar_lea.vmem [#allocation3], 2
      %v4450 = vld [vmem:[%s4449] ss:$2 sm:$0xff]
      %s4451 = scalar_lea.vmem [#allocation3], 18
      %v4452 = vld [vmem:[%s4451] ss:$2 sm:$0xff]
      %s4453 = scalar_lea.vmem [#allocation3], 34
      %v4454 = vld [vmem:[%s4453] ss:$2 sm:$0xff]
      %s4455 = scalar_lea.vmem [#allocation3], 50
      %v4456 = vld [vmem:[%s4455] ss:$2 sm:$0xff]
      %s4457 = scalar_lea.vmem [#allocation3], 66
      %v4458 = vld [vmem:[%s4457] ss:$2 sm:$0xff]
      %s4459 = scalar_lea.vmem [#allocation3], 82
      %v4460 = vld [vmem:[%s4459] ss:$2 sm:$0xff]
      %s4461 = scalar_lea.vmem [#allocation3], 98
      %v4462 = vld [vmem:[%s4461] ss:$2 sm:$0xff]
      %s4463 = scalar_lea.vmem [#allocation3], 114
      %v4464 = vld [vmem:[%s4463] ss:$2 sm:$0xff]
      %s4465 = scalar_lea.vmem [#allocation3], 130
      %v4466 = vld [vmem:[%s4465] ss:$2 sm:$0xff]
      %s4467 = scalar_lea.vmem [#allocation3], 146
      %v4468 = vld [vmem:[%s4467] ss:$2 sm:$0xff]
      %s4469 = scalar_lea.vmem [#allocation3], 162
      %v4470 = vld [vmem:[%s4469] ss:$2 sm:$0xff]
      %s4471 = scalar_lea.vmem [#allocation3], 178
      %v4472 = vld [vmem:[%s4471] ss:$2 sm:$0xff]
      %s4473 = scalar_lea.vmem [#allocation3], 194
      %v4474 = vld [vmem:[%s4473] ss:$2 sm:$0x1f]
      %4488 = vrot.lane.b32.xlu0 %v4424, 32
      %v4489 = vpop.permute.xlu0 %4488
      %4490 = vrot.lane.b32.xlu0 %v4426, 32
      %v4491 = vpop.permute.xlu0 %4490
      %4492 = vrot.lane.b32.xlu0 %v4428, 32
      %v4493 = vpop.permute.xlu0 %4492
      %4494 = vrot.lane.b32.xlu0 %v4430, 32
      %v4495 = vpop.permute.xlu0 %4494
      %4496 = vrot.lane.b32.xlu0 %v4432, 32
      %v4497 = vpop.permute.xlu0 %4496
      %4498 = vrot.lane.b32.xlu0 %v4434, 32
      %v4499 = vpop.permute.xlu0 %4498
      %4500 = vrot.lane.b32.xlu0 %v4436, 32
      %v4501 = vpop.permute.xlu0 %4500
      %4502 = vrot.lane.b32.xlu0 %v4438, 32
      %v4503 = vpop.permute.xlu0 %4502
      %4504 = vrot.lane.b32.xlu0 %v4440, 32
      %v4505 = vpop.permute.xlu0 %4504
      %4506 = vrot.lane.b32.xlu0 %v4442, 32
      %v4507 = vpop.permute.xlu0 %4506
      %4508 = vrot.lane.b32.xlu0 %v4444, 32
      %v4509 = vpop.permute.xlu0 %4508
      %4510 = vrot.lane.b32.xlu0 %v4446, 32
      %v4511 = vpop.permute.xlu0 %4510
      %4512 = vrot.lane.b32.xlu0 %v4448, 32
      %v4513 = vpop.permute.xlu0 %4512
      %4540 = vrot.lane.b32.xlu0 %v4450, 64
      %v4541 = vpop.permute.xlu0 %4540
      %4542 = vrot.lane.b32.xlu0 %v4452, 64
      %v4543 = vpop.permute.xlu0 %4542
      %4544 = vrot.lane.b32.xlu0 %v4454, 64
      %v4545 = vpop.permute.xlu0 %4544
      %4546 = vrot.lane.b32.xlu0 %v4456, 64
      %v4547 = vpop.permute.xlu0 %4546
      %4548 = vrot.lane.b32.xlu0 %v4458, 64
      %v4549 = vpop.permute.xlu0 %4548
      %4550 = vrot.lane.b32.xlu0 %v4460, 64
      %v4551 = vpop.permute.xlu0 %4550
      %4552 = vrot.lane.b32.xlu0 %v4462, 64
      %v4553 = vpop.permute.xlu0 %4552
      %4554 = vrot.lane.b32.xlu0 %v4464, 64
      %v4555 = vpop.permute.xlu0 %4554
      %4556 = vrot.lane.b32.xlu0 %v4466, 64
      %v4557 = vpop.permute.xlu0 %4556
      %4558 = vrot.lane.b32.xlu0 %v4468, 64
      %v4559 = vpop.permute.xlu0 %4558
      %4560 = vrot.lane.b32.xlu0 %v4470, 64
      %v4561 = vpop.permute.xlu0 %4560
      %4562 = vrot.lane.b32.xlu0 %v4472, 64
      %v4563 = vpop.permute.xlu0 %4562
      %4564 = vrot.lane.b32.xlu0 %v4474, 64
      %v4565 = vpop.permute.xlu0 %4564
      %v4579 = vsel %vm1159, %v4398, %v4489
      %v4580 = vsel %vm1159, %v4400, %v4491
      %v4581 = vsel %vm1159, %v4402, %v4493
      %v4582 = vsel %vm1159, %v4404, %v4495
      %v4583 = vsel %vm1159, %v4406, %v4497
      %v4584 = vsel %vm1159, %v4408, %v4499
      %v4585 = vsel %vm1159, %v4410, %v4501
      %v4586 = vsel %vm1159, %v4412, %v4503
      %v4587 = vsel %vm1159, %v4414, %v4505
      %v4588 = vsel %vm1159, %v4416, %v4507
      %v4589 = vsel %vm1159, %v4418, %v4509
      %v4590 = vsel %vm1159, %v4420, %v4511
      %v4591 = vsel %vm1159, %v4422, %v4513
      %v4592 = vsel %vm3292, %v4579, %v4541
      %v4593 = vsel %vm3292, %v4580, %v4543
      %v4594 = vsel %vm3292, %v4581, %v4545
      %v4595 = vsel %vm3292, %v4582, %v4547
      %v4596 = vsel %vm3292, %v4583, %v4549
      %v4597 = vsel %vm3292, %v4584, %v4551
      %v4598 = vsel %vm3292, %v4585, %v4553
      %v4599 = vsel %vm3292, %v4586, %v4555
      %v4600 = vsel %vm3292, %v4587, %v4557
      %v4601 = vsel %vm3292, %v4588, %v4559
      %v4602 = vsel %vm3292, %v4589, %v4561
      %v4603 = vsel %vm3292, %v4590, %v4563
      %v4604 = vsel %vm3292, %v4591, %v4565
      %s4605 = scalar_lea.vmem %s1, 192
      %v4606 = vld [vmem:[%s4605] sm:$0xff]
      %v4607 = vld [vmem:[%s4605 + $0x8] sm:$0xff]
      %v4608 = vld [vmem:[%s4605 + $0x10] sm:$0xff]
      %v4609 = vld [vmem:[%s4605 + $0x18] sm:$0xff]
      %v4610 = vld [vmem:[%s4605 + $0x20] sm:$0xff]
      %v4611 = vld [vmem:[%s4605 + $0x28] sm:$0xff]
      %v4612 = vld [vmem:[%s4605 + $0x30] sm:$0xff]
      %v4613 = vld [vmem:[%s4605 + $0x38] sm:$0xff]
      %v4614 = vld [vmem:[%s4605 + $0x40] sm:$0xff]
      %v4615 = vld [vmem:[%s4605 + $0x48] sm:$0xff]
      %v4616 = vld [vmem:[%s4605 + $0x50] sm:$0xff]
      %v4617 = vld [vmem:[%s4605 + $0x58] sm:$0xff]
      %s4618 = scalar_lea.vmem %s2, 8
      %v4619 = vld [vmem:[%s4618] sm:$0x1]
      %v4620 = vperm.slane %v4619, 0
      %v4622 = vsel %vm3335, %v4592, 0
      %v4625 = vsel %vm3335, %v4593, 0
      %v4628 = vsel %vm3335, %v4594, 0
      %v4631 = vsel %vm3335, %v4595, 0
      %v4634 = vsel %vm3335, %v4596, 0
      %v4637 = vsel %vm3335, %v4597, 0
      %v4640 = vsel %vm3335, %v4598, 0
      %v4643 = vsel %vm3335, %v4599, 0
      %v4646 = vsel %vm3335, %v4600, 0
      %v4649 = vsel %vm3335, %v4601, 0
      %v4652 = vsel %vm3335, %v4602, 0
      %v4655 = vsel %vm3335, %v4603, 0
      %v4658 = vsel %vm3335, %v4604, 0
      %4660 = vmatpush.msra.mxu0 0.0
      %4661 = vmatpush.msra.mxu0 0.0
      %4662 = vmatpush.msra.mxu0 0.0
      %4663 = vmatpush.msra.mxu0 0.0
      %4664 = vmatpush.msra.mxu0 %v4617
      %4665 = vmatpush.msra.mxu0 %v4616
      %4666 = vmatpush.msra.mxu0 %v4615
      %4667 = vmatpush.msra.mxu0 %v4614
      %4668 = vmatpush.msra.mxu0 %v4613
      %4669 = vmatpush.msra.mxu0 %v4612
      %4670 = vmatpush.msra.mxu0 %v4611
      %4671 = vmatpush.msra.mxu0 %v4610
      %4672 = vmatpush.msra.mxu0 %v4609
      %4673 = vmatpush.msra.mxu0 %v4608
      %4674 = vmatpush.msra.mxu0 %v4607
      %4675 = vmatpush.msra.mxu0 %v4606
      %4676 = vmatmul.f32.gmra.mxu0 %v4622
      %v4677 = vpop.f32.mrf.mxu0
      %v4678 = vadd.f32 %v4620, %v4677
      %4679 = vmatmul.f32.gmra.mxu0 %v4625
      %v4680 = vpop.f32.mrf.mxu0
      %v4681 = vadd.f32 %v4620, %v4680
      %4682 = vmatmul.f32.gmra.mxu0 %v4628
      %v4683 = vpop.f32.mrf.mxu0
      %v4684 = vadd.f32 %v4620, %v4683
      %4685 = vmatmul.f32.gmra.mxu0 %v4631
      %v4686 = vpop.f32.mrf.mxu0
      %v4687 = vadd.f32 %v4620, %v4686
      %4688 = vmatmul.f32.gmra.mxu0 %v4634
      %v4689 = vpop.f32.mrf.mxu0
      %v4690 = vadd.f32 %v4620, %v4689
      %4691 = vmatmul.f32.gmra.mxu0 %v4637
      %v4692 = vpop.f32.mrf.mxu0
      %v4693 = vadd.f32 %v4620, %v4692
      %4694 = vmatmul.f32.gmra.mxu0 %v4640
      %v4695 = vpop.f32.mrf.mxu0
      %v4696 = vadd.f32 %v4620, %v4695
      %4697 = vmatmul.f32.gmra.mxu0 %v4643
      %v4698 = vpop.f32.mrf.mxu0
      %v4699 = vadd.f32 %v4620, %v4698
      %4700 = vmatmul.f32.gmra.mxu0 %v4646
      %v4701 = vpop.f32.mrf.mxu0
      %v4702 = vadd.f32 %v4620, %v4701
      %4703 = vmatmul.f32.gmra.mxu0 %v4649
      %v4704 = vpop.f32.mrf.mxu0
      %v4705 = vadd.f32 %v4620, %v4704
      %4706 = vmatmul.f32.gmra.mxu0 %v4652
      %v4707 = vpop.f32.mrf.mxu0
      %v4708 = vadd.f32 %v4620, %v4707
      %4709 = vmatmul.f32.gmra.mxu0 %v4655
      %v4710 = vpop.f32.mrf.mxu0
      %v4711 = vadd.f32 %v4620, %v4710
      %4712 = vmatmul.f32.gmra.mxu0 %v4658
      %v4713 = vpop.f32.mrf.mxu0
      %v4714 = vadd.f32 %v4620, %v4713
      %4715 = vdwg.mxu0
      %v4716 = vld [vmem:[%s4618 + $0x1] sm:$0x1]
      %v4717 = vld [vmem:[%s4618 + $0x2] sm:$0x1]
      %v4718 = vsel %vm1159, %v4678, 0.0
      %4719 = vadd.xlane.f32.xlu0 %v4718
      %v4720 = vpop.xlane.xlu0 %4719
      %v4721 = vsel %vm1159, %v4681, 0.0
      %4722 = vadd.xlane.f32.xlu0 %v4721
      %v4723 = vpop.xlane.xlu0 %4722
      %v4724 = vsel %vm1159, %v4684, 0.0
      %4725 = vadd.xlane.f32.xlu0 %v4724
      %v4726 = vpop.xlane.xlu0 %4725
      %v4727 = vsel %vm1159, %v4687, 0.0
      %4728 = vadd.xlane.f32.xlu0 %v4727
      %v4729 = vpop.xlane.xlu0 %4728
      %v4730 = vsel %vm1159, %v4690, 0.0
      %4731 = vadd.xlane.f32.xlu0 %v4730
      %v4732 = vpop.xlane.xlu0 %4731
      %v4733 = vsel %vm1159, %v4693, 0.0
      %4734 = vadd.xlane.f32.xlu0 %v4733
      %v4735 = vpop.xlane.xlu0 %4734
      %v4736 = vsel %vm1159, %v4696, 0.0
      %4737 = vadd.xlane.f32.xlu0 %v4736
      %v4738 = vpop.xlane.xlu0 %4737
      %v4739 = vsel %vm1159, %v4699, 0.0
      %4740 = vadd.xlane.f32.xlu0 %v4739
      %v4741 = vpop.xlane.xlu0 %4740
      %v4742 = vsel %vm1159, %v4702, 0.0
      %4743 = vadd.xlane.f32.xlu0 %v4742
      %v4744 = vpop.xlane.xlu0 %4743
      %v4745 = vsel %vm1159, %v4705, 0.0
      %4746 = vadd.xlane.f32.xlu0 %v4745
      %v4747 = vpop.xlane.xlu0 %4746
      %v4748 = vsel %vm1159, %v4708, 0.0
      %4749 = vadd.xlane.f32.xlu0 %v4748
      %v4750 = vpop.xlane.xlu0 %4749
      %v4751 = vsel %vm1159, %v4711, 0.0
      %4752 = vadd.xlane.f32.xlu0 %v4751
      %v4753 = vpop.xlane.xlu0 %4752
      %vm4754 = vcmask 258048
      %v4755 = vsel %vm4754, %v4714, 0.0
      %4756 = vadd.xlane.f32.xlu0 %v4755
      %v4757 = vpop.xlane.xlu0 %4756
      %v4758 = vmul.f32 %v4720, %v1319
      %v4759 = vmul.f32 %v4723, %v1319
      %v4760 = vmul.f32 %v4726, %v1319
      %v4761 = vmul.f32 %v4729, %v1319
      %v4762 = vmul.f32 %v4732, %v1319
      %v4763 = vmul.f32 %v4735, %v1319
      %v4764 = vmul.f32 %v4738, %v1319
      %v4765 = vmul.f32 %v4741, %v1319
      %v4766 = vmul.f32 %v4744, %v1319
      %v4767 = vmul.f32 %v4747, %v1319
      %v4768 = vmul.f32 %v4750, %v1319
      %v4769 = vmul.f32 %v4753, %v1319
      %v4770 = vmul.f32 %v4757, %v1319
      %v4771 = vsub.f32 %v4678, %v4758
      %v4772 = vsub.f32 %v4681, %v4759
      %v4773 = vsub.f32 %v4684, %v4760
      %v4774 = vsub.f32 %v4687, %v4761
      %v4775 = vsub.f32 %v4690, %v4762
      %v4776 = vsub.f32 %v4693, %v4763
      %v4777 = vsub.f32 %v4696, %v4764
      %v4778 = vsub.f32 %v4699, %v4765
      %v4779 = vsub.f32 %v4702, %v4766
      %v4780 = vsub.f32 %v4705, %v4767
      %v4781 = vsub.f32 %v4708, %v4768
      %v4782 = vsub.f32 %v4711, %v4769
      %v4783 = vsub.f32 %v4714, %v4770
      %v4784 = vmul.f32 %v4771, %v4771
      %v4785 = vmul.f32 %v4772, %v4772
      %v4786 = vmul.f32 %v4773, %v4773
      %v4787 = vmul.f32 %v4774, %v4774
      %v4788 = vmul.f32 %v4775, %v4775
      %v4789 = vmul.f32 %v4776, %v4776
      %v4790 = vmul.f32 %v4777, %v4777
      %v4791 = vmul.f32 %v4778, %v4778
      %v4792 = vmul.f32 %v4779, %v4779
      %v4793 = vmul.f32 %v4780, %v4780
      %v4794 = vmul.f32 %v4781, %v4781
      %v4795 = vmul.f32 %v4782, %v4782
      %v4796 = vmul.f32 %v4783, %v4783
      %v4797 = vsel %vm1159, %v4784, 0.0
      %4798 = vadd.xlane.f32.xlu0 %v4797
      %v4799 = vpop.xlane.xlu0 %4798
      %v4800 = vsel %vm1159, %v4785, 0.0
      %4801 = vadd.xlane.f32.xlu0 %v4800
      %v4802 = vpop.xlane.xlu0 %4801
      %v4803 = vsel %vm1159, %v4786, 0.0
      %4804 = vadd.xlane.f32.xlu0 %v4803
      %v4805 = vpop.xlane.xlu0 %4804
      %v4806 = vsel %vm1159, %v4787, 0.0
      %4807 = vadd.xlane.f32.xlu0 %v4806
      %v4808 = vpop.xlane.xlu0 %4807
      %v4809 = vsel %vm1159, %v4788, 0.0
      %4810 = vadd.xlane.f32.xlu0 %v4809
      %v4811 = vpop.xlane.xlu0 %4810
      %v4812 = vsel %vm1159, %v4789, 0.0
      %4813 = vadd.xlane.f32.xlu0 %v4812
      %v4814 = vpop.xlane.xlu0 %4813
      %v4815 = vsel %vm1159, %v4790, 0.0
      %4816 = vadd.xlane.f32.xlu0 %v4815
      %v4817 = vpop.xlane.xlu0 %4816
      %v4818 = vsel %vm1159, %v4791, 0.0
      %4819 = vadd.xlane.f32.xlu0 %v4818
      %v4820 = vpop.xlane.xlu0 %4819
      %v4821 = vsel %vm1159, %v4792, 0.0
      %4822 = vadd.xlane.f32.xlu0 %v4821
      %v4823 = vpop.xlane.xlu0 %4822
      %v4824 = vsel %vm1159, %v4793, 0.0
      %4825 = vadd.xlane.f32.xlu0 %v4824
      %v4826 = vpop.xlane.xlu0 %4825
      %v4827 = vsel %vm1159, %v4794, 0.0
      %4828 = vadd.xlane.f32.xlu0 %v4827
      %v4829 = vpop.xlane.xlu0 %4828
      %v4830 = vsel %vm1159, %v4795, 0.0
      %4831 = vadd.xlane.f32.xlu0 %v4830
      %v4832 = vpop.xlane.xlu0 %4831
      %v4833 = vsel %vm4754, %v4796, 0.0
      %4834 = vadd.xlane.f32.xlu0 %v4833
      %v4835 = vpop.xlane.xlu0 %4834
      %v4836 = vmul.f32 %v4799, %v1319
      %v4837 = vmul.f32 %v4802, %v1319
      %v4838 = vmul.f32 %v4805, %v1319
      %v4839 = vmul.f32 %v4808, %v1319
      %v4840 = vmul.f32 %v4811, %v1319
      %v4841 = vmul.f32 %v4814, %v1319
      %v4842 = vmul.f32 %v4817, %v1319
      %v4843 = vmul.f32 %v4820, %v1319
      %v4844 = vmul.f32 %v4823, %v1319
      %v4845 = vmul.f32 %v4826, %v1319
      %v4846 = vmul.f32 %v4829, %v1319
      %v4847 = vmul.f32 %v4832, %v1319
      %v4848 = vmul.f32 %v4835, %v1319
      %v4849 = vadd.f32 %v4836, 1e-05
      %v4850 = vadd.f32 %v4837, 1e-05
      %v4851 = vadd.f32 %v4838, 1e-05
      %v4852 = vadd.f32 %v4839, 1e-05
      %v4853 = vadd.f32 %v4840, 1e-05
      %v4854 = vadd.f32 %v4841, 1e-05
      %v4855 = vadd.f32 %v4842, 1e-05
      %v4856 = vadd.f32 %v4843, 1e-05
      %v4857 = vadd.f32 %v4844, 1e-05
      %v4858 = vadd.f32 %v4845, 1e-05
      %v4859 = vadd.f32 %v4846, 1e-05
      %v4860 = vadd.f32 %v4847, 1e-05
      %v4861 = vadd.f32 %v4848, 1e-05
      %v4862 = vrsqrt.pop %v4849
      %v4863 = vmul.f32 %v4862, %v4849
      %v4864 = vmul.f32 %v4863, %v4862
      %v4865 = vmul.f32 0.5, %v4864
      %v4866 = vsub.f32 1.5, %v4865
      %v4867 = vmul.f32 %v4862, %v4866
      %vm4868 = vweird.f32 %v4849
      %vm4869 = vweird.f32 %v4862
      %vm4870 = vmor %vm4868, %vm4869
      %v4871 = vsel %vm4870, %v4862, %v4867
      %v4872 = vrsqrt.pop %v4850
      %v4873 = vmul.f32 %v4872, %v4850
      %v4874 = vmul.f32 %v4873, %v4872
      %v4875 = vmul.f32 0.5, %v4874
      %v4876 = vsub.f32 1.5, %v4875
      %v4877 = vmul.f32 %v4872, %v4876
      %vm4878 = vweird.f32 %v4850
      %vm4879 = vweird.f32 %v4872
      %vm4880 = vmor %vm4878, %vm4879
      %v4881 = vsel %vm4880, %v4872, %v4877
      %v4882 = vrsqrt.pop %v4851
      %v4883 = vmul.f32 %v4882, %v4851
      %v4884 = vmul.f32 %v4883, %v4882
      %v4885 = vmul.f32 0.5, %v4884
      %v4886 = vsub.f32 1.5, %v4885
      %v4887 = vmul.f32 %v4882, %v4886
      %vm4888 = vweird.f32 %v4851
      %vm4889 = vweird.f32 %v4882
      %vm4890 = vmor %vm4888, %vm4889
      %v4891 = vsel %vm4890, %v4882, %v4887
      %v4892 = vrsqrt.pop %v4852
      %v4893 = vmul.f32 %v4892, %v4852
      %v4894 = vmul.f32 %v4893, %v4892
      %v4895 = vmul.f32 0.5, %v4894
      %v4896 = vsub.f32 1.5, %v4895
      %v4897 = vmul.f32 %v4892, %v4896
      %vm4898 = vweird.f32 %v4852
      %vm4899 = vweird.f32 %v4892
      %vm4900 = vmor %vm4898, %vm4899
      %v4901 = vsel %vm4900, %v4892, %v4897
      %v4902 = vrsqrt.pop %v4853
      %v4903 = vmul.f32 %v4902, %v4853
      %v4904 = vmul.f32 %v4903, %v4902
      %v4905 = vmul.f32 0.5, %v4904
      %v4906 = vsub.f32 1.5, %v4905
      %v4907 = vmul.f32 %v4902, %v4906
      %vm4908 = vweird.f32 %v4853
      %vm4909 = vweird.f32 %v4902
      %vm4910 = vmor %vm4908, %vm4909
      %v4911 = vsel %vm4910, %v4902, %v4907
      %v4912 = vrsqrt.pop %v4854
      %v4913 = vmul.f32 %v4912, %v4854
      %v4914 = vmul.f32 %v4913, %v4912
      %v4915 = vmul.f32 0.5, %v4914
      %v4916 = vsub.f32 1.5, %v4915
      %v4917 = vmul.f32 %v4912, %v4916
      %vm4918 = vweird.f32 %v4854
      %vm4919 = vweird.f32 %v4912
      %vm4920 = vmor %vm4918, %vm4919
      %v4921 = vsel %vm4920, %v4912, %v4917
      %v4922 = vrsqrt.pop %v4855
      %v4923 = vmul.f32 %v4922, %v4855
      %v4924 = vmul.f32 %v4923, %v4922
      %v4925 = vmul.f32 0.5, %v4924
      %v4926 = vsub.f32 1.5, %v4925
      %v4927 = vmul.f32 %v4922, %v4926
      %vm4928 = vweird.f32 %v4855
      %vm4929 = vweird.f32 %v4922
      %vm4930 = vmor %vm4928, %vm4929
      %v4931 = vsel %vm4930, %v4922, %v4927
      %v4932 = vrsqrt.pop %v4856
      %v4933 = vmul.f32 %v4932, %v4856
      %v4934 = vmul.f32 %v4933, %v4932
      %v4935 = vmul.f32 0.5, %v4934
      %v4936 = vsub.f32 1.5, %v4935
      %v4937 = vmul.f32 %v4932, %v4936
      %vm4938 = vweird.f32 %v4856
      %vm4939 = vweird.f32 %v4932
      %vm4940 = vmor %vm4938, %vm4939
      %v4941 = vsel %vm4940, %v4932, %v4937
      %v4942 = vrsqrt.pop %v4857
      %v4943 = vmul.f32 %v4942, %v4857
      %v4944 = vmul.f32 %v4943, %v4942
      %v4945 = vmul.f32 0.5, %v4944
      %v4946 = vsub.f32 1.5, %v4945
      %v4947 = vmul.f32 %v4942, %v4946
      %vm4948 = vweird.f32 %v4857
      %vm4949 = vweird.f32 %v4942
      %vm4950 = vmor %vm4948, %vm4949
      %v4951 = vsel %vm4950, %v4942, %v4947
      %v4952 = vrsqrt.pop %v4858
      %v4953 = vmul.f32 %v4952, %v4858
      %v4954 = vmul.f32 %v4953, %v4952
      %v4955 = vmul.f32 0.5, %v4954
      %v4956 = vsub.f32 1.5, %v4955
      %v4957 = vmul.f32 %v4952, %v4956
      %vm4958 = vweird.f32 %v4858
      %vm4959 = vweird.f32 %v4952
      %vm4960 = vmor %vm4958, %vm4959
      %v4961 = vsel %vm4960, %v4952, %v4957
      %v4962 = vrsqrt.pop %v4859
      %v4963 = vmul.f32 %v4962, %v4859
      %v4964 = vmul.f32 %v4963, %v4962
      %v4965 = vmul.f32 0.5, %v4964
      %v4966 = vsub.f32 1.5, %v4965
      %v4967 = vmul.f32 %v4962, %v4966
      %vm4968 = vweird.f32 %v4859
      %vm4969 = vweird.f32 %v4962
      %vm4970 = vmor %vm4968, %vm4969
      %v4971 = vsel %vm4970, %v4962, %v4967
      %v4972 = vrsqrt.pop %v4860
      %v4973 = vmul.f32 %v4972, %v4860
      %v4974 = vmul.f32 %v4973, %v4972
      %v4975 = vmul.f32 0.5, %v4974
      %v4976 = vsub.f32 1.5, %v4975
      %v4977 = vmul.f32 %v4972, %v4976
      %vm4978 = vweird.f32 %v4860
      %vm4979 = vweird.f32 %v4972
      %vm4980 = vmor %vm4978, %vm4979
      %v4981 = vsel %vm4980, %v4972, %v4977
      %v4982 = vrsqrt.pop %v4861
      %v4983 = vmul.f32 %v4982, %v4861
      %v4984 = vmul.f32 %v4983, %v4982
      %v4985 = vmul.f32 0.5, %v4984
      %v4986 = vsub.f32 1.5, %v4985
      %v4987 = vmul.f32 %v4982, %v4986
      %vm4988 = vweird.f32 %v4861
      %vm4989 = vweird.f32 %v4982
      %vm4990 = vmor %vm4988, %vm4989
      %v4991 = vsel %vm4990, %v4982, %v4987
      %v4992 = vmul.f32 %v4771, %v4871
      %v4993 = vmul.f32 %v4772, %v4881
      %v4994 = vmul.f32 %v4773, %v4891
      %v4995 = vmul.f32 %v4774, %v4901
      %v4996 = vmul.f32 %v4775, %v4911
      %v4997 = vmul.f32 %v4776, %v4921
      %v4998 = vmul.f32 %v4777, %v4931
      %v4999 = vmul.f32 %v4778, %v4941
      %v5000 = vmul.f32 %v4779, %v4951
      %v5001 = vmul.f32 %v4780, %v4961
      %v5002 = vmul.f32 %v4781, %v4971
      %v5003 = vmul.f32 %v4782, %v4981
      %v5004 = vmul.f32 %v4783, %v4991
      %v5005 = vperm.slane %v4716, 0
      %v5006 = vmul.f32 %v4992, %v5005
      %v5007 = vmul.f32 %v4993, %v5005
      %v5008 = vmul.f32 %v4994, %v5005
      %v5009 = vmul.f32 %v4995, %v5005
      %v5010 = vmul.f32 %v4996, %v5005
      %v5011 = vmul.f32 %v4997, %v5005
      %v5012 = vmul.f32 %v4998, %v5005
      %v5013 = vmul.f32 %v4999, %v5005
      %v5014 = vmul.f32 %v5000, %v5005
      %v5015 = vmul.f32 %v5001, %v5005
      %v5016 = vmul.f32 %v5002, %v5005
      %v5017 = vmul.f32 %v5003, %v5005
      %v5018 = vmul.f32 %v5004, %v5005
      %v5019 = vperm.slane %v4717, 0
      %v5020 = vadd.f32 %v5006, %v5019
      %v5021 = vadd.f32 %v5007, %v5019
      %v5022 = vadd.f32 %v5008, %v5019
      %v5023 = vadd.f32 %v5009, %v5019
      %v5024 = vadd.f32 %v5010, %v5019
      %v5025 = vadd.f32 %v5011, %v5019
      %v5026 = vadd.f32 %v5012, %v5019
      %v5027 = vadd.f32 %v5013, %v5019
      %v5028 = vadd.f32 %v5014, %v5019
      %v5029 = vadd.f32 %v5015, %v5019
      %v5030 = vadd.f32 %v5016, %v5019
      %v5031 = vadd.f32 %v5017, %v5019
      %v5032 = vadd.f32 %v5018, %v5019
      %v5033 = vmul.f32 %v5020, 0.5
      %v5034 = vmul.f32 %v5021, 0.5
      %v5035 = vmul.f32 %v5022, 0.5
      %v5036 = vmul.f32 %v5023, 0.5
      %v5037 = vmul.f32 %v5024, 0.5
      %v5038 = vmul.f32 %v5025, 0.5
      %v5039 = vmul.f32 %v5026, 0.5
      %v5040 = vmul.f32 %v5027, 0.5
      %v5041 = vmul.f32 %v5028, 0.5
      %v5042 = vmul.f32 %v5029, 0.5
      %v5043 = vmul.f32 %v5030, 0.5
      %v5044 = vmul.f32 %v5031, 0.5
      %v5045 = vmul.f32 %v5032, 0.5
      %v5046 = vmul.f32 %v5020, 0.044715
      %v5047 = vmul.f32 %v5021, 0.044715
      %v5048 = vmul.f32 %v5022, 0.044715
      %v5049 = vmul.f32 %v5023, 0.044715
      %v5050 = vmul.f32 %v5024, 0.044715
      %v5051 = vmul.f32 %v5025, 0.044715
      %v5052 = vmul.f32 %v5026, 0.044715
      %v5053 = vmul.f32 %v5027, 0.044715
      %v5054 = vmul.f32 %v5028, 0.044715
      %v5055 = vmul.f32 %v5029, 0.044715
      %v5056 = vmul.f32 %v5030, 0.044715
      %v5057 = vmul.f32 %v5031, 0.044715
      %v5058 = vmul.f32 %v5032, 0.044715
      %v5059 = vmul.f32 %v5046, %v5020
      %v5060 = vmul.f32 %v5047, %v5021
      %v5061 = vmul.f32 %v5048, %v5022
      %v5062 = vmul.f32 %v5049, %v5023
      %v5063 = vmul.f32 %v5050, %v5024
      %v5064 = vmul.f32 %v5051, %v5025
      %v5065 = vmul.f32 %v5052, %v5026
      %v5066 = vmul.f32 %v5053, %v5027
      %v5067 = vmul.f32 %v5054, %v5028
      %v5068 = vmul.f32 %v5055, %v5029
      %v5069 = vmul.f32 %v5056, %v5030
      %v5070 = vmul.f32 %v5057, %v5031
      %v5071 = vmul.f32 %v5058, %v5032
      %v5072 = vmul.f32 %v5059, %v5020
      %v5073 = vmul.f32 %v5060, %v5021
      %v5074 = vmul.f32 %v5061, %v5022
      %v5075 = vmul.f32 %v5062, %v5023
      %v5076 = vmul.f32 %v5063, %v5024
      %v5077 = vmul.f32 %v5064, %v5025
      %v5078 = vmul.f32 %v5065, %v5026
      %v5079 = vmul.f32 %v5066, %v5027
      %v5080 = vmul.f32 %v5067, %v5028
      %v5081 = vmul.f32 %v5068, %v5029
      %v5082 = vmul.f32 %v5069, %v5030
      %v5083 = vmul.f32 %v5070, %v5031
      %v5084 = vmul.f32 %v5071, %v5032
      %v5085 = vadd.f32 %v5020, %v5072
      %v5086 = vadd.f32 %v5021, %v5073
      %v5087 = vadd.f32 %v5022, %v5074
      %v5088 = vadd.f32 %v5023, %v5075
      %v5089 = vadd.f32 %v5024, %v5076
      %v5090 = vadd.f32 %v5025, %v5077
      %v5091 = vadd.f32 %v5026, %v5078
      %v5092 = vadd.f32 %v5027, %v5079
      %v5093 = vadd.f32 %v5028, %v5080
      %v5094 = vadd.f32 %v5029, %v5081
      %v5095 = vadd.f32 %v5030, %v5082
      %v5096 = vadd.f32 %v5031, %v5083
      %v5097 = vadd.f32 %v5032, %v5084
      %v5098 = vmul.f32 %v5085, 0.7978846
      %v5099 = vmul.f32 %v5086, 0.7978846
      %v5100 = vmul.f32 %v5087, 0.7978846
      %v5101 = vmul.f32 %v5088, 0.7978846
      %v5102 = vmul.f32 %v5089, 0.7978846
      %v5103 = vmul.f32 %v5090, 0.7978846
      %v5104 = vmul.f32 %v5091, 0.7978846
      %v5105 = vmul.f32 %v5092, 0.7978846
      %v5106 = vmul.f32 %v5093, 0.7978846
      %v5107 = vmul.f32 %v5094, 0.7978846
      %v5108 = vmul.f32 %v5095, 0.7978846
      %v5109 = vmul.f32 %v5096, 0.7978846
      %v5110 = vmul.f32 %v5097, 0.7978846
      %v5111 = vtanh.pop %v5098
      %v5112 = vtanh.pop %v5099
      %v5113 = vtanh.pop %v5100
      %v5114 = vtanh.pop %v5101
      %v5115 = vtanh.pop %v5102
      %v5116 = vtanh.pop %v5103
      %v5117 = vtanh.pop %v5104
      %v5118 = vtanh.pop %v5105
      %v5119 = vtanh.pop %v5106
      %v5120 = vtanh.pop %v5107
      %v5121 = vtanh.pop %v5108
      %v5122 = vtanh.pop %v5109
      %v5123 = vtanh.pop %v5110
      %v5124 = vadd.f32 %v5111, 1.0
      %v5125 = vadd.f32 %v5112, 1.0
      %v5126 = vadd.f32 %v5113, 1.0
      %v5127 = vadd.f32 %v5114, 1.0
      %v5128 = vadd.f32 %v5115, 1.0
      %v5129 = vadd.f32 %v5116, 1.0
      %v5130 = vadd.f32 %v5117, 1.0
      %v5131 = vadd.f32 %v5118, 1.0
      %v5132 = vadd.f32 %v5119, 1.0
      %v5133 = vadd.f32 %v5120, 1.0
      %v5134 = vadd.f32 %v5121, 1.0
      %v5135 = vadd.f32 %v5122, 1.0
      %v5136 = vadd.f32 %v5123, 1.0
      %v5137 = vmul.f32 %v5033, %v5124
      %v5138 = vmul.f32 %v5034, %v5125
      %v5139 = vmul.f32 %v5035, %v5126
      %v5140 = vmul.f32 %v5036, %v5127
      %v5141 = vmul.f32 %v5037, %v5128
      %v5142 = vmul.f32 %v5038, %v5129
      %v5143 = vmul.f32 %v5039, %v5130
      %v5144 = vmul.f32 %v5040, %v5131
      %v5145 = vmul.f32 %v5041, %v5132
      %v5146 = vmul.f32 %v5042, %v5133
      %v5147 = vmul.f32 %v5043, %v5134
      %v5148 = vmul.f32 %v5044, %v5135
      %v5149 = vmul.f32 %v5045, %v5136
      %5150 = vst.msk [vmem:[#allocation2] sm:$0xff] %vm1159, %v5137
      %5151 = vst.msk [vmem:[#allocation2 + $0x8] sm:$0xff] %vm1159, %v5138
      %5152 = vst.msk [vmem:[#allocation2 + $0x10] sm:$0xff] %vm1159, %v5139
      %5153 = vst.msk [vmem:[#allocation2 + $0x18] sm:$0xff] %vm1159, %v5140
      %5154 = vst.msk [vmem:[#allocation2 + $0x20] sm:$0xff] %vm1159, %v5141
      %5155 = vst.msk [vmem:[#allocation2 + $0x28] sm:$0xff] %vm1159, %v5142
      %5156 = vst.msk [vmem:[#allocation2 + $0x30] sm:$0xff] %vm1159, %v5143
      %5157 = vst.msk [vmem:[#allocation2 + $0x38] sm:$0xff] %vm1159, %v5144
      %5158 = vst.msk [vmem:[#allocation2 + $0x40] sm:$0xff] %vm1159, %v5145
      %5159 = vst.msk [vmem:[#allocation2 + $0x48] sm:$0xff] %vm1159, %v5146
      %5160 = vst.msk [vmem:[#allocation2 + $0x50] sm:$0xff] %vm1159, %v5147
      %5161 = vst.msk [vmem:[#allocation2 + $0x58] sm:$0xff] %vm1159, %v5148
      %5162 = vst.msk [vmem:[#allocation2 + $0x60] sm:$0x1f] %vm4754, %v5149
      %v5163 = vld [vmem:[#allocation2] ss:$2 sm:$0xff]
      %v5164 = vld [vmem:[%s2904] ss:$2 sm:$0xff]
      %v5165 = vld [vmem:[%s2906] ss:$2 sm:$0xff]
      %v5166 = vld [vmem:[%s2908] ss:$2 sm:$0xff]
      %v5167 = vld [vmem:[%s2910] ss:$2 sm:$0xff]
      %v5168 = vld [vmem:[%s2912] ss:$2 sm:$0xff]
      %v5169 = vld [vmem:[%s2914] ss:$2 sm:$0x3]
      %v5170 = vld [vmem:[%s2954] ss:$2 sm:$0xff]
      %v5171 = vld [vmem:[%s2956] ss:$2 sm:$0xff]
      %v5172 = vld [vmem:[%s2958] ss:$2 sm:$0xff]
      %v5173 = vld [vmem:[%s2960] ss:$2 sm:$0xff]
      %v5174 = vld [vmem:[%s2962] ss:$2 sm:$0xff]
      %v5175 = vld [vmem:[%s2964] ss:$2 sm:$0xff]
      %v5176 = vld [vmem:[%s2966] ss:$2 sm:$0x3]
      %v5177 = vld [vmem:[%s3006] ss:$2 sm:$0xff]
      %v5178 = vld [vmem:[%s3008] ss:$2 sm:$0xff]
      %v5179 = vld [vmem:[%s3010] ss:$2 sm:$0xff]
      %v5180 = vld [vmem:[%s3012] ss:$2 sm:$0xff]
      %v5181 = vld [vmem:[%s3014] ss:$2 sm:$0xff]
      %v5182 = vld [vmem:[%s3016] ss:$2 sm:$0xff]
      %v5183 = vld [vmem:[%s3018] ss:$2 sm:$0x3]
      %5191 = vrot.lane.b32.xlu0 %v5170, 32
      %v5192 = vpop.permute.xlu0 %5191
      %5193 = vrot.lane.b32.xlu0 %v5171, 32
      %v5194 = vpop.permute.xlu0 %5193
      %5195 = vrot.lane.b32.xlu0 %v5172, 32
      %v5196 = vpop.permute.xlu0 %5195
      %5197 = vrot.lane.b32.xlu0 %v5173, 32
      %v5198 = vpop.permute.xlu0 %5197
      %5199 = vrot.lane.b32.xlu0 %v5174, 32
      %v5200 = vpop.permute.xlu0 %5199
      %5201 = vrot.lane.b32.xlu0 %v5175, 32
      %v5202 = vpop.permute.xlu0 %5201
      %5203 = vrot.lane.b32.xlu0 %v5176, 32
      %v5204 = vpop.permute.xlu0 %5203
      %5219 = vrot.lane.b32.xlu0 %v5177, 64
      %v5220 = vpop.permute.xlu0 %5219
      %5221 = vrot.lane.b32.xlu0 %v5178, 64
      %v5222 = vpop.permute.xlu0 %5221
      %5223 = vrot.lane.b32.xlu0 %v5179, 64
      %v5224 = vpop.permute.xlu0 %5223
      %5225 = vrot.lane.b32.xlu0 %v5180, 64
      %v5226 = vpop.permute.xlu0 %5225
      %5227 = vrot.lane.b32.xlu0 %v5181, 64
      %v5228 = vpop.permute.xlu0 %5227
      %5229 = vrot.lane.b32.xlu0 %v5182, 64
      %v5230 = vpop.permute.xlu0 %5229
      %5231 = vrot.lane.b32.xlu0 %v5183, 64
      %v5232 = vpop.permute.xlu0 %5231
      %v5240 = vsel %vm1159, %v5163, %v5192
      %v5241 = vsel %vm1159, %v5164, %v5194
      %v5242 = vsel %vm1159, %v5165, %v5196
      %v5243 = vsel %vm1159, %v5166, %v5198
      %v5244 = vsel %vm1159, %v5167, %v5200
      %v5245 = vsel %vm1159, %v5168, %v5202
      %v5246 = vsel %vm1159, %v5169, %v5204
      %v5247 = vsel %vm3292, %v5240, %v5220
      %v5248 = vsel %vm3292, %v5241, %v5222
      %v5249 = vsel %vm3292, %v5242, %v5224
      %v5250 = vsel %vm3292, %v5243, %v5226
      %v5251 = vsel %vm3292, %v5244, %v5228
      %v5252 = vsel %vm3292, %v5245, %v5230
      %v5253 = vsel %vm3292, %v5246, %v5232
      %s5254 = scalar_lea.vmem %s1, 288
      %v5255 = vld [vmem:[%s5254] sm:$0xff]
      %v5256 = vld [vmem:[%s5254 + $0x8] sm:$0xff]
      %v5257 = vld [vmem:[%s5254 + $0x10] sm:$0xff]
      %v5258 = vld [vmem:[%s5254 + $0x18] sm:$0xff]
      %v5259 = vld [vmem:[%s5254 + $0x20] sm:$0xff]
      %v5260 = vld [vmem:[%s5254 + $0x28] sm:$0xff]
      %v5261 = vld [vmem:[%s5254 + $0x30] sm:$0xff]
      %v5262 = vld [vmem:[%s5254 + $0x38] sm:$0xff]
      %v5263 = vld [vmem:[%s5254 + $0x40] sm:$0xff]
      %v5264 = vld [vmem:[%s5254 + $0x48] sm:$0xff]
      %v5265 = vld [vmem:[%s5254 + $0x50] sm:$0xff]
      %v5266 = vld [vmem:[%s5254 + $0x58] sm:$0xff]
      %s5267 = scalar_lea.vmem %s2, 12
      %v5268 = vld [vmem:[%s5267] sm:$0x1]
      %v5269 = vperm.slane %v5268, 0
      %v5271 = vsel %vm3335, %v5247, 0
      %v5274 = vsel %vm3335, %v5248, 0
      %v5277 = vsel %vm3335, %v5249, 0
      %v5280 = vsel %vm3335, %v5250, 0
      %v5283 = vsel %vm3335, %v5251, 0
      %v5286 = vsel %vm3335, %v5252, 0
      %v5289 = vsel %vm3335, %v5253, 0
      %5291 = vmatpush.msra.mxu0 0.0
      %5292 = vmatpush.msra.mxu0 0.0
      %5293 = vmatpush.msra.mxu0 0.0
      %5294 = vmatpush.msra.mxu0 0.0
      %5295 = vmatpush.msra.mxu0 %v5266
      %5296 = vmatpush.msra.mxu0 %v5265
      %5297 = vmatpush.msra.mxu0 %v5264
      %5298 = vmatpush.msra.mxu0 %v5263
      %5299 = vmatpush.msra.mxu0 %v5262
      %5300 = vmatpush.msra.mxu0 %v5261
      %5301 = vmatpush.msra.mxu0 %v5260
      %5302 = vmatpush.msra.mxu0 %v5259
      %5303 = vmatpush.msra.mxu0 %v5258
      %5304 = vmatpush.msra.mxu0 %v5257
      %5305 = vmatpush.msra.mxu0 %v5256
      %5306 = vmatpush.msra.mxu0 %v5255
      %5307 = vmatmul.f32.gmra.mxu0 %v5271
      %v5308 = vpop.f32.mrf.mxu0
      %v5309 = vadd.f32 %v5269, %v5308
      %5310 = vmatmul.f32.gmra.mxu0 %v5274
      %v5311 = vpop.f32.mrf.mxu0
      %v5312 = vadd.f32 %v5269, %v5311
      %5313 = vmatmul.f32.gmra.mxu0 %v5277
      %v5314 = vpop.f32.mrf.mxu0
      %v5315 = vadd.f32 %v5269, %v5314
      %5316 = vmatmul.f32.gmra.mxu0 %v5280
      %v5317 = vpop.f32.mrf.mxu0
      %v5318 = vadd.f32 %v5269, %v5317
      %5319 = vmatmul.f32.gmra.mxu0 %v5283
      %v5320 = vpop.f32.mrf.mxu0
      %v5321 = vadd.f32 %v5269, %v5320
      %5322 = vmatmul.f32.gmra.mxu0 %v5286
      %v5323 = vpop.f32.mrf.mxu0
      %v5324 = vadd.f32 %v5269, %v5323
      %5325 = vmatmul.f32.gmra.mxu0 %v5289
      %v5326 = vpop.f32.mrf.mxu0
      %v5327 = vadd.f32 %v5269, %v5326
      %5328 = vdwg.mxu0
      %v5329 = vld [vmem:[%s5267 + $0x1] sm:$0x1]
      %v5330 = vld [vmem:[%s5267 + $0x2] sm:$0x1]
      %v5331 = vsel %vm1159, %v5309, 0.0
      %5332 = vadd.xlane.f32.xlu0 %v5331
      %v5333 = vpop.xlane.xlu0 %5332
      %v5334 = vsel %vm1159, %v5312, 0.0
      %5335 = vadd.xlane.f32.xlu0 %v5334
      %v5336 = vpop.xlane.xlu0 %5335
      %v5337 = vsel %vm1159, %v5315, 0.0
      %5338 = vadd.xlane.f32.xlu0 %v5337
      %v5339 = vpop.xlane.xlu0 %5338
      %v5340 = vsel %vm1159, %v5318, 0.0
      %5341 = vadd.xlane.f32.xlu0 %v5340
      %v5342 = vpop.xlane.xlu0 %5341
      %v5343 = vsel %vm1159, %v5321, 0.0
      %5344 = vadd.xlane.f32.xlu0 %v5343
      %v5345 = vpop.xlane.xlu0 %5344
      %v5346 = vsel %vm1159, %v5324, 0.0
      %5347 = vadd.xlane.f32.xlu0 %v5346
      %v5348 = vpop.xlane.xlu0 %5347
      %vm5349 = vcmask 254976
      %v5350 = vsel %vm5349, %v5327, 0.0
      %5351 = vadd.xlane.f32.xlu0 %v5350
      %v5352 = vpop.xlane.xlu0 %5351
      %v5353 = vmul.f32 %v5333, %v1319
      %v5354 = vmul.f32 %v5336, %v1319
      %v5355 = vmul.f32 %v5339, %v1319
      %v5356 = vmul.f32 %v5342, %v1319
      %v5357 = vmul.f32 %v5345, %v1319
      %v5358 = vmul.f32 %v5348, %v1319
      %v5359 = vmul.f32 %v5352, %v1319
      %v5360 = vsub.f32 %v5309, %v5353
      %v5361 = vsub.f32 %v5312, %v5354
      %v5362 = vsub.f32 %v5315, %v5355
      %v5363 = vsub.f32 %v5318, %v5356
      %v5364 = vsub.f32 %v5321, %v5357
      %v5365 = vsub.f32 %v5324, %v5358
      %v5366 = vsub.f32 %v5327, %v5359
      %v5367 = vmul.f32 %v5360, %v5360
      %v5368 = vmul.f32 %v5361, %v5361
      %v5369 = vmul.f32 %v5362, %v5362
      %v5370 = vmul.f32 %v5363, %v5363
      %v5371 = vmul.f32 %v5364, %v5364
      %v5372 = vmul.f32 %v5365, %v5365
      %v5373 = vmul.f32 %v5366, %v5366
      %v5374 = vsel %vm1159, %v5367, 0.0
      %5375 = vadd.xlane.f32.xlu0 %v5374
      %v5376 = vpop.xlane.xlu0 %5375
      %v5377 = vsel %vm1159, %v5368, 0.0
      %5378 = vadd.xlane.f32.xlu0 %v5377
      %v5379 = vpop.xlane.xlu0 %5378
      %v5380 = vsel %vm1159, %v5369, 0.0
      %5381 = vadd.xlane.f32.xlu0 %v5380
      %v5382 = vpop.xlane.xlu0 %5381
      %v5383 = vsel %vm1159, %v5370, 0.0
      %5384 = vadd.xlane.f32.xlu0 %v5383
      %v5385 = vpop.xlane.xlu0 %5384
      %v5386 = vsel %vm1159, %v5371, 0.0
      %5387 = vadd.xlane.f32.xlu0 %v5386
      %v5388 = vpop.xlane.xlu0 %5387
      %v5389 = vsel %vm1159, %v5372, 0.0
      %5390 = vadd.xlane.f32.xlu0 %v5389
      %v5391 = vpop.xlane.xlu0 %5390
      %v5392 = vsel %vm5349, %v5373, 0.0
      %5393 = vadd.xlane.f32.xlu0 %v5392
      %v5394 = vpop.xlane.xlu0 %5393
      %v5395 = vmul.f32 %v5376, %v1319
      %v5396 = vmul.f32 %v5379, %v1319
      %v5397 = vmul.f32 %v5382, %v1319
      %v5398 = vmul.f32 %v5385, %v1319
      %v5399 = vmul.f32 %v5388, %v1319
      %v5400 = vmul.f32 %v5391, %v1319
      %v5401 = vmul.f32 %v5394, %v1319
      %v5402 = vadd.f32 %v5395, 1e-05
      %v5403 = vadd.f32 %v5396, 1e-05
      %v5404 = vadd.f32 %v5397, 1e-05
      %v5405 = vadd.f32 %v5398, 1e-05
      %v5406 = vadd.f32 %v5399, 1e-05
      %v5407 = vadd.f32 %v5400, 1e-05
      %v5408 = vadd.f32 %v5401, 1e-05
      %v5409 = vrsqrt.pop %v5402
      %v5410 = vmul.f32 %v5409, %v5402
      %v5411 = vmul.f32 %v5410, %v5409
      %v5412 = vmul.f32 0.5, %v5411
      %v5413 = vsub.f32 1.5, %v5412
      %v5414 = vmul.f32 %v5409, %v5413
      %vm5415 = vweird.f32 %v5402
      %vm5416 = vweird.f32 %v5409
      %vm5417 = vmor %vm5415, %vm5416
      %v5418 = vsel %vm5417, %v5409, %v5414
      %v5419 = vrsqrt.pop %v5403
      %v5420 = vmul.f32 %v5419, %v5403
      %v5421 = vmul.f32 %v5420, %v5419
      %v5422 = vmul.f32 0.5, %v5421
      %v5423 = vsub.f32 1.5, %v5422
      %v5424 = vmul.f32 %v5419, %v5423
      %vm5425 = vweird.f32 %v5403
      %vm5426 = vweird.f32 %v5419
      %vm5427 = vmor %vm5425, %vm5426
      %v5428 = vsel %vm5427, %v5419, %v5424
      %v5429 = vrsqrt.pop %v5404
      %v5430 = vmul.f32 %v5429, %v5404
      %v5431 = vmul.f32 %v5430, %v5429
      %v5432 = vmul.f32 0.5, %v5431
      %v5433 = vsub.f32 1.5, %v5432
      %v5434 = vmul.f32 %v5429, %v5433
      %vm5435 = vweird.f32 %v5404
      %vm5436 = vweird.f32 %v5429
      %vm5437 = vmor %vm5435, %vm5436
      %v5438 = vsel %vm5437, %v5429, %v5434
      %v5439 = vrsqrt.pop %v5405
      %v5440 = vmul.f32 %v5439, %v5405
      %v5441 = vmul.f32 %v5440, %v5439
      %v5442 = vmul.f32 0.5, %v5441
      %v5443 = vsub.f32 1.5, %v5442
      %v5444 = vmul.f32 %v5439, %v5443
      %vm5445 = vweird.f32 %v5405
      %vm5446 = vweird.f32 %v5439
      %vm5447 = vmor %vm5445, %vm5446
      %v5448 = vsel %vm5447, %v5439, %v5444
      %v5449 = vrsqrt.pop %v5406
      %v5450 = vmul.f32 %v5449, %v5406
      %v5451 = vmul.f32 %v5450, %v5449
      %v5452 = vmul.f32 0.5, %v5451
      %v5453 = vsub.f32 1.5, %v5452
      %v5454 = vmul.f32 %v5449, %v5453
      %vm5455 = vweird.f32 %v5406
      %vm5456 = vweird.f32 %v5449
      %vm5457 = vmor %vm5455, %vm5456
      %v5458 = vsel %vm5457, %v5449, %v5454
      %v5459 = vrsqrt.pop %v5407
      %v5460 = vmul.f32 %v5459, %v5407
      %v5461 = vmul.f32 %v5460, %v5459
      %v5462 = vmul.f32 0.5, %v5461
      %v5463 = vsub.f32 1.5, %v5462
      %v5464 = vmul.f32 %v5459, %v5463
      %vm5465 = vweird.f32 %v5407
      %vm5466 = vweird.f32 %v5459
      %vm5467 = vmor %vm5465, %vm5466
      %v5468 = vsel %vm5467, %v5459, %v5464
      %v5469 = vrsqrt.pop %v5408
      %v5470 = vmul.f32 %v5469, %v5408
      %v5471 = vmul.f32 %v5470, %v5469
      %v5472 = vmul.f32 0.5, %v5471
      %v5473 = vsub.f32 1.5, %v5472
      %v5474 = vmul.f32 %v5469, %v5473
      %vm5475 = vweird.f32 %v5408
      %vm5476 = vweird.f32 %v5469
      %vm5477 = vmor %vm5475, %vm5476
      %v5478 = vsel %vm5477, %v5469, %v5474
      %v5479 = vmul.f32 %v5360, %v5418
      %v5480 = vmul.f32 %v5361, %v5428
      %v5481 = vmul.f32 %v5362, %v5438
      %v5482 = vmul.f32 %v5363, %v5448
      %v5483 = vmul.f32 %v5364, %v5458
      %v5484 = vmul.f32 %v5365, %v5468
      %v5485 = vmul.f32 %v5366, %v5478
      %v5486 = vperm.slane %v5329, 0
      %v5487 = vmul.f32 %v5479, %v5486
      %v5488 = vmul.f32 %v5480, %v5486
      %v5489 = vmul.f32 %v5481, %v5486
      %v5490 = vmul.f32 %v5482, %v5486
      %v5491 = vmul.f32 %v5483, %v5486
      %v5492 = vmul.f32 %v5484, %v5486
      %v5493 = vmul.f32 %v5485, %v5486
      %v5494 = vperm.slane %v5330, 0
      %v5495 = vadd.f32 %v5487, %v5494
      %v5496 = vadd.f32 %v5488, %v5494
      %v5497 = vadd.f32 %v5489, %v5494
      %v5498 = vadd.f32 %v5490, %v5494
      %v5499 = vadd.f32 %v5491, %v5494
      %v5500 = vadd.f32 %v5492, %v5494
      %v5501 = vadd.f32 %v5493, %v5494
      %v5502 = vmul.f32 %v5495, 0.5
      %v5503 = vmul.f32 %v5496, 0.5
      %v5504 = vmul.f32 %v5497, 0.5
      %v5505 = vmul.f32 %v5498, 0.5
      %v5506 = vmul.f32 %v5499, 0.5
      %v5507 = vmul.f32 %v5500, 0.5
      %v5508 = vmul.f32 %v5501, 0.5
      %v5509 = vmul.f32 %v5495, 0.044715
      %v5510 = vmul.f32 %v5496, 0.044715
      %v5511 = vmul.f32 %v5497, 0.044715
      %v5512 = vmul.f32 %v5498, 0.044715
      %v5513 = vmul.f32 %v5499, 0.044715
      %v5514 = vmul.f32 %v5500, 0.044715
      %v5515 = vmul.f32 %v5501, 0.044715
      %v5516 = vmul.f32 %v5509, %v5495
      %v5517 = vmul.f32 %v5510, %v5496
      %v5518 = vmul.f32 %v5511, %v5497
      %v5519 = vmul.f32 %v5512, %v5498
      %v5520 = vmul.f32 %v5513, %v5499
      %v5521 = vmul.f32 %v5514, %v5500
      %v5522 = vmul.f32 %v5515, %v5501
      %v5523 = vmul.f32 %v5516, %v5495
      %v5524 = vmul.f32 %v5517, %v5496
      %v5525 = vmul.f32 %v5518, %v5497
      %v5526 = vmul.f32 %v5519, %v5498
      %v5527 = vmul.f32 %v5520, %v5499
      %v5528 = vmul.f32 %v5521, %v5500
      %v5529 = vmul.f32 %v5522, %v5501
      %v5530 = vadd.f32 %v5495, %v5523
      %v5531 = vadd.f32 %v5496, %v5524
      %v5532 = vadd.f32 %v5497, %v5525
      %v5533 = vadd.f32 %v5498, %v5526
      %v5534 = vadd.f32 %v5499, %v5527
      %v5535 = vadd.f32 %v5500, %v5528
      %v5536 = vadd.f32 %v5501, %v5529
      %v5537 = vmul.f32 %v5530, 0.7978846
      %v5538 = vmul.f32 %v5531, 0.7978846
      %v5539 = vmul.f32 %v5532, 0.7978846
      %v5540 = vmul.f32 %v5533, 0.7978846
      %v5541 = vmul.f32 %v5534, 0.7978846
      %v5542 = vmul.f32 %v5535, 0.7978846
      %v5543 = vmul.f32 %v5536, 0.7978846
      %v5544 = vtanh.pop %v5537
      %v5545 = vtanh.pop %v5538
      %v5546 = vtanh.pop %v5539
      %v5547 = vtanh.pop %v5540
      %v5548 = vtanh.pop %v5541
      %v5549 = vtanh.pop %v5542
      %v5550 = vtanh.pop %v5543
      %v5551 = vadd.f32 %v5544, 1.0
      %v5552 = vadd.f32 %v5545, 1.0
      %v5553 = vadd.f32 %v5546, 1.0
      %v5554 = vadd.f32 %v5547, 1.0
      %v5555 = vadd.f32 %v5548, 1.0
      %v5556 = vadd.f32 %v5549, 1.0
      %v5557 = vadd.f32 %v5550, 1.0
      %v5558 = vmul.f32 %v5502, %v5551
      %v5559 = vmul.f32 %v5503, %v5552
      %v5560 = vmul.f32 %v5504, %v5553
      %v5561 = vmul.f32 %v5505, %v5554
      %v5562 = vmul.f32 %v5506, %v5555
      %v5563 = vmul.f32 %v5507, %v5556
      %v5564 = vmul.f32 %v5508, %v5557
      %5565 = vst.msk [vmem:[#allocation3] sm:$0xff] %vm1159, %v5558
      %5566 = vst.msk [vmem:[#allocation3 + $0x8] sm:$0xff] %vm1159, %v5559
      %5567 = vst.msk [vmem:[#allocation3 + $0x10] sm:$0xff] %vm1159, %v5560
      %5568 = vst.msk [vmem:[#allocation3 + $0x18] sm:$0xff] %vm1159, %v5561
      %5569 = vst.msk [vmem:[#allocation3 + $0x20] sm:$0xff] %vm1159, %v5562
      %5570 = vst.msk [vmem:[#allocation3 + $0x28] sm:$0xff] %vm1159, %v5563
      %5571 = vst.msk [vmem:[#allocation3 + $0x30] sm:$0x3] %vm5349, %v5564
      %v5572 = vld [vmem:[#allocation3] ss:$2 sm:$0xff]
      %v5573 = vld [vmem:[%s4399] ss:$2 sm:$0xff]
      %v5574 = vld [vmem:[%s4401] ss:$2 sm:$0xff]
      %v5575 = vld [vmem:[%s4423] ss:$2 sm:$0xff]
      %v5576 = vld [vmem:[%s4425] ss:$2 sm:$0xff]
      %v5577 = vld [vmem:[%s4427] ss:$2 sm:$0xff]
      %v5578 = vld [vmem:[%s4449] ss:$2 sm:$0xff]
      %v5579 = vld [vmem:[%s4451] ss:$2 sm:$0xff]
      %v5580 = vld [vmem:[%s4453] ss:$2 sm:$0xff]
      %5584 = vrot.lane.b32.xlu0 %v5575, 32
      %v5585 = vpop.permute.xlu0 %5584
      %5586 = vrot.lane.b32.xlu0 %v5576, 32
      %v5587 = vpop.permute.xlu0 %5586
      %5588 = vrot.lane.b32.xlu0 %v5577, 32
      %v5589 = vpop.permute.xlu0 %5588
      %5596 = vrot.lane.b32.xlu0 %v5578, 64
      %v5597 = vpop.permute.xlu0 %5596
      %5598 = vrot.lane.b32.xlu0 %v5579, 64
      %v5599 = vpop.permute.xlu0 %5598
      %5600 = vrot.lane.b32.xlu0 %v5580, 64
      %v5601 = vpop.permute.xlu0 %5600
      %v5605 = vsel %vm1159, %v5572, %v5585
      %v5606 = vsel %vm1159, %v5573, %v5587
      %v5607 = vsel %vm1159, %v5574, %v5589
      %v5608 = vsel %vm3292, %v5605, %v5597
      %v5609 = vsel %vm3292, %v5606, %v5599
      %v5610 = vsel %vm3292, %v5607, %v5601
      %s5611 = scalar_lea.vmem %s1, 384
      %v5612 = vld [vmem:[%s5611] sm:$0xff]
      %v5613 = vld [vmem:[%s5611 + $0x8] sm:$0xff]
      %v5614 = vld [vmem:[%s5611 + $0x10] sm:$0xff]
      %v5615 = vld [vmem:[%s5611 + $0x18] sm:$0xff]
      %v5616 = vld [vmem:[%s5611 + $0x20] sm:$0xff]
      %v5617 = vld [vmem:[%s5611 + $0x28] sm:$0xff]
      %v5618 = vld [vmem:[%s5611 + $0x30] sm:$0xff]
      %v5619 = vld [vmem:[%s5611 + $0x38] sm:$0xff]
      %v5620 = vld [vmem:[%s5611 + $0x40] sm:$0xff]
      %v5621 = vld [vmem:[%s5611 + $0x48] sm:$0xff]
      %v5622 = vld [vmem:[%s5611 + $0x50] sm:$0xff]
      %v5623 = vld [vmem:[%s5611 + $0x58] sm:$0xff]
      %s5624 = scalar_lea.vmem %s2, 16
      %v5625 = vld [vmem:[%s5624] sm:$0x1]
      %v5626 = vperm.slane %v5625, 0
      %v5628 = vsel %vm3335, %v5608, 0
      %v5631 = vsel %vm3335, %v5609, 0
      %v5634 = vsel %vm3335, %v5610, 0
      %5636 = vmatpush.msra.mxu0 0.0
      %5637 = vmatpush.msra.mxu0 0.0
      %5638 = vmatpush.msra.mxu0 0.0
      %5639 = vmatpush.msra.mxu0 0.0
      %5640 = vmatpush.msra.mxu0 %v5623
      %5641 = vmatpush.msra.mxu0 %v5622
      %5642 = vmatpush.msra.mxu0 %v5621
      %5643 = vmatpush.msra.mxu0 %v5620
      %5644 = vmatpush.msra.mxu0 %v5619
      %5645 = vmatpush.msra.mxu0 %v5618
      %5646 = vmatpush.msra.mxu0 %v5617
      %5647 = vmatpush.msra.mxu0 %v5616
      %5648 = vmatpush.msra.mxu0 %v5615
      %5649 = vmatpush.msra.mxu0 %v5614
      %5650 = vmatpush.msra.mxu0 %v5613
      %5651 = vmatpush.msra.mxu0 %v5612
      %5652 = vmatmul.f32.gmra.mxu0 %v5628
      %v5653 = vpop.f32.mrf.mxu0
      %v5654 = vadd.f32 %v5626, %v5653
      %5655 = vmatmul.f32.gmra.mxu0 %v5631
      %v5656 = vpop.f32.mrf.mxu0
      %v5657 = vadd.f32 %v5626, %v5656
      %5658 = vmatmul.f32.gmra.mxu0 %v5634
      %v5659 = vpop.f32.mrf.mxu0
      %v5660 = vadd.f32 %v5626, %v5659
      %5661 = vdwg.mxu0
      %v5662 = vld [vmem:[%s5624 + $0x1] sm:$0x1]
      %v5663 = vld [vmem:[%s5624 + $0x2] sm:$0x1]
      %v5664 = vsel %vm1159, %v5654, 0.0
      %5665 = vadd.xlane.f32.xlu0 %v5664
      %v5666 = vpop.xlane.xlu0 %5665
      %v5667 = vsel %vm1159, %v5657, 0.0
      %5668 = vadd.xlane.f32.xlu0 %v5667
      %v5669 = vpop.xlane.xlu0 %5668
      %v5670 = vsel %vm1159, %v5660, 0.0
      %5671 = vadd.xlane.f32.xlu0 %v5670
      %v5672 = vpop.xlane.xlu0 %5671
      %v5673 = vmul.f32 %v5666, %v1319
      %v5674 = vmul.f32 %v5669, %v1319
      %v5675 = vmul.f32 %v5672, %v1319
      %v5676 = vsub.f32 %v5654, %v5673
      %v5677 = vsub.f32 %v5657, %v5674
      %v5678 = vsub.f32 %v5660, %v5675
      %v5679 = vmul.f32 %v5676, %v5676
      %v5680 = vmul.f32 %v5677, %v5677
      %v5681 = vmul.f32 %v5678, %v5678
      %v5682 = vsel %vm1159, %v5679, 0.0
      %5683 = vadd.xlane.f32.xlu0 %v5682
      %v5684 = vpop.xlane.xlu0 %5683
      %v5685 = vsel %vm1159, %v5680, 0.0
      %5686 = vadd.xlane.f32.xlu0 %v5685
      %v5687 = vpop.xlane.xlu0 %5686
      %v5688 = vsel %vm1159, %v5681, 0.0
      %5689 = vadd.xlane.f32.xlu0 %v5688
      %v5690 = vpop.xlane.xlu0 %5689
      %v5691 = vmul.f32 %v5684, %v1319
      %v5692 = vmul.f32 %v5687, %v1319
      %v5693 = vmul.f32 %v5690, %v1319
      %v5694 = vadd.f32 %v5691, 1e-05
      %v5695 = vadd.f32 %v5692, 1e-05
      %v5696 = vadd.f32 %v5693, 1e-05
      %v5697 = vrsqrt.pop %v5694
      %v5698 = vmul.f32 %v5697, %v5694
      %v5699 = vmul.f32 %v5698, %v5697
      %v5700 = vmul.f32 0.5, %v5699
      %v5701 = vsub.f32 1.5, %v5700
      %v5702 = vmul.f32 %v5697, %v5701
      %vm5703 = vweird.f32 %v5694
      %vm5704 = vweird.f32 %v5697
      %vm5705 = vmor %vm5703, %vm5704
      %v5706 = vsel %vm5705, %v5697, %v5702
      %v5707 = vrsqrt.pop %v5695
      %v5708 = vmul.f32 %v5707, %v5695
      %v5709 = vmul.f32 %v5708, %v5707
      %v5710 = vmul.f32 0.5, %v5709
      %v5711 = vsub.f32 1.5, %v5710
      %v5712 = vmul.f32 %v5707, %v5711
      %vm5713 = vweird.f32 %v5695
      %vm5714 = vweird.f32 %v5707
      %vm5715 = vmor %vm5713, %vm5714
      %v5716 = vsel %vm5715, %v5707, %v5712
      %v5717 = vrsqrt.pop %v5696
      %v5718 = vmul.f32 %v5717, %v5696
      %v5719 = vmul.f32 %v5718, %v5717
      %v5720 = vmul.f32 0.5, %v5719
      %v5721 = vsub.f32 1.5, %v5720
      %v5722 = vmul.f32 %v5717, %v5721
      %vm5723 = vweird.f32 %v5696
      %vm5724 = vweird.f32 %v5717
      %vm5725 = vmor %vm5723, %vm5724
      %v5726 = vsel %vm5725, %v5717, %v5722
      %v5727 = vmul.f32 %v5676, %v5706
      %v5728 = vmul.f32 %v5677, %v5716
      %v5729 = vmul.f32 %v5678, %v5726
      %v5730 = vperm.slane %v5662, 0
      %v5731 = vmul.f32 %v5727, %v5730
      %v5732 = vmul.f32 %v5728, %v5730
      %v5733 = vmul.f32 %v5729, %v5730
      %v5734 = vperm.slane %v5663, 0
      %v5735 = vadd.f32 %v5731, %v5734
      %v5736 = vadd.f32 %v5732, %v5734
      %v5737 = vadd.f32 %v5733, %v5734
      %v5738 = vmul.f32 %v5735, 0.5
      %v5739 = vmul.f32 %v5736, 0.5
      %v5740 = vmul.f32 %v5737, 0.5
      %v5741 = vmul.f32 %v5735, 0.044715
      %v5742 = vmul.f32 %v5736, 0.044715
      %v5743 = vmul.f32 %v5737, 0.044715
      %v5744 = vmul.f32 %v5741, %v5735
      %v5745 = vmul.f32 %v5742, %v5736
      %v5746 = vmul.f32 %v5743, %v5737
      %v5747 = vmul.f32 %v5744, %v5735
      %v5748 = vmul.f32 %v5745, %v5736
      %v5749 = vmul.f32 %v5746, %v5737
      %v5750 = vadd.f32 %v5735, %v5747
      %v5751 = vadd.f32 %v5736, %v5748
      %v5752 = vadd.f32 %v5737, %v5749
      %v5753 = vmul.f32 %v5750, 0.7978846
      %v5754 = vmul.f32 %v5751, 0.7978846
      %v5755 = vmul.f32 %v5752, 0.7978846
      %v5756 = vtanh.pop %v5753
      %v5757 = vtanh.pop %v5754
      %v5758 = vtanh.pop %v5755
      %v5759 = vadd.f32 %v5756, 1.0
      %v5760 = vadd.f32 %v5757, 1.0
      %v5761 = vadd.f32 %v5758, 1.0
      %v5762 = vmul.f32 %v5738, %v5759
      %v5763 = vmul.f32 %v5739, %v5760
      %v5764 = vmul.f32 %v5740, %v5761
      %5765 = vst.msk [vmem:[#allocation2] sm:$0xff] %vm1159, %v5762
      %5766 = vst.msk [vmem:[#allocation2 + $0x8] sm:$0xff] %vm1159, %v5763
      %5767 = vst.msk [vmem:[#allocation2 + $0x10] sm:$0xff] %vm1159, %v5764
      %v5768 = vld [vmem:[#allocation2] ss:$2 sm:$0xff]
      %v5769 = vld [vmem:[%s2904] ss:$2 sm:$0xf]
      %v5770 = vld [vmem:[%s2954] ss:$2 sm:$0xff]
      %v5771 = vld [vmem:[%s2956] ss:$2 sm:$0xf]
      %5774 = vrot.lane.b32.xlu0 %v5770, 32
      %v5775 = vpop.permute.xlu0 %5774
      %5776 = vrot.lane.b32.xlu0 %v5771, 32
      %v5777 = vpop.permute.xlu0 %5776
      %v5780 = vsel %vm1159, %v5768, %v5775
      %v5781 = vsel %vm1159, %v5769, %v5777
      %s5782 = scalar_lea.vmem %s1, 480
      %v5783 = vld [vmem:[%s5782] sm:$0xff]
      %v5784 = vld [vmem:[%s5782 + $0x8] sm:$0xff]
      %v5785 = vld [vmem:[%s5782 + $0x10] sm:$0xff]
      %v5786 = vld [vmem:[%s5782 + $0x18] sm:$0xff]
      %v5787 = vld [vmem:[%s5782 + $0x20] sm:$0xff]
      %v5788 = vld [vmem:[%s5782 + $0x28] sm:$0xff]
      %v5789 = vld [vmem:[%s5782 + $0x30] sm:$0xff]
      %v5790 = vld [vmem:[%s5782 + $0x38] sm:$0xff]
      %s5791 = scalar_lea.vmem %s2, 20
      %v5792 = vld [vmem:[%s5791] sm:$0x1]
      %v5793 = vperm.slane %v5792, 0
      %v5795 = vsel %vm3292, %v5780, 0
      %v5798 = vsel %vm3292, %v5781, 0
      %5800 = vmatpush.msra.mxu0 0.0
      %5801 = vmatpush.msra.mxu0 0.0
      %5802 = vmatpush.msra.mxu0 0.0
      %5803 = vmatpush.msra.mxu0 0.0
      %5804 = vmatpush.msra.mxu0 0.0
      %5805 = vmatpush.msra.mxu0 0.0
      %5806 = vmatpush.msra.mxu0 0.0
      %5807 = vmatpush.msra.mxu0 0.0
      %5808 = vmatpush.msra.mxu0 %v5790
      %5809 = vmatpush.msra.mxu0 %v5789
      %5810 = vmatpush.msra.mxu0 %v5788
      %5811 = vmatpush.msra.mxu0 %v5787
      %5812 = vmatpush.msra.mxu0 %v5786
      %5813 = vmatpush.msra.mxu0 %v5785
      %5814 = vmatpush.msra.mxu0 %v5784
      %5815 = vmatpush.msra.mxu0 %v5783
      %5816 = vmatmul.f32.gmra.mxu0 %v5795
      %v5817 = vpop.f32.mrf.mxu0
      %v5818 = vadd.f32 %v5793, %v5817
      %5819 = vmatmul.f32.gmra.mxu0 %v5798
      %v5820 = vpop.f32.mrf.mxu0
      %v5821 = vadd.f32 %v5793, %v5820
      %5822 = vdwg.mxu0
      %v5823 = vld [vmem:[%s5791 + $0x1] sm:$0x1]
      %v5824 = vld [vmem:[%s5791 + $0x2] sm:$0x1]
      %v5825 = vsel %vm1159, %v5818, 0.0
      %5826 = vadd.xlane.f32.xlu0 %v5825
      %v5827 = vpop.xlane.xlu0 %5826
      %vm5828 = vcmask 257024
      %v5829 = vsel %vm5828, %v5821, 0.0
      %5830 = vadd.xlane.f32.xlu0 %v5829
      %v5831 = vpop.xlane.xlu0 %5830
      %v5832 = vmul.f32 %v5827, %v1319
      %v5833 = vmul.f32 %v5831, %v1319
      %v5834 = vsub.f32 %v5818, %v5832
      %v5835 = vsub.f32 %v5821, %v5833
      %v5836 = vmul.f32 %v5834, %v5834
      %v5837 = vmul.f32 %v5835, %v5835
      %v5838 = vsel %vm1159, %v5836, 0.0
      %5839 = vadd.xlane.f32.xlu0 %v5838
      %v5840 = vpop.xlane.xlu0 %5839
      %v5841 = vsel %vm5828, %v5837, 0.0
      %5842 = vadd.xlane.f32.xlu0 %v5841
      %v5843 = vpop.xlane.xlu0 %5842
      %v5844 = vmul.f32 %v5840, %v1319
      %v5845 = vmul.f32 %v5843, %v1319
      %v5846 = vadd.f32 %v5844, 1e-05
      %v5847 = vadd.f32 %v5845, 1e-05
      %v5848 = vrsqrt.pop %v5846
      %v5849 = vmul.f32 %v5848, %v5846
      %v5850 = vmul.f32 %v5849, %v5848
      %v5851 = vmul.f32 0.5, %v5850
      %v5852 = vsub.f32 1.5, %v5851
      %v5853 = vmul.f32 %v5848, %v5852
      %vm5854 = vweird.f32 %v5846
      %vm5855 = vweird.f32 %v5848
      %vm5856 = vmor %vm5854, %vm5855
      %v5857 = vsel %vm5856, %v5848, %v5853
      %v5858 = vrsqrt.pop %v5847
      %v5859 = vmul.f32 %v5858, %v5847
      %v5860 = vmul.f32 %v5859, %v5858
      %v5861 = vmul.f32 0.5, %v5860
      %v5862 = vsub.f32 1.5, %v5861
      %v5863 = vmul.f32 %v5858, %v5862
      %vm5864 = vweird.f32 %v5847
      %vm5865 = vweird.f32 %v5858
      %vm5866 = vmor %vm5864, %vm5865
      %v5867 = vsel %vm5866, %v5858, %v5863
      %v5868 = vmul.f32 %v5834, %v5857
      %v5869 = vmul.f32 %v5835, %v5867
      %v5870 = vperm.slane %v5823, 0
      %v5871 = vmul.f32 %v5868, %v5870
      %v5872 = vmul.f32 %v5869, %v5870
      %v5873 = vperm.slane %v5824, 0
      %v5874 = vadd.f32 %v5871, %v5873
      %v5875 = vadd.f32 %v5872, %v5873
      %v5876 = vmul.f32 %v5874, 0.5
      %v5877 = vmul.f32 %v5875, 0.5
      %v5878 = vmul.f32 %v5874, 0.044715
      %v5879 = vmul.f32 %v5875, 0.044715
      %v5880 = vmul.f32 %v5878, %v5874
      %v5881 = vmul.f32 %v5879, %v5875
      %v5882 = vmul.f32 %v5880, %v5874
      %v5883 = vmul.f32 %v5881, %v5875
      %v5884 = vadd.f32 %v5874, %v5882
      %v5885 = vadd.f32 %v5875, %v5883
      %v5886 = vmul.f32 %v5884, 0.7978846
      %v5887 = vmul.f32 %v5885, 0.7978846
      %v5888 = vtanh.pop %v5886
      %v5889 = vtanh.pop %v5887
      %v5890 = vadd.f32 %v5888, 1.0
      %v5891 = vadd.f32 %v5889, 1.0
      %v5892 = vmul.f32 %v5876, %v5890
      %v5893 = vmul.f32 %v5877, %v5891
      %5894 = vst.msk [vmem:[#allocation3] sm:$0xff] %vm1159, %v5892
      %5895 = vst.msk [vmem:[#allocation3 + $0x8] sm:$0xf] %vm5828, %v5893
      %v5896 = vld [vmem:[#allocation3] ss:$2 sm:$0x3f]
      %v5897 = vld [vmem:[%s4423] ss:$2 sm:$0x3f]
      %5899 = vrot.lane.b32.xlu0 %v5897, 32
      %v5900 = vpop.permute.xlu0 %5899
      %v5902 = vsel %vm1159, %v5896, %v5900
      %s5903 = scalar_lea.vmem %s1, 576
      %v5904 = vld [vmem:[%s5903] sm:$0xff]
      %v5905 = vld [vmem:[%s5903 + $0x8] sm:$0xff]
      %v5906 = vld [vmem:[%s5903 + $0x10] sm:$0xff]
      %v5907 = vld [vmem:[%s5903 + $0x18] sm:$0xff]
      %v5908 = vld [vmem:[%s5903 + $0x20] sm:$0xff]
      %v5909 = vld [vmem:[%s5903 + $0x28] sm:$0xff]
      %v5910 = vld [vmem:[%s5903 + $0x30] sm:$0xff]
      %v5911 = vld [vmem:[%s5903 + $0x38] sm:$0xff]
      %s5912 = scalar_lea.vmem %s2, 24
      %v5913 = vld [vmem:[%s5912] sm:$0x1]
      %v5914 = vperm.slane %v5913, 0
      %v5916 = vsel %vm3292, %v5902, 0
      %5918 = vmatpush.msra.mxu0 0.0
      %5919 = vmatpush.msra.mxu0 0.0
      %5920 = vmatpush.msra.mxu0 0.0
      %5921 = vmatpush.msra.mxu0 0.0
      %5922 = vmatpush.msra.mxu0 0.0
      %5923 = vmatpush.msra.mxu0 0.0
      %5924 = vmatpush.msra.mxu0 0.0
      %5925 = vmatpush.msra.mxu0 0.0
      %5926 = vmatpush.msra.mxu0 %v5911
      %5927 = vmatpush.msra.mxu0 %v5910
      %5928 = vmatpush.msra.mxu0 %v5909
      %5929 = vmatpush.msra.mxu0 %v5908
      %5930 = vmatpush.msra.mxu0 %v5907
      %5931 = vmatpush.msra.mxu0 %v5906
      %5932 = vmatpush.msra.mxu0 %v5905
      %5933 = vmatpush.msra.mxu0 %v5904
      %5934 = vmatmul.f32.gmra.mxu0 %v5916
      %v5935 = vpop.f32.mrf.mxu0
      %v5936 = vadd.f32 %v5914, %v5935
      %5937 = vdwg.mxu0
      %v5938 = vld [vmem:[%s5912 + $0x1] sm:$0x1]
      %v5939 = vld [vmem:[%s5912 + $0x2] sm:$0x1]
      %vm5940 = vcmask 259072
      %v5941 = vsel %vm5940, %v5936, 0.0
      %5942 = vadd.xlane.f32.xlu0 %v5941
      %v5943 = vpop.xlane.xlu0 %5942
      %v5944 = vmul.f32 %v5943, %v1319
      %v5945 = vsub.f32 %v5936, %v5944
      %v5946 = vmul.f32 %v5945, %v5945
      %v5947 = vsel %vm5940, %v5946, 0.0
      %5948 = vadd.xlane.f32.xlu0 %v5947
      %v5949 = vpop.xlane.xlu0 %5948
      %v5950 = vmul.f32 %v5949, %v1319
      %v5951 = vadd.f32 %v5950, 1e-05
      %v5952 = vrsqrt.pop %v5951
      %v5953 = vmul.f32 %v5952, %v5951
      %v5954 = vmul.f32 %v5953, %v5952
      %v5955 = vmul.f32 0.5, %v5954
      %v5956 = vsub.f32 1.5, %v5955
      %v5957 = vmul.f32 %v5952, %v5956
      %vm5958 = vweird.f32 %v5951
      %vm5959 = vweird.f32 %v5952
      %vm5960 = vmor %vm5958, %vm5959
      %v5961 = vsel %vm5960, %v5952, %v5957
      %v5962 = vmul.f32 %v5945, %v5961
      %v5963 = vperm.slane %v5938, 0
      %v5964 = vmul.f32 %v5962, %v5963
      %v5965 = vperm.slane %v5939, 0
      %v5966 = vadd.f32 %v5964, %v5965
      %v5967 = vmul.f32 %v5966, 0.5
      %v5968 = vmul.f32 %v5966, 0.044715
      %v5969 = vmul.f32 %v5968, %v5966
      %v5970 = vmul.f32 %v5969, %v5966
      %v5971 = vadd.f32 %v5966, %v5970
      %v5972 = vmul.f32 %v5971, 0.7978846
      %v5973 = vtanh.pop %v5972
      %v5974 = vadd.f32 %v5973, 1.0
      %v5975 = vmul.f32 %v5967, %v5974
      %v5976 = vld [vmem:[%s11] sm:$0x1]
      %v5977 = vld [vmem:[%s11 + $0x1] sm:$0x1]
      %v5978 = vsel %vm5940, %v5975, 0.0
      %5979 = vadd.xlane.f32.xlu0 %v5978
      %v5980 = vpop.xlane.xlu0 %5979
      %v5981 = vmul.f32 %v5980, %v1319
      %v5982 = vsub.f32 %v5975, %v5981
      %v5983 = vmul.f32 %v5982, %v5982
      %v5984 = vsel %vm5940, %v5983, 0.0
      %5985 = vadd.xlane.f32.xlu0 %v5984
      %v5986 = vpop.xlane.xlu0 %5985
      %v5987 = vmul.f32 %v5986, %v1319
      %v5988 = vadd.f32 %v5987, 1e-05
      %v5989 = vrsqrt.pop %v5988
      %v5990 = vmul.f32 %v5989, %v5988
      %v5991 = vmul.f32 %v5990, %v5989
      %v5992 = vmul.f32 0.5, %v5991
      %v5993 = vsub.f32 1.5, %v5992
      %v5994 = vmul.f32 %v5989, %v5993
      %vm5995 = vweird.f32 %v5988
      %vm5996 = vweird.f32 %v5989
      %vm5997 = vmor %vm5995, %vm5996
      %v5998 = vsel %vm5997, %v5989, %v5994
      %v5999 = vmul.f32 %v5982, %v5998
      %v6000 = vperm.slane %v5976, 0
      %v6001 = vmul.f32 %v5999, %v6000
      %v6002 = vperm.slane %v5977, 0
      %v6003 = vadd.f32 %v6001, %v6002
      %v6004 = vld [vmem:[%s3] sm:$0xff]
      %v6005 = vld [vmem:[%s3 + $0x8] sm:$0xff]
      %v6006 = vld [vmem:[%s3 + $0x10] sm:$0xff]
      %v6007 = vld [vmem:[%s3 + $0x18] sm:$0xff]
      %v6008 = vld [vmem:[%s11 + $0x2] sm:$0x1]
      %v6009 = vperm.slane %v6008, 0
      %v6011 = vsel %vm1159, %v6003, 0
      %6013 = vmatpush.msra.mxu0 0.0
      %6014 = vmatpush.msra.mxu0 0.0
      %6015 = vmatpush.msra.mxu0 0.0
      %6016 = vmatpush.msra.mxu0 0.0
      %6017 = vmatpush.msra.mxu0 0.0
      %6018 = vmatpush.msra.mxu0 0.0
      %6019 = vmatpush.msra.mxu0 0.0
      %6020 = vmatpush.msra.mxu0 0.0
      %6021 = vmatpush.msra.mxu0 0.0
      %6022 = vmatpush.msra.mxu0 0.0
      %6023 = vmatpush.msra.mxu0 0.0
      %6024 = vmatpush.msra.mxu0 0.0
      %6025 = vmatpush.msra.mxu0 %v6007
      %6026 = vmatpush.msra.mxu0 %v6006
      %6027 = vmatpush.msra.mxu0 %v6005
      %6028 = vmatpush.msra.mxu0 %v6004
      %6029 = vmatmul.f32.gmra.mxu0 %v6011
      %v6030 = vpop.f32.mrf.mxu0
      %v6031 = vadd.f32 %v6009, %v6030
      %6032 = vdwg.mxu0
      %v6034 = vrot.slane %v6031, 3
      %vm6036 = vcmask 1044480
      %v6037 = vsel %vm6036, 0.0, %v6034
      %vm6038 = vcmask 1042432
      %v6039 = vsel %vm6038, %v6034, 0.0
      %v6041 = vrot.slane %v6037, 1
      %6042 = vrot.lane.b32.xlu0 %v6041, 32
      %v6043 = vpop.permute.xlu0 %6042
      %v6045 = vrot.slane %v6037, 2
      %6046 = vrot.lane.b32.xlu0 %v6045, 64
      %v6047 = vpop.permute.xlu0 %6046
      %v6050 = vrot.slane %v6037, 3
      %v6051 = vrot.slane %v6039, 3
      %v6052 = vsel %vm6036, %v6050, %v6051
      %6053 = vrot.lane.b32.xlu0 %v6052, 96
      %v6054 = vpop.permute.xlu0 %6053
      %vm6056 = vcmask 1043456
      %v6057 = vrot.slane %v6037, 4
      %v6058 = vrot.slane %v6039, 4
      %v6059 = vsel %vm6056, %v6057, %v6058
      %v6061 = vrot.slane %v6037, 5
      %v6062 = vrot.slane %v6039, 5
      %v6063 = vsel %vm6038, %v6061, %v6062
      %6064 = vrot.lane.b32.xlu0 %v6063, 32
      %v6065 = vpop.permute.xlu0 %6064
      %v6067 = vrot.slane %v6037, 6
      %v6068 = vrot.slane %v6039, 6
      %v6069 = vsel %vm983, %v6067, %v6068
      %6070 = vrot.lane.b32.xlu0 %v6069, 64
      %v6071 = vpop.permute.xlu0 %6070
      %vm6073 = vcmask 1040384
      %v6074 = vrot.slane %v6037, 7
      %v6075 = vrot.slane %v6039, 7
      %v6076 = vsel %vm6073, %v6074, %v6075
      %6077 = vrot.lane.b32.xlu0 %v6076, 96
      %v6078 = vpop.permute.xlu0 %6077
      %v6080 = vrot.slane %v6039, 1
      %6081 = vrot.lane.b32.xlu0 %v6080, 32
      %v6082 = vpop.permute.xlu0 %6081
      %v6084 = vrot.slane %v6039, 2
      %6085 = vrot.lane.b32.xlu0 %v6084, 64
      %v6086 = vpop.permute.xlu0 %6085
      %v6088 = vsel %vm1159, %v6037, %v6043
      %v6089 = vsel %vm3292, %v6088, %v6047
      %v6090 = vsel %vm3335, %v6089, %v6054
      %v6091 = vsel %vm1159, %v6059, %v6065
      %v6092 = vsel %vm3292, %v6091, %v6071
      %v6093 = vsel %vm3335, %v6092, %v6078
      %v6094 = vsel %vm1159, %v6039, %v6082
      %v6095 = vsel %vm3292, %v6094, %v6086
      %v6096 = vld [vmem:[%s4] sm:$0xff]
      %v6097 = vld [vmem:[%s4 + $0x8] sm:$0xff]
      %v6098 = vld [vmem:[%s4 + $0x10] sm:$0xff]
      %v6099 = vld [vmem:[%s4 + $0x18] sm:$0xff]
      %v6100 = vld [vmem:[%s4 + $0x20] sm:$0xff]
      %v6101 = vld [vmem:[%s4 + $0x28] sm:$0xff]
      %v6102 = vld [vmem:[%s4 + $0x30] sm:$0xff]
      %v6103 = vld [vmem:[%s4 + $0x38] sm:$0xff]
      %v6104 = vld [vmem:[%s4 + $0x40] sm:$0xff]
      %v6105 = vld [vmem:[%s4 + $0x48] sm:$0xff]
      %v6106 = vld [vmem:[%s4 + $0x50] sm:$0xff]
      %v6107 = vld [vmem:[%s4 + $0x58] sm:$0xff]
      %v6108 = vld [vmem:[%s4 + $0x60] sm:$0xff]
      %v6109 = vld [vmem:[%s4 + $0x68] sm:$0xff]
      %v6110 = vld [vmem:[%s4 + $0x70] sm:$0xff]
      %v6111 = vld [vmem:[%s4 + $0x78] sm:$0xff]
      %v6112 = vld [vmem:[%s4 + $0x80] sm:$0xff]
      %v6113 = vld [vmem:[%s4 + $0x88] sm:$0xff]
      %v6114 = vld [vmem:[%s4 + $0x90] sm:$0xff]
      %v6115 = vld [vmem:[%s4 + $0x98] sm:$0xff]
      %v6116 = vld [vmem:[%s4 + $0xa0] sm:$0xff]
      %v6117 = vld [vmem:[%s4 + $0xa8] sm:$0xff]
      %v6118 = vld [vmem:[%s4 + $0xb0] sm:$0xff]
      %v6119 = vld [vmem:[%s4 + $0xb8] sm:$0xff]
      %v6120 = vld [vmem:[%s4 + $0xc0] sm:$0xff]
      %v6121 = vld [vmem:[%s4 + $0xc8] sm:$0xff]
      %v6122 = vld [vmem:[%s4 + $0xd0] sm:$0xff]
      %v6123 = vld [vmem:[%s4 + $0xd8] sm:$0xff]
      %v6124 = vld [vmem:[%s4 + $0xe0] sm:$0xff]
      %v6125 = vld [vmem:[%s4 + $0xe8] sm:$0xff]
      %v6126 = vld [vmem:[%s4 + $0xf0] sm:$0xff]
      %v6127 = vld [vmem:[%s4 + $0xf8] sm:$0xff]
      %v6128 = vld [vmem:[%s4 + $0x100] sm:$0xff]
      %v6129 = vld [vmem:[%s4 + $0x108] sm:$0xff]
      %v6130 = vld [vmem:[%s4 + $0x110] sm:$0xff]
      %v6131 = vld [vmem:[%s4 + $0x118] sm:$0xff]
      %v6132 = vld [vmem:[%s4 + $0x120] sm:$0xff]
      %v6133 = vld [vmem:[%s4 + $0x128] sm:$0xff]
      %v6134 = vld [vmem:[%s4 + $0x130] sm:$0xff]
      %v6135 = vld [vmem:[%s4 + $0x138] sm:$0xff]
      %v6136 = vld [vmem:[%s4 + $0x140] sm:$0xff]
      %v6137 = vld [vmem:[%s4 + $0x148] sm:$0xff]
      %v6138 = vld [vmem:[%s4 + $0x150] sm:$0xff]
      %v6139 = vld [vmem:[%s4 + $0x158] sm:$0xff]
      %v6140 = vld [vmem:[%s11 + $0x3] sm:$0x1]
      %v6141 = vperm.slane %v6140, 0
      %v6143 = vsel %vm3335, %v6095, 0
      %6145 = vmatpush.msra.mxu0 %v6111
      %6146 = vmatpush.msra.mxu0 %v6110
      %6147 = vmatpush.msra.mxu0 %v6109
      %6148 = vmatpush.msra.mxu0 %v6108
      %6149 = vmatpush.msra.mxu0 %v6107
      %6150 = vmatpush.msra.mxu0 %v6106
      %6151 = vmatpush.msra.mxu0 %v6105
      %6152 = vmatpush.msra.mxu0 %v6104
      %6153 = vmatpush.msra.mxu0 %v6103
      %6154 = vmatpush.msra.mxu0 %v6102
      %6155 = vmatpush.msra.mxu0 %v6101
      %6156 = vmatpush.msra.mxu0 %v6100
      %6157 = vmatpush.msra.mxu0 %v6099
      %6158 = vmatpush.msra.mxu0 %v6098
      %6159 = vmatpush.msra.mxu0 %v6097
      %6160 = vmatpush.msra.mxu0 %v6096
      %6161 = vmatmul.f32.gmra.mxu0 %v6090
      %v6162 = vpop.f32.mrf.mxu0
      %v6163 = vadd.f32 %v6141, %v6162
      %6164 = vdwg.mxu0
      %6165 = vmatpush.msra.mxu0 %v6127
      %6166 = vmatpush.msra.mxu0 %v6126
      %6167 = vmatpush.msra.mxu0 %v6125
      %6168 = vmatpush.msra.mxu0 %v6124
      %6169 = vmatpush.msra.mxu0 %v6123
      %6170 = vmatpush.msra.mxu0 %v6122
      %6171 = vmatpush.msra.mxu0 %v6121
      %6172 = vmatpush.msra.mxu0 %v6120
      %6173 = vmatpush.msra.mxu0 %v6119
      %6174 = vmatpush.msra.mxu0 %v6118
      %6175 = vmatpush.msra.mxu0 %v6117
      %6176 = vmatpush.msra.mxu0 %v6116
      %6177 = vmatpush.msra.mxu0 %v6115
      %6178 = vmatpush.msra.mxu0 %v6114
      %6179 = vmatpush.msra.mxu0 %v6113
      %6180 = vmatpush.msra.mxu0 %v6112
      %6181 = vmatmul.f32.gmra.mxu0 %v6093
      %v6182 = vpop.f32.mrf.mxu0
      %v6183 = vadd.f32 %v6163, %v6182
      %6184 = vdwg.mxu0
      %6185 = vmatpush.msra.mxu0 0.0
      %6186 = vmatpush.msra.mxu0 0.0
      %6187 = vmatpush.msra.mxu0 0.0
      %6188 = vmatpush.msra.mxu0 0.0
      %6189 = vmatpush.msra.mxu0 %v6139
      %6190 = vmatpush.msra.mxu0 %v6138
      %6191 = vmatpush.msra.mxu0 %v6137
      %6192 = vmatpush.msra.mxu0 %v6136
      %6193 = vmatpush.msra.mxu0 %v6135
      %6194 = vmatpush.msra.mxu0 %v6134
      %6195 = vmatpush.msra.mxu0 %v6133
      %6196 = vmatpush.msra.mxu0 %v6132
      %6197 = vmatpush.msra.mxu0 %v6131
      %6198 = vmatpush.msra.mxu0 %v6130
      %6199 = vmatpush.msra.mxu0 %v6129
      %6200 = vmatpush.msra.mxu0 %v6128
      %6201 = vmatmul.f32.gmra.mxu0 %v6143
      %v6202 = vpop.f32.mrf.mxu0
      %v6203 = vadd.f32 %v6183, %v6202
      %6204 = vdwg.mxu0
      %v6205 = vmul.f32 %v6203, 0.5
      %v6206 = vmul.f32 %v6203, 0.044715
      %v6207 = vmul.f32 %v6206, %v6203
      %v6208 = vmul.f32 %v6207, %v6203
      %v6209 = vadd.f32 %v6203, %v6208
      %v6210 = vmul.f32 %v6209, 0.7978846
      %v6211 = vtanh.pop %v6210
      %v6212 = vadd.f32 %v6211, 1.0
      %v6213 = vmul.f32 %v6205, %v6212
      %v6214 = vadd.f32 %v6031, %v6213
      %v6215 = vld [vmem:[%s11 + $0x4] sm:$0x1]
      %v6216 = vld [vmem:[%s11 + $0x5] sm:$0x1]
      %v6217 = vsel %vm5940, %v6214, 0.0
      %6218 = vadd.xlane.f32.xlu0 %v6217
      %v6219 = vpop.xlane.xlu0 %6218
      %v6220 = vmul.f32 %v6219, %v1319
      %v6221 = vsub.f32 %v6214, %v6220
      %v6222 = vmul.f32 %v6221, %v6221
      %v6223 = vsel %vm5940, %v6222, 0.0
      %6224 = vadd.xlane.f32.xlu0 %v6223
      %v6225 = vpop.xlane.xlu0 %6224
      %v6226 = vmul.f32 %v6225, %v1319
      %v6227 = vadd.f32 %v6226, 1e-05
      %v6228 = vrsqrt.pop %v6227
      %v6229 = vmul.f32 %v6228, %v6227
      %v6230 = vmul.f32 %v6229, %v6228
      %v6231 = vmul.f32 0.5, %v6230
      %v6232 = vsub.f32 1.5, %v6231
      %v6233 = vmul.f32 %v6228, %v6232
      %vm6234 = vweird.f32 %v6227
      %vm6235 = vweird.f32 %v6228
      %vm6236 = vmor %vm6234, %vm6235
      %v6237 = vsel %vm6236, %v6228, %v6233
      %v6238 = vmul.f32 %v6221, %v6237
      %v6239 = vperm.slane %v6215, 0
      %v6240 = vmul.f32 %v6238, %v6239
      %v6241 = vperm.slane %v6216, 0
      %v6242 = vadd.f32 %v6240, %v6241
      %v6243 = vld [vmem:[%s5] sm:$0xff]
      %v6244 = vld [vmem:[%s5 + $0x8] sm:$0xff]
      %v6245 = vld [vmem:[%s5 + $0x10] sm:$0xff]
      %v6246 = vld [vmem:[%s5 + $0x18] sm:$0xff]
      %v6247 = vld [vmem:[%s6] sm:$0x1]
      %v6249 = vperm.slane %v6247, 0
      %v6252 = vsel %vm1159, %v6242, 0
      %6254 = vmatpush.msra.mxu0 0.0
      %6255 = vmatpush.msra.mxu0 0.0
      %6256 = vmatpush.msra.mxu0 0.0
      %6257 = vmatpush.msra.mxu0 0.0
      %6258 = vmatpush.msra.mxu0 0.0
      %6259 = vmatpush.msra.mxu0 0.0
      %6260 = vmatpush.msra.mxu0 0.0
      %6261 = vmatpush.msra.mxu0 0.0
      %6262 = vmatpush.msra.mxu0 0.0
      %6263 = vmatpush.msra.mxu0 0.0
      %6264 = vmatpush.msra.mxu0 0.0
      %6265 = vmatpush.msra.mxu0 0.0
      %6266 = vmatpush.msra.mxu0 %v6246
      %6267 = vmatpush.msra.mxu0 %v6245
      %6268 = vmatpush.msra.mxu0 %v6244
      %6269 = vmatpush.msra.mxu0 %v6243
      %6270 = vmatmul.f32.gmra.mxu0 %v6252
      %v6271 = vpop.f32.mrf.mxu0
      %v6272 = vadd.f32 %v6249, %v6271
      %6273 = vdwg.mxu0
      %s6274 = scalar_lea.vmem %s5, 128
      %v6275 = vld [vmem:[%s6274] sm:$0xff]
      %v6276 = vld [vmem:[%s6274 + $0x8] sm:$0xff]
      %v6277 = vld [vmem:[%s6274 + $0x10] sm:$0xff]
      %v6278 = vld [vmem:[%s6274 + $0x18] sm:$0xff]
      %6279 = vmatpush.msra.mxu0 0.0
      %6280 = vmatpush.msra.mxu0 0.0
      %6281 = vmatpush.msra.mxu0 0.0
      %6282 = vmatpush.msra.mxu0 0.0
      %6283 = vmatpush.msra.mxu0 0.0
      %6284 = vmatpush.msra.mxu0 0.0
      %6285 = vmatpush.msra.mxu0 0.0
      %6286 = vmatpush.msra.mxu0 0.0
      %6287 = vmatpush.msra.mxu0 0.0
      %6288 = vmatpush.msra.mxu0 0.0
      %6289 = vmatpush.msra.mxu0 0.0
      %6290 = vmatpush.msra.mxu0 0.0
      %6291 = vmatpush.msra.mxu0 %v6278
      %6292 = vmatpush.msra.mxu0 %v6277
      %6293 = vmatpush.msra.mxu0 %v6276
      %6294 = vmatpush.msra.mxu0 %v6275
      %6295 = vmatmul.f32.gmra.mxu0 %v6252
      %v6296 = vpop.f32.mrf.mxu0
      %v6297 = vadd.f32 0.0, %v6296
      %6298 = vdwg.mxu0
      %s6299 = scalar_lea.vmem %s5, 256
      %v6300 = vld [vmem:[%s6299] sm:$0xff]
      %v6301 = vld [vmem:[%s6299 + $0x8] sm:$0xff]
      %v6302 = vld [vmem:[%s6299 + $0x10] sm:$0xff]
      %v6303 = vld [vmem:[%s6299 + $0x18] sm:$0xff]
      %6304 = vmatpush.msra.mxu0 0.0
      %6305 = vmatpush.msra.mxu0 0.0
      %6306 = vmatpush.msra.mxu0 0.0
      %6307 = vmatpush.msra.mxu0 0.0
      %6308 = vmatpush.msra.mxu0 0.0
      %6309 = vmatpush.msra.mxu0 0.0
      %6310 = vmatpush.msra.mxu0 0.0
      %6311 = vmatpush.msra.mxu0 0.0
      %6312 = vmatpush.msra.mxu0 0.0
      %6313 = vmatpush.msra.mxu0 0.0
      %6314 = vmatpush.msra.mxu0 0.0
      %6315 = vmatpush.msra.mxu0 0.0
      %6316 = vmatpush.msra.mxu0 %v6303
      %6317 = vmatpush.msra.mxu0 %v6302
      %6318 = vmatpush.msra.mxu0 %v6301
      %6319 = vmatpush.msra.mxu0 %v6300
      %6320 = vmatmul.f32.gmra.mxu0 %v6252
      %v6321 = vpop.f32.mrf.mxu0
      %v6322 = vadd.f32 0.0, %v6321
      %6323 = vdwg.mxu0
      %vm6324 = vcmask 64512
      %v6326 = vsel %vm6324, %v6272, 0
      %v6329 = vsel %vm6324, %v6297, 0
      %6331 = vmatpush.xpose.msra.mxu0 0.0
      %6332 = vmatpush.xpose.msra.mxu0 0.0
      %6333 = vmatpush.xpose.msra.mxu0 0.0
      %6334 = vmatpush.xpose.msra.mxu0 0.0
      %6335 = vmatpush.xpose.msra.mxu0 0.0
      %6336 = vmatpush.xpose.msra.mxu0 0.0
      %6337 = vmatpush.xpose.msra.mxu0 0.0
      %6338 = vmatpush.xpose.msra.mxu0 0.0
      %6339 = vmatpush.xpose.msra.mxu0 0.0
      %6340 = vmatpush.xpose.msra.mxu0 0.0
      %6341 = vmatpush.xpose.msra.mxu0 0.0
      %6342 = vmatpush.xpose.msra.mxu0 0.0
      %6343 = vmatpush.xpose.msra.mxu0 0.0
      %6344 = vmatpush.xpose.msra.mxu0 0.0
      %6345 = vmatpush.xpose.msra.mxu0 0.0
      %6346 = vmatpush.xpose.msra.mxu0 %v6329
      %6347 = vmatmul.f32.gmra.mxu0 %v6326
      %v6348 = vpop.f32.mrf.mxu0
      %v6349 = vadd.f32 0.0, %v6348
      %6350 = vdwg.mxu0
      %vm6351 = vcmask 46080
      %v6352 = vsel %vm6351, %v6349, -inf
      %6353 = vmax.xlane.f32.xlu0 %v6352
      %v6354 = vpop.xlane.xlu0 %6353
      %v6355 = vsub.f32 %v6349, %v6354
      %v6356 = vmul.f32 %v6355, 1.442695
      %v6357 = vpow.pop %v6356
      %v6358 = vsel %vm6351, %v6357, 0.0
      %6359 = vadd.xlane.f32.xlu0 %v6358
      %v6360 = vpop.xlane.xlu0 %6359
      %v6361 = vrcp.pop %v6360
      %v6362 = vmul.f32 %v6357, %v6361
      %vm6363 = vcmask 48128
      %v6365 = vsel %vm6363, %v6362, 0
      %vm6367 = vcmask 1045504
      %v6369 = vsel %vm6367, %v6322, 0
      %6371 = vmatpush.msra.mxu0 0.0
      %6372 = vmatpush.msra.mxu0 0.0
      %6373 = vmatpush.msra.mxu0 0.0
      %6374 = vmatpush.msra.mxu0 0.0
      %6375 = vmatpush.msra.mxu0 0.0
      %6376 = vmatpush.msra.mxu0 0.0
      %6377 = vmatpush.msra.mxu0 0.0
      %6378 = vmatpush.msra.mxu0 0.0
      %6379 = vmatpush.msra.mxu0 0.0
      %6380 = vmatpush.msra.mxu0 0.0
      %6381 = vmatpush.msra.mxu0 0.0
      %6382 = vmatpush.msra.mxu0 0.0
      %6383 = vmatpush.msra.mxu0 0.0
      %6384 = vmatpush.msra.mxu0 0.0
      %6385 = vmatpush.msra.mxu0 0.0
      %6386 = vmatpush.msra.mxu0 %v6369
      %6387 = vmatmul.f32.gmra.mxu0 %v6365
      %v6388 = vpop.f32.mrf.mxu0
      %v6389 = vadd.f32 0.0, %v6388
      %6390 = vdwg.mxu0
      %v6391 = vld [vmem:[%s7] sm:$0xff]
      %s6392 = scalar_lea.vmem %s5, 32
      %v6393 = vld [vmem:[%s6392] sm:$0xff]
      %v6394 = vld [vmem:[%s6392 + $0x8] sm:$0xff]
      %v6395 = vld [vmem:[%s6392 + $0x10] sm:$0xff]
      %v6396 = vld [vmem:[%s6392 + $0x18] sm:$0xff]
      %s6397 = scalar_lea.vmem %s6, 1
      %v6398 = vld [vmem:[%s6397] sm:$0x1]
      %v6400 = vperm.slane %v6398, 0
      %6402 = vmatpush.msra.mxu0 0.0
      %6403 = vmatpush.msra.mxu0 0.0
      %6404 = vmatpush.msra.mxu0 0.0
      %6405 = vmatpush.msra.mxu0 0.0
      %6406 = vmatpush.msra.mxu0 0.0
      %6407 = vmatpush.msra.mxu0 0.0
      %6408 = vmatpush.msra.mxu0 0.0
      %6409 = vmatpush.msra.mxu0 0.0
      %6410 = vmatpush.msra.mxu0 0.0
      %6411 = vmatpush.msra.mxu0 0.0
      %6412 = vmatpush.msra.mxu0 0.0
      %6413 = vmatpush.msra.mxu0 0.0
      %6414 = vmatpush.msra.mxu0 %v6396
      %6415 = vmatpush.msra.mxu0 %v6395
      %6416 = vmatpush.msra.mxu0 %v6394
      %6417 = vmatpush.msra.mxu0 %v6393
      %6418 = vmatmul.f32.gmra.mxu0 %v6252
      %v6419 = vpop.f32.mrf.mxu0
      %v6420 = vadd.f32 %v6400, %v6419
      %6421 = vdwg.mxu0
      %s6422 = scalar_lea.vmem %s5, 160
      %v6423 = vld [vmem:[%s6422] sm:$0xff]
      %v6424 = vld [vmem:[%s6422 + $0x8] sm:$0xff]
      %v6425 = vld [vmem:[%s6422 + $0x10] sm:$0xff]
      %v6426 = vld [vmem:[%s6422 + $0x18] sm:$0xff]
      %6427 = vmatpush.msra.mxu0 0.0
      %6428 = vmatpush.msra.mxu0 0.0
      %6429 = vmatpush.msra.mxu0 0.0
      %6430 = vmatpush.msra.mxu0 0.0
      %6431 = vmatpush.msra.mxu0 0.0
      %6432 = vmatpush.msra.mxu0 0.0
      %6433 = vmatpush.msra.mxu0 0.0
      %6434 = vmatpush.msra.mxu0 0.0
      %6435 = vmatpush.msra.mxu0 0.0
      %6436 = vmatpush.msra.mxu0 0.0
      %6437 = vmatpush.msra.mxu0 0.0
      %6438 = vmatpush.msra.mxu0 0.0
      %6439 = vmatpush.msra.mxu0 %v6426
      %6440 = vmatpush.msra.mxu0 %v6425
      %6441 = vmatpush.msra.mxu0 %v6424
      %6442 = vmatpush.msra.mxu0 %v6423
      %6443 = vmatmul.f32.gmra.mxu0 %v6252
      %v6444 = vpop.f32.mrf.mxu0
      %v6445 = vadd.f32 0.0, %v6444
      %6446 = vdwg.mxu0
      %s6447 = scalar_lea.vmem %s5, 288
      %v6448 = vld [vmem:[%s6447] sm:$0xff]
      %v6449 = vld [vmem:[%s6447 + $0x8] sm:$0xff]
      %v6450 = vld [vmem:[%s6447 + $0x10] sm:$0xff]
      %v6451 = vld [vmem:[%s6447 + $0x18] sm:$0xff]
      %6452 = vmatpush.msra.mxu0 0.0
      %6453 = vmatpush.msra.mxu0 0.0
      %6454 = vmatpush.msra.mxu0 0.0
      %6455 = vmatpush.msra.mxu0 0.0
      %6456 = vmatpush.msra.mxu0 0.0
      %6457 = vmatpush.msra.mxu0 0.0
      %6458 = vmatpush.msra.mxu0 0.0
      %6459 = vmatpush.msra.mxu0 0.0
      %6460 = vmatpush.msra.mxu0 0.0
      %6461 = vmatpush.msra.mxu0 0.0
      %6462 = vmatpush.msra.mxu0 0.0
      %6463 = vmatpush.msra.mxu0 0.0
      %6464 = vmatpush.msra.mxu0 %v6451
      %6465 = vmatpush.msra.mxu0 %v6450
      %6466 = vmatpush.msra.mxu0 %v6449
      %6467 = vmatpush.msra.mxu0 %v6448
      %6468 = vmatmul.f32.gmra.mxu0 %v6252
      %v6469 = vpop.f32.mrf.mxu0
      %v6470 = vadd.f32 0.0, %v6469
      %6471 = vdwg.mxu0
      %v6473 = vsel %vm6324, %v6420, 0
      %v6476 = vsel %vm6324, %v6445, 0
      %6478 = vmatpush.xpose.msra.mxu0 0.0
      %6479 = vmatpush.xpose.msra.mxu0 0.0
      %6480 = vmatpush.xpose.msra.mxu0 0.0
      %6481 = vmatpush.xpose.msra.mxu0 0.0
      %6482 = vmatpush.xpose.msra.mxu0 0.0
      %6483 = vmatpush.xpose.msra.mxu0 0.0
      %6484 = vmatpush.xpose.msra.mxu0 0.0
      %6485 = vmatpush.xpose.msra.mxu0 0.0
      %6486 = vmatpush.xpose.msra.mxu0 0.0
      %6487 = vmatpush.xpose.msra.mxu0 0.0
      %6488 = vmatpush.xpose.msra.mxu0 0.0
      %6489 = vmatpush.xpose.msra.mxu0 0.0
      %6490 = vmatpush.xpose.msra.mxu0 0.0
      %6491 = vmatpush.xpose.msra.mxu0 0.0
      %6492 = vmatpush.xpose.msra.mxu0 0.0
      %6493 = vmatpush.xpose.msra.mxu0 %v6476
      %6494 = vmatmul.f32.gmra.mxu0 %v6473
      %v6495 = vpop.f32.mrf.mxu0
      %v6496 = vadd.f32 0.0, %v6495
      %6497 = vdwg.mxu0
      %v6498 = vsel %vm6351, %v6496, -inf
      %6499 = vmax.xlane.f32.xlu0 %v6498
      %v6500 = vpop.xlane.xlu0 %6499
      %v6501 = vsub.f32 %v6496, %v6500
      %v6502 = vmul.f32 %v6501, 1.442695
      %v6503 = vpow.pop %v6502
      %v6504 = vsel %vm6351, %v6503, 0.0
      %6505 = vadd.xlane.f32.xlu0 %v6504
      %v6506 = vpop.xlane.xlu0 %6505
      %v6507 = vrcp.pop %v6506
      %v6508 = vmul.f32 %v6503, %v6507
      %v6510 = vsel %vm6363, %v6508, 0
      %v6513 = vsel %vm6367, %v6470, 0
      %6515 = vmatpush.msra.mxu0 0.0
      %6516 = vmatpush.msra.mxu0 0.0
      %6517 = vmatpush.msra.mxu0 0.0
      %6518 = vmatpush.msra.mxu0 0.0
      %6519 = vmatpush.msra.mxu0 0.0
      %6520 = vmatpush.msra.mxu0 0.0
      %6521 = vmatpush.msra.mxu0 0.0
      %6522 = vmatpush.msra.mxu0 0.0
      %6523 = vmatpush.msra.mxu0 0.0
      %6524 = vmatpush.msra.mxu0 0.0
      %6525 = vmatpush.msra.mxu0 0.0
      %6526 = vmatpush.msra.mxu0 0.0
      %6527 = vmatpush.msra.mxu0 0.0
      %6528 = vmatpush.msra.mxu0 0.0
      %6529 = vmatpush.msra.mxu0 0.0
      %6530 = vmatpush.msra.mxu0 %v6513
      %6531 = vmatmul.f32.gmra.mxu0 %v6510
      %v6532 = vpop.f32.mrf.mxu0
      %v6533 = vadd.f32 0.0, %v6532
      %6534 = vdwg.mxu0
      %s6535 = scalar_lea.vmem %s7, 8
      %v6536 = vld [vmem:[%s6535] sm:$0xff]
      %v6538 = vsel %vm6324, %v6533, 0
      %6540 = vmatpush.msra.mxu0 0.0
      %6541 = vmatpush.msra.mxu0 0.0
      %6542 = vmatpush.msra.mxu0 0.0
      %6543 = vmatpush.msra.mxu0 0.0
      %6544 = vmatpush.msra.mxu0 0.0
      %6545 = vmatpush.msra.mxu0 0.0
      %6546 = vmatpush.msra.mxu0 0.0
      %6547 = vmatpush.msra.mxu0 0.0
      %6548 = vmatpush.msra.mxu0 0.0
      %6549 = vmatpush.msra.mxu0 0.0
      %6550 = vmatpush.msra.mxu0 0.0
      %6551 = vmatpush.msra.mxu0 0.0
      %6552 = vmatpush.msra.mxu0 0.0
      %6553 = vmatpush.msra.mxu0 0.0
      %6554 = vmatpush.msra.mxu0 0.0
      %6555 = vmatpush.msra.mxu0 %v6536
      %6556 = vmatmul.f32.gmra.mxu0 %v6538
      %v6557 = vpop.f32.mrf.mxu0
      %v6558 = vadd.f32 0.0, %v6557
      %6559 = vdwg.mxu0
      %v6561 = vsel %vm6324, %v6389, 0
      %6563 = vmatpush.msra.mxu0 0.0
      %6564 = vmatpush.msra.mxu0 0.0
      %6565 = vmatpush.msra.mxu0 0.0
      %6566 = vmatpush.msra.mxu0 0.0
      %6567 = vmatpush.msra.mxu0 0.0
      %6568 = vmatpush.msra.mxu0 0.0
      %6569 = vmatpush.msra.mxu0 0.0
      %6570 = vmatpush.msra.mxu0 0.0
      %6571 = vmatpush.msra.mxu0 0.0
      %6572 = vmatpush.msra.mxu0 0.0
      %6573 = vmatpush.msra.mxu0 0.0
      %6574 = vmatpush.msra.mxu0 0.0
      %6575 = vmatpush.msra.mxu0 0.0
      %6576 = vmatpush.msra.mxu0 0.0
      %6577 = vmatpush.msra.mxu0 0.0
      %6578 = vmatpush.msra.mxu0 %v6391
      %6579 = vmatmul.f32.gmra.mxu0 %v6561
      %v6580 = vpop.f32.mrf.mxu0
      %v6581 = vadd.f32 %v6558, %v6580
      %6582 = vdwg.mxu0
      %s6583 = scalar_lea.vmem %s5, 64
      %v6584 = vld [vmem:[%s6583] sm:$0xff]
      %v6585 = vld [vmem:[%s6583 + $0x8] sm:$0xff]
      %v6586 = vld [vmem:[%s6583 + $0x10] sm:$0xff]
      %v6587 = vld [vmem:[%s6583 + $0x18] sm:$0xff]
      %s6588 = scalar_lea.vmem %s6, 2
      %v6589 = vld [vmem:[%s6588] sm:$0x1]
      %v6591 = vperm.slane %v6589, 0
      %6593 = vmatpush.msra.mxu0 0.0
      %6594 = vmatpush.msra.mxu0 0.0
      %6595 = vmatpush.msra.mxu0 0.0
      %6596 = vmatpush.msra.mxu0 0.0
      %6597 = vmatpush.msra.mxu0 0.0
      %6598 = vmatpush.msra.mxu0 0.0
      %6599 = vmatpush.msra.mxu0 0.0
      %6600 = vmatpush.msra.mxu0 0.0
      %6601 = vmatpush.msra.mxu0 0.0
      %6602 = vmatpush.msra.mxu0 0.0
      %6603 = vmatpush.msra.mxu0 0.0
      %6604 = vmatpush.msra.mxu0 0.0
      %6605 = vmatpush.msra.mxu0 %v6587
      %6606 = vmatpush.msra.mxu0 %v6586
      %6607 = vmatpush.msra.mxu0 %v6585
      %6608 = vmatpush.msra.mxu0 %v6584
      %6609 = vmatmul.f32.gmra.mxu0 %v6252
      %v6610 = vpop.f32.mrf.mxu0
      %v6611 = vadd.f32 %v6591, %v6610
      %6612 = vdwg.mxu0
      %s6613 = scalar_lea.vmem %s5, 192
      %v6614 = vld [vmem:[%s6613] sm:$0xff]
      %v6615 = vld [vmem:[%s6613 + $0x8] sm:$0xff]
      %v6616 = vld [vmem:[%s6613 + $0x10] sm:$0xff]
      %v6617 = vld [vmem:[%s6613 + $0x18] sm:$0xff]
      %6618 = vmatpush.msra.mxu0 0.0
      %6619 = vmatpush.msra.mxu0 0.0
      %6620 = vmatpush.msra.mxu0 0.0
      %6621 = vmatpush.msra.mxu0 0.0
      %6622 = vmatpush.msra.mxu0 0.0
      %6623 = vmatpush.msra.mxu0 0.0
      %6624 = vmatpush.msra.mxu0 0.0
      %6625 = vmatpush.msra.mxu0 0.0
      %6626 = vmatpush.msra.mxu0 0.0
      %6627 = vmatpush.msra.mxu0 0.0
      %6628 = vmatpush.msra.mxu0 0.0
      %6629 = vmatpush.msra.mxu0 0.0
      %6630 = vmatpush.msra.mxu0 %v6617
      %6631 = vmatpush.msra.mxu0 %v6616
      %6632 = vmatpush.msra.mxu0 %v6615
      %6633 = vmatpush.msra.mxu0 %v6614
      %6634 = vmatmul.f32.gmra.mxu0 %v6252
      %v6635 = vpop.f32.mrf.mxu0
      %v6636 = vadd.f32 0.0, %v6635
      %6637 = vdwg.mxu0
      %s6638 = scalar_lea.vmem %s5, 320
      %v6639 = vld [vmem:[%s6638] sm:$0xff]
      %v6640 = vld [vmem:[%s6638 + $0x8] sm:$0xff]
      %v6641 = vld [vmem:[%s6638 + $0x10] sm:$0xff]
      %v6642 = vld [vmem:[%s6638 + $0x18] sm:$0xff]
      %6643 = vmatpush.msra.mxu0 0.0
      %6644 = vmatpush.msra.mxu0 0.0
      %6645 = vmatpush.msra.mxu0 0.0
      %6646 = vmatpush.msra.mxu0 0.0
      %6647 = vmatpush.msra.mxu0 0.0
      %6648 = vmatpush.msra.mxu0 0.0
      %6649 = vmatpush.msra.mxu0 0.0
      %6650 = vmatpush.msra.mxu0 0.0
      %6651 = vmatpush.msra.mxu0 0.0
      %6652 = vmatpush.msra.mxu0 0.0
      %6653 = vmatpush.msra.mxu0 0.0
      %6654 = vmatpush.msra.mxu0 0.0
      %6655 = vmatpush.msra.mxu0 %v6642
      %6656 = vmatpush.msra.mxu0 %v6641
      %6657 = vmatpush.msra.mxu0 %v6640
      %6658 = vmatpush.msra.mxu0 %v6639
      %6659 = vmatmul.f32.gmra.mxu0 %v6252
      %v6660 = vpop.f32.mrf.mxu0
      %v6661 = vadd.f32 0.0, %v6660
      %6662 = vdwg.mxu0
      %v6664 = vsel %vm6324, %v6611, 0
      %v6667 = vsel %vm6324, %v6636, 0
      %6669 = vmatpush.xpose.msra.mxu0 0.0
      %6670 = vmatpush.xpose.msra.mxu0 0.0
      %6671 = vmatpush.xpose.msra.mxu0 0.0
      %6672 = vmatpush.xpose.msra.mxu0 0.0
      %6673 = vmatpush.xpose.msra.mxu0 0.0
      %6674 = vmatpush.xpose.msra.mxu0 0.0
      %6675 = vmatpush.xpose.msra.mxu0 0.0
      %6676 = vmatpush.xpose.msra.mxu0 0.0
      %6677 = vmatpush.xpose.msra.mxu0 0.0
      %6678 = vmatpush.xpose.msra.mxu0 0.0
      %6679 = vmatpush.xpose.msra.mxu0 0.0
      %6680 = vmatpush.xpose.msra.mxu0 0.0
      %6681 = vmatpush.xpose.msra.mxu0 0.0
      %6682 = vmatpush.xpose.msra.mxu0 0.0
      %6683 = vmatpush.xpose.msra.mxu0 0.0
      %6684 = vmatpush.xpose.msra.mxu0 %v6667
      %6685 = vmatmul.f32.gmra.mxu0 %v6664
      %v6686 = vpop.f32.mrf.mxu0
      %v6687 = vadd.f32 0.0, %v6686
      %6688 = vdwg.mxu0
      %v6689 = vsel %vm6351, %v6687, -inf
      %6690 = vmax.xlane.f32.xlu0 %v6689
      %v6691 = vpop.xlane.xlu0 %6690
      %v6692 = vsub.f32 %v6687, %v6691
      %v6693 = vmul.f32 %v6692, 1.442695
      %v6694 = vpow.pop %v6693
      %v6695 = vsel %vm6351, %v6694, 0.0
      %6696 = vadd.xlane.f32.xlu0 %v6695
      %v6697 = vpop.xlane.xlu0 %6696
      %v6698 = vrcp.pop %v6697
      %v6699 = vmul.f32 %v6694, %v6698
      %v6701 = vsel %vm6363, %v6699, 0
      %v6704 = vsel %vm6367, %v6661, 0
      %6706 = vmatpush.msra.mxu0 0.0
      %6707 = vmatpush.msra.mxu0 0.0
      %6708 = vmatpush.msra.mxu0 0.0
      %6709 = vmatpush.msra.mxu0 0.0
      %6710 = vmatpush.msra.mxu0 0.0
      %6711 = vmatpush.msra.mxu0 0.0
      %6712 = vmatpush.msra.mxu0 0.0
      %6713 = vmatpush.msra.mxu0 0.0
      %6714 = vmatpush.msra.mxu0 0.0
      %6715 = vmatpush.msra.mxu0 0.0
      %6716 = vmatpush.msra.mxu0 0.0
      %6717 = vmatpush.msra.mxu0 0.0
      %6718 = vmatpush.msra.mxu0 0.0
      %6719 = vmatpush.msra.mxu0 0.0
      %6720 = vmatpush.msra.mxu0 0.0
      %6721 = vmatpush.msra.mxu0 %v6704
      %6722 = vmatmul.f32.gmra.mxu0 %v6701
      %v6723 = vpop.f32.mrf.mxu0
      %v6724 = vadd.f32 0.0, %v6723
      %6725 = vdwg.mxu0
      %s6726 = scalar_lea.vmem %s7, 16
      %v6727 = vld [vmem:[%s6726] sm:$0xff]
      %v6729 = vsel %vm6324, %v6724, 0
      %6731 = vmatpush.msra.mxu0 0.0
      %6732 = vmatpush.msra.mxu0 0.0
      %6733 = vmatpush.msra.mxu0 0.0
      %6734 = vmatpush.msra.mxu0 0.0
      %6735 = vmatpush.msra.mxu0 0.0
      %6736 = vmatpush.msra.mxu0 0.0
      %6737 = vmatpush.msra.mxu0 0.0
      %6738 = vmatpush.msra.mxu0 0.0
      %6739 = vmatpush.msra.mxu0 0.0
      %6740 = vmatpush.msra.mxu0 0.0
      %6741 = vmatpush.msra.mxu0 0.0
      %6742 = vmatpush.msra.mxu0 0.0
      %6743 = vmatpush.msra.mxu0 0.0
      %6744 = vmatpush.msra.mxu0 0.0
      %6745 = vmatpush.msra.mxu0 0.0
      %6746 = vmatpush.msra.mxu0 %v6727
      %6747 = vmatmul.f32.gmra.mxu0 %v6729
      %v6748 = vpop.f32.mrf.mxu0
      %v6749 = vadd.f32 0.0, %v6748
      %6750 = vdwg.mxu0
      %v6751 = vadd.f32 %v6581, %v6749
      %s6752 = scalar_lea.vmem %s5, 96
      %v6753 = vld [vmem:[%s6752] sm:$0xff]
      %v6754 = vld [vmem:[%s6752 + $0x8] sm:$0xff]
      %v6755 = vld [vmem:[%s6752 + $0x10] sm:$0xff]
      %v6756 = vld [vmem:[%s6752 + $0x18] sm:$0xff]
      %s6757 = scalar_lea.vmem %s6, 3
      %v6758 = vld [vmem:[%s6757] sm:$0x1]
      %v6760 = vperm.slane %v6758, 0
      %6762 = vmatpush.msra.mxu0 0.0
      %6763 = vmatpush.msra.mxu0 0.0
      %6764 = vmatpush.msra.mxu0 0.0
      %6765 = vmatpush.msra.mxu0 0.0
      %6766 = vmatpush.msra.mxu0 0.0
      %6767 = vmatpush.msra.mxu0 0.0
      %6768 = vmatpush.msra.mxu0 0.0
      %6769 = vmatpush.msra.mxu0 0.0
      %6770 = vmatpush.msra.mxu0 0.0
      %6771 = vmatpush.msra.mxu0 0.0
      %6772 = vmatpush.msra.mxu0 0.0
      %6773 = vmatpush.msra.mxu0 0.0
      %6774 = vmatpush.msra.mxu0 %v6756
      %6775 = vmatpush.msra.mxu0 %v6755
      %6776 = vmatpush.msra.mxu0 %v6754
      %6777 = vmatpush.msra.mxu0 %v6753
      %6778 = vmatmul.f32.gmra.mxu0 %v6252
      %v6779 = vpop.f32.mrf.mxu0
      %v6780 = vadd.f32 %v6760, %v6779
      %6781 = vdwg.mxu0
      %s6782 = scalar_lea.vmem %s5, 224
      %v6783 = vld [vmem:[%s6782] sm:$0xff]
      %v6784 = vld [vmem:[%s6782 + $0x8] sm:$0xff]
      %v6785 = vld [vmem:[%s6782 + $0x10] sm:$0xff]
      %v6786 = vld [vmem:[%s6782 + $0x18] sm:$0xff]
      %6787 = vmatpush.msra.mxu0 0.0
      %6788 = vmatpush.msra.mxu0 0.0
      %6789 = vmatpush.msra.mxu0 0.0
      %6790 = vmatpush.msra.mxu0 0.0
      %6791 = vmatpush.msra.mxu0 0.0
      %6792 = vmatpush.msra.mxu0 0.0
      %6793 = vmatpush.msra.mxu0 0.0
      %6794 = vmatpush.msra.mxu0 0.0
      %6795 = vmatpush.msra.mxu0 0.0
      %6796 = vmatpush.msra.mxu0 0.0
      %6797 = vmatpush.msra.mxu0 0.0
      %6798 = vmatpush.msra.mxu0 0.0
      %6799 = vmatpush.msra.mxu0 %v6786
      %6800 = vmatpush.msra.mxu0 %v6785
      %6801 = vmatpush.msra.mxu0 %v6784
      %6802 = vmatpush.msra.mxu0 %v6783
      %6803 = vmatmul.f32.gmra.mxu0 %v6252
      %v6804 = vpop.f32.mrf.mxu0
      %v6805 = vadd.f32 0.0, %v6804
      %6806 = vdwg.mxu0
      %s6807 = scalar_lea.vmem %s5, 352
      %v6808 = vld [vmem:[%s6807] sm:$0xff]
      %v6809 = vld [vmem:[%s6807 + $0x8] sm:$0xff]
      %v6810 = vld [vmem:[%s6807 + $0x10] sm:$0xff]
      %v6811 = vld [vmem:[%s6807 + $0x18] sm:$0xff]
      %6812 = vmatpush.msra.mxu0 0.0
      %6813 = vmatpush.msra.mxu0 0.0
      %6814 = vmatpush.msra.mxu0 0.0
      %6815 = vmatpush.msra.mxu0 0.0
      %6816 = vmatpush.msra.mxu0 0.0
      %6817 = vmatpush.msra.mxu0 0.0
      %6818 = vmatpush.msra.mxu0 0.0
      %6819 = vmatpush.msra.mxu0 0.0
      %6820 = vmatpush.msra.mxu0 0.0
      %6821 = vmatpush.msra.mxu0 0.0
      %6822 = vmatpush.msra.mxu0 0.0
      %6823 = vmatpush.msra.mxu0 0.0
      %6824 = vmatpush.msra.mxu0 %v6811
      %6825 = vmatpush.msra.mxu0 %v6810
      %6826 = vmatpush.msra.mxu0 %v6809
      %6827 = vmatpush.msra.mxu0 %v6808
      %6828 = vmatmul.f32.gmra.mxu0 %v6252
      %v6829 = vpop.f32.mrf.mxu0
      %v6830 = vadd.f32 0.0, %v6829
      %6831 = vdwg.mxu0
      %v6833 = vsel %vm6324, %v6780, 0
      %v6836 = vsel %vm6324, %v6805, 0
      %6838 = vmatpush.xpose.msra.mxu0 0.0
      %6839 = vmatpush.xpose.msra.mxu0 0.0
      %6840 = vmatpush.xpose.msra.mxu0 0.0
      %6841 = vmatpush.xpose.msra.mxu0 0.0
      %6842 = vmatpush.xpose.msra.mxu0 0.0
      %6843 = vmatpush.xpose.msra.mxu0 0.0
      %6844 = vmatpush.xpose.msra.mxu0 0.0
      %6845 = vmatpush.xpose.msra.mxu0 0.0
      %6846 = vmatpush.xpose.msra.mxu0 0.0
      %6847 = vmatpush.xpose.msra.mxu0 0.0
      %6848 = vmatpush.xpose.msra.mxu0 0.0
      %6849 = vmatpush.xpose.msra.mxu0 0.0
      %6850 = vmatpush.xpose.msra.mxu0 0.0
      %6851 = vmatpush.xpose.msra.mxu0 0.0
      %6852 = vmatpush.xpose.msra.mxu0 0.0
      %6853 = vmatpush.xpose.msra.mxu0 %v6836
      %6854 = vmatmul.f32.gmra.mxu0 %v6833
      %v6855 = vpop.f32.mrf.mxu0
      %v6856 = vadd.f32 0.0, %v6855
      %6857 = vdwg.mxu0
      %v6858 = vsel %vm6351, %v6856, -inf
      %6859 = vmax.xlane.f32.xlu0 %v6858
      %v6860 = vpop.xlane.xlu0 %6859
      %v6861 = vsub.f32 %v6856, %v6860
      %v6862 = vmul.f32 %v6861, 1.442695
      %v6863 = vpow.pop %v6862
      %v6864 = vsel %vm6351, %v6863, 0.0
      %6865 = vadd.xlane.f32.xlu0 %v6864
      %v6866 = vpop.xlane.xlu0 %6865
      %v6867 = vrcp.pop %v6866
      %v6868 = vmul.f32 %v6863, %v6867
      %v6870 = vsel %vm6363, %v6868, 0
      %v6873 = vsel %vm6367, %v6830, 0
      %6875 = vmatpush.msra.mxu0 0.0
      %6876 = vmatpush.msra.mxu0 0.0
      %6877 = vmatpush.msra.mxu0 0.0
      %6878 = vmatpush.msra.mxu0 0.0
      %6879 = vmatpush.msra.mxu0 0.0
      %6880 = vmatpush.msra.mxu0 0.0
      %6881 = vmatpush.msra.mxu0 0.0
      %6882 = vmatpush.msra.mxu0 0.0
      %6883 = vmatpush.msra.mxu0 0.0
      %6884 = vmatpush.msra.mxu0 0.0
      %6885 = vmatpush.msra.mxu0 0.0
      %6886 = vmatpush.msra.mxu0 0.0
      %6887 = vmatpush.msra.mxu0 0.0
      %6888 = vmatpush.msra.mxu0 0.0
      %6889 = vmatpush.msra.mxu0 0.0
      %6890 = vmatpush.msra.mxu0 %v6873
      %6891 = vmatmul.f32.gmra.mxu0 %v6870
      %v6892 = vpop.f32.mrf.mxu0
      %v6893 = vadd.f32 0.0, %v6892
      %6894 = vdwg.mxu0
      %s6895 = scalar_lea.vmem %s7, 24
      %v6896 = vld [vmem:[%s6895] sm:$0xff]
      %v6898 = vsel %vm6324, %v6893, 0
      %6900 = vmatpush.msra.mxu0 0.0
      %6901 = vmatpush.msra.mxu0 0.0
      %6902 = vmatpush.msra.mxu0 0.0
      %6903 = vmatpush.msra.mxu0 0.0
      %6904 = vmatpush.msra.mxu0 0.0
      %6905 = vmatpush.msra.mxu0 0.0
      %6906 = vmatpush.msra.mxu0 0.0
      %6907 = vmatpush.msra.mxu0 0.0
      %6908 = vmatpush.msra.mxu0 0.0
      %6909 = vmatpush.msra.mxu0 0.0
      %6910 = vmatpush.msra.mxu0 0.0
      %6911 = vmatpush.msra.mxu0 0.0
      %6912 = vmatpush.msra.mxu0 0.0
      %6913 = vmatpush.msra.mxu0 0.0
      %6914 = vmatpush.msra.mxu0 0.0
      %6915 = vmatpush.msra.mxu0 %v6896
      %6916 = vmatmul.f32.gmra.mxu0 %v6898
      %v6917 = vpop.f32.mrf.mxu0
      %v6918 = vadd.f32 0.0, %v6917
      %6919 = vdwg.mxu0
      %v6920 = vadd.f32 %v6751, %v6918
      %v6921 = vadd.f32 %v6214, %v6920
      %v6922 = vld [vmem:[%s11 + $0x6] sm:$0x1]
      %v6923 = vperm.slane %v6922, 0
      %v6924 = vadd.f32 %v6921, %v6923
      %v6925 = vld [vmem:[%s11 + $0x7] sm:$0x1]
      %v6926 = vld [vmem:[%s11 + $0x8] sm:$0x1]
      %v6927 = vsel %vm5940, %v6924, 0.0
      %6928 = vadd.xlane.f32.xlu0 %v6927
      %v6929 = vpop.xlane.xlu0 %6928
      %v6930 = vmul.f32 %v6929, %v1319
      %v6931 = vsub.f32 %v6924, %v6930
      %v6932 = vmul.f32 %v6931, %v6931
      %v6933 = vsel %vm5940, %v6932, 0.0
      %6934 = vadd.xlane.f32.xlu0 %v6933
      %v6935 = vpop.xlane.xlu0 %6934
      %v6936 = vmul.f32 %v6935, %v1319
      %v6937 = vadd.f32 %v6936, 1e-05
      %v6938 = vrsqrt.pop %v6937
      %v6939 = vmul.f32 %v6938, %v6937
      %v6940 = vmul.f32 %v6939, %v6938
      %v6941 = vmul.f32 0.5, %v6940
      %v6942 = vsub.f32 1.5, %v6941
      %v6943 = vmul.f32 %v6938, %v6942
      %vm6944 = vweird.f32 %v6937
      %vm6945 = vweird.f32 %v6938
      %vm6946 = vmor %vm6944, %vm6945
      %v6947 = vsel %vm6946, %v6938, %v6943
      %v6948 = vmul.f32 %v6931, %v6947
      %v6949 = vperm.slane %v6925, 0
      %v6950 = vmul.f32 %v6948, %v6949
      %v6951 = vperm.slane %v6926, 0
      %v6952 = vadd.f32 %v6950, %v6951
      %v6953 = vld [vmem:[%s8] sm:$0xff]
      %v6954 = vld [vmem:[%s8 + $0x8] sm:$0xff]
      %v6955 = vld [vmem:[%s8 + $0x10] sm:$0xff]
      %v6956 = vld [vmem:[%s8 + $0x18] sm:$0xff]
      %v6957 = vld [vmem:[%s9] sm:$0x1]
      %v6959 = vperm.slane %v6957, 0
      %v6962 = vsel %vm1159, %v6952, 0
      %6964 = vmatpush.msra.mxu0 0.0
      %6965 = vmatpush.msra.mxu0 0.0
      %6966 = vmatpush.msra.mxu0 0.0
      %6967 = vmatpush.msra.mxu0 0.0
      %6968 = vmatpush.msra.mxu0 0.0
      %6969 = vmatpush.msra.mxu0 0.0
      %6970 = vmatpush.msra.mxu0 0.0
      %6971 = vmatpush.msra.mxu0 0.0
      %6972 = vmatpush.msra.mxu0 0.0
      %6973 = vmatpush.msra.mxu0 0.0
      %6974 = vmatpush.msra.mxu0 0.0
      %6975 = vmatpush.msra.mxu0 0.0
      %6976 = vmatpush.msra.mxu0 %v6956
      %6977 = vmatpush.msra.mxu0 %v6955
      %6978 = vmatpush.msra.mxu0 %v6954
      %6979 = vmatpush.msra.mxu0 %v6953
      %6980 = vmatmul.f32.gmra.mxu0 %v6962
      %v6981 = vpop.f32.mrf.mxu0
      %v6982 = vadd.f32 %v6959, %v6981
      %6983 = vdwg.mxu0
      %v6984 = vmul.f32 %v6982, 0.5
      %v6985 = vmul.f32 %v6982, 0.044715
      %v6986 = vmul.f32 %v6985, %v6982
      %v6987 = vmul.f32 %v6986, %v6982
      %v6988 = vadd.f32 %v6982, %v6987
      %v6989 = vmul.f32 %v6988, 0.7978846
      %v6990 = vtanh.pop %v6989
      %v6991 = vadd.f32 %v6990, 1.0
      %v6992 = vmul.f32 %v6984, %v6991
      %v6993 = vld [vmem:[%s10] sm:$0xff]
      %v6994 = vld [vmem:[%s10 + $0x8] sm:$0xff]
      %v6995 = vld [vmem:[%s10 + $0x10] sm:$0xff]
      %v6996 = vld [vmem:[%s10 + $0x18] sm:$0xff]
      %v6997 = vld [vmem:[%s10 + $0x20] sm:$0xff]
      %v6998 = vld [vmem:[%s10 + $0x28] sm:$0xff]
      %v6999 = vld [vmem:[%s10 + $0x30] sm:$0xff]
      %v7000 = vld [vmem:[%s10 + $0x38] sm:$0xff]
      %v7001 = vld [vmem:[%s11 + $0x9] sm:$0x1]
      %v7002 = vperm.slane %v7001, 0
      %v7004 = vsel %vm3292, %v6992, 0
      %7006 = vmatpush.msra.mxu0 0.0
      %7007 = vmatpush.msra.mxu0 0.0
      %7008 = vmatpush.msra.mxu0 0.0
      %7009 = vmatpush.msra.mxu0 0.0
      %7010 = vmatpush.msra.mxu0 0.0
      %7011 = vmatpush.msra.mxu0 0.0
      %7012 = vmatpush.msra.mxu0 0.0
      %7013 = vmatpush.msra.mxu0 0.0
      %7014 = vmatpush.msra.mxu0 %v7000
      %7015 = vmatpush.msra.mxu0 %v6999
      %7016 = vmatpush.msra.mxu0 %v6998
      %7017 = vmatpush.msra.mxu0 %v6997
      %7018 = vmatpush.msra.mxu0 %v6996
      %7019 = vmatpush.msra.mxu0 %v6995
      %7020 = vmatpush.msra.mxu0 %v6994
      %7021 = vmatpush.msra.mxu0 %v6993
      %7022 = vmatmul.f32.gmra.mxu0 %v7004
      %v7023 = vpop.f32.mrf.mxu0
      %v7024 = vadd.f32 %v7002, %v7023
      %7025 = vdwg.mxu0
      %v7026 = vadd.f32 %v6924, %v7024
      %v7027 = vld [vmem:[%s11 + $0xa] sm:$0x1]
      %v7028 = vld [vmem:[%s11 + $0xb] sm:$0x1]
      %v7029 = vsel %vm5940, %v7026, 0.0
      %7030 = vadd.xlane.f32.xlu0 %v7029
      %v7031 = vpop.xlane.xlu0 %7030
      %v7032 = vmul.f32 %v7031, %v1319
      %v7033 = vsub.f32 %v7026, %v7032
      %v7034 = vmul.f32 %v7033, %v7033
      %v7035 = vsel %vm5940, %v7034, 0.0
      %7036 = vadd.xlane.f32.xlu0 %v7035
      %v7037 = vpop.xlane.xlu0 %7036
      %v7038 = vmul.f32 %v7037, %v1319
      %v7039 = vadd.f32 %v7038, 1e-05
      %v7040 = vrsqrt.pop %v7039
      %v7041 = vmul.f32 %v7040, %v7039
      %v7042 = vmul.f32 %v7041, %v7040
      %v7043 = vmul.f32 0.5, %v7042
      %v7044 = vsub.f32 1.5, %v7043
      %v7045 = vmul.f32 %v7040, %v7044
      %vm7046 = vweird.f32 %v7039
      %vm7047 = vweird.f32 %v7040
      %vm7048 = vmor %vm7046, %vm7047
      %v7049 = vsel %vm7048, %v7040, %v7045
      %v7050 = vmul.f32 %v7033, %v7049
      %v7051 = vperm.slane %v7027, 0
      %v7052 = vmul.f32 %v7050, %v7051
      %v7053 = vperm.slane %v7028, 0
      %v7054 = vadd.f32 %v7052, %v7053
      %s7055 = scalar_lea.vmem %s5, 384
      %v7056 = vld [vmem:[%s7055] sm:$0xff]
      %v7057 = vld [vmem:[%s7055 + $0x8] sm:$0xff]
      %v7058 = vld [vmem:[%s7055 + $0x10] sm:$0xff]
      %v7059 = vld [vmem:[%s7055 + $0x18] sm:$0xff]
      %s7060 = scalar_lea.vmem %s6, 4
      %v7061 = vld [vmem:[%s7060] sm:$0x1]
      %v7063 = vperm.slane %v7061, 0
      %v7066 = vsel %vm1159, %v7054, 0
      %7068 = vmatpush.msra.mxu0 0.0
      %7069 = vmatpush.msra.mxu0 0.0
      %7070 = vmatpush.msra.mxu0 0.0
      %7071 = vmatpush.msra.mxu0 0.0
      %7072 = vmatpush.msra.mxu0 0.0
      %7073 = vmatpush.msra.mxu0 0.0
      %7074 = vmatpush.msra.mxu0 0.0
      %7075 = vmatpush.msra.mxu0 0.0
      %7076 = vmatpush.msra.mxu0 0.0
      %7077 = vmatpush.msra.mxu0 0.0
      %7078 = vmatpush.msra.mxu0 0.0
      %7079 = vmatpush.msra.mxu0 0.0
      %7080 = vmatpush.msra.mxu0 %v7059
      %7081 = vmatpush.msra.mxu0 %v7058
      %7082 = vmatpush.msra.mxu0 %v7057
      %7083 = vmatpush.msra.mxu0 %v7056
      %7084 = vmatmul.f32.gmra.mxu0 %v7066
      %v7085 = vpop.f32.mrf.mxu0
      %v7086 = vadd.f32 %v7063, %v7085
      %7087 = vdwg.mxu0
      %s7088 = scalar_lea.vmem %s5, 512
      %v7089 = vld [vmem:[%s7088] sm:$0xff]
      %v7090 = vld [vmem:[%s7088 + $0x8] sm:$0xff]
      %v7091 = vld [vmem:[%s7088 + $0x10] sm:$0xff]
      %v7092 = vld [vmem:[%s7088 + $0x18] sm:$0xff]
      %7093 = vmatpush.msra.mxu0 0.0
      %7094 = vmatpush.msra.mxu0 0.0
      %7095 = vmatpush.msra.mxu0 0.0
      %7096 = vmatpush.msra.mxu0 0.0
      %7097 = vmatpush.msra.mxu0 0.0
      %7098 = vmatpush.msra.mxu0 0.0
      %7099 = vmatpush.msra.mxu0 0.0
      %7100 = vmatpush.msra.mxu0 0.0
      %7101 = vmatpush.msra.mxu0 0.0
      %7102 = vmatpush.msra.mxu0 0.0
      %7103 = vmatpush.msra.mxu0 0.0
      %7104 = vmatpush.msra.mxu0 0.0
      %7105 = vmatpush.msra.mxu0 %v7092
      %7106 = vmatpush.msra.mxu0 %v7091
      %7107 = vmatpush.msra.mxu0 %v7090
      %7108 = vmatpush.msra.mxu0 %v7089
      %7109 = vmatmul.f32.gmra.mxu0 %v7066
      %v7110 = vpop.f32.mrf.mxu0
      %v7111 = vadd.f32 0.0, %v7110
      %7112 = vdwg.mxu0
      %s7113 = scalar_lea.vmem %s5, 640
      %v7114 = vld [vmem:[%s7113] sm:$0xff]
      %v7115 = vld [vmem:[%s7113 + $0x8] sm:$0xff]
      %v7116 = vld [vmem:[%s7113 + $0x10] sm:$0xff]
      %v7117 = vld [vmem:[%s7113 + $0x18] sm:$0xff]
      %7118 = vmatpush.msra.mxu0 0.0
      %7119 = vmatpush.msra.mxu0 0.0
      %7120 = vmatpush.msra.mxu0 0.0
      %7121 = vmatpush.msra.mxu0 0.0
      %7122 = vmatpush.msra.mxu0 0.0
      %7123 = vmatpush.msra.mxu0 0.0
      %7124 = vmatpush.msra.mxu0 0.0
      %7125 = vmatpush.msra.mxu0 0.0
      %7126 = vmatpush.msra.mxu0 0.0
      %7127 = vmatpush.msra.mxu0 0.0
      %7128 = vmatpush.msra.mxu0 0.0
      %7129 = vmatpush.msra.mxu0 0.0
      %7130 = vmatpush.msra.mxu0 %v7117
      %7131 = vmatpush.msra.mxu0 %v7116
      %7132 = vmatpush.msra.mxu0 %v7115
      %7133 = vmatpush.msra.mxu0 %v7114
      %7134 = vmatmul.f32.gmra.mxu0 %v7066
      %v7135 = vpop.f32.mrf.mxu0
      %v7136 = vadd.f32 0.0, %v7135
      %7137 = vdwg.mxu0
      %v7139 = vsel %vm6324, %v7086, 0
      %v7142 = vsel %vm6324, %v7111, 0
      %7144 = vmatpush.xpose.msra.mxu0 0.0
      %7145 = vmatpush.xpose.msra.mxu0 0.0
      %7146 = vmatpush.xpose.msra.mxu0 0.0
      %7147 = vmatpush.xpose.msra.mxu0 0.0
      %7148 = vmatpush.xpose.msra.mxu0 0.0
      %7149 = vmatpush.xpose.msra.mxu0 0.0
      %7150 = vmatpush.xpose.msra.mxu0 0.0
      %7151 = vmatpush.xpose.msra.mxu0 0.0
      %7152 = vmatpush.xpose.msra.mxu0 0.0
      %7153 = vmatpush.xpose.msra.mxu0 0.0
      %7154 = vmatpush.xpose.msra.mxu0 0.0
      %7155 = vmatpush.xpose.msra.mxu0 0.0
      %7156 = vmatpush.xpose.msra.mxu0 0.0
      %7157 = vmatpush.xpose.msra.mxu0 0.0
      %7158 = vmatpush.xpose.msra.mxu0 0.0
      %7159 = vmatpush.xpose.msra.mxu0 %v7142
      %7160 = vmatmul.f32.gmra.mxu0 %v7139
      %v7161 = vpop.f32.mrf.mxu0
      %v7162 = vadd.f32 0.0, %v7161
      %7163 = vdwg.mxu0
      %v7164 = vsel %vm6351, %v7162, -inf
      %7165 = vmax.xlane.f32.xlu0 %v7164
      %v7166 = vpop.xlane.xlu0 %7165
      %v7167 = vsub.f32 %v7162, %v7166
      %v7168 = vmul.f32 %v7167, 1.442695
      %v7169 = vpow.pop %v7168
      %v7170 = vsel %vm6351, %v7169, 0.0
      %7171 = vadd.xlane.f32.xlu0 %v7170
      %v7172 = vpop.xlane.xlu0 %7171
      %v7173 = vrcp.pop %v7172
      %v7174 = vmul.f32 %v7169, %v7173
      %v7176 = vsel %vm6363, %v7174, 0
      %v7179 = vsel %vm6367, %v7136, 0
      %7181 = vmatpush.msra.mxu0 0.0
      %7182 = vmatpush.msra.mxu0 0.0
      %7183 = vmatpush.msra.mxu0 0.0
      %7184 = vmatpush.msra.mxu0 0.0
      %7185 = vmatpush.msra.mxu0 0.0
      %7186 = vmatpush.msra.mxu0 0.0
      %7187 = vmatpush.msra.mxu0 0.0
      %7188 = vmatpush.msra.mxu0 0.0
      %7189 = vmatpush.msra.mxu0 0.0
      %7190 = vmatpush.msra.mxu0 0.0
      %7191 = vmatpush.msra.mxu0 0.0
      %7192 = vmatpush.msra.mxu0 0.0
      %7193 = vmatpush.msra.mxu0 0.0
      %7194 = vmatpush.msra.mxu0 0.0
      %7195 = vmatpush.msra.mxu0 0.0
      %7196 = vmatpush.msra.mxu0 %v7179
      %7197 = vmatmul.f32.gmra.mxu0 %v7176
      %v7198 = vpop.f32.mrf.mxu0
      %v7199 = vadd.f32 0.0, %v7198
      %7200 = vdwg.mxu0
      %s7201 = scalar_lea.vmem %s7, 32
      %v7202 = vld [vmem:[%s7201] sm:$0xff]
      %s7203 = scalar_lea.vmem %s5, 416
      %v7204 = vld [vmem:[%s7203] sm:$0xff]
      %v7205 = vld [vmem:[%s7203 + $0x8] sm:$0xff]
      %v7206 = vld [vmem:[%s7203 + $0x10] sm:$0xff]
      %v7207 = vld [vmem:[%s7203 + $0x18] sm:$0xff]
      %s7208 = scalar_lea.vmem %s6, 5
      %v7209 = vld [vmem:[%s7208] sm:$0x1]
      %v7211 = vperm.slane %v7209, 0
      %7213 = vmatpush.msra.mxu0 0.0
      %7214 = vmatpush.msra.mxu0 0.0
      %7215 = vmatpush.msra.mxu0 0.0
      %7216 = vmatpush.msra.mxu0 0.0
      %7217 = vmatpush.msra.mxu0 0.0
      %7218 = vmatpush.msra.mxu0 0.0
      %7219 = vmatpush.msra.mxu0 0.0
      %7220 = vmatpush.msra.mxu0 0.0
      %7221 = vmatpush.msra.mxu0 0.0
      %7222 = vmatpush.msra.mxu0 0.0
      %7223 = vmatpush.msra.mxu0 0.0
      %7224 = vmatpush.msra.mxu0 0.0
      %7225 = vmatpush.msra.mxu0 %v7207
      %7226 = vmatpush.msra.mxu0 %v7206
      %7227 = vmatpush.msra.mxu0 %v7205
      %7228 = vmatpush.msra.mxu0 %v7204
      %7229 = vmatmul.f32.gmra.mxu0 %v7066
      %v7230 = vpop.f32.mrf.mxu0
      %v7231 = vadd.f32 %v7211, %v7230
      %7232 = vdwg.mxu0
      %s7233 = scalar_lea.vmem %s5, 544
      %v7234 = vld [vmem:[%s7233] sm:$0xff]
      %v7235 = vld [vmem:[%s7233 + $0x8] sm:$0xff]
      %v7236 = vld [vmem:[%s7233 + $0x10] sm:$0xff]
      %v7237 = vld [vmem:[%s7233 + $0x18] sm:$0xff]
      %7238 = vmatpush.msra.mxu0 0.0
      %7239 = vmatpush.msra.mxu0 0.0
      %7240 = vmatpush.msra.mxu0 0.0
      %7241 = vmatpush.msra.mxu0 0.0
      %7242 = vmatpush.msra.mxu0 0.0
      %7243 = vmatpush.msra.mxu0 0.0
      %7244 = vmatpush.msra.mxu0 0.0
      %7245 = vmatpush.msra.mxu0 0.0
      %7246 = vmatpush.msra.mxu0 0.0
      %7247 = vmatpush.msra.mxu0 0.0
      %7248 = vmatpush.msra.mxu0 0.0
      %7249 = vmatpush.msra.mxu0 0.0
      %7250 = vmatpush.msra.mxu0 %v7237
      %7251 = vmatpush.msra.mxu0 %v7236
      %7252 = vmatpush.msra.mxu0 %v7235
      %7253 = vmatpush.msra.mxu0 %v7234
      %7254 = vmatmul.f32.gmra.mxu0 %v7066
      %v7255 = vpop.f32.mrf.mxu0
      %v7256 = vadd.f32 0.0, %v7255
      %7257 = vdwg.mxu0
      %s7258 = scalar_lea.vmem %s5, 672
      %v7259 = vld [vmem:[%s7258] sm:$0xff]
      %v7260 = vld [vmem:[%s7258 + $0x8] sm:$0xff]
      %v7261 = vld [vmem:[%s7258 + $0x10] sm:$0xff]
      %v7262 = vld [vmem:[%s7258 + $0x18] sm:$0xff]
      %7263 = vmatpush.msra.mxu0 0.0
      %7264 = vmatpush.msra.mxu0 0.0
      %7265 = vmatpush.msra.mxu0 0.0
      %7266 = vmatpush.msra.mxu0 0.0
      %7267 = vmatpush.msra.mxu0 0.0
      %7268 = vmatpush.msra.mxu0 0.0
      %7269 = vmatpush.msra.mxu0 0.0
      %7270 = vmatpush.msra.mxu0 0.0
      %7271 = vmatpush.msra.mxu0 0.0
      %7272 = vmatpush.msra.mxu0 0.0
      %7273 = vmatpush.msra.mxu0 0.0
      %7274 = vmatpush.msra.mxu0 0.0
      %7275 = vmatpush.msra.mxu0 %v7262
      %7276 = vmatpush.msra.mxu0 %v7261
      %7277 = vmatpush.msra.mxu0 %v7260
      %7278 = vmatpush.msra.mxu0 %v7259
      %7279 = vmatmul.f32.gmra.mxu0 %v7066
      %v7280 = vpop.f32.mrf.mxu0
      %v7281 = vadd.f32 0.0, %v7280
      %7282 = vdwg.mxu0
      %v7284 = vsel %vm6324, %v7231, 0
      %v7287 = vsel %vm6324, %v7256, 0
      %7289 = vmatpush.xpose.msra.mxu0 0.0
      %7290 = vmatpush.xpose.msra.mxu0 0.0
      %7291 = vmatpush.xpose.msra.mxu0 0.0
      %7292 = vmatpush.xpose.msra.mxu0 0.0
      %7293 = vmatpush.xpose.msra.mxu0 0.0
      %7294 = vmatpush.xpose.msra.mxu0 0.0
      %7295 = vmatpush.xpose.msra.mxu0 0.0
      %7296 = vmatpush.xpose.msra.mxu0 0.0
      %7297 = vmatpush.xpose.msra.mxu0 0.0
      %7298 = vmatpush.xpose.msra.mxu0 0.0
      %7299 = vmatpush.xpose.msra.mxu0 0.0
      %7300 = vmatpush.xpose.msra.mxu0 0.0
      %7301 = vmatpush.xpose.msra.mxu0 0.0
      %7302 = vmatpush.xpose.msra.mxu0 0.0
      %7303 = vmatpush.xpose.msra.mxu0 0.0
      %7304 = vmatpush.xpose.msra.mxu0 %v7287
      %7305 = vmatmul.f32.gmra.mxu0 %v7284
      %v7306 = vpop.f32.mrf.mxu0
      %v7307 = vadd.f32 0.0, %v7306
      %7308 = vdwg.mxu0
      %v7309 = vsel %vm6351, %v7307, -inf
      %7310 = vmax.xlane.f32.xlu0 %v7309
      %v7311 = vpop.xlane.xlu0 %7310
      %v7312 = vsub.f32 %v7307, %v7311
      %v7313 = vmul.f32 %v7312, 1.442695
      %v7314 = vpow.pop %v7313
      %v7315 = vsel %vm6351, %v7314, 0.0
      %7316 = vadd.xlane.f32.xlu0 %v7315
      %v7317 = vpop.xlane.xlu0 %7316
      %v7318 = vrcp.pop %v7317
      %v7319 = vmul.f32 %v7314, %v7318
      %v7321 = vsel %vm6363, %v7319, 0
      %v7324 = vsel %vm6367, %v7281, 0
      %7326 = vmatpush.msra.mxu0 0.0
      %7327 = vmatpush.msra.mxu0 0.0
      %7328 = vmatpush.msra.mxu0 0.0
      %7329 = vmatpush.msra.mxu0 0.0
      %7330 = vmatpush.msra.mxu0 0.0
      %7331 = vmatpush.msra.mxu0 0.0
      %7332 = vmatpush.msra.mxu0 0.0
      %7333 = vmatpush.msra.mxu0 0.0
      %7334 = vmatpush.msra.mxu0 0.0
      %7335 = vmatpush.msra.mxu0 0.0
      %7336 = vmatpush.msra.mxu0 0.0
      %7337 = vmatpush.msra.mxu0 0.0
      %7338 = vmatpush.msra.mxu0 0.0
      %7339 = vmatpush.msra.mxu0 0.0
      %7340 = vmatpush.msra.mxu0 0.0
      %7341 = vmatpush.msra.mxu0 %v7324
      %7342 = vmatmul.f32.gmra.mxu0 %v7321
      %v7343 = vpop.f32.mrf.mxu0
      %v7344 = vadd.f32 0.0, %v7343
      %7345 = vdwg.mxu0
      %s7346 = scalar_lea.vmem %s7, 40
      %v7347 = vld [vmem:[%s7346] sm:$0xff]
      %v7349 = vsel %vm6324, %v7344, 0
      %7351 = vmatpush.msra.mxu0 0.0
      %7352 = vmatpush.msra.mxu0 0.0
      %7353 = vmatpush.msra.mxu0 0.0
      %7354 = vmatpush.msra.mxu0 0.0
      %7355 = vmatpush.msra.mxu0 0.0
      %7356 = vmatpush.msra.mxu0 0.0
      %7357 = vmatpush.msra.mxu0 0.0
      %7358 = vmatpush.msra.mxu0 0.0
      %7359 = vmatpush.msra.mxu0 0.0
      %7360 = vmatpush.msra.mxu0 0.0
      %7361 = vmatpush.msra.mxu0 0.0
      %7362 = vmatpush.msra.mxu0 0.0
      %7363 = vmatpush.msra.mxu0 0.0
      %7364 = vmatpush.msra.mxu0 0.0
      %7365 = vmatpush.msra.mxu0 0.0
      %7366 = vmatpush.msra.mxu0 %v7347
      %7367 = vmatmul.f32.gmra.mxu0 %v7349
      %v7368 = vpop.f32.mrf.mxu0
      %v7369 = vadd.f32 0.0, %v7368
      %7370 = vdwg.mxu0
      %v7372 = vsel %vm6324, %v7199, 0
      %7374 = vmatpush.msra.mxu0 0.0
      %7375 = vmatpush.msra.mxu0 0.0
      %7376 = vmatpush.msra.mxu0 0.0
      %7377 = vmatpush.msra.mxu0 0.0
      %7378 = vmatpush.msra.mxu0 0.0
      %7379 = vmatpush.msra.mxu0 0.0
      %7380 = vmatpush.msra.mxu0 0.0
      %7381 = vmatpush.msra.mxu0 0.0
      %7382 = vmatpush.msra.mxu0 0.0
      %7383 = vmatpush.msra.mxu0 0.0
      %7384 = vmatpush.msra.mxu0 0.0
      %7385 = vmatpush.msra.mxu0 0.0
      %7386 = vmatpush.msra.mxu0 0.0
      %7387 = vmatpush.msra.mxu0 0.0
      %7388 = vmatpush.msra.mxu0 0.0
      %7389 = vmatpush.msra.mxu0 %v7202
      %7390 = vmatmul.f32.gmra.mxu0 %v7372
      %v7391 = vpop.f32.mrf.mxu0
      %v7392 = vadd.f32 %v7369, %v7391
      %7393 = vdwg.mxu0
      %s7394 = scalar_lea.vmem %s5, 448
      %v7395 = vld [vmem:[%s7394] sm:$0xff]
      %v7396 = vld [vmem:[%s7394 + $0x8] sm:$0xff]
      %v7397 = vld [vmem:[%s7394 + $0x10] sm:$0xff]
      %v7398 = vld [vmem:[%s7394 + $0x18] sm:$0xff]
      %s7399 = scalar_lea.vmem %s6, 6
      %v7400 = vld [vmem:[%s7399] sm:$0x1]
      %v7402 = vperm.slane %v7400, 0
      %7404 = vmatpush.msra.mxu0 0.0
      %7405 = vmatpush.msra.mxu0 0.0
      %7406 = vmatpush.msra.mxu0 0.0
      %7407 = vmatpush.msra.mxu0 0.0
      %7408 = vmatpush.msra.mxu0 0.0
      %7409 = vmatpush.msra.mxu0 0.0
      %7410 = vmatpush.msra.mxu0 0.0
      %7411 = vmatpush.msra.mxu0 0.0
      %7412 = vmatpush.msra.mxu0 0.0
      %7413 = vmatpush.msra.mxu0 0.0
      %7414 = vmatpush.msra.mxu0 0.0
      %7415 = vmatpush.msra.mxu0 0.0
      %7416 = vmatpush.msra.mxu0 %v7398
      %7417 = vmatpush.msra.mxu0 %v7397
      %7418 = vmatpush.msra.mxu0 %v7396
      %7419 = vmatpush.msra.mxu0 %v7395
      %7420 = vmatmul.f32.gmra.mxu0 %v7066
      %v7421 = vpop.f32.mrf.mxu0
      %v7422 = vadd.f32 %v7402, %v7421
      %7423 = vdwg.mxu0
      %s7424 = scalar_lea.vmem %s5, 576
      %v7425 = vld [vmem:[%s7424] sm:$0xff]
      %v7426 = vld [vmem:[%s7424 + $0x8] sm:$0xff]
      %v7427 = vld [vmem:[%s7424 + $0x10] sm:$0xff]
      %v7428 = vld [vmem:[%s7424 + $0x18] sm:$0xff]
      %7429 = vmatpush.msra.mxu0 0.0
      %7430 = vmatpush.msra.mxu0 0.0
      %7431 = vmatpush.msra.mxu0 0.0
      %7432 = vmatpush.msra.mxu0 0.0
      %7433 = vmatpush.msra.mxu0 0.0
      %7434 = vmatpush.msra.mxu0 0.0
      %7435 = vmatpush.msra.mxu0 0.0
      %7436 = vmatpush.msra.mxu0 0.0
      %7437 = vmatpush.msra.mxu0 0.0
      %7438 = vmatpush.msra.mxu0 0.0
      %7439 = vmatpush.msra.mxu0 0.0
      %7440 = vmatpush.msra.mxu0 0.0
      %7441 = vmatpush.msra.mxu0 %v7428
      %7442 = vmatpush.msra.mxu0 %v7427
      %7443 = vmatpush.msra.mxu0 %v7426
      %7444 = vmatpush.msra.mxu0 %v7425
      %7445 = vmatmul.f32.gmra.mxu0 %v7066
      %v7446 = vpop.f32.mrf.mxu0
      %v7447 = vadd.f32 0.0, %v7446
      %7448 = vdwg.mxu0
      %s7449 = scalar_lea.vmem %s5, 704
      %v7450 = vld [vmem:[%s7449] sm:$0xff]
      %v7451 = vld [vmem:[%s7449 + $0x8] sm:$0xff]
      %v7452 = vld [vmem:[%s7449 + $0x10] sm:$0xff]
      %v7453 = vld [vmem:[%s7449 + $0x18] sm:$0xff]
      %7454 = vmatpush.msra.mxu0 0.0
      %7455 = vmatpush.msra.mxu0 0.0
      %7456 = vmatpush.msra.mxu0 0.0
      %7457 = vmatpush.msra.mxu0 0.0
      %7458 = vmatpush.msra.mxu0 0.0
      %7459 = vmatpush.msra.mxu0 0.0
      %7460 = vmatpush.msra.mxu0 0.0
      %7461 = vmatpush.msra.mxu0 0.0
      %7462 = vmatpush.msra.mxu0 0.0
      %7463 = vmatpush.msra.mxu0 0.0
      %7464 = vmatpush.msra.mxu0 0.0
      %7465 = vmatpush.msra.mxu0 0.0
      %7466 = vmatpush.msra.mxu0 %v7453
      %7467 = vmatpush.msra.mxu0 %v7452
      %7468 = vmatpush.msra.mxu0 %v7451
      %7469 = vmatpush.msra.mxu0 %v7450
      %7470 = vmatmul.f32.gmra.mxu0 %v7066
      %v7471 = vpop.f32.mrf.mxu0
      %v7472 = vadd.f32 0.0, %v7471
      %7473 = vdwg.mxu0
      %v7475 = vsel %vm6324, %v7422, 0
      %v7478 = vsel %vm6324, %v7447, 0
      %7480 = vmatpush.xpose.msra.mxu0 0.0
      %7481 = vmatpush.xpose.msra.mxu0 0.0
      %7482 = vmatpush.xpose.msra.mxu0 0.0
      %7483 = vmatpush.xpose.msra.mxu0 0.0
      %7484 = vmatpush.xpose.msra.mxu0 0.0
      %7485 = vmatpush.xpose.msra.mxu0 0.0
      %7486 = vmatpush.xpose.msra.mxu0 0.0
      %7487 = vmatpush.xpose.msra.mxu0 0.0
      %7488 = vmatpush.xpose.msra.mxu0 0.0
      %7489 = vmatpush.xpose.msra.mxu0 0.0
      %7490 = vmatpush.xpose.msra.mxu0 0.0
      %7491 = vmatpush.xpose.msra.mxu0 0.0
      %7492 = vmatpush.xpose.msra.mxu0 0.0
      %7493 = vmatpush.xpose.msra.mxu0 0.0
      %7494 = vmatpush.xpose.msra.mxu0 0.0
      %7495 = vmatpush.xpose.msra.mxu0 %v7478
      %7496 = vmatmul.f32.gmra.mxu0 %v7475
      %v7497 = vpop.f32.mrf.mxu0
      %v7498 = vadd.f32 0.0, %v7497
      %7499 = vdwg.mxu0
      %v7500 = vsel %vm6351, %v7498, -inf
      %7501 = vmax.xlane.f32.xlu0 %v7500
      %v7502 = vpop.xlane.xlu0 %7501
      %v7503 = vsub.f32 %v7498, %v7502
      %v7504 = vmul.f32 %v7503, 1.442695
      %v7505 = vpow.pop %v7504
      %v7506 = vsel %vm6351, %v7505, 0.0
      %7507 = vadd.xlane.f32.xlu0 %v7506
      %v7508 = vpop.xlane.xlu0 %7507
      %v7509 = vrcp.pop %v7508
      %v7510 = vmul.f32 %v7505, %v7509
      %v7512 = vsel %vm6363, %v7510, 0
      %v7515 = vsel %vm6367, %v7472, 0
      %7517 = vmatpush.msra.mxu0 0.0
      %7518 = vmatpush.msra.mxu0 0.0
      %7519 = vmatpush.msra.mxu0 0.0
      %7520 = vmatpush.msra.mxu0 0.0
      %7521 = vmatpush.msra.mxu0 0.0
      %7522 = vmatpush.msra.mxu0 0.0
      %7523 = vmatpush.msra.mxu0 0.0
      %7524 = vmatpush.msra.mxu0 0.0
      %7525 = vmatpush.msra.mxu0 0.0
      %7526 = vmatpush.msra.mxu0 0.0
      %7527 = vmatpush.msra.mxu0 0.0
      %7528 = vmatpush.msra.mxu0 0.0
      %7529 = vmatpush.msra.mxu0 0.0
      %7530 = vmatpush.msra.mxu0 0.0
      %7531 = vmatpush.msra.mxu0 0.0
      %7532 = vmatpush.msra.mxu0 %v7515
      %7533 = vmatmul.f32.gmra.mxu0 %v7512
      %v7534 = vpop.f32.mrf.mxu0
      %v7535 = vadd.f32 0.0, %v7534
      %7536 = vdwg.mxu0
      %s7537 = scalar_lea.vmem %s7, 48
      %v7538 = vld [vmem:[%s7537] sm:$0xff]
      %v7540 = vsel %vm6324, %v7535, 0
      %7542 = vmatpush.msra.mxu0 0.0
      %7543 = vmatpush.msra.mxu0 0.0
      %7544 = vmatpush.msra.mxu0 0.0
      %7545 = vmatpush.msra.mxu0 0.0
      %7546 = vmatpush.msra.mxu0 0.0
      %7547 = vmatpush.msra.mxu0 0.0
      %7548 = vmatpush.msra.mxu0 0.0
      %7549 = vmatpush.msra.mxu0 0.0
      %7550 = vmatpush.msra.mxu0 0.0
      %7551 = vmatpush.msra.mxu0 0.0
      %7552 = vmatpush.msra.mxu0 0.0
      %7553 = vmatpush.msra.mxu0 0.0
      %7554 = vmatpush.msra.mxu0 0.0
      %7555 = vmatpush.msra.mxu0 0.0
      %7556 = vmatpush.msra.mxu0 0.0
      %7557 = vmatpush.msra.mxu0 %v7538
      %7558 = vmatmul.f32.gmra.mxu0 %v7540
      %v7559 = vpop.f32.mrf.mxu0
      %v7560 = vadd.f32 0.0, %v7559
      %7561 = vdwg.mxu0
      %v7562 = vadd.f32 %v7392, %v7560
      %s7563 = scalar_lea.vmem %s5, 480
      %v7564 = vld [vmem:[%s7563] sm:$0xff]
      %v7565 = vld [vmem:[%s7563 + $0x8] sm:$0xff]
      %v7566 = vld [vmem:[%s7563 + $0x10] sm:$0xff]
      %v7567 = vld [vmem:[%s7563 + $0x18] sm:$0xff]
      %s7568 = scalar_lea.vmem %s6, 7
      %v7569 = vld [vmem:[%s7568] sm:$0x1]
      %v7571 = vperm.slane %v7569, 0
      %7573 = vmatpush.msra.mxu0 0.0
      %7574 = vmatpush.msra.mxu0 0.0
      %7575 = vmatpush.msra.mxu0 0.0
      %7576 = vmatpush.msra.mxu0 0.0
      %7577 = vmatpush.msra.mxu0 0.0
      %7578 = vmatpush.msra.mxu0 0.0
      %7579 = vmatpush.msra.mxu0 0.0
      %7580 = vmatpush.msra.mxu0 0.0
      %7581 = vmatpush.msra.mxu0 0.0
      %7582 = vmatpush.msra.mxu0 0.0
      %7583 = vmatpush.msra.mxu0 0.0
      %7584 = vmatpush.msra.mxu0 0.0
      %7585 = vmatpush.msra.mxu0 %v7567
      %7586 = vmatpush.msra.mxu0 %v7566
      %7587 = vmatpush.msra.mxu0 %v7565
      %7588 = vmatpush.msra.mxu0 %v7564
      %7589 = vmatmul.f32.gmra.mxu0 %v7066
      %v7590 = vpop.f32.mrf.mxu0
      %v7591 = vadd.f32 %v7571, %v7590
      %7592 = vdwg.mxu0
      %s7593 = scalar_lea.vmem %s5, 608
      %v7594 = vld [vmem:[%s7593] sm:$0xff]
      %v7595 = vld [vmem:[%s7593 + $0x8] sm:$0xff]
      %v7596 = vld [vmem:[%s7593 + $0x10] sm:$0xff]
      %v7597 = vld [vmem:[%s7593 + $0x18] sm:$0xff]
      %7598 = vmatpush.msra.mxu0 0.0
      %7599 = vmatpush.msra.mxu0 0.0
      %7600 = vmatpush.msra.mxu0 0.0
      %7601 = vmatpush.msra.mxu0 0.0
      %7602 = vmatpush.msra.mxu0 0.0
      %7603 = vmatpush.msra.mxu0 0.0
      %7604 = vmatpush.msra.mxu0 0.0
      %7605 = vmatpush.msra.mxu0 0.0
      %7606 = vmatpush.msra.mxu0 0.0
      %7607 = vmatpush.msra.mxu0 0.0
      %7608 = vmatpush.msra.mxu0 0.0
      %7609 = vmatpush.msra.mxu0 0.0
      %7610 = vmatpush.msra.mxu0 %v7597
      %7611 = vmatpush.msra.mxu0 %v7596
      %7612 = vmatpush.msra.mxu0 %v7595
      %7613 = vmatpush.msra.mxu0 %v7594
      %7614 = vmatmul.f32.gmra.mxu0 %v7066
      %v7615 = vpop.f32.mrf.mxu0
      %v7616 = vadd.f32 0.0, %v7615
      %7617 = vdwg.mxu0
      %s7618 = scalar_lea.vmem %s5, 736
      %v7619 = vld [vmem:[%s7618] sm:$0xff]
      %v7620 = vld [vmem:[%s7618 + $0x8] sm:$0xff]
      %v7621 = vld [vmem:[%s7618 + $0x10] sm:$0xff]
      %v7622 = vld [vmem:[%s7618 + $0x18] sm:$0xff]
      %7623 = vmatpush.msra.mxu0 0.0
      %7624 = vmatpush.msra.mxu0 0.0
      %7625 = vmatpush.msra.mxu0 0.0
      %7626 = vmatpush.msra.mxu0 0.0
      %7627 = vmatpush.msra.mxu0 0.0
      %7628 = vmatpush.msra.mxu0 0.0
      %7629 = vmatpush.msra.mxu0 0.0
      %7630 = vmatpush.msra.mxu0 0.0
      %7631 = vmatpush.msra.mxu0 0.0
      %7632 = vmatpush.msra.mxu0 0.0
      %7633 = vmatpush.msra.mxu0 0.0
      %7634 = vmatpush.msra.mxu0 0.0
      %7635 = vmatpush.msra.mxu0 %v7622
      %7636 = vmatpush.msra.mxu0 %v7621
      %7637 = vmatpush.msra.mxu0 %v7620
      %7638 = vmatpush.msra.mxu0 %v7619
      %7639 = vmatmul.f32.gmra.mxu0 %v7066
      %v7640 = vpop.f32.mrf.mxu0
      %v7641 = vadd.f32 0.0, %v7640
      %7642 = vdwg.mxu0
      %v7644 = vsel %vm6324, %v7591, 0
      %v7647 = vsel %vm6324, %v7616, 0
      %7649 = vmatpush.xpose.msra.mxu0 0.0
      %7650 = vmatpush.xpose.msra.mxu0 0.0
      %7651 = vmatpush.xpose.msra.mxu0 0.0
      %7652 = vmatpush.xpose.msra.mxu0 0.0
      %7653 = vmatpush.xpose.msra.mxu0 0.0
      %7654 = vmatpush.xpose.msra.mxu0 0.0
      %7655 = vmatpush.xpose.msra.mxu0 0.0
      %7656 = vmatpush.xpose.msra.mxu0 0.0
      %7657 = vmatpush.xpose.msra.mxu0 0.0
      %7658 = vmatpush.xpose.msra.mxu0 0.0
      %7659 = vmatpush.xpose.msra.mxu0 0.0
      %7660 = vmatpush.xpose.msra.mxu0 0.0
      %7661 = vmatpush.xpose.msra.mxu0 0.0
      %7662 = vmatpush.xpose.msra.mxu0 0.0
      %7663 = vmatpush.xpose.msra.mxu0 0.0
      %7664 = vmatpush.xpose.msra.mxu0 %v7647
      %7665 = vmatmul.f32.gmra.mxu0 %v7644
      %v7666 = vpop.f32.mrf.mxu0
      %v7667 = vadd.f32 0.0, %v7666
      %7668 = vdwg.mxu0
      %v7669 = vsel %vm6351, %v7667, -inf
      %7670 = vmax.xlane.f32.xlu0 %v7669
      %v7671 = vpop.xlane.xlu0 %7670
      %v7672 = vsub.f32 %v7667, %v7671
      %v7673 = vmul.f32 %v7672, 1.442695
      %v7674 = vpow.pop %v7673
      %v7675 = vsel %vm6351, %v7674, 0.0
      %7676 = vadd.xlane.f32.xlu0 %v7675
      %v7677 = vpop.xlane.xlu0 %7676
      %v7678 = vrcp.pop %v7677
      %v7679 = vmul.f32 %v7674, %v7678
      %v7681 = vsel %vm6363, %v7679, 0
      %v7684 = vsel %vm6367, %v7641, 0
      %7686 = vmatpush.msra.mxu0 0.0
      %7687 = vmatpush.msra.mxu0 0.0
      %7688 = vmatpush.msra.mxu0 0.0
      %7689 = vmatpush.msra.mxu0 0.0
      %7690 = vmatpush.msra.mxu0 0.0
      %7691 = vmatpush.msra.mxu0 0.0
      %7692 = vmatpush.msra.mxu0 0.0
      %7693 = vmatpush.msra.mxu0 0.0
      %7694 = vmatpush.msra.mxu0 0.0
      %7695 = vmatpush.msra.mxu0 0.0
      %7696 = vmatpush.msra.mxu0 0.0
      %7697 = vmatpush.msra.mxu0 0.0
      %7698 = vmatpush.msra.mxu0 0.0
      %7699 = vmatpush.msra.mxu0 0.0
      %7700 = vmatpush.msra.mxu0 0.0
      %7701 = vmatpush.msra.mxu0 %v7684
      %7702 = vmatmul.f32.gmra.mxu0 %v7681
      %v7703 = vpop.f32.mrf.mxu0
      %v7704 = vadd.f32 0.0, %v7703
      %7705 = vdwg.mxu0
      %s7706 = scalar_lea.vmem %s7, 56
      %v7707 = vld [vmem:[%s7706] sm:$0xff]
      %v7709 = vsel %vm6324, %v7704, 0
      %7711 = vmatpush.msra.mxu0 0.0
      %7712 = vmatpush.msra.mxu0 0.0
      %7713 = vmatpush.msra.mxu0 0.0
      %7714 = vmatpush.msra.mxu0 0.0
      %7715 = vmatpush.msra.mxu0 0.0
      %7716 = vmatpush.msra.mxu0 0.0
      %7717 = vmatpush.msra.mxu0 0.0
      %7718 = vmatpush.msra.mxu0 0.0
      %7719 = vmatpush.msra.mxu0 0.0
      %7720 = vmatpush.msra.mxu0 0.0
      %7721 = vmatpush.msra.mxu0 0.0
      %7722 = vmatpush.msra.mxu0 0.0
      %7723 = vmatpush.msra.mxu0 0.0
      %7724 = vmatpush.msra.mxu0 0.0
      %7725 = vmatpush.msra.mxu0 0.0
      %7726 = vmatpush.msra.mxu0 %v7707
      %7727 = vmatmul.f32.gmra.mxu0 %v7709
      %v7728 = vpop.f32.mrf.mxu0
      %v7729 = vadd.f32 0.0, %v7728
      %7730 = vdwg.mxu0
      %v7731 = vadd.f32 %v7562, %v7729
      %v7732 = vadd.f32 %v7026, %v7731
      %v7733 = vld [vmem:[%s11 + $0xc] sm:$0x1]
      %v7734 = vperm.slane %v7733, 0
      %v7735 = vadd.f32 %v7732, %v7734
      %v7736 = vld [vmem:[%s11 + $0xd] sm:$0x1]
      %v7737 = vld [vmem:[%s11 + $0xe] sm:$0x1]
      %v7738 = vsel %vm5940, %v7735, 0.0
      %7739 = vadd.xlane.f32.xlu0 %v7738
      %v7740 = vpop.xlane.xlu0 %7739
      %v7741 = vmul.f32 %v7740, %v1319
      %v7742 = vsub.f32 %v7735, %v7741
      %v7743 = vmul.f32 %v7742, %v7742
      %v7744 = vsel %vm5940, %v7743, 0.0
      %7745 = vadd.xlane.f32.xlu0 %v7744
      %v7746 = vpop.xlane.xlu0 %7745
      %v7747 = vmul.f32 %v7746, %v1319
      %v7748 = vadd.f32 %v7747, 1e-05
      %v7749 = vrsqrt.pop %v7748
      %v7750 = vmul.f32 %v7749, %v7748
      %v7751 = vmul.f32 %v7750, %v7749
      %v7752 = vmul.f32 0.5, %v7751
      %v7753 = vsub.f32 1.5, %v7752
      %v7754 = vmul.f32 %v7749, %v7753
      %vm7755 = vweird.f32 %v7748
      %vm7756 = vweird.f32 %v7749
      %vm7757 = vmor %vm7755, %vm7756
      %v7758 = vsel %vm7757, %v7749, %v7754
      %v7759 = vmul.f32 %v7742, %v7758
      %v7760 = vperm.slane %v7736, 0
      %v7761 = vmul.f32 %v7759, %v7760
      %v7762 = vperm.slane %v7737, 0
      %v7763 = vadd.f32 %v7761, %v7762
      %s7764 = scalar_lea.vmem %s8, 32
      %v7765 = vld [vmem:[%s7764] sm:$0xff]
      %v7766 = vld [vmem:[%s7764 + $0x8] sm:$0xff]
      %v7767 = vld [vmem:[%s7764 + $0x10] sm:$0xff]
      %v7768 = vld [vmem:[%s7764 + $0x18] sm:$0xff]
      %s7769 = scalar_lea.vmem %s9, 1
      %v7770 = vld [vmem:[%s7769] sm:$0x1]
      %v7772 = vperm.slane %v7770, 0
      %v7775 = vsel %vm1159, %v7763, 0
      %7777 = vmatpush.msra.mxu0 0.0
      %7778 = vmatpush.msra.mxu0 0.0
      %7779 = vmatpush.msra.mxu0 0.0
      %7780 = vmatpush.msra.mxu0 0.0
      %7781 = vmatpush.msra.mxu0 0.0
      %7782 = vmatpush.msra.mxu0 0.0
      %7783 = vmatpush.msra.mxu0 0.0
      %7784 = vmatpush.msra.mxu0 0.0
      %7785 = vmatpush.msra.mxu0 0.0
      %7786 = vmatpush.msra.mxu0 0.0
      %7787 = vmatpush.msra.mxu0 0.0
      %7788 = vmatpush.msra.mxu0 0.0
      %7789 = vmatpush.msra.mxu0 %v7768
      %7790 = vmatpush.msra.mxu0 %v7767
      %7791 = vmatpush.msra.mxu0 %v7766
      %7792 = vmatpush.msra.mxu0 %v7765
      %7793 = vmatmul.f32.gmra.mxu0 %v7775
      %v7794 = vpop.f32.mrf.mxu0
      %v7795 = vadd.f32 %v7772, %v7794
      %7796 = vdwg.mxu0
      %v7797 = vmul.f32 %v7795, 0.5
      %v7798 = vmul.f32 %v7795, 0.044715
      %v7799 = vmul.f32 %v7798, %v7795
      %v7800 = vmul.f32 %v7799, %v7795
      %v7801 = vadd.f32 %v7795, %v7800
      %v7802 = vmul.f32 %v7801, 0.7978846
      %v7803 = vtanh.pop %v7802
      %v7804 = vadd.f32 %v7803, 1.0
      %v7805 = vmul.f32 %v7797, %v7804
      %s7806 = scalar_lea.vmem %s10, 64
      %v7807 = vld [vmem:[%s7806] sm:$0xff]
      %v7808 = vld [vmem:[%s7806 + $0x8] sm:$0xff]
      %v7809 = vld [vmem:[%s7806 + $0x10] sm:$0xff]
      %v7810 = vld [vmem:[%s7806 + $0x18] sm:$0xff]
      %v7811 = vld [vmem:[%s7806 + $0x20] sm:$0xff]
      %v7812 = vld [vmem:[%s7806 + $0x28] sm:$0xff]
      %v7813 = vld [vmem:[%s7806 + $0x30] sm:$0xff]
      %v7814 = vld [vmem:[%s7806 + $0x38] sm:$0xff]
      %v7815 = vld [vmem:[%s11 + $0xf] sm:$0x1]
      %v7816 = vperm.slane %v7815, 0
      %v7818 = vsel %vm3292, %v7805, 0
      %7820 = vmatpush.msra.mxu0 0.0
      %7821 = vmatpush.msra.mxu0 0.0
      %7822 = vmatpush.msra.mxu0 0.0
      %7823 = vmatpush.msra.mxu0 0.0
      %7824 = vmatpush.msra.mxu0 0.0
      %7825 = vmatpush.msra.mxu0 0.0
      %7826 = vmatpush.msra.mxu0 0.0
      %7827 = vmatpush.msra.mxu0 0.0
      %7828 = vmatpush.msra.mxu0 %v7814
      %7829 = vmatpush.msra.mxu0 %v7813
      %7830 = vmatpush.msra.mxu0 %v7812
      %7831 = vmatpush.msra.mxu0 %v7811
      %7832 = vmatpush.msra.mxu0 %v7810
      %7833 = vmatpush.msra.mxu0 %v7809
      %7834 = vmatpush.msra.mxu0 %v7808
      %7835 = vmatpush.msra.mxu0 %v7807
      %7836 = vmatmul.f32.gmra.mxu0 %v7818
      %v7837 = vpop.f32.mrf.mxu0
      %v7838 = vadd.f32 %v7816, %v7837
      %7839 = vdwg.mxu0
      %v7840 = vadd.f32 %v7735, %v7838
      %v7841 = vld [vmem:[%s11 + $0x10] sm:$0x1]
      %v7842 = vld [vmem:[%s11 + $0x11] sm:$0x1]
      %v7843 = vsel %vm5940, %v7840, 0.0
      %7844 = vadd.xlane.f32.xlu0 %v7843
      %v7845 = vpop.xlane.xlu0 %7844
      %v7846 = vmul.f32 %v7845, %v1319
      %v7847 = vsub.f32 %v7840, %v7846
      %v7848 = vmul.f32 %v7847, %v7847
      %v7849 = vsel %vm5940, %v7848, 0.0
      %7850 = vadd.xlane.f32.xlu0 %v7849
      %v7851 = vpop.xlane.xlu0 %7850
      %v7852 = vmul.f32 %v7851, %v1319
      %v7853 = vadd.f32 %v7852, 1e-05
      %v7854 = vrsqrt.pop %v7853
      %v7855 = vmul.f32 %v7854, %v7853
      %v7856 = vmul.f32 %v7855, %v7854
      %v7857 = vmul.f32 0.5, %v7856
      %v7858 = vsub.f32 1.5, %v7857
      %v7859 = vmul.f32 %v7854, %v7858
      %vm7860 = vweird.f32 %v7853
      %vm7861 = vweird.f32 %v7854
      %vm7862 = vmor %vm7860, %vm7861
      %v7863 = vsel %vm7862, %v7854, %v7859
      %v7864 = vmul.f32 %v7847, %v7863
      %v7865 = vperm.slane %v7841, 0
      %v7866 = vmul.f32 %v7864, %v7865
      %v7867 = vperm.slane %v7842, 0
      %v7868 = vadd.f32 %v7866, %v7867
      %7869 = vst.msk [vmem:[%s411] sm:$0x3f] %vm5940, %v7868
      %p7870 = scmp.lt.s32.totalorder %s23, 1
      %s7871 = scalar_select %p7870, %s23, 1
      %s7872 = smul.addr %s7871, 8
      %s7873 = scalar_lea.vmem %s12, %s7872
      // Predicated region
      $region69: #{ssl_forward.1} parent=67 // pred_check
        %p7874 = pneg %p298
      $region70: #{ssl_forward.1} parent=67 // pred_check_branch
        %7876 = sbr.rel (%p7874) target = $region72
      $region71: #{ssl_forward.1} parent=67 // pred_region
        _
      $region72: #{ssl_forward.1} parent=67 // pred_fallthru
        _
    $region68: #{ssl_forward.1} parent=5 // pred_fallthru
      _
    %p7877 = scmp.le.s32.totalorder 2, %s18
    // Predicated region
    $region73: #{ssl_forward.1} parent=5 // pred_check
      %p7878 = pneg %p7877
    $region74: #{ssl_forward.1} parent=5 // pred_check_branch
      %7880 = sbr.rel (%p7878) target = $region76
    $region75: #{ssl_forward.1} parent=5 // pred_region
      %s7881 = ssub.s32 %s18, 2
      // Predicated region
      $region77: #{ssl_forward.1} parent=75 // pred_check
        %p7882 = pneg %p304
      $region78: #{ssl_forward.1} parent=75 // pred_check_branch
        %7884 = sbr.rel (%p7882) target = $region80
      $region79: #{ssl_forward.1} parent=75 // pred_region
        %p7885 = scmp.lt.s32.totalorder %s24, 1
        %s7886 = scalar_select %p7885, %s24, 1
        %s7887 = smul.addr %s7886, 8
        %s7888 = scalar_lea.vmem %s12, %s7887
      $region80: #{ssl_forward.1} parent=75 // pred_fallthru
        _
    $region76: #{ssl_forward.1} parent=5 // pred_fallthru
      _
  $region6: #{ssl_forward.1} parent=0 // loop_footer
    %s22 = sadd.s32 1, %s18
  $region7: #{ssl_forward.1} parent=0 // loop_footer_branch
    %17 = sbr.rel target = $region3
  $region8: #{ssl_forward.1} parent=0 // loop_exit
    _

</llo_original>
